<compile_context>
chip_gen: v5e
topology: v5e:2x2
jax: 0.10.0
libtpu: 0.0.40
codegen_flags: <defaults>
</compile_context>

<pallas_src>
import functools

import jax
import jax.numpy as jnp
from jax.experimental import pallas as pl
from jax.experimental.pallas import tpu as pltpu


# ---------------------------------------------------------------------------
# Kernel: full PoseRefineNet forward (feat + pooled head) in one call.
# ---------------------------------------------------------------------------
def _pose_refine_kernel(inp_ref, pool_ref,
                        w1_ref, b1_ref, w2_ref, b2_ref,
                        w5a_ref, w5b_ref, b5_ref, w6_ref, b6_ref,
                        wh1_ref, bh1_ref,
                        wh2r_ref, wh2t_ref, bh2r_ref, bh2t_ref,
                        wh3_ref, bh3_ref,
                        out_ref):
    f32 = jnp.float32
    bf16 = jnp.bfloat16

    inp = inp_ref[...]                                                  # (P, 128) bf16

    # pointfeat_1 = cat(relu(conv1(x)), relu(e_conv1(emb)))   [block-diag fused]
    pf1 = jnp.maximum(
        jnp.dot(inp, w1_ref[...], preferred_element_type=f32) + b1_ref[...], 0.0)
    pf1_b = pf1.astype(bf16)

    # pointfeat_2 = cat(relu(conv2(x1)), relu(e_conv2(e1)))   [block-diag fused]
    pf2 = jnp.maximum(
        jnp.dot(pf1_b, w2_ref[...], preferred_element_type=f32) + b2_ref[...], 0.0)

    # conv5 over pointfeat_3 = cat(pf1, pf2), without materializing the concat:
    # x5 = relu(pf1 @ w5[:, :128].T + pf2 @ w5[:, 128:].T + b5)
    x5 = jnp.dot(pf1_b, w5a_ref[...], preferred_element_type=f32)
    x5 = x5 + jnp.dot(pf2.astype(bf16), w5b_ref[...], preferred_element_type=f32)
    x5 = jnp.maximum(x5 + b5_ref[...], 0.0)

    # conv6
    x6 = jnp.maximum(
        jnp.dot(x5.astype(bf16), w6_ref[...], preferred_element_type=f32)
        + b6_ref[...], 0.0)                                             # (P, 1024)

    # AvgPool1d(num_points), per batch element, via a (B, P) bf16 pooling matrix.
    ap = jnp.dot(pool_ref[...], x6.astype(bf16),
                 preferred_element_type=f32)                            # (B, 1024)

    # Head layer 1: conv1_r / conv1_t share the input -> row-stacked weights.
    rt1 = jnp.maximum(
        jnp.dot(ap.astype(bf16), wh1_ref[...], preferred_element_type=f32)
        + bh1_ref[...], 0.0)                                            # (B, 1024)
    rt1_b = rt1.astype(bf16)

    # Head layer 2: conv2_r / conv2_t as two dense matmuls (no block-diag zeros).
    rt2_r = jnp.dot(rt1_b[:, :512], wh2r_ref[...],
                    preferred_element_type=f32) + bh2r_ref[...]         # (B, 128)
    rt2_t = jnp.dot(rt1_b[:, 512:], wh2t_ref[...],
                    preferred_element_type=f32) + bh2t_ref[...]         # (B, 128)
    rt2 = jnp.maximum(jnp.concatenate([rt2_r, rt2_t], axis=-1), 0.0)    # (B, 256)

    # Head layer 3: conv3_r / conv3_t, block-diagonal, no ReLU.
    out_ref[...] = (
        jnp.dot(rt2.astype(bf16), wh3_ref[...], preferred_element_type=f32)
        + bh3_ref[...])


# ---------------------------------------------------------------------------
# Weight packing (run ONCE, eagerly, outside the jitted forward).
# ---------------------------------------------------------------------------
def _blockdiag(a, b):
    ra, ca = a.shape
    rb, cb = b.shape
    top = jnp.concatenate([a, jnp.zeros((ra, cb), a.dtype)], axis=1)
    bot = jnp.concatenate([jnp.zeros((rb, ca), b.dtype), b], axis=1)
    return jnp.concatenate([top, bot], axis=0)


def pack_params(p, num_obj):
    """Pack / fuse weights for the kernel. Call once; reuse the result."""
    bf16 = jnp.bfloat16

    # Feat layer 1: conv1 (64,3) ⊕ e_conv1 (64,32) -> (128, 35), pad cols to 128.
    w1 = _blockdiag(p["conv1"][0], p["e_conv1"][0])                      # (128, 35)
    w1 = jnp.pad(w1, ((0, 0), (0, 128 - w1.shape[1]))).T.astype(bf16)    # (128, 128)
    b1 = jnp.concatenate([p["conv1"][1], p["e_conv1"][1]])[None, :]

    # Feat layer 2: conv2 (128,64) ⊕ e_conv2 (128,64)  (split point 64 is not
    # lane-tile aligned, so keep this one block-diagonal).
    w2 = _blockdiag(p["conv2"][0], p["e_conv2"][0]).T.astype(bf16)       # (128, 256)
    b2 = jnp.concatenate([p["conv2"][1], p["e_conv2"][1]])[None, :]

    # conv5 split over pointfeat_3 = cat(pointfeat_1, pointfeat_2).
    w5 = p["conv5"][0]                                                   # (512, 384)
    w5a = w5[:, :128].T.astype(bf16)                                     # (128, 512)
    w5b = w5[:, 128:].T.astype(bf16)                                     # (256, 512)
    b5 = p["conv5"][1][None, :]

    w6 = p["conv6"][0].T.astype(bf16)                                    # (512, 1024)
    b6 = p["conv6"][1][None, :]

    # Head layer 1: conv1_r / conv1_t share the input -> row-stack.
    wh1 = jnp.concatenate([p["conv1_r"][0], p["conv1_t"][0]],
                          axis=0).T.astype(bf16)                         # (1024, 1024)
    bh1 = jnp.concatenate([p["conv1_r"][1], p["conv1_t"][1]])[None, :]

    # Head layer 2: dense r / t halves (no block-diag zeros).
    wh2r = p["conv2_r"][0].T.astype(bf16)                                # (512, 128)
    wh2t = p["conv2_t"][0].T.astype(bf16)                                # (512, 128)
    bh2r = p["conv2_r"][1][None, :]
    bh2t = p["conv2_t"][1][None, :]

    # Head layer 3: independent r / t paths -> block-diagonal, bf16, pad to 128 lanes.
    wh3 = _blockdiag(p["conv3_r"][0], p["conv3_t"][0]).T                 # (256, 7*no)
    bh3 = jnp.concatenate([p["conv3_r"][1], p["conv3_t"][1]])[None, :]
    out_cols = 7 * num_obj
    out_pad = max(128, -(-out_cols // 128) * 128)
    wh3 = jnp.pad(wh3, ((0, 0), (0, out_pad - out_cols))).astype(bf16)
    bh3 = jnp.pad(bh3, ((0, 0), (0, out_pad - out_cols)))

    packed = (w1, b1, w2, b2, w5a, w5b, b5, w6, b6,
              wh1, bh1, wh2r, wh2t, bh2r, bh2t, wh3, bh3)
    return packed


def make_pool_matrix(batch, num_points):
    """(B, B*N) AvgPool1d(num_points) pooling matrix, bf16 (1/N exact). Once."""
    pool = jnp.repeat(jnp.eye(batch, dtype=jnp.float32), num_points, axis=1)
    return (pool / num_points).astype(jnp.bfloat16)


# ---------------------------------------------------------------------------
# PoseRefineNet.forward (jitted; takes pre-packed weights + pool matrix)
# ---------------------------------------------------------------------------
@functools.partial(jax.jit, static_argnames=("num_obj",))
def pose_refine_forward(packed, pool, x, emb, obj, *, num_obj):
    """
    packed: tuple from pack_params (computed once, outside jit)
    pool:   (B, B*N) bf16 pooling matrix (computed once, outside jit)
    x:   (B, N, 3)   float32 -- points (PyTorch forward transposes internally)
    emb: (B, 32, N)  float32 -- per-point color embedding
    obj: (B, 1)      int32   -- object index per batch element
    Returns (out_rx, out_tx) = ((1, 4), (1, 3)) -- index_select on batch 0.
    """
    B, N, _ = x.shape
    out_pad = packed[-2].shape[1]   # wh3 lane width (static at trace time)

    # Point-major concatenated input: channels on the lane axis, padded to 128, bf16.
    pts = x.reshape(B * N, 3)
    emb_pm = jnp.transpose(emb, (0, 2, 1)).reshape(B * N, 32)
    inp = jnp.concatenate([pts, emb_pm], axis=-1)                        # (B*N, 35)
    inp = jnp.pad(inp, ((0, 0), (0, 128 - inp.shape[1])))                # (B*N, 128)
    inp = inp.astype(jnp.bfloat16)

    n_in = 2 + len(packed)
    rt3 = pl.pallas_call(
        _pose_refine_kernel,
        out_shape=jax.ShapeDtypeStruct((B, out_pad), jnp.float32),
        in_specs=[pl.BlockSpec(memory_space=pltpu.MemorySpace.VMEM)] * n_in,
        out_specs=pl.BlockSpec(memory_space=pltpu.MemorySpace.VMEM),
        cost_estimate=pl.CostEstimate(
            flops=400_000_000, transcendentals=0, bytes_accessed=4_200_000),
    )(inp, pool, *packed)

    rx = rt3[:, : 4 * num_obj].reshape(B, num_obj, 4)
    tx = rt3[:, 4 * num_obj: 7 * num_obj].reshape(B, num_obj, 3)

    # TODO(synk): torch.index_select over obj is a tiny data-dependent gather; it
    # is left to XLA (jnp.take) rather than scalar-prefetched into the kernel.
    b = 0
    out_rx = jnp.take(rx[b], obj[b], axis=0)
    out_tx = jnp.take(tx[b], obj[b], axis=0)
    return out_rx, out_tx


# ---------------------------------------------------------------------------
# Parameters (deterministic, PyTorch Conv1d/Linear-style uniform init)
# ---------------------------------------------------------------------------
def init_params(key, num_obj):
    def layer(k, cout, cin):
        k1, k2 = jax.random.split(k)
        bound = 1.0 / (cin ** 0.5)
        w = jax.random.uniform(k1, (cout, cin), jnp.float32, -bound, bound)
        b = jax.random.uniform(k2, (cout,), jnp.float32, -bound, bound)
        return w, b

    ks = jax.random.split(key, 12)
    return {
        "conv1":   layer(ks[0], 64, 3),
        "e_conv1": layer(ks[1], 64, 32),
        "conv2":   layer(ks[2], 128, 64),
        "e_conv2": layer(ks[3], 128, 64),
        "conv5":   layer(ks[4], 512, 384),
        "conv6":   layer(ks[5], 1024, 512),
        "conv1_r": layer(ks[6], 512, 1024),
        "conv1_t": layer(ks[7], 512, 1024),
        "conv2_r": layer(ks[8], 128, 512),
        "conv2_t": layer(ks[9], 128, 512),
        "conv3_r": layer(ks[10], num_obj * 4, 128),
        "conv3_t": layer(ks[11], num_obj * 3, 128),
    }


if __name__ == "__main__":
    key = jax.random.PRNGKey(0)
    B, num_points, num_obj = 2, 128, 5

    kp, kx, ke, ko = jax.random.split(key, 4)
    params = init_params(kp, num_obj)
    x = jax.random.normal(kx, (B, num_points, 3), jnp.float32)
    emb = jax.random.normal(ke, (B, 32, num_points), jnp.float32)
    obj = jax.random.randint(ko, (B, 1), 0, num_obj, jnp.int32)

    # Pack weights / pooling matrix ONCE (outside jit); reuse across calls.
    packed = jax.block_until_ready(pack_params(params, num_obj))
    pool = jax.block_until_ready(make_pool_matrix(B, num_points))

    out_rx, out_tx = pose_refine_forward(packed, pool, x, emb, obj,
                                         num_obj=num_obj)
    jax.block_until_ready((out_rx, out_tx))

    assert out_rx.shape == (1, 4)
    assert out_tx.shape == (1, 3)
    print("KERNEL_OK")
</pallas_src>

<mosaic_0001>
module attributes {stable_mosaic.version = 11 : i64} {
  func.func @_pose_refine_kernel(%arg0: memref<256x128xbf16, #tpu.memory_space<vmem>>, %arg1: memref<2x256xbf16, #tpu.memory_space<vmem>>, %arg2: memref<128x128xbf16, #tpu.memory_space<vmem>>, %arg3: memref<1x128xf32, #tpu.memory_space<vmem>>, %arg4: memref<128x256xbf16, #tpu.memory_space<vmem>>, %arg5: memref<1x256xf32, #tpu.memory_space<vmem>>, %arg6: memref<128x512xbf16, #tpu.memory_space<vmem>>, %arg7: memref<256x512xbf16, #tpu.memory_space<vmem>>, %arg8: memref<1x512xf32, #tpu.memory_space<vmem>>, %arg9: memref<512x1024xbf16, #tpu.memory_space<vmem>>, %arg10: memref<1x1024xf32, #tpu.memory_space<vmem>>, %arg11: memref<1024x1024xbf16, #tpu.memory_space<vmem>>, %arg12: memref<1x1024xf32, #tpu.memory_space<vmem>>, %arg13: memref<512x128xbf16, #tpu.memory_space<vmem>>, %arg14: memref<512x128xbf16, #tpu.memory_space<vmem>>, %arg15: memref<1x128xf32, #tpu.memory_space<vmem>>, %arg16: memref<1x128xf32, #tpu.memory_space<vmem>>, %arg17: memref<256x128xbf16, #tpu.memory_space<vmem>>, %arg18: memref<1x128xf32, #tpu.memory_space<vmem>>, %arg19: memref<2x128xf32, #tpu.memory_space<vmem>>) attributes {dimension_semantics = [], scalar_prefetch = 0 : i64, scratch_operands = 0 : i64, tpu.core_type = #tpu.core_type<tc>} {
    %c0 = arith.constant 0 : index
    %c0_0 = arith.constant 0 : index
    %0 = vector.load %arg0[%c0, %c0_0] : memref<256x128xbf16, #tpu.memory_space<vmem>>, vector<256x128xbf16>
    %c0_1 = arith.constant 0 : index
    %c0_2 = arith.constant 0 : index
    %1 = vector.load %arg2[%c0_1, %c0_2] : memref<128x128xbf16, #tpu.memory_space<vmem>>, vector<128x128xbf16>
    %cst = arith.constant dense<0.000000e+00> : vector<256x128xf32>
    %2 = tpu.matmul %0, %1, %cst {dimension_numbers = #tpu.dot_dimension_numbers<[1], [0], [0], [1], [0, 0, 1, 1], [], []>} : vector<256x128xbf16>, vector<128x128xbf16>, vector<256x128xf32> -> vector<256x128xf32>
    %c0_3 = arith.constant 0 : index
    %c0_4 = arith.constant 0 : index
    %3 = vector.load %arg3[%c0_3, %c0_4] : memref<1x128xf32, #tpu.memory_space<vmem>>, vector<1x128xf32>
    %4 = vector.broadcast %3 : vector<1x128xf32> to vector<256x128xf32>
    %5 = arith.addf %2, %4 : vector<256x128xf32>
    %cst_5 = arith.constant 0.000000e+00 : f32
    %6 = vector.broadcast %cst_5 : f32 to vector<256x128xf32>
    %7 = arith.maximumf %5, %6 : vector<256x128xf32>
    %8 = arith.truncf %7 : vector<256x128xf32> to vector<256x128xbf16>
    %c0_6 = arith.constant 0 : index
    %c0_7 = arith.constant 0 : index
    %9 = vector.load %arg4[%c0_6, %c0_7] : memref<128x256xbf16, #tpu.memory_space<vmem>>, vector<128x256xbf16>
    %cst_8 = arith.constant dense<0.000000e+00> : vector<256x256xf32>
    %10 = tpu.matmul %8, %9, %cst_8 {dimension_numbers = #tpu.dot_dimension_numbers<[1], [0], [0], [1], [0, 0, 1, 1], [], []>} : vector<256x128xbf16>, vector<128x256xbf16>, vector<256x256xf32> -> vector<256x256xf32>
    %c0_9 = arith.constant 0 : index
    %c0_10 = arith.constant 0 : index
    %11 = vector.load %arg5[%c0_9, %c0_10] : memref<1x256xf32, #tpu.memory_space<vmem>>, vector<1x256xf32>
    %12 = vector.broadcast %11 : vector<1x256xf32> to vector<256x256xf32>
    %13 = arith.addf %10, %12 : vector<256x256xf32>
    %cst_11 = arith.constant 0.000000e+00 : f32
    %14 = vector.broadcast %cst_11 : f32 to vector<256x256xf32>
    %15 = arith.maximumf %13, %14 : vector<256x256xf32>
    %c0_12 = arith.constant 0 : index
    %c0_13 = arith.constant 0 : index
    %16 = vector.load %arg6[%c0_12, %c0_13] : memref<128x512xbf16, #tpu.memory_space<vmem>>, vector<128x512xbf16>
    %cst_14 = arith.constant dense<0.000000e+00> : vector<256x512xf32>
    %17 = tpu.matmul %8, %16, %cst_14 {dimension_numbers = #tpu.dot_dimension_numbers<[1], [0], [0], [1], [0, 0, 1, 1], [], []>} : vector<256x128xbf16>, vector<128x512xbf16>, vector<256x512xf32> -> vector<256x512xf32>
    %18 = arith.truncf %15 : vector<256x256xf32> to vector<256x256xbf16>
    %c0_15 = arith.constant 0 : index
    %c0_16 = arith.constant 0 : index
    %19 = vector.load %arg7[%c0_15, %c0_16] : memref<256x512xbf16, #tpu.memory_space<vmem>>, vector<256x512xbf16>
    %cst_17 = arith.constant dense<0.000000e+00> : vector<256x512xf32>
    %20 = tpu.matmul %18, %19, %cst_17 {dimension_numbers = #tpu.dot_dimension_numbers<[1], [0], [0], [1], [0, 0, 1, 1], [], []>} : vector<256x256xbf16>, vector<256x512xbf16>, vector<256x512xf32> -> vector<256x512xf32>
    %21 = arith.addf %17, %20 : vector<256x512xf32>
    %c0_18 = arith.constant 0 : index
    %c0_19 = arith.constant 0 : index
    %22 = vector.load %arg8[%c0_18, %c0_19] : memref<1x512xf32, #tpu.memory_space<vmem>>, vector<1x512xf32>
    %23 = vector.broadcast %22 : vector<1x512xf32> to vector<256x512xf32>
    %24 = arith.addf %21, %23 : vector<256x512xf32>
    %cst_20 = arith.constant 0.000000e+00 : f32
    %25 = vector.broadcast %cst_20 : f32 to vector<256x512xf32>
    %26 = arith.maximumf %24, %25 : vector<256x512xf32>
    %27 = arith.truncf %26 : vector<256x512xf32> to vector<256x512xbf16>
    %c0_21 = arith.constant 0 : index
    %c0_22 = arith.constant 0 : index
    %28 = vector.load %arg9[%c0_21, %c0_22] : memref<512x1024xbf16, #tpu.memory_space<vmem>>, vector<512x1024xbf16>
    %cst_23 = arith.constant dense<0.000000e+00> : vector<256x1024xf32>
    %29 = tpu.matmul %27, %28, %cst_23 {dimension_numbers = #tpu.dot_dimension_numbers<[1], [0], [0], [1], [0, 0, 1, 1], [], []>} : vector<256x512xbf16>, vector<512x1024xbf16>, vector<256x1024xf32> -> vector<256x1024xf32>
    %c0_24 = arith.constant 0 : index
    %c0_25 = arith.constant 0 : index
    %30 = vector.load %arg10[%c0_24, %c0_25] : memref<1x1024xf32, #tpu.memory_space<vmem>>, vector<1x1024xf32>
    %31 = vector.broadcast %30 : vector<1x1024xf32> to vector<256x1024xf32>
    %32 = arith.addf %29, %31 : vector<256x1024xf32>
    %cst_26 = arith.constant 0.000000e+00 : f32
    %33 = vector.broadcast %cst_26 : f32 to vector<256x1024xf32>
    %34 = arith.maximumf %32, %33 : vector<256x1024xf32>
    %c0_27 = arith.constant 0 : index
    %c0_28 = arith.constant 0 : index
    %35 = vector.load %arg1[%c0_27, %c0_28] : memref<2x256xbf16, #tpu.memory_space<vmem>>, vector<2x256xbf16>
    %36 = arith.truncf %34 : vector<256x1024xf32> to vector<256x1024xbf16>
    %cst_29 = arith.constant dense<0.000000e+00> : vector<2x1024xf32>
    %37 = tpu.matmul %35, %36, %cst_29 {dimension_numbers = #tpu.dot_dimension_numbers<[1], [0], [0], [1], [0, 0, 1, 1], [], []>} : vector<2x256xbf16>, vector<256x1024xbf16>, vector<2x1024xf32> -> vector<2x1024xf32>
    %38 = arith.truncf %37 : vector<2x1024xf32> to vector<2x1024xbf16>
    %c0_30 = arith.constant 0 : index
    %c0_31 = arith.constant 0 : index
    %39 = vector.load %arg11[%c0_30, %c0_31] : memref<1024x1024xbf16, #tpu.memory_space<vmem>>, vector<1024x1024xbf16>
    %cst_32 = arith.constant dense<0.000000e+00> : vector<2x1024xf32>
    %40 = tpu.matmul %38, %39, %cst_32 {dimension_numbers = #tpu.dot_dimension_numbers<[1], [0], [0], [1], [0, 0, 1, 1], [], []>} : vector<2x1024xbf16>, vector<1024x1024xbf16>, vector<2x1024xf32> -> vector<2x1024xf32>
    %c0_33 = arith.constant 0 : index
    %c0_34 = arith.constant 0 : index
    %41 = vector.load %arg12[%c0_33, %c0_34] : memref<1x1024xf32, #tpu.memory_space<vmem>>, vector<1x1024xf32>
    %42 = vector.broadcast %41 : vector<1x1024xf32> to vector<2x1024xf32>
    %43 = arith.addf %40, %42 : vector<2x1024xf32>
    %cst_35 = arith.constant 0.000000e+00 : f32
    %44 = vector.broadcast %cst_35 : f32 to vector<2x1024xf32>
    %45 = arith.maximumf %43, %44 : vector<2x1024xf32>
    %46 = arith.truncf %45 : vector<2x1024xf32> to vector<2x1024xbf16>
    %47 = vector.extract_strided_slice %46 {offsets = [0, 0], sizes = [2, 512], strides = [1, 1]} : vector<2x1024xbf16> to vector<2x512xbf16>
    %c0_36 = arith.constant 0 : index
    %c0_37 = arith.constant 0 : index
    %48 = vector.load %arg13[%c0_36, %c0_37] : memref<512x128xbf16, #tpu.memory_space<vmem>>, vector<512x128xbf16>
    %cst_38 = arith.constant dense<0.000000e+00> : vector<2x128xf32>
    %49 = tpu.matmul %47, %48, %cst_38 {dimension_numbers = #tpu.dot_dimension_numbers<[1], [0], [0], [1], [0, 0, 1, 1], [], []>} : vector<2x512xbf16>, vector<512x128xbf16>, vector<2x128xf32> -> vector<2x128xf32>
    %c0_39 = arith.constant 0 : index
    %c0_40 = arith.constant 0 : index
    %50 = vector.load %arg15[%c0_39, %c0_40] : memref<1x128xf32, #tpu.memory_space<vmem>>, vector<1x128xf32>
    %51 = vector.broadcast %50 : vector<1x128xf32> to vector<2x128xf32>
    %52 = arith.addf %49, %51 : vector<2x128xf32>
    %53 = vector.extract_strided_slice %46 {offsets = [0, 512], sizes = [2, 512], strides = [1, 1]} : vector<2x1024xbf16> to vector<2x512xbf16>
    %c0_41 = arith.constant 0 : index
    %c0_42 = arith.constant 0 : index
    %54 = vector.load %arg14[%c0_41, %c0_42] : memref<512x128xbf16, #tpu.memory_space<vmem>>, vector<512x128xbf16>
    %cst_43 = arith.constant dense<0.000000e+00> : vector<2x128xf32>
    %55 = tpu.matmul %53, %54, %cst_43 {dimension_numbers = #tpu.dot_dimension_numbers<[1], [0], [0], [1], [0, 0, 1, 1], [], []>} : vector<2x512xbf16>, vector<512x128xbf16>, vector<2x128xf32> -> vector<2x128xf32>
    %c0_44 = arith.constant 0 : index
    %c0_45 = arith.constant 0 : index
    %56 = vector.load %arg16[%c0_44, %c0_45] : memref<1x128xf32, #tpu.memory_space<vmem>>, vector<1x128xf32>
    %57 = vector.broadcast %56 : vector<1x128xf32> to vector<2x128xf32>
    %58 = arith.addf %55, %57 : vector<2x128xf32>
    %59 = tpu.concatenate %52, %58 in 1 : vector<2x128xf32>, vector<2x128xf32> -> vector<2x256xf32>
    %cst_46 = arith.constant 0.000000e+00 : f32
    %60 = vector.broadcast %cst_46 : f32 to vector<2x256xf32>
    %61 = arith.maximumf %59, %60 : vector<2x256xf32>
    %62 = arith.truncf %61 : vector<2x256xf32> to vector<2x256xbf16>
    %c0_47 = arith.constant 0 : index
    %c0_48 = arith.constant 0 : index
    %63 = vector.load %arg17[%c0_47, %c0_48] : memref<256x128xbf16, #tpu.memory_space<vmem>>, vector<256x128xbf16>
    %cst_49 = arith.constant dense<0.000000e+00> : vector<2x128xf32>
    %64 = tpu.matmul %62, %63, %cst_49 {dimension_numbers = #tpu.dot_dimension_numbers<[1], [0], [0], [1], [0, 0, 1, 1], [], []>} : vector<2x256xbf16>, vector<256x128xbf16>, vector<2x128xf32> -> vector<2x128xf32>
    %c0_50 = arith.constant 0 : index
    %c0_51 = arith.constant 0 : index
    %65 = vector.load %arg18[%c0_50, %c0_51] : memref<1x128xf32, #tpu.memory_space<vmem>>, vector<1x128xf32>
    %66 = vector.broadcast %65 : vector<1x128xf32> to vector<2x128xf32>
    %67 = arith.addf %64, %66 : vector<2x128xf32>
    %c0_52 = arith.constant 0 : index
    %c0_53 = arith.constant 0 : index
    %68 = vector.load %arg19[%c0_52, %c0_53] : memref<2x128xf32, #tpu.memory_space<vmem>>, vector<2x128xf32>
    tpu.vector_store %arg19[%c0_52, %c0_53], %67 {strides = array<i32>} : memref<2x128xf32, #tpu.memory_space<vmem>>, vector<2x128xf32>,
    return
  }
}

</mosaic_0001>

<llo_original>
// kernel: squeeze.4
$region0: #{squeeze.4}
  %s0 = inlined_call_operand.vmem [shape: f32[20], index: 0, kind: input, shape index: {}]
  %s1 = inlined_call_operand.vmem [shape: f32[5,4], index: 1, kind: output, shape index: {}]
  $region1: #{squeeze.4} parent=0
    #allocation0 [shape = 'u8[4096]{0}', space=vmem, size = 0x1000, scoped, tag = 'scoped mem for input reshape']
    %s3 = ssub.s32 2, 1
    %v4 = vld [vmem:[%s0] sm:%s3]
    %5 = vst [vmem:[#allocation0] sm:%s3] %v4
    %v6 = vld [vmem:[#allocation0] sm:$0x1]
    %vm7 = vcmask 31744
    %8 = vst.msk [vmem:[%s1] sm:$0x1] %vm7, %v6
    %v9 = vld [vmem:[#allocation0] sm:$0x1]
    %10 = vrot.lane.b32.xlu0 %v9, 124
    %v11 = vpop.permute.xlu0 %10
    %vm12 = vcmask 31744
    %s13 = scalar_lea.vmem %s1, 1
    %14 = vst.msk [vmem:[%s13] sm:$0x1] %vm12, %v11
    %v15 = vld [vmem:[#allocation0] sm:$0x1]
    %16 = vrot.lane.b32.xlu0 %v15, 120
    %v17 = vpop.permute.xlu0 %16
    %vm18 = vcmask 31744
    %s19 = scalar_lea.vmem %s1, 2
    %20 = vst.msk [vmem:[%s19] sm:$0x1] %vm18, %v17
    %v21 = vld [vmem:[#allocation0] sm:$0x1]
    %22 = vrot.lane.b32.xlu0 %v21, 116
    %v23 = vpop.permute.xlu0 %22
    %vm24 = vcmask 31744
    %s25 = scalar_lea.vmem %s1, 3
    %26 = vst.msk [vmem:[%s25] sm:$0x1] %vm24, %v23
    %v27 = vld [vmem:[#allocation0] sm:$0x1]
    %28 = vrot.lane.b32.xlu0 %v27, 112
    %v29 = vpop.permute.xlu0 %28
    %vm30 = vcmask 31744
    %s31 = scalar_lea.vmem %s1, 4
    %32 = vst.msk [vmem:[%s31] sm:$0x1] %vm30, %v29

// kernel: squeeze.6
$region0: #{squeeze.6}
  %s0 = inlined_call_operand.vmem [shape: f32[15], index: 0, kind: input, shape index: {}]
  %s1 = inlined_call_operand.vmem [shape: f32[5,3], index: 1, kind: output, shape index: {}]
  $region1: #{squeeze.6} parent=0
    #allocation0 [shape = 'u8[4096]{0}', space=vmem, size = 0x1000, scoped, tag = 'scoped mem for input reshape']
    %s3 = ssub.s32 2, 1
    %v4 = vld [vmem:[%s0] sm:%s3]
    %5 = vst [vmem:[#allocation0] sm:%s3] %v4
    %v6 = vld [vmem:[#allocation0] sm:$0x1]
    %vm7 = vcmask 23552
    %8 = vst.msk [vmem:[%s1] sm:$0x1] %vm7, %v6
    %v9 = vld [vmem:[#allocation0] sm:$0x1]
    %10 = vrot.lane.b32.xlu0 %v9, 125
    %v11 = vpop.permute.xlu0 %10
    %vm12 = vcmask 23552
    %s13 = scalar_lea.vmem %s1, 1
    %14 = vst.msk [vmem:[%s13] sm:$0x1] %vm12, %v11
    %v15 = vld [vmem:[#allocation0] sm:$0x1]
    %16 = vrot.lane.b32.xlu0 %v15, 122
    %v17 = vpop.permute.xlu0 %16
    %vm18 = vcmask 23552
    %s19 = scalar_lea.vmem %s1, 2
    %20 = vst.msk [vmem:[%s19] sm:$0x1] %vm18, %v17
    %v21 = vld [vmem:[#allocation0] sm:$0x1]
    %22 = vrot.lane.b32.xlu0 %v21, 119
    %v23 = vpop.permute.xlu0 %22
    %vm24 = vcmask 23552
    %s25 = scalar_lea.vmem %s1, 3
    %26 = vst.msk [vmem:[%s25] sm:$0x1] %vm24, %v23
    %v27 = vld [vmem:[#allocation0] sm:$0x1]
    %28 = vrot.lane.b32.xlu0 %v27, 116
    %v29 = vpop.permute.xlu0 %28
    %vm30 = vcmask 23552
    %s31 = scalar_lea.vmem %s1, 4
    %32 = vst.msk [vmem:[%s31] sm:$0x1] %vm30, %v29

// kernel: pose_refine_forward.1
$region0: #{pose_refine_forward.1}
  #allocation0 [shape = 'u32[]', space=smem, size = 0x4, offset = 0x4, fixed_abs, tag = 'smem constant byte address 0x4 - core index']
  #allocation1 [shape = 'u32[72,128]{1,0:T(1,128)}', space=vmem, size = 0x9000, scoped, tag = 'internal scratch']
  %s0 = inlined_call_operand.vmem [shape: bf16[256,128], index: 0, kind: input, shape index: {}]
  %s1 = inlined_call_operand.hbm [shape: bf16[2,256], index: 1, kind: input, shape index: {}]
  %s2 = inlined_call_operand.hbm [shape: bf16[128,128], index: 2, kind: input, shape index: {}]
  %s3 = inlined_call_operand.hbm [shape: f32[1,128], index: 3, kind: input, shape index: {}]
  %s4 = inlined_call_operand.hbm [shape: bf16[128,256], index: 4, kind: input, shape index: {}]
  %s5 = inlined_call_operand.hbm [shape: f32[1,256], index: 5, kind: input, shape index: {}]
  %s6 = inlined_call_operand.hbm [shape: bf16[128,512], index: 6, kind: input, shape index: {}]
  %s7 = inlined_call_operand.hbm [shape: bf16[256,512], index: 7, kind: input, shape index: {}]
  %s8 = inlined_call_operand.hbm [shape: f32[1,512], index: 8, kind: input, shape index: {}]
  %s9 = inlined_call_operand.hbm [shape: bf16[512,1024], index: 9, kind: input, shape index: {}]
  %s10 = inlined_call_operand.hbm [shape: f32[1,1024], index: 10, kind: input, shape index: {}]
  %s11 = inlined_call_operand.hbm [shape: bf16[1024,1024], index: 11, kind: input, shape index: {}]
  %s12 = inlined_call_operand.hbm [shape: f32[1,1024], index: 12, kind: input, shape index: {}]
  %s13 = inlined_call_operand.hbm [shape: bf16[512,128], index: 13, kind: input, shape index: {}]
  %s14 = inlined_call_operand.hbm [shape: bf16[512,128], index: 14, kind: input, shape index: {}]
  %s15 = inlined_call_operand.hbm [shape: f32[1,128], index: 15, kind: input, shape index: {}]
  %s16 = inlined_call_operand.hbm [shape: f32[1,128], index: 16, kind: input, shape index: {}]
  %s17 = inlined_call_operand.hbm [shape: bf16[256,128], index: 17, kind: input, shape index: {}]
  %s18 = inlined_call_operand.hbm [shape: f32[1,128], index: 18, kind: input, shape index: {}]
  %s19 = inlined_call_operand.vmem [shape: f32[2,128], index: 19, kind: output, shape index: {}]
  %s20 = sld [smem:[#allocation0]]
  $region158: #{pose_refine_forward.1} parent=0
    _
  %s22 = ssub.s32 1, %s20
  %s23 = scalar_select 0, %s22, %s20
  $region1: #{pose_refine_forward.1} parent=0
    #allocation2 [shape = 'u8[1024]{0}', space=vmem, size = 0x400, scoped, tag = 'input window, operand 1, single buffered']
    #allocation3 [shape = 's32[1]{0}', space=sflag, size = 0x4, scoped, tag = 'scoped memory for pose_refine_forward.1']
    #allocation4 [shape = 'u8[32768]{0}', space=vmem, size = 0x8000, scoped, tag = 'input window, operand 2, single buffered']
    #allocation5 [shape = 's32[1]{0}', space=sflag, size = 0x4, scoped, tag = 'scoped memory for pose_refine_forward.1']
    #allocation6 [shape = 'u8[512]{0}', space=vmem, size = 0x400, scoped, tag = 'input window, operand 3, single buffered']
    #allocation7 [shape = 'u8[65536]{0}', space=vmem, size = 0x10000, scoped, tag = 'input window, operand 4, single buffered']
    #allocation8 [shape = 's32[1]{0}', space=sflag, size = 0x4, scoped, tag = 'scoped memory for pose_refine_forward.1']
    #allocation9 [shape = 'u8[1024]{0}', space=vmem, size = 0x400, scoped, tag = 'input window, operand 5, single buffered']
    #allocation10 [shape = 'u8[131072]{0}', space=vmem, size = 0x20000, scoped, tag = 'input window, operand 6, single buffered']
    #allocation11 [shape = 's32[1]{0}', space=sflag, size = 0x4, scoped, tag = 'scoped memory for pose_refine_forward.1']
    #allocation12 [shape = 'u8[262144]{0}', space=vmem, size = 0x40000, scoped, tag = 'input window, operand 7, single buffered']
    #allocation13 [shape = 'u8[2048]{0}', space=vmem, size = 0x800, scoped, tag = 'input window, operand 8, single buffered']
    #allocation14 [shape = 's32[1]{0}', space=sflag, size = 0x4, scoped, tag = 'scoped memory for pose_refine_forward.1']
    #allocation15 [shape = 'u8[1048576]{0}', space=vmem, size = 0x100000, scoped, tag = 'input window, operand 9, single buffered']
    #allocation16 [shape = 'u8[4096]{0}', space=vmem, size = 0x1000, scoped, tag = 'input window, operand 10, single buffered']
    #allocation17 [shape = 's32[1]{0}', space=sflag, size = 0x4, scoped, tag = 'scoped memory for pose_refine_forward.1']
    #allocation18 [shape = 'u8[2097152]{0}', space=vmem, size = 0x200000, scoped, tag = 'input window, operand 11, single buffered']
    #allocation19 [shape = 'u8[4096]{0}', space=vmem, size = 0x1000, scoped, tag = 'input window, operand 12, single buffered']
    #allocation20 [shape = 's32[1]{0}', space=sflag, size = 0x4, scoped, tag = 'scoped memory for pose_refine_forward.1']
    #allocation21 [shape = 'u8[131072]{0}', space=vmem, size = 0x20000, scoped, tag = 'input window, operand 13, single buffered']
    #allocation22 [shape = 'u8[131072]{0}', space=vmem, size = 0x20000, scoped, tag = 'input window, operand 14, single buffered']
    #allocation23 [shape = 's32[1]{0}', space=sflag, size = 0x4, scoped, tag = 'scoped memory for pose_refine_forward.1']
    #allocation24 [shape = 'u8[512]{0}', space=vmem, size = 0x400, scoped, tag = 'input window, operand 15, single buffered']
    #allocation25 [shape = 'u8[512]{0}', space=vmem, size = 0x400, scoped, tag = 'input window, operand 16, single buffered']
    #allocation26 [shape = 's32[1]{0}', space=sflag, size = 0x4, scoped, tag = 'scoped memory for pose_refine_forward.1']
    #allocation27 [shape = 'u8[65536]{0}', space=vmem, size = 0x10000, scoped, tag = 'input window, operand 17, single buffered']
    #allocation28 [shape = 'u8[512]{0}', space=vmem, size = 0x400, scoped, tag = 'input window, operand 18, single buffered']
    #allocation29 [shape = 's32[1]{0}', space=sflag, size = 0x4, scoped, tag = 'scoped memory for pose_refine_forward.1']
    %24 = vsyncpa [#allocation3], 0
    %25 = vsyncpa [#allocation5], 0
    %26 = vsyncpa [#allocation8], 0
    %27 = vsyncpa [#allocation11], 0
    %28 = vsyncpa [#allocation14], 0
    %29 = vsyncpa [#allocation17], 0
    %30 = vsyncpa [#allocation20], 0
    %31 = vsyncpa [#allocation23], 0
    %32 = vsyncpa [#allocation26], 0
    %33 = vsyncpa [#allocation29], 0
    // Predicated region
    $region2: #{pose_refine_forward.1} parent=1 // pred_check
      _
    $region3: #{pose_refine_forward.1} parent=1 // pred_check_branch
      %35 = sbr.rel (0) target = $region5
    $region4: #{pose_refine_forward.1} parent=1 // pred_region
      _
    $region5: #{pose_refine_forward.1} parent=1 // pred_fallthru
      _
    // Predicated region
    $region6: #{pose_refine_forward.1} parent=1 // pred_check
      _
    $region7: #{pose_refine_forward.1} parent=1 // pred_check_branch
      %37 = sbr.rel (0) target = $region9
    $region8: #{pose_refine_forward.1} parent=1 // pred_region
      %39 = vsyncadd [#allocation3], 0
      %s41 = sshll.u32 %s1, 4
      %s42 = int_to_ptr.hbm [resolvable:$true] %s41
      %s43 = sshll.u32 [#allocation2], 4
      %s44 = int_to_ptr.vmem [resolvable:$true] %s43
      %46 = dma.hbm_to_vmem [thread:$0]  %s42, 32, %s44, [#allocation3]
    $region9: #{pose_refine_forward.1} parent=1 // pred_fallthru
      _
    // Predicated region
    $region10: #{pose_refine_forward.1} parent=1 // pred_check
      _
    $region11: #{pose_refine_forward.1} parent=1 // pred_check_branch
      %48 = sbr.rel (0) target = $region13
    $region12: #{pose_refine_forward.1} parent=1 // pred_region
      %50 = vsyncadd [#allocation5], 0
      %s51 = sshll.u32 %s2, 4
      %s52 = int_to_ptr.hbm [resolvable:$true] %s51
      %s53 = sshll.u32 [#allocation4], 4
      %s54 = int_to_ptr.vmem [resolvable:$true] %s53
      %59 = dma.hbm_to_vmem [thread:$0]  %s52, 1024, %s54, [#allocation5], 64, 64, 4
    $region13: #{pose_refine_forward.1} parent=1 // pred_fallthru
      _
    // Predicated region
    $region14: #{pose_refine_forward.1} parent=1 // pred_check
      _
    $region15: #{pose_refine_forward.1} parent=1 // pred_check_branch
      %61 = sbr.rel (0) target = $region17
    $region16: #{pose_refine_forward.1} parent=1 // pred_region
      %63 = vsyncadd [#allocation5], 0
      %s65 = sshll.u32 %s3, 4
      %s66 = int_to_ptr.hbm [resolvable:$true] %s65
      %s67 = sshll.u32 [#allocation6], 4
      %s68 = int_to_ptr.vmem [resolvable:$true] %s67
      %70 = dma.hbm_to_vmem [thread:$0]  %s66, 16, %s68, [#allocation5]
    $region17: #{pose_refine_forward.1} parent=1 // pred_fallthru
      _
    // Predicated region
    $region18: #{pose_refine_forward.1} parent=1 // pred_check
      _
    $region19: #{pose_refine_forward.1} parent=1 // pred_check_branch
      %72 = sbr.rel (0) target = $region21
    $region20: #{pose_refine_forward.1} parent=1 // pred_region
      %74 = vsyncadd [#allocation8], 0
      %s75 = sshll.u32 %s4, 4
      %s76 = int_to_ptr.hbm [resolvable:$true] %s75
      %s77 = sshll.u32 [#allocation7], 4
      %s78 = int_to_ptr.vmem [resolvable:$true] %s77
      %83 = dma.hbm_to_vmem [thread:$0]  %s76, 2048, %s78, [#allocation8], 128, 128, 8
    $region21: #{pose_refine_forward.1} parent=1 // pred_fallthru
      _
    // Predicated region
    $region22: #{pose_refine_forward.1} parent=1 // pred_check
      _
    $region23: #{pose_refine_forward.1} parent=1 // pred_check_branch
      %85 = sbr.rel (0) target = $region25
    $region24: #{pose_refine_forward.1} parent=1 // pred_region
      %87 = vsyncadd [#allocation8], 0
      %s89 = sshll.u32 %s5, 4
      %s90 = int_to_ptr.hbm [resolvable:$true] %s89
      %s91 = sshll.u32 [#allocation9], 4
      %s92 = int_to_ptr.vmem [resolvable:$true] %s91
      %94 = dma.hbm_to_vmem [thread:$0]  %s90, 32, %s92, [#allocation8]
    $region25: #{pose_refine_forward.1} parent=1 // pred_fallthru
      _
    // Predicated region
    $region26: #{pose_refine_forward.1} parent=1 // pred_check
      _
    $region27: #{pose_refine_forward.1} parent=1 // pred_check_branch
      %96 = sbr.rel (0) target = $region29
    $region28: #{pose_refine_forward.1} parent=1 // pred_region
      %98 = vsyncadd [#allocation11], 0
      %s99 = sshll.u32 %s6, 4
      %s100 = int_to_ptr.hbm [resolvable:$true] %s99
      %s101 = sshll.u32 [#allocation10], 4
      %s102 = int_to_ptr.vmem [resolvable:$true] %s101
      %107 = dma.hbm_to_vmem [thread:$0]  %s100, 4096, %s102, [#allocation11], 256, 256, 16
    $region29: #{pose_refine_forward.1} parent=1 // pred_fallthru
      _
    // Predicated region
    $region30: #{pose_refine_forward.1} parent=1 // pred_check
      _
    $region31: #{pose_refine_forward.1} parent=1 // pred_check_branch
      %109 = sbr.rel (0) target = $region33
    $region32: #{pose_refine_forward.1} parent=1 // pred_region
      %111 = vsyncadd [#allocation11], 0
      %s112 = sshll.u32 %s7, 4
      %s113 = int_to_ptr.hbm [resolvable:$true] %s112
      %s114 = sshll.u32 [#allocation12], 4
      %s115 = int_to_ptr.vmem [resolvable:$true] %s114
      %120 = dma.hbm_to_vmem [thread:$0]  %s113, 8192, %s115, [#allocation11], 256, 256, 16
    $region33: #{pose_refine_forward.1} parent=1 // pred_fallthru
      _
    // Predicated region
    $region34: #{pose_refine_forward.1} parent=1 // pred_check
      _
    $region35: #{pose_refine_forward.1} parent=1 // pred_check_branch
      %122 = sbr.rel (0) target = $region37
    $region36: #{pose_refine_forward.1} parent=1 // pred_region
      %124 = vsyncadd [#allocation14], 0
      %s126 = sshll.u32 %s8, 4
      %s127 = int_to_ptr.hbm [resolvable:$true] %s126
      %s128 = sshll.u32 [#allocation13], 4
      %s129 = int_to_ptr.vmem [resolvable:$true] %s128
      %131 = dma.hbm_to_vmem [thread:$0]  %s127, 64, %s129, [#allocation14]
    $region37: #{pose_refine_forward.1} parent=1 // pred_fallthru
      _
    // Predicated region
    $region38: #{pose_refine_forward.1} parent=1 // pred_check
      _
    $region39: #{pose_refine_forward.1} parent=1 // pred_check_branch
      %133 = sbr.rel (0) target = $region41
    $region40: #{pose_refine_forward.1} parent=1 // pred_region
      %135 = vsyncadd [#allocation14], 0
      %s136 = sshll.u32 %s9, 4
      %s137 = int_to_ptr.hbm [resolvable:$true] %s136
      %s138 = sshll.u32 [#allocation15], 4
      %s139 = int_to_ptr.vmem [resolvable:$true] %s138
      %144 = dma.hbm_to_vmem [thread:$0]  %s137, 32768, %s139, [#allocation14], 512, 512, 32
    $region41: #{pose_refine_forward.1} parent=1 // pred_fallthru
      _
    // Predicated region
    $region42: #{pose_refine_forward.1} parent=1 // pred_check
      _
    $region43: #{pose_refine_forward.1} parent=1 // pred_check_branch
      %146 = sbr.rel (0) target = $region45
    $region44: #{pose_refine_forward.1} parent=1 // pred_region
      %148 = vsyncadd [#allocation17], 0
      %s150 = sshll.u32 %s10, 4
      %s151 = int_to_ptr.hbm [resolvable:$true] %s150
      %s152 = sshll.u32 [#allocation16], 4
      %s153 = int_to_ptr.vmem [resolvable:$true] %s152
      %155 = dma.hbm_to_vmem [thread:$0]  %s151, 128, %s153, [#allocation17]
    $region45: #{pose_refine_forward.1} parent=1 // pred_fallthru
      _
    // Predicated region
    $region46: #{pose_refine_forward.1} parent=1 // pred_check
      _
    $region47: #{pose_refine_forward.1} parent=1 // pred_check_branch
      %157 = sbr.rel (0) target = $region49
    $region48: #{pose_refine_forward.1} parent=1 // pred_region
      %159 = vsyncadd [#allocation17], 0
      %s160 = sshll.u32 %s11, 4
      %s161 = int_to_ptr.hbm [resolvable:$true] %s160
      %s162 = sshll.u32 [#allocation18], 4
      %s163 = int_to_ptr.vmem [resolvable:$true] %s162
      %168 = dma.hbm_to_vmem [thread:$0]  %s161, 65536, %s163, [#allocation17], 512, 512, 32
    $region49: #{pose_refine_forward.1} parent=1 // pred_fallthru
      _
    // Predicated region
    $region50: #{pose_refine_forward.1} parent=1 // pred_check
      _
    $region51: #{pose_refine_forward.1} parent=1 // pred_check_branch
      %170 = sbr.rel (0) target = $region53
    $region52: #{pose_refine_forward.1} parent=1 // pred_region
      %172 = vsyncadd [#allocation20], 0
      %s174 = sshll.u32 %s12, 4
      %s175 = int_to_ptr.hbm [resolvable:$true] %s174
      %s176 = sshll.u32 [#allocation19], 4
      %s177 = int_to_ptr.vmem [resolvable:$true] %s176
      %179 = dma.hbm_to_vmem [thread:$0]  %s175, 128, %s177, [#allocation20]
    $region53: #{pose_refine_forward.1} parent=1 // pred_fallthru
      _
    // Predicated region
    $region54: #{pose_refine_forward.1} parent=1 // pred_check
      _
    $region55: #{pose_refine_forward.1} parent=1 // pred_check_branch
      %181 = sbr.rel (0) target = $region57
    $region56: #{pose_refine_forward.1} parent=1 // pred_region
      %183 = vsyncadd [#allocation20], 0
      %s184 = sshll.u32 %s13, 4
      %s185 = int_to_ptr.hbm [resolvable:$true] %s184
      %s186 = sshll.u32 [#allocation21], 4
      %s187 = int_to_ptr.vmem [resolvable:$true] %s186
      %192 = dma.hbm_to_vmem [thread:$0]  %s185, 4096, %s187, [#allocation20], 64, 64, 4
    $region57: #{pose_refine_forward.1} parent=1 // pred_fallthru
      _
    // Predicated region
    $region58: #{pose_refine_forward.1} parent=1 // pred_check
      _
    $region59: #{pose_refine_forward.1} parent=1 // pred_check_branch
      %194 = sbr.rel (0) target = $region61
    $region60: #{pose_refine_forward.1} parent=1 // pred_region
      %196 = vsyncadd [#allocation23], 0
      %s197 = sshll.u32 %s14, 4
      %s198 = int_to_ptr.hbm [resolvable:$true] %s197
      %s199 = sshll.u32 [#allocation22], 4
      %s200 = int_to_ptr.vmem [resolvable:$true] %s199
      %205 = dma.hbm_to_vmem [thread:$0]  %s198, 4096, %s200, [#allocation23], 64, 64, 4
    $region61: #{pose_refine_forward.1} parent=1 // pred_fallthru
      _
    // Predicated region
    $region62: #{pose_refine_forward.1} parent=1 // pred_check
      _
    $region63: #{pose_refine_forward.1} parent=1 // pred_check_branch
      %207 = sbr.rel (0) target = $region65
    $region64: #{pose_refine_forward.1} parent=1 // pred_region
      %209 = vsyncadd [#allocation23], 0
      %s211 = sshll.u32 %s15, 4
      %s212 = int_to_ptr.hbm [resolvable:$true] %s211
      %s213 = sshll.u32 [#allocation24], 4
      %s214 = int_to_ptr.vmem [resolvable:$true] %s213
      %216 = dma.hbm_to_vmem [thread:$0]  %s212, 16, %s214, [#allocation23]
    $region65: #{pose_refine_forward.1} parent=1 // pred_fallthru
      _
    // Predicated region
    $region66: #{pose_refine_forward.1} parent=1 // pred_check
      _
    $region67: #{pose_refine_forward.1} parent=1 // pred_check_branch
      %218 = sbr.rel (0) target = $region69
    $region68: #{pose_refine_forward.1} parent=1 // pred_region
      %220 = vsyncadd [#allocation26], 0
      %s222 = sshll.u32 %s16, 4
      %s223 = int_to_ptr.hbm [resolvable:$true] %s222
      %s224 = sshll.u32 [#allocation25], 4
      %s225 = int_to_ptr.vmem [resolvable:$true] %s224
      %227 = dma.hbm_to_vmem [thread:$0]  %s223, 16, %s225, [#allocation26]
    $region69: #{pose_refine_forward.1} parent=1 // pred_fallthru
      _
    // Predicated region
    $region70: #{pose_refine_forward.1} parent=1 // pred_check
      _
    $region71: #{pose_refine_forward.1} parent=1 // pred_check_branch
      %229 = sbr.rel (0) target = $region73
    $region72: #{pose_refine_forward.1} parent=1 // pred_region
      %231 = vsyncadd [#allocation26], 0
      %s232 = sshll.u32 %s17, 4
      %s233 = int_to_ptr.hbm [resolvable:$true] %s232
      %s234 = sshll.u32 [#allocation27], 4
      %s235 = int_to_ptr.vmem [resolvable:$true] %s234
      %240 = dma.hbm_to_vmem [thread:$0]  %s233, 2048, %s235, [#allocation26], 64, 64, 4
    $region73: #{pose_refine_forward.1} parent=1 // pred_fallthru
      _
    // Predicated region
    $region74: #{pose_refine_forward.1} parent=1 // pred_check
      _
    $region75: #{pose_refine_forward.1} parent=1 // pred_check_branch
      %242 = sbr.rel (0) target = $region77
    $region76: #{pose_refine_forward.1} parent=1 // pred_region
      %244 = vsyncadd [#allocation29], 0
      %s246 = sshll.u32 %s18, 4
      %s247 = int_to_ptr.hbm [resolvable:$true] %s246
      %s248 = sshll.u32 [#allocation28], 4
      %s249 = int_to_ptr.vmem [resolvable:$true] %s248
      %251 = dma.hbm_to_vmem [thread:$0]  %s247, 16, %s249, [#allocation29]
    $region77: #{pose_refine_forward.1} parent=1 // pred_fallthru
      _
    // Predicated region
    $region78: #{pose_refine_forward.1} parent=1 // pred_check
      _
    $region79: #{pose_refine_forward.1} parent=1 // pred_check_branch
      %253 = sbr.rel (0) target = $region81
    $region80: #{pose_refine_forward.1} parent=1 // pred_region
      %255 = dma.done [#allocation3], 32
    $region81: #{pose_refine_forward.1} parent=1 // pred_fallthru
      _
    // Predicated region
    $region82: #{pose_refine_forward.1} parent=1 // pred_check
      _
    $region83: #{pose_refine_forward.1} parent=1 // pred_check_branch
      %257 = sbr.rel (0) target = $region85
    $region84: #{pose_refine_forward.1} parent=1 // pred_region
      %259 = dma.done [#allocation5], 1024
    $region85: #{pose_refine_forward.1} parent=1 // pred_fallthru
      _
    // Predicated region
    $region86: #{pose_refine_forward.1} parent=1 // pred_check
      _
    $region87: #{pose_refine_forward.1} parent=1 // pred_check_branch
      %261 = sbr.rel (0) target = $region89
    $region88: #{pose_refine_forward.1} parent=1 // pred_region
      %263 = dma.done [#allocation5], 16
    $region89: #{pose_refine_forward.1} parent=1 // pred_fallthru
      _
    // Predicated region
    $region90: #{pose_refine_forward.1} parent=1 // pred_check
      _
    $region91: #{pose_refine_forward.1} parent=1 // pred_check_branch
      %265 = sbr.rel (0) target = $region93
    $region92: #{pose_refine_forward.1} parent=1 // pred_region
      %267 = dma.done [#allocation8], 2048
    $region93: #{pose_refine_forward.1} parent=1 // pred_fallthru
      _
    // Predicated region
    $region94: #{pose_refine_forward.1} parent=1 // pred_check
      _
    $region95: #{pose_refine_forward.1} parent=1 // pred_check_branch
      %269 = sbr.rel (0) target = $region97
    $region96: #{pose_refine_forward.1} parent=1 // pred_region
      %271 = dma.done [#allocation8], 32
    $region97: #{pose_refine_forward.1} parent=1 // pred_fallthru
      _
    // Predicated region
    $region98: #{pose_refine_forward.1} parent=1 // pred_check
      _
    $region99: #{pose_refine_forward.1} parent=1 // pred_check_branch
      %273 = sbr.rel (0) target = $region101
    $region100: #{pose_refine_forward.1} parent=1 // pred_region
      %275 = dma.done [#allocation11], 4096
    $region101: #{pose_refine_forward.1} parent=1 // pred_fallthru
      _
    // Predicated region
    $region102: #{pose_refine_forward.1} parent=1 // pred_check
      _
    $region103: #{pose_refine_forward.1} parent=1 // pred_check_branch
      %277 = sbr.rel (0) target = $region105
    $region104: #{pose_refine_forward.1} parent=1 // pred_region
      %279 = dma.done [#allocation11], 8192
    $region105: #{pose_refine_forward.1} parent=1 // pred_fallthru
      _
    // Predicated region
    $region106: #{pose_refine_forward.1} parent=1 // pred_check
      _
    $region107: #{pose_refine_forward.1} parent=1 // pred_check_branch
      %281 = sbr.rel (0) target = $region109
    $region108: #{pose_refine_forward.1} parent=1 // pred_region
      %283 = dma.done [#allocation14], 64
    $region109: #{pose_refine_forward.1} parent=1 // pred_fallthru
      _
    // Predicated region
    $region110: #{pose_refine_forward.1} parent=1 // pred_check
      _
    $region111: #{pose_refine_forward.1} parent=1 // pred_check_branch
      %285 = sbr.rel (0) target = $region113
    $region112: #{pose_refine_forward.1} parent=1 // pred_region
      %287 = dma.done [#allocation14], 32768
    $region113: #{pose_refine_forward.1} parent=1 // pred_fallthru
      _
    // Predicated region
    $region114: #{pose_refine_forward.1} parent=1 // pred_check
      _
    $region115: #{pose_refine_forward.1} parent=1 // pred_check_branch
      %289 = sbr.rel (0) target = $region117
    $region116: #{pose_refine_forward.1} parent=1 // pred_region
      %291 = dma.done [#allocation17], 128
    $region117: #{pose_refine_forward.1} parent=1 // pred_fallthru
      _
    // Predicated region
    $region118: #{pose_refine_forward.1} parent=1 // pred_check
      _
    $region119: #{pose_refine_forward.1} parent=1 // pred_check_branch
      %293 = sbr.rel (0) target = $region121
    $region120: #{pose_refine_forward.1} parent=1 // pred_region
      %295 = dma.done [#allocation17], 65536
    $region121: #{pose_refine_forward.1} parent=1 // pred_fallthru
      _
    // Predicated region
    $region122: #{pose_refine_forward.1} parent=1 // pred_check
      _
    $region123: #{pose_refine_forward.1} parent=1 // pred_check_branch
      %297 = sbr.rel (0) target = $region125
    $region124: #{pose_refine_forward.1} parent=1 // pred_region
      %299 = dma.done [#allocation20], 128
    $region125: #{pose_refine_forward.1} parent=1 // pred_fallthru
      _
    // Predicated region
    $region126: #{pose_refine_forward.1} parent=1 // pred_check
      _
    $region127: #{pose_refine_forward.1} parent=1 // pred_check_branch
      %301 = sbr.rel (0) target = $region129
    $region128: #{pose_refine_forward.1} parent=1 // pred_region
      %303 = dma.done [#allocation20], 4096
    $region129: #{pose_refine_forward.1} parent=1 // pred_fallthru
      _
    // Predicated region
    $region130: #{pose_refine_forward.1} parent=1 // pred_check
      _
    $region131: #{pose_refine_forward.1} parent=1 // pred_check_branch
      %305 = sbr.rel (0) target = $region133
    $region132: #{pose_refine_forward.1} parent=1 // pred_region
      %307 = dma.done [#allocation23], 4096
    $region133: #{pose_refine_forward.1} parent=1 // pred_fallthru
      _
    // Predicated region
    $region134: #{pose_refine_forward.1} parent=1 // pred_check
      _
    $region135: #{pose_refine_forward.1} parent=1 // pred_check_branch
      %309 = sbr.rel (0) target = $region137
    $region136: #{pose_refine_forward.1} parent=1 // pred_region
      %311 = dma.done [#allocation23], 16
    $region137: #{pose_refine_forward.1} parent=1 // pred_fallthru
      _
    // Predicated region
    $region138: #{pose_refine_forward.1} parent=1 // pred_check
      _
    $region139: #{pose_refine_forward.1} parent=1 // pred_check_branch
      %313 = sbr.rel (0) target = $region141
    $region140: #{pose_refine_forward.1} parent=1 // pred_region
      %315 = dma.done [#allocation26], 16
    $region141: #{pose_refine_forward.1} parent=1 // pred_fallthru
      _
    // Predicated region
    $region142: #{pose_refine_forward.1} parent=1 // pred_check
      _
    $region143: #{pose_refine_forward.1} parent=1 // pred_check_branch
      %317 = sbr.rel (0) target = $region145
    $region144: #{pose_refine_forward.1} parent=1 // pred_region
      %319 = dma.done [#allocation26], 2048
    $region145: #{pose_refine_forward.1} parent=1 // pred_fallthru
      _
    // Predicated region
    $region146: #{pose_refine_forward.1} parent=1 // pred_check
      _
    $region147: #{pose_refine_forward.1} parent=1 // pred_check_branch
      %321 = sbr.rel (0) target = $region149
    $region148: #{pose_refine_forward.1} parent=1 // pred_region
      %323 = dma.done [#allocation29], 16
    $region149: #{pose_refine_forward.1} parent=1 // pred_fallthru
      _
    %v324 = vld [vmem:[%s0] sm:$0xf]
    %v325 = vld [vmem:[%s0 + $0x4] sm:$0xf]
    %v326 = vld [vmem:[%s0 + $0x8] sm:$0xf]
    %v327 = vld [vmem:[%s0 + $0xc] sm:$0xf]
    %v328 = vld [vmem:[%s0 + $0x10] sm:$0xf]
    %v329 = vld [vmem:[%s0 + $0x14] sm:$0xf]
    %v330 = vld [vmem:[%s0 + $0x18] sm:$0xf]
    %v331 = vld [vmem:[%s0 + $0x1c] sm:$0xf]
    %v332 = vld [vmem:[%s0 + $0x20] sm:$0xf]
    %v333 = vld [vmem:[%s0 + $0x24] sm:$0xf]
    %v334 = vld [vmem:[%s0 + $0x28] sm:$0xf]
    %v335 = vld [vmem:[%s0 + $0x2c] sm:$0xf]
    %v336 = vld [vmem:[%s0 + $0x30] sm:$0xf]
    %v337 = vld [vmem:[%s0 + $0x34] sm:$0xf]
    %v338 = vld [vmem:[%s0 + $0x38] sm:$0xf]
    %v339 = vld [vmem:[%s0 + $0x3c] sm:$0xf]
    %v340 = vld [vmem:[%s0 + $0x40] sm:$0xf]
    %v341 = vld [vmem:[%s0 + $0x44] sm:$0xf]
    %v342 = vld [vmem:[%s0 + $0x48] sm:$0xf]
    %v343 = vld [vmem:[%s0 + $0x4c] sm:$0xf]
    %v344 = vld [vmem:[%s0 + $0x50] sm:$0xf]
    %v345 = vld [vmem:[%s0 + $0x54] sm:$0xf]
    %v346 = vld [vmem:[%s0 + $0x58] sm:$0xf]
    %v347 = vld [vmem:[%s0 + $0x5c] sm:$0xf]
    %v348 = vld [vmem:[%s0 + $0x60] sm:$0xf]
    %v349 = vld [vmem:[%s0 + $0x64] sm:$0xf]
    %v350 = vld [vmem:[%s0 + $0x68] sm:$0xf]
    %v351 = vld [vmem:[%s0 + $0x6c] sm:$0xf]
    %v352 = vld [vmem:[%s0 + $0x70] sm:$0xf]
    %v353 = vld [vmem:[%s0 + $0x74] sm:$0xf]
    %v354 = vld [vmem:[%s0 + $0x78] sm:$0xf]
    %v355 = vld [vmem:[%s0 + $0x7c] sm:$0xf]
    %v356 = vld [vmem:[#allocation4] sm:$0xf]
    %v357 = vld [vmem:[#allocation4 + $0x4] sm:$0xf]
    %v358 = vld [vmem:[#allocation4 + $0x8] sm:$0xf]
    %v359 = vld [vmem:[#allocation4 + $0xc] sm:$0xf]
    %v360 = vld [vmem:[#allocation4 + $0x10] sm:$0xf]
    %v361 = vld [vmem:[#allocation4 + $0x14] sm:$0xf]
    %v362 = vld [vmem:[#allocation4 + $0x18] sm:$0xf]
    %v363 = vld [vmem:[#allocation4 + $0x1c] sm:$0xf]
    %v364 = vld [vmem:[#allocation4 + $0x20] sm:$0xf]
    %v365 = vld [vmem:[#allocation4 + $0x24] sm:$0xf]
    %v366 = vld [vmem:[#allocation4 + $0x28] sm:$0xf]
    %v367 = vld [vmem:[#allocation4 + $0x2c] sm:$0xf]
    %v368 = vld [vmem:[#allocation4 + $0x30] sm:$0xf]
    %v369 = vld [vmem:[#allocation4 + $0x34] sm:$0xf]
    %v370 = vld [vmem:[#allocation4 + $0x38] sm:$0xf]
    %v371 = vld [vmem:[#allocation4 + $0x3c] sm:$0xf]
    %v372 = vld [vmem:[#allocation6] sm:$0x1]
    %v374 = vperm.slane %v372, 0
    %v408 = vunpack.c.l.b16 %v324
    %v409 = vunpack.c.l.b16 %v325
    %v410 = vunpack.c.l.b16 %v326
    %v411 = vunpack.c.l.b16 %v327
    %v412 = vunpack.c.l.b16 %v328
    %v413 = vunpack.c.l.b16 %v329
    %v414 = vunpack.c.l.b16 %v330
    %v415 = vunpack.c.l.b16 %v331
    %v416 = vunpack.c.l.b16 %v332
    %v417 = vunpack.c.l.b16 %v333
    %v418 = vunpack.c.l.b16 %v334
    %v419 = vunpack.c.l.b16 %v335
    %v420 = vunpack.c.l.b16 %v336
    %v421 = vunpack.c.l.b16 %v337
    %v422 = vunpack.c.l.b16 %v338
    %v423 = vunpack.c.l.b16 %v339
    %v424 = vunpack.c.l.b16 %v340
    %v425 = vunpack.c.l.b16 %v341
    %v426 = vunpack.c.l.b16 %v342
    %v427 = vunpack.c.l.b16 %v343
    %v428 = vunpack.c.l.b16 %v344
    %v429 = vunpack.c.l.b16 %v345
    %v430 = vunpack.c.l.b16 %v346
    %v431 = vunpack.c.l.b16 %v347
    %v432 = vunpack.c.l.b16 %v348
    %v433 = vunpack.c.l.b16 %v349
    %v434 = vunpack.c.l.b16 %v350
    %v435 = vunpack.c.l.b16 %v351
    %v436 = vunpack.c.l.b16 %v352
    %v437 = vunpack.c.l.b16 %v353
    %v438 = vunpack.c.l.b16 %v354
    %v439 = vunpack.c.l.b16 %v355
    %v440 = vpack.c.b16 %v409, %v408
    %v441 = vpack.c.b16 %v411, %v410
    %v442 = vpack.c.b16 %v413, %v412
    %v443 = vpack.c.b16 %v415, %v414
    %v444 = vpack.c.b16 %v417, %v416
    %v445 = vpack.c.b16 %v419, %v418
    %v446 = vpack.c.b16 %v421, %v420
    %v447 = vpack.c.b16 %v423, %v422
    %v448 = vpack.c.b16 %v425, %v424
    %v449 = vpack.c.b16 %v427, %v426
    %v450 = vpack.c.b16 %v429, %v428
    %v451 = vpack.c.b16 %v431, %v430
    %v452 = vpack.c.b16 %v433, %v432
    %v453 = vpack.c.b16 %v435, %v434
    %v454 = vpack.c.b16 %v437, %v436
    %v455 = vpack.c.b16 %v439, %v438
    %v488 = vunpack.c.l.b16 %v356
    %v489 = vunpack.c.l.b16 %v357
    %v490 = vunpack.c.l.b16 %v358
    %v491 = vunpack.c.l.b16 %v359
    %v492 = vunpack.c.l.b16 %v360
    %v493 = vunpack.c.l.b16 %v361
    %v494 = vunpack.c.l.b16 %v362
    %v495 = vunpack.c.l.b16 %v363
    %v496 = vunpack.c.l.b16 %v364
    %v497 = vunpack.c.l.b16 %v365
    %v498 = vunpack.c.l.b16 %v366
    %v499 = vunpack.c.l.b16 %v367
    %v500 = vunpack.c.l.b16 %v368
    %v501 = vunpack.c.l.b16 %v369
    %v502 = vunpack.c.l.b16 %v370
    %v503 = vunpack.c.l.b16 %v371
    %v504 = vpack.c.b16 %v489, %v488
    %v505 = vpack.c.b16 %v491, %v490
    %v506 = vpack.c.b16 %v493, %v492
    %v507 = vpack.c.b16 %v495, %v494
    %v508 = vpack.c.b16 %v497, %v496
    %v509 = vpack.c.b16 %v499, %v498
    %v510 = vpack.c.b16 %v501, %v500
    %v511 = vpack.c.b16 %v503, %v502
    %520 = vmatpush.bf16.msra.mxu0 %v511
    %521 = vmatpush.bf16.msra.mxu0 %v510
    %522 = vmatpush.bf16.msra.mxu0 %v509
    %523 = vmatpush.bf16.msra.mxu0 %v508
    %524 = vmatpush.bf16.msra.mxu0 %v507
    %525 = vmatpush.bf16.msra.mxu0 %v506
    %526 = vmatpush.bf16.msra.mxu0 %v505
    %527 = vmatpush.bf16.msra.mxu0 %v504
    %528 = vmatmul.bf16.gmra.mxu0 %v440
    %v529 = vpop.f32.mrf.mxu0
    %v530 = vadd.f32 %v374, %v529
    %v531 = vpop.f32.mrf.mxu0
    %v532 = vadd.f32 %v374, %v531
    %533 = vmatmul.bf16.gmra.mxu0 %v441
    %v534 = vpop.f32.mrf.mxu0
    %v535 = vadd.f32 %v374, %v534
    %v536 = vpop.f32.mrf.mxu0
    %v537 = vadd.f32 %v374, %v536
    %538 = vmatmul.bf16.gmra.mxu0 %v442
    %v539 = vpop.f32.mrf.mxu0
    %v540 = vadd.f32 %v374, %v539
    %v541 = vpop.f32.mrf.mxu0
    %v542 = vadd.f32 %v374, %v541
    %543 = vmatmul.bf16.gmra.mxu0 %v443
    %v544 = vpop.f32.mrf.mxu0
    %v545 = vadd.f32 %v374, %v544
    %v546 = vpop.f32.mrf.mxu0
    %v547 = vadd.f32 %v374, %v546
    %548 = vmatmul.bf16.gmra.mxu0 %v444
    %v549 = vpop.f32.mrf.mxu0
    %v550 = vadd.f32 %v374, %v549
    %v551 = vpop.f32.mrf.mxu0
    %v552 = vadd.f32 %v374, %v551
    %553 = vmatmul.bf16.gmra.mxu0 %v445
    %v554 = vpop.f32.mrf.mxu0
    %v555 = vadd.f32 %v374, %v554
    %v556 = vpop.f32.mrf.mxu0
    %v557 = vadd.f32 %v374, %v556
    %558 = vmatmul.bf16.gmra.mxu0 %v446
    %v559 = vpop.f32.mrf.mxu0
    %v560 = vadd.f32 %v374, %v559
    %v561 = vpop.f32.mrf.mxu0
    %v562 = vadd.f32 %v374, %v561
    %563 = vmatmul.bf16.gmra.mxu0 %v447
    %v564 = vpop.f32.mrf.mxu0
    %v565 = vadd.f32 %v374, %v564
    %v566 = vpop.f32.mrf.mxu0
    %v567 = vadd.f32 %v374, %v566
    %568 = vmatmul.bf16.gmra.mxu0 %v448
    %v569 = vpop.f32.mrf.mxu0
    %v570 = vadd.f32 %v374, %v569
    %v571 = vpop.f32.mrf.mxu0
    %v572 = vadd.f32 %v374, %v571
    %573 = vmatmul.bf16.gmra.mxu0 %v449
    %v574 = vpop.f32.mrf.mxu0
    %v575 = vadd.f32 %v374, %v574
    %v576 = vpop.f32.mrf.mxu0
    %v577 = vadd.f32 %v374, %v576
    %578 = vmatmul.bf16.gmra.mxu0 %v450
    %v579 = vpop.f32.mrf.mxu0
    %v580 = vadd.f32 %v374, %v579
    %v581 = vpop.f32.mrf.mxu0
    %v582 = vadd.f32 %v374, %v581
    %583 = vmatmul.bf16.gmra.mxu0 %v451
    %v584 = vpop.f32.mrf.mxu0
    %v585 = vadd.f32 %v374, %v584
    %v586 = vpop.f32.mrf.mxu0
    %v587 = vadd.f32 %v374, %v586
    %588 = vmatmul.bf16.gmra.mxu0 %v452
    %v589 = vpop.f32.mrf.mxu0
    %v590 = vadd.f32 %v374, %v589
    %v591 = vpop.f32.mrf.mxu0
    %v592 = vadd.f32 %v374, %v591
    %593 = vmatmul.bf16.gmra.mxu0 %v453
    %v594 = vpop.f32.mrf.mxu0
    %v595 = vadd.f32 %v374, %v594
    %v596 = vpop.f32.mrf.mxu0
    %v597 = vadd.f32 %v374, %v596
    %598 = vmatmul.bf16.gmra.mxu0 %v454
    %v599 = vpop.f32.mrf.mxu0
    %v600 = vadd.f32 %v374, %v599
    %v601 = vpop.f32.mrf.mxu0
    %v602 = vadd.f32 %v374, %v601
    %603 = vmatmul.bf16.gmra.mxu0 %v455
    %v604 = vpop.f32.mrf.mxu0
    %v605 = vadd.f32 %v374, %v604
    %v606 = vpop.f32.mrf.mxu0
    %v607 = vadd.f32 %v374, %v606
    %608 = vdwg.mxu0
    %v609 = vmax.f32 %v530, 0.0
    %v610 = vmax.f32 %v532, 0.0
    %v611 = vmax.f32 %v535, 0.0
    %v612 = vmax.f32 %v537, 0.0
    %v613 = vmax.f32 %v540, 0.0
    %v614 = vmax.f32 %v542, 0.0
    %v615 = vmax.f32 %v545, 0.0
    %v616 = vmax.f32 %v547, 0.0
    %v617 = vmax.f32 %v550, 0.0
    %v618 = vmax.f32 %v552, 0.0
    %v619 = vmax.f32 %v555, 0.0
    %v620 = vmax.f32 %v557, 0.0
    %v621 = vmax.f32 %v560, 0.0
    %v622 = vmax.f32 %v562, 0.0
    %v623 = vmax.f32 %v565, 0.0
    %v624 = vmax.f32 %v567, 0.0
    %v625 = vmax.f32 %v570, 0.0
    %v626 = vmax.f32 %v572, 0.0
    %v627 = vmax.f32 %v575, 0.0
    %v628 = vmax.f32 %v577, 0.0
    %v629 = vmax.f32 %v580, 0.0
    %v630 = vmax.f32 %v582, 0.0
    %v631 = vmax.f32 %v585, 0.0
    %v632 = vmax.f32 %v587, 0.0
    %v633 = vmax.f32 %v590, 0.0
    %v634 = vmax.f32 %v592, 0.0
    %v635 = vmax.f32 %v595, 0.0
    %v636 = vmax.f32 %v597, 0.0
    %v637 = vmax.f32 %v600, 0.0
    %v638 = vmax.f32 %v602, 0.0
    %v639 = vmax.f32 %v605, 0.0
    %v640 = vmax.f32 %v607, 0.0
    %v641 = vpack.c.bf16 %v610, %v609
    %v642 = vpack.c.bf16 %v612, %v611
    %v643 = vpack.c.bf16 %v614, %v613
    %v644 = vpack.c.bf16 %v616, %v615
    %v645 = vpack.c.bf16 %v618, %v617
    %v646 = vpack.c.bf16 %v620, %v619
    %v647 = vpack.c.bf16 %v622, %v621
    %v648 = vpack.c.bf16 %v624, %v623
    %v649 = vpack.c.bf16 %v626, %v625
    %v650 = vpack.c.bf16 %v628, %v627
    %v651 = vpack.c.bf16 %v630, %v629
    %v652 = vpack.c.bf16 %v632, %v631
    %v653 = vpack.c.bf16 %v634, %v633
    %v654 = vpack.c.bf16 %v636, %v635
    %v655 = vpack.c.bf16 %v638, %v637
    %v656 = vpack.c.bf16 %v640, %v639
    %v657 = vld [vmem:[#allocation7] sm:$0xff]
    %v658 = vld [vmem:[#allocation7 + $0x8] sm:$0xff]
    %v659 = vld [vmem:[#allocation7 + $0x10] sm:$0xff]
    %v660 = vld [vmem:[#allocation7 + $0x18] sm:$0xff]
    %v661 = vld [vmem:[#allocation7 + $0x20] sm:$0xff]
    %v662 = vld [vmem:[#allocation7 + $0x28] sm:$0xff]
    %v663 = vld [vmem:[#allocation7 + $0x30] sm:$0xff]
    %v664 = vld [vmem:[#allocation7 + $0x38] sm:$0xff]
    %v665 = vld [vmem:[#allocation7 + $0x40] sm:$0xff]
    %v666 = vld [vmem:[#allocation7 + $0x48] sm:$0xff]
    %v667 = vld [vmem:[#allocation7 + $0x50] sm:$0xff]
    %v668 = vld [vmem:[#allocation7 + $0x58] sm:$0xff]
    %v669 = vld [vmem:[#allocation7 + $0x60] sm:$0xff]
    %v670 = vld [vmem:[#allocation7 + $0x68] sm:$0xff]
    %v671 = vld [vmem:[#allocation7 + $0x70] sm:$0xff]
    %v672 = vld [vmem:[#allocation7 + $0x78] sm:$0xff]
    %v673 = vld [vmem:[#allocation9] sm:$0x3]
    %v675 = vperm.slane %v673, 0
    %v676 = vperm.slane %v673, 1
    %v695 = vunpack.c.l.b16 %v657
    %v696 = vunpack.c.h.b16 %v657
    %v697 = vunpack.c.l.b16 %v658
    %v698 = vunpack.c.h.b16 %v658
    %v699 = vunpack.c.l.b16 %v659
    %v700 = vunpack.c.h.b16 %v659
    %v701 = vunpack.c.l.b16 %v660
    %v702 = vunpack.c.h.b16 %v660
    %v703 = vunpack.c.l.b16 %v661
    %v704 = vunpack.c.h.b16 %v661
    %v705 = vunpack.c.l.b16 %v662
    %v706 = vunpack.c.h.b16 %v662
    %v707 = vunpack.c.l.b16 %v663
    %v708 = vunpack.c.h.b16 %v663
    %v709 = vunpack.c.l.b16 %v664
    %v710 = vunpack.c.h.b16 %v664
    %v711 = vunpack.c.l.b16 %v665
    %v712 = vunpack.c.h.b16 %v665
    %v713 = vunpack.c.l.b16 %v666
    %v714 = vunpack.c.h.b16 %v666
    %v715 = vunpack.c.l.b16 %v667
    %v716 = vunpack.c.h.b16 %v667
    %v717 = vunpack.c.l.b16 %v668
    %v718 = vunpack.c.h.b16 %v668
    %v719 = vunpack.c.l.b16 %v669
    %v720 = vunpack.c.h.b16 %v669
    %v721 = vunpack.c.l.b16 %v670
    %v722 = vunpack.c.h.b16 %v670
    %v723 = vunpack.c.l.b16 %v671
    %v724 = vunpack.c.h.b16 %v671
    %v725 = vunpack.c.l.b16 %v672
    %v726 = vunpack.c.h.b16 %v672
    %v727 = vpack.c.b16 %v697, %v695
    %v728 = vpack.c.b16 %v698, %v696
    %v729 = vpack.c.b16 %v701, %v699
    %v730 = vpack.c.b16 %v702, %v700
    %v731 = vpack.c.b16 %v705, %v703
    %v732 = vpack.c.b16 %v706, %v704
    %v733 = vpack.c.b16 %v709, %v707
    %v734 = vpack.c.b16 %v710, %v708
    %v735 = vpack.c.b16 %v713, %v711
    %v736 = vpack.c.b16 %v714, %v712
    %v737 = vpack.c.b16 %v717, %v715
    %v738 = vpack.c.b16 %v718, %v716
    %v739 = vpack.c.b16 %v721, %v719
    %v740 = vpack.c.b16 %v722, %v720
    %v741 = vpack.c.b16 %v725, %v723
    %v742 = vpack.c.b16 %v726, %v724
    %759 = vmatpush.bf16.msra.mxu0 %v741
    %760 = vmatpush.bf16.msra.mxu0 %v739
    %761 = vmatpush.bf16.msra.mxu0 %v737
    %762 = vmatpush.bf16.msra.mxu0 %v735
    %763 = vmatpush.bf16.msra.mxu0 %v733
    %764 = vmatpush.bf16.msra.mxu0 %v731
    %765 = vmatpush.bf16.msra.mxu0 %v729
    %766 = vmatpush.bf16.msra.mxu0 %v727
    %767 = vmatmul.bf16.gmra.mxu0 %v641
    %v768 = vpop.f32.mrf.mxu0
    %v769 = vadd.f32 %v675, %v768
    %v770 = vpop.f32.mrf.mxu0
    %v771 = vadd.f32 %v675, %v770
    %772 = vmatmul.bf16.gmra.mxu0 %v642
    %v773 = vpop.f32.mrf.mxu0
    %v774 = vadd.f32 %v675, %v773
    %v775 = vpop.f32.mrf.mxu0
    %v776 = vadd.f32 %v675, %v775
    %777 = vmatmul.bf16.gmra.mxu0 %v643
    %v778 = vpop.f32.mrf.mxu0
    %v779 = vadd.f32 %v675, %v778
    %v780 = vpop.f32.mrf.mxu0
    %v781 = vadd.f32 %v675, %v780
    %782 = vmatmul.bf16.gmra.mxu0 %v644
    %v783 = vpop.f32.mrf.mxu0
    %v784 = vadd.f32 %v675, %v783
    %v785 = vpop.f32.mrf.mxu0
    %v786 = vadd.f32 %v675, %v785
    %787 = vmatmul.bf16.gmra.mxu0 %v645
    %v788 = vpop.f32.mrf.mxu0
    %v789 = vadd.f32 %v675, %v788
    %v790 = vpop.f32.mrf.mxu0
    %v791 = vadd.f32 %v675, %v790
    %792 = vmatmul.bf16.gmra.mxu0 %v646
    %v793 = vpop.f32.mrf.mxu0
    %v794 = vadd.f32 %v675, %v793
    %v795 = vpop.f32.mrf.mxu0
    %v796 = vadd.f32 %v675, %v795
    %797 = vmatmul.bf16.gmra.mxu0 %v647
    %v798 = vpop.f32.mrf.mxu0
    %v799 = vadd.f32 %v675, %v798
    %v800 = vpop.f32.mrf.mxu0
    %v801 = vadd.f32 %v675, %v800
    %802 = vmatmul.bf16.gmra.mxu0 %v648
    %v803 = vpop.f32.mrf.mxu0
    %v804 = vadd.f32 %v675, %v803
    %v805 = vpop.f32.mrf.mxu0
    %v806 = vadd.f32 %v675, %v805
    %807 = vmatmul.bf16.gmra.mxu0 %v649
    %v808 = vpop.f32.mrf.mxu0
    %v809 = vadd.f32 %v675, %v808
    %v810 = vpop.f32.mrf.mxu0
    %v811 = vadd.f32 %v675, %v810
    %812 = vmatmul.bf16.gmra.mxu0 %v650
    %v813 = vpop.f32.mrf.mxu0
    %v814 = vadd.f32 %v675, %v813
    %v815 = vpop.f32.mrf.mxu0
    %v816 = vadd.f32 %v675, %v815
    %817 = vmatmul.bf16.gmra.mxu0 %v651
    %v818 = vpop.f32.mrf.mxu0
    %v819 = vadd.f32 %v675, %v818
    %v820 = vpop.f32.mrf.mxu0
    %v821 = vadd.f32 %v675, %v820
    %822 = vmatmul.bf16.gmra.mxu0 %v652
    %v823 = vpop.f32.mrf.mxu0
    %v824 = vadd.f32 %v675, %v823
    %v825 = vpop.f32.mrf.mxu0
    %v826 = vadd.f32 %v675, %v825
    %827 = vmatmul.bf16.gmra.mxu0 %v653
    %v828 = vpop.f32.mrf.mxu0
    %v829 = vadd.f32 %v675, %v828
    %v830 = vpop.f32.mrf.mxu0
    %v831 = vadd.f32 %v675, %v830
    %832 = vmatmul.bf16.gmra.mxu0 %v654
    %v833 = vpop.f32.mrf.mxu0
    %v834 = vadd.f32 %v675, %v833
    %v835 = vpop.f32.mrf.mxu0
    %v836 = vadd.f32 %v675, %v835
    %837 = vmatmul.bf16.gmra.mxu0 %v655
    %v838 = vpop.f32.mrf.mxu0
    %v839 = vadd.f32 %v675, %v838
    %v840 = vpop.f32.mrf.mxu0
    %v841 = vadd.f32 %v675, %v840
    %842 = vmatmul.bf16.gmra.mxu0 %v656
    %v843 = vpop.f32.mrf.mxu0
    %v844 = vadd.f32 %v675, %v843
    %v845 = vpop.f32.mrf.mxu0
    %v846 = vadd.f32 %v675, %v845
    %847 = vdwg.mxu0
    %848 = vmatpush.bf16.msra.mxu0 %v742
    %849 = vmatpush.bf16.msra.mxu0 %v740
    %850 = vmatpush.bf16.msra.mxu0 %v738
    %851 = vmatpush.bf16.msra.mxu0 %v736
    %852 = vmatpush.bf16.msra.mxu0 %v734
    %853 = vmatpush.bf16.msra.mxu0 %v732
    %854 = vmatpush.bf16.msra.mxu0 %v730
    %855 = vmatpush.bf16.msra.mxu0 %v728
    %856 = vmatmul.bf16.gmra.mxu0 %v641
    %v857 = vpop.f32.mrf.mxu0
    %v858 = vadd.f32 %v676, %v857
    %v859 = vpop.f32.mrf.mxu0
    %v860 = vadd.f32 %v676, %v859
    %861 = vmatmul.bf16.gmra.mxu0 %v642
    %v862 = vpop.f32.mrf.mxu0
    %v863 = vadd.f32 %v676, %v862
    %v864 = vpop.f32.mrf.mxu0
    %v865 = vadd.f32 %v676, %v864
    %866 = vmatmul.bf16.gmra.mxu0 %v643
    %v867 = vpop.f32.mrf.mxu0
    %v868 = vadd.f32 %v676, %v867
    %v869 = vpop.f32.mrf.mxu0
    %v870 = vadd.f32 %v676, %v869
    %871 = vmatmul.bf16.gmra.mxu0 %v644
    %v872 = vpop.f32.mrf.mxu0
    %v873 = vadd.f32 %v676, %v872
    %v874 = vpop.f32.mrf.mxu0
    %v875 = vadd.f32 %v676, %v874
    %876 = vmatmul.bf16.gmra.mxu0 %v645
    %v877 = vpop.f32.mrf.mxu0
    %v878 = vadd.f32 %v676, %v877
    %v879 = vpop.f32.mrf.mxu0
    %v880 = vadd.f32 %v676, %v879
    %881 = vmatmul.bf16.gmra.mxu0 %v646
    %v882 = vpop.f32.mrf.mxu0
    %v883 = vadd.f32 %v676, %v882
    %v884 = vpop.f32.mrf.mxu0
    %v885 = vadd.f32 %v676, %v884
    %886 = vmatmul.bf16.gmra.mxu0 %v647
    %v887 = vpop.f32.mrf.mxu0
    %v888 = vadd.f32 %v676, %v887
    %v889 = vpop.f32.mrf.mxu0
    %v890 = vadd.f32 %v676, %v889
    %891 = vmatmul.bf16.gmra.mxu0 %v648
    %v892 = vpop.f32.mrf.mxu0
    %v893 = vadd.f32 %v676, %v892
    %v894 = vpop.f32.mrf.mxu0
    %v895 = vadd.f32 %v676, %v894
    %896 = vmatmul.bf16.gmra.mxu0 %v649
    %v897 = vpop.f32.mrf.mxu0
    %v898 = vadd.f32 %v676, %v897
    %v899 = vpop.f32.mrf.mxu0
    %v900 = vadd.f32 %v676, %v899
    %901 = vmatmul.bf16.gmra.mxu0 %v650
    %v902 = vpop.f32.mrf.mxu0
    %v903 = vadd.f32 %v676, %v902
    %v904 = vpop.f32.mrf.mxu0
    %v905 = vadd.f32 %v676, %v904
    %906 = vmatmul.bf16.gmra.mxu0 %v651
    %v907 = vpop.f32.mrf.mxu0
    %v908 = vadd.f32 %v676, %v907
    %v909 = vpop.f32.mrf.mxu0
    %v910 = vadd.f32 %v676, %v909
    %911 = vmatmul.bf16.gmra.mxu0 %v652
    %v912 = vpop.f32.mrf.mxu0
    %v913 = vadd.f32 %v676, %v912
    %v914 = vpop.f32.mrf.mxu0
    %v915 = vadd.f32 %v676, %v914
    %916 = vmatmul.bf16.gmra.mxu0 %v653
    %v917 = vpop.f32.mrf.mxu0
    %v918 = vadd.f32 %v676, %v917
    %v919 = vpop.f32.mrf.mxu0
    %v920 = vadd.f32 %v676, %v919
    %921 = vmatmul.bf16.gmra.mxu0 %v654
    %v922 = vpop.f32.mrf.mxu0
    %v923 = vadd.f32 %v676, %v922
    %v924 = vpop.f32.mrf.mxu0
    %v925 = vadd.f32 %v676, %v924
    %926 = vmatmul.bf16.gmra.mxu0 %v655
    %v927 = vpop.f32.mrf.mxu0
    %v928 = vadd.f32 %v676, %v927
    %v929 = vpop.f32.mrf.mxu0
    %v930 = vadd.f32 %v676, %v929
    %931 = vmatmul.bf16.gmra.mxu0 %v656
    %v932 = vpop.f32.mrf.mxu0
    %v933 = vadd.f32 %v676, %v932
    %v934 = vpop.f32.mrf.mxu0
    %v935 = vadd.f32 %v676, %v934
    %936 = vdwg.mxu0
    %v937 = vmax.f32 %v769, 0.0
    %v938 = vmax.f32 %v858, 0.0
    %v939 = vmax.f32 %v771, 0.0
    %v940 = vmax.f32 %v860, 0.0
    %v941 = vmax.f32 %v774, 0.0
    %v942 = vmax.f32 %v863, 0.0
    %v943 = vmax.f32 %v776, 0.0
    %v944 = vmax.f32 %v865, 0.0
    %v945 = vmax.f32 %v779, 0.0
    %v946 = vmax.f32 %v868, 0.0
    %v947 = vmax.f32 %v781, 0.0
    %v948 = vmax.f32 %v870, 0.0
    %v949 = vmax.f32 %v784, 0.0
    %v950 = vmax.f32 %v873, 0.0
    %v951 = vmax.f32 %v786, 0.0
    %v952 = vmax.f32 %v875, 0.0
    %v953 = vmax.f32 %v789, 0.0
    %v954 = vmax.f32 %v878, 0.0
    %v955 = vmax.f32 %v791, 0.0
    %v956 = vmax.f32 %v880, 0.0
    %v957 = vmax.f32 %v794, 0.0
    %v958 = vmax.f32 %v883, 0.0
    %v959 = vmax.f32 %v796, 0.0
    %v960 = vmax.f32 %v885, 0.0
    %v961 = vmax.f32 %v799, 0.0
    %v962 = vmax.f32 %v888, 0.0
    %v963 = vmax.f32 %v801, 0.0
    %v964 = vmax.f32 %v890, 0.0
    %v965 = vmax.f32 %v804, 0.0
    %v966 = vmax.f32 %v893, 0.0
    %v967 = vmax.f32 %v806, 0.0
    %v968 = vmax.f32 %v895, 0.0
    %v969 = vmax.f32 %v809, 0.0
    %v970 = vmax.f32 %v898, 0.0
    %v971 = vmax.f32 %v811, 0.0
    %v972 = vmax.f32 %v900, 0.0
    %v973 = vmax.f32 %v814, 0.0
    %v974 = vmax.f32 %v903, 0.0
    %v975 = vmax.f32 %v816, 0.0
    %v976 = vmax.f32 %v905, 0.0
    %v977 = vmax.f32 %v819, 0.0
    %v978 = vmax.f32 %v908, 0.0
    %v979 = vmax.f32 %v821, 0.0
    %v980 = vmax.f32 %v910, 0.0
    %v981 = vmax.f32 %v824, 0.0
    %v982 = vmax.f32 %v913, 0.0
    %v983 = vmax.f32 %v826, 0.0
    %v984 = vmax.f32 %v915, 0.0
    %v985 = vmax.f32 %v829, 0.0
    %v986 = vmax.f32 %v918, 0.0
    %v987 = vmax.f32 %v831, 0.0
    %v988 = vmax.f32 %v920, 0.0
    %v989 = vmax.f32 %v834, 0.0
    %v990 = vmax.f32 %v923, 0.0
    %v991 = vmax.f32 %v836, 0.0
    %v992 = vmax.f32 %v925, 0.0
    %v993 = vmax.f32 %v839, 0.0
    %v994 = vmax.f32 %v928, 0.0
    %v995 = vmax.f32 %v841, 0.0
    %v996 = vmax.f32 %v930, 0.0
    %v997 = vmax.f32 %v844, 0.0
    %v998 = vmax.f32 %v933, 0.0
    %v999 = vmax.f32 %v846, 0.0
    %v1000 = vmax.f32 %v935, 0.0
    %v1001 = vld [vmem:[#allocation10] sm:$0xff]
    %v1002 = vld [vmem:[#allocation10 + $0x8] sm:$0xff]
    %v1003 = vld [vmem:[#allocation10 + $0x10] sm:$0xff]
    %v1004 = vld [vmem:[#allocation10 + $0x18] sm:$0xff]
    %v1005 = vld [vmem:[#allocation10 + $0x20] sm:$0xff]
    %v1006 = vld [vmem:[#allocation10 + $0x28] sm:$0xff]
    %v1007 = vld [vmem:[#allocation10 + $0x30] sm:$0xff]
    %v1008 = vld [vmem:[#allocation10 + $0x38] sm:$0xff]
    %v1009 = vld [vmem:[#allocation10 + $0x40] sm:$0xff]
    %v1010 = vld [vmem:[#allocation10 + $0x48] sm:$0xff]
    %v1011 = vld [vmem:[#allocation10 + $0x50] sm:$0xff]
    %v1012 = vld [vmem:[#allocation10 + $0x58] sm:$0xff]
    %v1013 = vld [vmem:[#allocation10 + $0x60] sm:$0xff]
    %v1014 = vld [vmem:[#allocation10 + $0x68] sm:$0xff]
    %v1015 = vld [vmem:[#allocation10 + $0x70] sm:$0xff]
    %v1016 = vld [vmem:[#allocation10 + $0x78] sm:$0xff]
    %v1017 = vld [vmem:[#allocation10 + $0x80] sm:$0xff]
    %v1018 = vld [vmem:[#allocation10 + $0x88] sm:$0xff]
    %v1019 = vld [vmem:[#allocation10 + $0x90] sm:$0xff]
    %v1020 = vld [vmem:[#allocation10 + $0x98] sm:$0xff]
    %v1021 = vld [vmem:[#allocation10 + $0xa0] sm:$0xff]
    %v1022 = vld [vmem:[#allocation10 + $0xa8] sm:$0xff]
    %v1023 = vld [vmem:[#allocation10 + $0xb0] sm:$0xff]
    %v1024 = vld [vmem:[#allocation10 + $0xb8] sm:$0xff]
    %v1025 = vld [vmem:[#allocation10 + $0xc0] sm:$0xff]
    %v1026 = vld [vmem:[#allocation10 + $0xc8] sm:$0xff]
    %v1027 = vld [vmem:[#allocation10 + $0xd0] sm:$0xff]
    %v1028 = vld [vmem:[#allocation10 + $0xd8] sm:$0xff]
    %v1029 = vld [vmem:[#allocation10 + $0xe0] sm:$0xff]
    %v1030 = vld [vmem:[#allocation10 + $0xe8] sm:$0xff]
    %v1031 = vld [vmem:[#allocation10 + $0xf0] sm:$0xff]
    %v1032 = vld [vmem:[#allocation10 + $0xf8] sm:$0xff]
    %v1033 = vpack.c.bf16 %v939, %v937
    %v1034 = vpack.c.bf16 %v940, %v938
    %v1035 = vpack.c.bf16 %v943, %v941
    %v1036 = vpack.c.bf16 %v944, %v942
    %v1037 = vpack.c.bf16 %v947, %v945
    %v1038 = vpack.c.bf16 %v948, %v946
    %v1039 = vpack.c.bf16 %v951, %v949
    %v1040 = vpack.c.bf16 %v952, %v950
    %v1041 = vpack.c.bf16 %v955, %v953
    %v1042 = vpack.c.bf16 %v956, %v954
    %v1043 = vpack.c.bf16 %v959, %v957
    %v1044 = vpack.c.bf16 %v960, %v958
    %v1045 = vpack.c.bf16 %v963, %v961
    %v1046 = vpack.c.bf16 %v964, %v962
    %v1047 = vpack.c.bf16 %v967, %v965
    %v1048 = vpack.c.bf16 %v968, %v966
    %v1049 = vpack.c.bf16 %v971, %v969
    %v1050 = vpack.c.bf16 %v972, %v970
    %v1051 = vpack.c.bf16 %v975, %v973
    %v1052 = vpack.c.bf16 %v976, %v974
    %v1053 = vpack.c.bf16 %v979, %v977
    %v1054 = vpack.c.bf16 %v980, %v978
    %v1055 = vpack.c.bf16 %v983, %v981
    %v1056 = vpack.c.bf16 %v984, %v982
    %v1057 = vpack.c.bf16 %v987, %v985
    %v1058 = vpack.c.bf16 %v988, %v986
    %v1059 = vpack.c.bf16 %v991, %v989
    %v1060 = vpack.c.bf16 %v992, %v990
    %v1061 = vpack.c.bf16 %v995, %v993
    %v1062 = vpack.c.bf16 %v996, %v994
    %v1063 = vpack.c.bf16 %v999, %v997
    %v1064 = vpack.c.bf16 %v1000, %v998
    %v1065 = vld [vmem:[#allocation12] sm:$0xff]
    %v1066 = vld [vmem:[#allocation12 + $0x8] sm:$0xff]
    %v1067 = vld [vmem:[#allocation12 + $0x10] sm:$0xff]
    %v1068 = vld [vmem:[#allocation12 + $0x18] sm:$0xff]
    %v1069 = vld [vmem:[#allocation12 + $0x20] sm:$0xff]
    %v1070 = vld [vmem:[#allocation12 + $0x28] sm:$0xff]
    %v1071 = vld [vmem:[#allocation12 + $0x30] sm:$0xff]
    %v1072 = vld [vmem:[#allocation12 + $0x38] sm:$0xff]
    %v1073 = vld [vmem:[#allocation12 + $0x40] sm:$0xff]
    %v1074 = vld [vmem:[#allocation12 + $0x48] sm:$0xff]
    %v1075 = vld [vmem:[#allocation12 + $0x50] sm:$0xff]
    %v1076 = vld [vmem:[#allocation12 + $0x58] sm:$0xff]
    %v1077 = vld [vmem:[#allocation12 + $0x60] sm:$0xff]
    %v1078 = vld [vmem:[#allocation12 + $0x68] sm:$0xff]
    %v1079 = vld [vmem:[#allocation12 + $0x70] sm:$0xff]
    %v1080 = vld [vmem:[#allocation12 + $0x78] sm:$0xff]
    %v1081 = vld [vmem:[#allocation12 + $0x80] sm:$0xff]
    %v1082 = vld [vmem:[#allocation12 + $0x88] sm:$0xff]
    %v1083 = vld [vmem:[#allocation12 + $0x90] sm:$0xff]
    %v1084 = vld [vmem:[#allocation12 + $0x98] sm:$0xff]
    %v1085 = vld [vmem:[#allocation12 + $0xa0] sm:$0xff]
    %v1086 = vld [vmem:[#allocation12 + $0xa8] sm:$0xff]
    %v1087 = vld [vmem:[#allocation12 + $0xb0] sm:$0xff]
    %v1088 = vld [vmem:[#allocation12 + $0xb8] sm:$0xff]
    %v1089 = vld [vmem:[#allocation12 + $0xc0] sm:$0xff]
    %v1090 = vld [vmem:[#allocation12 + $0xc8] sm:$0xff]
    %v1091 = vld [vmem:[#allocation12 + $0xd0] sm:$0xff]
    %v1092 = vld [vmem:[#allocation12 + $0xd8] sm:$0xff]
    %v1093 = vld [vmem:[#allocation12 + $0xe0] sm:$0xff]
    %v1094 = vld [vmem:[#allocation12 + $0xe8] sm:$0xff]
    %v1095 = vld [vmem:[#allocation12 + $0xf0] sm:$0xff]
    %v1096 = vld [vmem:[#allocation12 + $0xf8] sm:$0xff]
    %v1097 = vld [vmem:[#allocation12 + $0x100] sm:$0xff]
    %v1098 = vld [vmem:[#allocation12 + $0x108] sm:$0xff]
    %v1099 = vld [vmem:[#allocation12 + $0x110] sm:$0xff]
    %v1100 = vld [vmem:[#allocation12 + $0x118] sm:$0xff]
    %v1101 = vld [vmem:[#allocation12 + $0x120] sm:$0xff]
    %v1102 = vld [vmem:[#allocation12 + $0x128] sm:$0xff]
    %v1103 = vld [vmem:[#allocation12 + $0x130] sm:$0xff]
    %v1104 = vld [vmem:[#allocation12 + $0x138] sm:$0xff]
    %v1105 = vld [vmem:[#allocation12 + $0x140] sm:$0xff]
    %v1106 = vld [vmem:[#allocation12 + $0x148] sm:$0xff]
    %v1107 = vld [vmem:[#allocation12 + $0x150] sm:$0xff]
    %v1108 = vld [vmem:[#allocation12 + $0x158] sm:$0xff]
    %v1109 = vld [vmem:[#allocation12 + $0x160] sm:$0xff]
    %v1110 = vld [vmem:[#allocation12 + $0x168] sm:$0xff]
    %v1111 = vld [vmem:[#allocation12 + $0x170] sm:$0xff]
    %v1112 = vld [vmem:[#allocation12 + $0x178] sm:$0xff]
    %v1113 = vld [vmem:[#allocation12 + $0x180] sm:$0xff]
    %v1114 = vld [vmem:[#allocation12 + $0x188] sm:$0xff]
    %v1115 = vld [vmem:[#allocation12 + $0x190] sm:$0xff]
    %v1116 = vld [vmem:[#allocation12 + $0x198] sm:$0xff]
    %v1117 = vld [vmem:[#allocation12 + $0x1a0] sm:$0xff]
    %v1118 = vld [vmem:[#allocation12 + $0x1a8] sm:$0xff]
    %v1119 = vld [vmem:[#allocation12 + $0x1b0] sm:$0xff]
    %v1120 = vld [vmem:[#allocation12 + $0x1b8] sm:$0xff]
    %v1121 = vld [vmem:[#allocation12 + $0x1c0] sm:$0xff]
    %v1122 = vld [vmem:[#allocation12 + $0x1c8] sm:$0xff]
    %v1123 = vld [vmem:[#allocation12 + $0x1d0] sm:$0xff]
    %v1124 = vld [vmem:[#allocation12 + $0x1d8] sm:$0xff]
    %v1125 = vld [vmem:[#allocation12 + $0x1e0] sm:$0xff]
    %v1126 = vld [vmem:[#allocation12 + $0x1e8] sm:$0xff]
    %v1127 = vld [vmem:[#allocation12 + $0x1f0] sm:$0xff]
    %v1128 = vld [vmem:[#allocation12 + $0x1f8] sm:$0xff]
    %v1193 = vunpack.c.l.b16 %v1065
    %v1194 = vunpack.c.h.b16 %v1065
    %v1195 = vunpack.c.l.b16 %v1066
    %v1196 = vunpack.c.h.b16 %v1066
    %v1197 = vunpack.c.l.b16 %v1067
    %v1198 = vunpack.c.h.b16 %v1067
    %v1199 = vunpack.c.l.b16 %v1068
    %v1200 = vunpack.c.h.b16 %v1068
    %v1201 = vunpack.c.l.b16 %v1069
    %v1202 = vunpack.c.h.b16 %v1069
    %v1203 = vunpack.c.l.b16 %v1070
    %v1204 = vunpack.c.h.b16 %v1070
    %v1205 = vunpack.c.l.b16 %v1071
    %v1206 = vunpack.c.h.b16 %v1071
    %v1207 = vunpack.c.l.b16 %v1072
    %v1208 = vunpack.c.h.b16 %v1072
    %v1209 = vunpack.c.l.b16 %v1073
    %v1210 = vunpack.c.h.b16 %v1073
    %v1211 = vunpack.c.l.b16 %v1074
    %v1212 = vunpack.c.h.b16 %v1074
    %v1213 = vunpack.c.l.b16 %v1075
    %v1214 = vunpack.c.h.b16 %v1075
    %v1215 = vunpack.c.l.b16 %v1076
    %v1216 = vunpack.c.h.b16 %v1076
    %v1217 = vunpack.c.l.b16 %v1077
    %v1218 = vunpack.c.h.b16 %v1077
    %v1219 = vunpack.c.l.b16 %v1078
    %v1220 = vunpack.c.h.b16 %v1078
    %v1221 = vunpack.c.l.b16 %v1079
    %v1222 = vunpack.c.h.b16 %v1079
    %v1223 = vunpack.c.l.b16 %v1080
    %v1224 = vunpack.c.h.b16 %v1080
    %v1225 = vunpack.c.l.b16 %v1081
    %v1226 = vunpack.c.h.b16 %v1081
    %v1227 = vunpack.c.l.b16 %v1082
    %v1228 = vunpack.c.h.b16 %v1082
    %v1229 = vunpack.c.l.b16 %v1083
    %v1230 = vunpack.c.h.b16 %v1083
    %v1231 = vunpack.c.l.b16 %v1084
    %v1232 = vunpack.c.h.b16 %v1084
    %v1233 = vunpack.c.l.b16 %v1085
    %v1234 = vunpack.c.h.b16 %v1085
    %v1235 = vunpack.c.l.b16 %v1086
    %v1236 = vunpack.c.h.b16 %v1086
    %v1237 = vunpack.c.l.b16 %v1087
    %v1238 = vunpack.c.h.b16 %v1087
    %v1239 = vunpack.c.l.b16 %v1088
    %v1240 = vunpack.c.h.b16 %v1088
    %v1241 = vunpack.c.l.b16 %v1089
    %v1242 = vunpack.c.h.b16 %v1089
    %v1243 = vunpack.c.l.b16 %v1090
    %v1244 = vunpack.c.h.b16 %v1090
    %v1245 = vunpack.c.l.b16 %v1091
    %v1246 = vunpack.c.h.b16 %v1091
    %v1247 = vunpack.c.l.b16 %v1092
    %v1248 = vunpack.c.h.b16 %v1092
    %v1249 = vunpack.c.l.b16 %v1093
    %v1250 = vunpack.c.h.b16 %v1093
    %v1251 = vunpack.c.l.b16 %v1094
    %v1252 = vunpack.c.h.b16 %v1094
    %v1253 = vunpack.c.l.b16 %v1095
    %v1254 = vunpack.c.h.b16 %v1095
    %v1255 = vunpack.c.l.b16 %v1096
    %v1256 = vunpack.c.h.b16 %v1096
    %v1257 = vunpack.c.l.b16 %v1097
    %v1258 = vunpack.c.h.b16 %v1097
    %v1259 = vunpack.c.l.b16 %v1098
    %v1260 = vunpack.c.h.b16 %v1098
    %v1261 = vunpack.c.l.b16 %v1099
    %v1262 = vunpack.c.h.b16 %v1099
    %v1263 = vunpack.c.l.b16 %v1100
    %v1264 = vunpack.c.h.b16 %v1100
    %v1265 = vunpack.c.l.b16 %v1101
    %v1266 = vunpack.c.h.b16 %v1101
    %v1267 = vunpack.c.l.b16 %v1102
    %v1268 = vunpack.c.h.b16 %v1102
    %v1269 = vunpack.c.l.b16 %v1103
    %v1270 = vunpack.c.h.b16 %v1103
    %v1271 = vunpack.c.l.b16 %v1104
    %v1272 = vunpack.c.h.b16 %v1104
    %v1273 = vunpack.c.l.b16 %v1105
    %v1274 = vunpack.c.h.b16 %v1105
    %v1275 = vunpack.c.l.b16 %v1106
    %v1276 = vunpack.c.h.b16 %v1106
    %v1277 = vunpack.c.l.b16 %v1107
    %v1278 = vunpack.c.h.b16 %v1107
    %v1279 = vunpack.c.l.b16 %v1108
    %v1280 = vunpack.c.h.b16 %v1108
    %v1281 = vunpack.c.l.b16 %v1109
    %v1282 = vunpack.c.h.b16 %v1109
    %v1283 = vunpack.c.l.b16 %v1110
    %v1284 = vunpack.c.h.b16 %v1110
    %v1285 = vunpack.c.l.b16 %v1111
    %v1286 = vunpack.c.h.b16 %v1111
    %v1287 = vunpack.c.l.b16 %v1112
    %v1288 = vunpack.c.h.b16 %v1112
    %v1289 = vunpack.c.l.b16 %v1113
    %v1290 = vunpack.c.h.b16 %v1113
    %v1291 = vunpack.c.l.b16 %v1114
    %v1292 = vunpack.c.h.b16 %v1114
    %v1293 = vunpack.c.l.b16 %v1115
    %v1294 = vunpack.c.h.b16 %v1115
    %v1295 = vunpack.c.l.b16 %v1116
    %v1296 = vunpack.c.h.b16 %v1116
    %v1297 = vunpack.c.l.b16 %v1117
    %v1298 = vunpack.c.h.b16 %v1117
    %v1299 = vunpack.c.l.b16 %v1118
    %v1300 = vunpack.c.h.b16 %v1118
    %v1301 = vunpack.c.l.b16 %v1119
    %v1302 = vunpack.c.h.b16 %v1119
    %v1303 = vunpack.c.l.b16 %v1120
    %v1304 = vunpack.c.h.b16 %v1120
    %v1305 = vunpack.c.l.b16 %v1121
    %v1306 = vunpack.c.h.b16 %v1121
    %v1307 = vunpack.c.l.b16 %v1122
    %v1308 = vunpack.c.h.b16 %v1122
    %v1309 = vunpack.c.l.b16 %v1123
    %v1310 = vunpack.c.h.b16 %v1123
    %v1311 = vunpack.c.l.b16 %v1124
    %v1312 = vunpack.c.h.b16 %v1124
    %v1313 = vunpack.c.l.b16 %v1125
    %v1314 = vunpack.c.h.b16 %v1125
    %v1315 = vunpack.c.l.b16 %v1126
    %v1316 = vunpack.c.h.b16 %v1126
    %v1317 = vunpack.c.l.b16 %v1127
    %v1318 = vunpack.c.h.b16 %v1127
    %v1319 = vunpack.c.l.b16 %v1128
    %v1320 = vunpack.c.h.b16 %v1128
    %v1321 = vpack.c.b16 %v1197, %v1193
    %v1322 = vpack.c.b16 %v1198, %v1194
    %v1323 = vpack.c.b16 %v1199, %v1195
    %v1324 = vpack.c.b16 %v1200, %v1196
    %v1325 = vpack.c.b16 %v1205, %v1201
    %v1326 = vpack.c.b16 %v1206, %v1202
    %v1327 = vpack.c.b16 %v1207, %v1203
    %v1328 = vpack.c.b16 %v1208, %v1204
    %v1329 = vpack.c.b16 %v1213, %v1209
    %v1330 = vpack.c.b16 %v1214, %v1210
    %v1331 = vpack.c.b16 %v1215, %v1211
    %v1332 = vpack.c.b16 %v1216, %v1212
    %v1333 = vpack.c.b16 %v1221, %v1217
    %v1334 = vpack.c.b16 %v1222, %v1218
    %v1335 = vpack.c.b16 %v1223, %v1219
    %v1336 = vpack.c.b16 %v1224, %v1220
    %v1337 = vpack.c.b16 %v1229, %v1225
    %v1338 = vpack.c.b16 %v1230, %v1226
    %v1339 = vpack.c.b16 %v1231, %v1227
    %v1340 = vpack.c.b16 %v1232, %v1228
    %v1341 = vpack.c.b16 %v1237, %v1233
    %v1342 = vpack.c.b16 %v1238, %v1234
    %v1343 = vpack.c.b16 %v1239, %v1235
    %v1344 = vpack.c.b16 %v1240, %v1236
    %v1345 = vpack.c.b16 %v1245, %v1241
    %v1346 = vpack.c.b16 %v1246, %v1242
    %v1347 = vpack.c.b16 %v1247, %v1243
    %v1348 = vpack.c.b16 %v1248, %v1244
    %v1349 = vpack.c.b16 %v1253, %v1249
    %v1350 = vpack.c.b16 %v1254, %v1250
    %v1351 = vpack.c.b16 %v1255, %v1251
    %v1352 = vpack.c.b16 %v1256, %v1252
    %v1353 = vpack.c.b16 %v1261, %v1257
    %v1354 = vpack.c.b16 %v1262, %v1258
    %v1355 = vpack.c.b16 %v1263, %v1259
    %v1356 = vpack.c.b16 %v1264, %v1260
    %v1357 = vpack.c.b16 %v1269, %v1265
    %v1358 = vpack.c.b16 %v1270, %v1266
    %v1359 = vpack.c.b16 %v1271, %v1267
    %v1360 = vpack.c.b16 %v1272, %v1268
    %v1361 = vpack.c.b16 %v1277, %v1273
    %v1362 = vpack.c.b16 %v1278, %v1274
    %v1363 = vpack.c.b16 %v1279, %v1275
    %v1364 = vpack.c.b16 %v1280, %v1276
    %v1365 = vpack.c.b16 %v1285, %v1281
    %v1366 = vpack.c.b16 %v1286, %v1282
    %v1367 = vpack.c.b16 %v1287, %v1283
    %v1368 = vpack.c.b16 %v1288, %v1284
    %v1369 = vpack.c.b16 %v1293, %v1289
    %v1370 = vpack.c.b16 %v1294, %v1290
    %v1371 = vpack.c.b16 %v1295, %v1291
    %v1372 = vpack.c.b16 %v1296, %v1292
    %v1373 = vpack.c.b16 %v1301, %v1297
    %v1374 = vpack.c.b16 %v1302, %v1298
    %v1375 = vpack.c.b16 %v1303, %v1299
    %v1376 = vpack.c.b16 %v1304, %v1300
    %v1377 = vpack.c.b16 %v1309, %v1305
    %v1378 = vpack.c.b16 %v1310, %v1306
    %v1379 = vpack.c.b16 %v1311, %v1307
    %v1380 = vpack.c.b16 %v1312, %v1308
    %v1381 = vpack.c.b16 %v1317, %v1313
    %v1382 = vpack.c.b16 %v1318, %v1314
    %v1383 = vpack.c.b16 %v1319, %v1315
    %v1384 = vpack.c.b16 %v1320, %v1316
    %1449 = vmatpush.bf16.msra.mxu0 %v1349
    %1450 = vmatpush.bf16.msra.mxu0 %v1345
    %1451 = vmatpush.bf16.msra.mxu0 %v1341
    %1452 = vmatpush.bf16.msra.mxu0 %v1337
    %1453 = vmatpush.bf16.msra.mxu0 %v1333
    %1454 = vmatpush.bf16.msra.mxu0 %v1329
    %1455 = vmatpush.bf16.msra.mxu0 %v1325
    %1456 = vmatpush.bf16.msra.mxu0 %v1321
    %1457 = vmatmul.bf16.gmra.mxu0 %v1033
    %v1458 = vpop.f32.mrf.mxu0
    %v1459 = vadd.f32 0.0, %v1458
    %v1460 = vpop.f32.mrf.mxu0
    %v1461 = vadd.f32 0.0, %v1460
    %1462 = vmatmul.bf16.gmra.mxu0 %v1035
    %v1463 = vpop.f32.mrf.mxu0
    %v1464 = vadd.f32 0.0, %v1463
    %v1465 = vpop.f32.mrf.mxu0
    %v1466 = vadd.f32 0.0, %v1465
    %1467 = vmatmul.bf16.gmra.mxu0 %v1037
    %v1468 = vpop.f32.mrf.mxu0
    %v1469 = vadd.f32 0.0, %v1468
    %v1470 = vpop.f32.mrf.mxu0
    %v1471 = vadd.f32 0.0, %v1470
    %1472 = vmatmul.bf16.gmra.mxu0 %v1039
    %v1473 = vpop.f32.mrf.mxu0
    %v1474 = vadd.f32 0.0, %v1473
    %v1475 = vpop.f32.mrf.mxu0
    %v1476 = vadd.f32 0.0, %v1475
    %1477 = vmatmul.bf16.gmra.mxu0 %v1041
    %v1478 = vpop.f32.mrf.mxu0
    %v1479 = vadd.f32 0.0, %v1478
    %v1480 = vpop.f32.mrf.mxu0
    %v1481 = vadd.f32 0.0, %v1480
    %1482 = vmatmul.bf16.gmra.mxu0 %v1043
    %v1483 = vpop.f32.mrf.mxu0
    %v1484 = vadd.f32 0.0, %v1483
    %v1485 = vpop.f32.mrf.mxu0
    %v1486 = vadd.f32 0.0, %v1485
    %1487 = vmatmul.bf16.gmra.mxu0 %v1045
    %v1488 = vpop.f32.mrf.mxu0
    %v1489 = vadd.f32 0.0, %v1488
    %v1490 = vpop.f32.mrf.mxu0
    %v1491 = vadd.f32 0.0, %v1490
    %1492 = vmatmul.bf16.gmra.mxu0 %v1047
    %v1493 = vpop.f32.mrf.mxu0
    %v1494 = vadd.f32 0.0, %v1493
    %v1495 = vpop.f32.mrf.mxu0
    %v1496 = vadd.f32 0.0, %v1495
    %1497 = vmatmul.bf16.gmra.mxu0 %v1049
    %v1498 = vpop.f32.mrf.mxu0
    %v1499 = vadd.f32 0.0, %v1498
    %v1500 = vpop.f32.mrf.mxu0
    %v1501 = vadd.f32 0.0, %v1500
    %1502 = vmatmul.bf16.gmra.mxu0 %v1051
    %v1503 = vpop.f32.mrf.mxu0
    %v1504 = vadd.f32 0.0, %v1503
    %v1505 = vpop.f32.mrf.mxu0
    %v1506 = vadd.f32 0.0, %v1505
    %1507 = vmatmul.bf16.gmra.mxu0 %v1053
    %v1508 = vpop.f32.mrf.mxu0
    %v1509 = vadd.f32 0.0, %v1508
    %v1510 = vpop.f32.mrf.mxu0
    %v1511 = vadd.f32 0.0, %v1510
    %1512 = vmatmul.bf16.gmra.mxu0 %v1055
    %v1513 = vpop.f32.mrf.mxu0
    %v1514 = vadd.f32 0.0, %v1513
    %v1515 = vpop.f32.mrf.mxu0
    %v1516 = vadd.f32 0.0, %v1515
    %1517 = vmatmul.bf16.gmra.mxu0 %v1057
    %v1518 = vpop.f32.mrf.mxu0
    %v1519 = vadd.f32 0.0, %v1518
    %v1520 = vpop.f32.mrf.mxu0
    %v1521 = vadd.f32 0.0, %v1520
    %1522 = vmatmul.bf16.gmra.mxu0 %v1059
    %v1523 = vpop.f32.mrf.mxu0
    %v1524 = vadd.f32 0.0, %v1523
    %v1525 = vpop.f32.mrf.mxu0
    %v1526 = vadd.f32 0.0, %v1525
    %1527 = vmatmul.bf16.gmra.mxu0 %v1061
    %v1528 = vpop.f32.mrf.mxu0
    %v1529 = vadd.f32 0.0, %v1528
    %v1530 = vpop.f32.mrf.mxu0
    %v1531 = vadd.f32 0.0, %v1530
    %1532 = vmatmul.bf16.gmra.mxu0 %v1063
    %v1533 = vpop.f32.mrf.mxu0
    %v1534 = vadd.f32 0.0, %v1533
    %v1535 = vpop.f32.mrf.mxu0
    %v1536 = vadd.f32 0.0, %v1535
    %1537 = vdwg.mxu0
    %1538 = vmatpush.bf16.msra.mxu0 %v1381
    %1539 = vmatpush.bf16.msra.mxu0 %v1377
    %1540 = vmatpush.bf16.msra.mxu0 %v1373
    %1541 = vmatpush.bf16.msra.mxu0 %v1369
    %1542 = vmatpush.bf16.msra.mxu0 %v1365
    %1543 = vmatpush.bf16.msra.mxu0 %v1361
    %1544 = vmatpush.bf16.msra.mxu0 %v1357
    %1545 = vmatpush.bf16.msra.mxu0 %v1353
    %1546 = vmatmul.bf16.gmra.mxu0 %v1034
    %v1547 = vpop.f32.mrf.mxu0
    %v1548 = vadd.f32 %v1459, %v1547
    %v1549 = vpop.f32.mrf.mxu0
    %v1550 = vadd.f32 %v1461, %v1549
    %1551 = vmatmul.bf16.gmra.mxu0 %v1036
    %v1552 = vpop.f32.mrf.mxu0
    %v1553 = vadd.f32 %v1464, %v1552
    %v1554 = vpop.f32.mrf.mxu0
    %v1555 = vadd.f32 %v1466, %v1554
    %1556 = vmatmul.bf16.gmra.mxu0 %v1038
    %v1557 = vpop.f32.mrf.mxu0
    %v1558 = vadd.f32 %v1469, %v1557
    %v1559 = vpop.f32.mrf.mxu0
    %v1560 = vadd.f32 %v1471, %v1559
    %1561 = vmatmul.bf16.gmra.mxu0 %v1040
    %v1562 = vpop.f32.mrf.mxu0
    %v1563 = vadd.f32 %v1474, %v1562
    %v1564 = vpop.f32.mrf.mxu0
    %v1565 = vadd.f32 %v1476, %v1564
    %1566 = vmatmul.bf16.gmra.mxu0 %v1042
    %v1567 = vpop.f32.mrf.mxu0
    %v1568 = vadd.f32 %v1479, %v1567
    %v1569 = vpop.f32.mrf.mxu0
    %v1570 = vadd.f32 %v1481, %v1569
    %1571 = vmatmul.bf16.gmra.mxu0 %v1044
    %v1572 = vpop.f32.mrf.mxu0
    %v1573 = vadd.f32 %v1484, %v1572
    %v1574 = vpop.f32.mrf.mxu0
    %v1575 = vadd.f32 %v1486, %v1574
    %1576 = vmatmul.bf16.gmra.mxu0 %v1046
    %v1577 = vpop.f32.mrf.mxu0
    %v1578 = vadd.f32 %v1489, %v1577
    %v1579 = vpop.f32.mrf.mxu0
    %v1580 = vadd.f32 %v1491, %v1579
    %1581 = vmatmul.bf16.gmra.mxu0 %v1048
    %v1582 = vpop.f32.mrf.mxu0
    %v1583 = vadd.f32 %v1494, %v1582
    %v1584 = vpop.f32.mrf.mxu0
    %v1585 = vadd.f32 %v1496, %v1584
    %1586 = vmatmul.bf16.gmra.mxu0 %v1050
    %v1587 = vpop.f32.mrf.mxu0
    %v1588 = vadd.f32 %v1499, %v1587
    %v1589 = vpop.f32.mrf.mxu0
    %v1590 = vadd.f32 %v1501, %v1589
    %1591 = vmatmul.bf16.gmra.mxu0 %v1052
    %v1592 = vpop.f32.mrf.mxu0
    %v1593 = vadd.f32 %v1504, %v1592
    %v1594 = vpop.f32.mrf.mxu0
    %v1595 = vadd.f32 %v1506, %v1594
    %1596 = vmatmul.bf16.gmra.mxu0 %v1054
    %v1597 = vpop.f32.mrf.mxu0
    %v1598 = vadd.f32 %v1509, %v1597
    %v1599 = vpop.f32.mrf.mxu0
    %v1600 = vadd.f32 %v1511, %v1599
    %1601 = vmatmul.bf16.gmra.mxu0 %v1056
    %v1602 = vpop.f32.mrf.mxu0
    %v1603 = vadd.f32 %v1514, %v1602
    %v1604 = vpop.f32.mrf.mxu0
    %v1605 = vadd.f32 %v1516, %v1604
    %1606 = vmatmul.bf16.gmra.mxu0 %v1058
    %v1607 = vpop.f32.mrf.mxu0
    %v1608 = vadd.f32 %v1519, %v1607
    %v1609 = vpop.f32.mrf.mxu0
    %v1610 = vadd.f32 %v1521, %v1609
    %1611 = vmatmul.bf16.gmra.mxu0 %v1060
    %v1612 = vpop.f32.mrf.mxu0
    %v1613 = vadd.f32 %v1524, %v1612
    %v1614 = vpop.f32.mrf.mxu0
    %v1615 = vadd.f32 %v1526, %v1614
    %1616 = vmatmul.bf16.gmra.mxu0 %v1062
    %v1617 = vpop.f32.mrf.mxu0
    %v1618 = vadd.f32 %v1529, %v1617
    %v1619 = vpop.f32.mrf.mxu0
    %v1620 = vadd.f32 %v1531, %v1619
    %1621 = vmatmul.bf16.gmra.mxu0 %v1064
    %v1622 = vpop.f32.mrf.mxu0
    %v1623 = vadd.f32 %v1534, %v1622
    %v1624 = vpop.f32.mrf.mxu0
    %v1625 = vadd.f32 %v1536, %v1624
    %1626 = vdwg.mxu0
    %1627 = vmatpush.bf16.msra.mxu0 %v1350
    %1628 = vmatpush.bf16.msra.mxu0 %v1346
    %1629 = vmatpush.bf16.msra.mxu0 %v1342
    %1630 = vmatpush.bf16.msra.mxu0 %v1338
    %1631 = vmatpush.bf16.msra.mxu0 %v1334
    %1632 = vmatpush.bf16.msra.mxu0 %v1330
    %1633 = vmatpush.bf16.msra.mxu0 %v1326
    %1634 = vmatpush.bf16.msra.mxu0 %v1322
    %1635 = vmatmul.bf16.gmra.mxu0 %v1033
    %v1636 = vpop.f32.mrf.mxu0
    %v1637 = vadd.f32 0.0, %v1636
    %v1638 = vpop.f32.mrf.mxu0
    %v1639 = vadd.f32 0.0, %v1638
    %1640 = vmatmul.bf16.gmra.mxu0 %v1035
    %v1641 = vpop.f32.mrf.mxu0
    %v1642 = vadd.f32 0.0, %v1641
    %v1643 = vpop.f32.mrf.mxu0
    %v1644 = vadd.f32 0.0, %v1643
    %1645 = vmatmul.bf16.gmra.mxu0 %v1037
    %v1646 = vpop.f32.mrf.mxu0
    %v1647 = vadd.f32 0.0, %v1646
    %v1648 = vpop.f32.mrf.mxu0
    %v1649 = vadd.f32 0.0, %v1648
    %1650 = vmatmul.bf16.gmra.mxu0 %v1039
    %v1651 = vpop.f32.mrf.mxu0
    %v1652 = vadd.f32 0.0, %v1651
    %v1653 = vpop.f32.mrf.mxu0
    %v1654 = vadd.f32 0.0, %v1653
    %1655 = vmatmul.bf16.gmra.mxu0 %v1041
    %v1656 = vpop.f32.mrf.mxu0
    %v1657 = vadd.f32 0.0, %v1656
    %v1658 = vpop.f32.mrf.mxu0
    %v1659 = vadd.f32 0.0, %v1658
    %1660 = vmatmul.bf16.gmra.mxu0 %v1043
    %v1661 = vpop.f32.mrf.mxu0
    %v1662 = vadd.f32 0.0, %v1661
    %v1663 = vpop.f32.mrf.mxu0
    %v1664 = vadd.f32 0.0, %v1663
    %1665 = vmatmul.bf16.gmra.mxu0 %v1045
    %v1666 = vpop.f32.mrf.mxu0
    %v1667 = vadd.f32 0.0, %v1666
    %v1668 = vpop.f32.mrf.mxu0
    %v1669 = vadd.f32 0.0, %v1668
    %1670 = vmatmul.bf16.gmra.mxu0 %v1047
    %v1671 = vpop.f32.mrf.mxu0
    %v1672 = vadd.f32 0.0, %v1671
    %v1673 = vpop.f32.mrf.mxu0
    %v1674 = vadd.f32 0.0, %v1673
    %1675 = vmatmul.bf16.gmra.mxu0 %v1049
    %v1676 = vpop.f32.mrf.mxu0
    %v1677 = vadd.f32 0.0, %v1676
    %v1678 = vpop.f32.mrf.mxu0
    %v1679 = vadd.f32 0.0, %v1678
    %1680 = vmatmul.bf16.gmra.mxu0 %v1051
    %v1681 = vpop.f32.mrf.mxu0
    %v1682 = vadd.f32 0.0, %v1681
    %v1683 = vpop.f32.mrf.mxu0
    %v1684 = vadd.f32 0.0, %v1683
    %1685 = vmatmul.bf16.gmra.mxu0 %v1053
    %v1686 = vpop.f32.mrf.mxu0
    %v1687 = vadd.f32 0.0, %v1686
    %v1688 = vpop.f32.mrf.mxu0
    %v1689 = vadd.f32 0.0, %v1688
    %1690 = vmatmul.bf16.gmra.mxu0 %v1055
    %v1691 = vpop.f32.mrf.mxu0
    %v1692 = vadd.f32 0.0, %v1691
    %v1693 = vpop.f32.mrf.mxu0
    %v1694 = vadd.f32 0.0, %v1693
    %1695 = vmatmul.bf16.gmra.mxu0 %v1057
    %v1696 = vpop.f32.mrf.mxu0
    %v1697 = vadd.f32 0.0, %v1696
    %v1698 = vpop.f32.mrf.mxu0
    %v1699 = vadd.f32 0.0, %v1698
    %1700 = vmatmul.bf16.gmra.mxu0 %v1059
    %v1701 = vpop.f32.mrf.mxu0
    %v1702 = vadd.f32 0.0, %v1701
    %v1703 = vpop.f32.mrf.mxu0
    %v1704 = vadd.f32 0.0, %v1703
    %1705 = vmatmul.bf16.gmra.mxu0 %v1061
    %v1706 = vpop.f32.mrf.mxu0
    %v1707 = vadd.f32 0.0, %v1706
    %v1708 = vpop.f32.mrf.mxu0
    %v1709 = vadd.f32 0.0, %v1708
    %1710 = vmatmul.bf16.gmra.mxu0 %v1063
    %v1711 = vpop.f32.mrf.mxu0
    %v1712 = vadd.f32 0.0, %v1711
    %v1713 = vpop.f32.mrf.mxu0
    %v1714 = vadd.f32 0.0, %v1713
    %1715 = vdwg.mxu0
    %1716 = vmatpush.bf16.msra.mxu0 %v1382
    %1717 = vmatpush.bf16.msra.mxu0 %v1378
    %1718 = vmatpush.bf16.msra.mxu0 %v1374
    %1719 = vmatpush.bf16.msra.mxu0 %v1370
    %1720 = vmatpush.bf16.msra.mxu0 %v1366
    %1721 = vmatpush.bf16.msra.mxu0 %v1362
    %1722 = vmatpush.bf16.msra.mxu0 %v1358
    %1723 = vmatpush.bf16.msra.mxu0 %v1354
    %1724 = vmatmul.bf16.gmra.mxu0 %v1034
    %v1725 = vpop.f32.mrf.mxu0
    %v1726 = vadd.f32 %v1637, %v1725
    %v1727 = vpop.f32.mrf.mxu0
    %v1728 = vadd.f32 %v1639, %v1727
    %1729 = vmatmul.bf16.gmra.mxu0 %v1036
    %v1730 = vpop.f32.mrf.mxu0
    %v1731 = vadd.f32 %v1642, %v1730
    %v1732 = vpop.f32.mrf.mxu0
    %v1733 = vadd.f32 %v1644, %v1732
    %1734 = vmatmul.bf16.gmra.mxu0 %v1038
    %v1735 = vpop.f32.mrf.mxu0
    %v1736 = vadd.f32 %v1647, %v1735
    %v1737 = vpop.f32.mrf.mxu0
    %v1738 = vadd.f32 %v1649, %v1737
    %1739 = vmatmul.bf16.gmra.mxu0 %v1040
    %v1740 = vpop.f32.mrf.mxu0
    %v1741 = vadd.f32 %v1652, %v1740
    %v1742 = vpop.f32.mrf.mxu0
    %v1743 = vadd.f32 %v1654, %v1742
    %1744 = vmatmul.bf16.gmra.mxu0 %v1042
    %v1745 = vpop.f32.mrf.mxu0
    %v1746 = vadd.f32 %v1657, %v1745
    %v1747 = vpop.f32.mrf.mxu0
    %v1748 = vadd.f32 %v1659, %v1747
    %1749 = vmatmul.bf16.gmra.mxu0 %v1044
    %v1750 = vpop.f32.mrf.mxu0
    %v1751 = vadd.f32 %v1662, %v1750
    %v1752 = vpop.f32.mrf.mxu0
    %v1753 = vadd.f32 %v1664, %v1752
    %1754 = vmatmul.bf16.gmra.mxu0 %v1046
    %v1755 = vpop.f32.mrf.mxu0
    %v1756 = vadd.f32 %v1667, %v1755
    %v1757 = vpop.f32.mrf.mxu0
    %v1758 = vadd.f32 %v1669, %v1757
    %1759 = vmatmul.bf16.gmra.mxu0 %v1048
    %v1760 = vpop.f32.mrf.mxu0
    %v1761 = vadd.f32 %v1672, %v1760
    %v1762 = vpop.f32.mrf.mxu0
    %v1763 = vadd.f32 %v1674, %v1762
    %1764 = vmatmul.bf16.gmra.mxu0 %v1050
    %v1765 = vpop.f32.mrf.mxu0
    %v1766 = vadd.f32 %v1677, %v1765
    %v1767 = vpop.f32.mrf.mxu0
    %v1768 = vadd.f32 %v1679, %v1767
    %1769 = vmatmul.bf16.gmra.mxu0 %v1052
    %v1770 = vpop.f32.mrf.mxu0
    %v1771 = vadd.f32 %v1682, %v1770
    %v1772 = vpop.f32.mrf.mxu0
    %v1773 = vadd.f32 %v1684, %v1772
    %1774 = vmatmul.bf16.gmra.mxu0 %v1054
    %v1775 = vpop.f32.mrf.mxu0
    %v1776 = vadd.f32 %v1687, %v1775
    %v1777 = vpop.f32.mrf.mxu0
    %v1778 = vadd.f32 %v1689, %v1777
    %1779 = vmatmul.bf16.gmra.mxu0 %v1056
    %v1780 = vpop.f32.mrf.mxu0
    %v1781 = vadd.f32 %v1692, %v1780
    %v1782 = vpop.f32.mrf.mxu0
    %v1783 = vadd.f32 %v1694, %v1782
    %1784 = vmatmul.bf16.gmra.mxu0 %v1058
    %v1785 = vpop.f32.mrf.mxu0
    %v1786 = vadd.f32 %v1697, %v1785
    %v1787 = vpop.f32.mrf.mxu0
    %v1788 = vadd.f32 %v1699, %v1787
    %1789 = vmatmul.bf16.gmra.mxu0 %v1060
    %v1790 = vpop.f32.mrf.mxu0
    %v1791 = vadd.f32 %v1702, %v1790
    %v1792 = vpop.f32.mrf.mxu0
    %v1793 = vadd.f32 %v1704, %v1792
    %1794 = vmatmul.bf16.gmra.mxu0 %v1062
    %v1795 = vpop.f32.mrf.mxu0
    %v1796 = vadd.f32 %v1707, %v1795
    %v1797 = vpop.f32.mrf.mxu0
    %v1798 = vadd.f32 %v1709, %v1797
    %1799 = vmatmul.bf16.gmra.mxu0 %v1064
    %v1800 = vpop.f32.mrf.mxu0
    %v1801 = vadd.f32 %v1712, %v1800
    %v1802 = vpop.f32.mrf.mxu0
    %v1803 = vadd.f32 %v1714, %v1802
    %1804 = vdwg.mxu0
    %1805 = vmatpush.bf16.msra.mxu0 %v1351
    %1806 = vmatpush.bf16.msra.mxu0 %v1347
    %1807 = vmatpush.bf16.msra.mxu0 %v1343
    %1808 = vmatpush.bf16.msra.mxu0 %v1339
    %1809 = vmatpush.bf16.msra.mxu0 %v1335
    %1810 = vmatpush.bf16.msra.mxu0 %v1331
    %1811 = vmatpush.bf16.msra.mxu0 %v1327
    %1812 = vmatpush.bf16.msra.mxu0 %v1323
    %1813 = vmatmul.bf16.gmra.mxu0 %v1033
    %v1814 = vpop.f32.mrf.mxu0
    %v1815 = vadd.f32 0.0, %v1814
    %v1816 = vpop.f32.mrf.mxu0
    %v1817 = vadd.f32 0.0, %v1816
    %1818 = vmatmul.bf16.gmra.mxu0 %v1035
    %v1819 = vpop.f32.mrf.mxu0
    %v1820 = vadd.f32 0.0, %v1819
    %v1821 = vpop.f32.mrf.mxu0
    %v1822 = vadd.f32 0.0, %v1821
    %1823 = vmatmul.bf16.gmra.mxu0 %v1037
    %v1824 = vpop.f32.mrf.mxu0
    %v1825 = vadd.f32 0.0, %v1824
    %v1826 = vpop.f32.mrf.mxu0
    %v1827 = vadd.f32 0.0, %v1826
    %1828 = vmatmul.bf16.gmra.mxu0 %v1039
    %v1829 = vpop.f32.mrf.mxu0
    %v1830 = vadd.f32 0.0, %v1829
    %v1831 = vpop.f32.mrf.mxu0
    %v1832 = vadd.f32 0.0, %v1831
    %1833 = vmatmul.bf16.gmra.mxu0 %v1041
    %v1834 = vpop.f32.mrf.mxu0
    %v1835 = vadd.f32 0.0, %v1834
    %v1836 = vpop.f32.mrf.mxu0
    %v1837 = vadd.f32 0.0, %v1836
    %1838 = vmatmul.bf16.gmra.mxu0 %v1043
    %v1839 = vpop.f32.mrf.mxu0
    %v1840 = vadd.f32 0.0, %v1839
    %v1841 = vpop.f32.mrf.mxu0
    %v1842 = vadd.f32 0.0, %v1841
    %1843 = vmatmul.bf16.gmra.mxu0 %v1045
    %v1844 = vpop.f32.mrf.mxu0
    %v1845 = vadd.f32 0.0, %v1844
    %v1846 = vpop.f32.mrf.mxu0
    %v1847 = vadd.f32 0.0, %v1846
    %1848 = vmatmul.bf16.gmra.mxu0 %v1047
    %v1849 = vpop.f32.mrf.mxu0
    %v1850 = vadd.f32 0.0, %v1849
    %v1851 = vpop.f32.mrf.mxu0
    %v1852 = vadd.f32 0.0, %v1851
    %1853 = vmatmul.bf16.gmra.mxu0 %v1049
    %v1854 = vpop.f32.mrf.mxu0
    %v1855 = vadd.f32 0.0, %v1854
    %v1856 = vpop.f32.mrf.mxu0
    %v1857 = vadd.f32 0.0, %v1856
    %1858 = vmatmul.bf16.gmra.mxu0 %v1051
    %v1859 = vpop.f32.mrf.mxu0
    %v1860 = vadd.f32 0.0, %v1859
    %v1861 = vpop.f32.mrf.mxu0
    %v1862 = vadd.f32 0.0, %v1861
    %1863 = vmatmul.bf16.gmra.mxu0 %v1053
    %v1864 = vpop.f32.mrf.mxu0
    %v1865 = vadd.f32 0.0, %v1864
    %v1866 = vpop.f32.mrf.mxu0
    %v1867 = vadd.f32 0.0, %v1866
    %1868 = vmatmul.bf16.gmra.mxu0 %v1055
    %v1869 = vpop.f32.mrf.mxu0
    %v1870 = vadd.f32 0.0, %v1869
    %v1871 = vpop.f32.mrf.mxu0
    %v1872 = vadd.f32 0.0, %v1871
    %1873 = vmatmul.bf16.gmra.mxu0 %v1057
    %v1874 = vpop.f32.mrf.mxu0
    %v1875 = vadd.f32 0.0, %v1874
    %v1876 = vpop.f32.mrf.mxu0
    %v1877 = vadd.f32 0.0, %v1876
    %1878 = vmatmul.bf16.gmra.mxu0 %v1059
    %v1879 = vpop.f32.mrf.mxu0
    %v1880 = vadd.f32 0.0, %v1879
    %v1881 = vpop.f32.mrf.mxu0
    %v1882 = vadd.f32 0.0, %v1881
    %1883 = vmatmul.bf16.gmra.mxu0 %v1061
    %v1884 = vpop.f32.mrf.mxu0
    %v1885 = vadd.f32 0.0, %v1884
    %v1886 = vpop.f32.mrf.mxu0
    %v1887 = vadd.f32 0.0, %v1886
    %1888 = vmatmul.bf16.gmra.mxu0 %v1063
    %v1889 = vpop.f32.mrf.mxu0
    %v1890 = vadd.f32 0.0, %v1889
    %v1891 = vpop.f32.mrf.mxu0
    %v1892 = vadd.f32 0.0, %v1891
    %1893 = vdwg.mxu0
    %1894 = vmatpush.bf16.msra.mxu0 %v1383
    %1895 = vmatpush.bf16.msra.mxu0 %v1379
    %1896 = vmatpush.bf16.msra.mxu0 %v1375
    %1897 = vmatpush.bf16.msra.mxu0 %v1371
    %1898 = vmatpush.bf16.msra.mxu0 %v1367
    %1899 = vmatpush.bf16.msra.mxu0 %v1363
    %1900 = vmatpush.bf16.msra.mxu0 %v1359
    %1901 = vmatpush.bf16.msra.mxu0 %v1355
    %1902 = vmatmul.bf16.gmra.mxu0 %v1034
    %v1903 = vpop.f32.mrf.mxu0
    %v1904 = vadd.f32 %v1815, %v1903
    %v1905 = vpop.f32.mrf.mxu0
    %v1906 = vadd.f32 %v1817, %v1905
    %1907 = vmatmul.bf16.gmra.mxu0 %v1036
    %v1908 = vpop.f32.mrf.mxu0
    %v1909 = vadd.f32 %v1820, %v1908
    %v1910 = vpop.f32.mrf.mxu0
    %v1911 = vadd.f32 %v1822, %v1910
    %1912 = vmatmul.bf16.gmra.mxu0 %v1038
    %v1913 = vpop.f32.mrf.mxu0
    %v1914 = vadd.f32 %v1825, %v1913
    %v1915 = vpop.f32.mrf.mxu0
    %v1916 = vadd.f32 %v1827, %v1915
    %1917 = vmatmul.bf16.gmra.mxu0 %v1040
    %v1918 = vpop.f32.mrf.mxu0
    %v1919 = vadd.f32 %v1830, %v1918
    %v1920 = vpop.f32.mrf.mxu0
    %v1921 = vadd.f32 %v1832, %v1920
    %1922 = vmatmul.bf16.gmra.mxu0 %v1042
    %v1923 = vpop.f32.mrf.mxu0
    %v1924 = vadd.f32 %v1835, %v1923
    %v1925 = vpop.f32.mrf.mxu0
    %v1926 = vadd.f32 %v1837, %v1925
    %1927 = vmatmul.bf16.gmra.mxu0 %v1044
    %v1928 = vpop.f32.mrf.mxu0
    %v1929 = vadd.f32 %v1840, %v1928
    %v1930 = vpop.f32.mrf.mxu0
    %v1931 = vadd.f32 %v1842, %v1930
    %1932 = vmatmul.bf16.gmra.mxu0 %v1046
    %v1933 = vpop.f32.mrf.mxu0
    %v1934 = vadd.f32 %v1845, %v1933
    %v1935 = vpop.f32.mrf.mxu0
    %v1936 = vadd.f32 %v1847, %v1935
    %1937 = vmatmul.bf16.gmra.mxu0 %v1048
    %v1938 = vpop.f32.mrf.mxu0
    %v1939 = vadd.f32 %v1850, %v1938
    %v1940 = vpop.f32.mrf.mxu0
    %v1941 = vadd.f32 %v1852, %v1940
    %1942 = vmatmul.bf16.gmra.mxu0 %v1050
    %v1943 = vpop.f32.mrf.mxu0
    %v1944 = vadd.f32 %v1855, %v1943
    %v1945 = vpop.f32.mrf.mxu0
    %v1946 = vadd.f32 %v1857, %v1945
    %1947 = vmatmul.bf16.gmra.mxu0 %v1052
    %v1948 = vpop.f32.mrf.mxu0
    %v1949 = vadd.f32 %v1860, %v1948
    %v1950 = vpop.f32.mrf.mxu0
    %v1951 = vadd.f32 %v1862, %v1950
    %1952 = vmatmul.bf16.gmra.mxu0 %v1054
    %v1953 = vpop.f32.mrf.mxu0
    %v1954 = vadd.f32 %v1865, %v1953
    %v1955 = vpop.f32.mrf.mxu0
    %v1956 = vadd.f32 %v1867, %v1955
    %1957 = vmatmul.bf16.gmra.mxu0 %v1056
    %v1958 = vpop.f32.mrf.mxu0
    %v1959 = vadd.f32 %v1870, %v1958
    %v1960 = vpop.f32.mrf.mxu0
    %v1961 = vadd.f32 %v1872, %v1960
    %1962 = vmatmul.bf16.gmra.mxu0 %v1058
    %v1963 = vpop.f32.mrf.mxu0
    %v1964 = vadd.f32 %v1875, %v1963
    %v1965 = vpop.f32.mrf.mxu0
    %v1966 = vadd.f32 %v1877, %v1965
    %1967 = vmatmul.bf16.gmra.mxu0 %v1060
    %v1968 = vpop.f32.mrf.mxu0
    %v1969 = vadd.f32 %v1880, %v1968
    %v1970 = vpop.f32.mrf.mxu0
    %v1971 = vadd.f32 %v1882, %v1970
    %1972 = vmatmul.bf16.gmra.mxu0 %v1062
    %v1973 = vpop.f32.mrf.mxu0
    %v1974 = vadd.f32 %v1885, %v1973
    %v1975 = vpop.f32.mrf.mxu0
    %v1976 = vadd.f32 %v1887, %v1975
    %1977 = vmatmul.bf16.gmra.mxu0 %v1064
    %v1978 = vpop.f32.mrf.mxu0
    %v1979 = vadd.f32 %v1890, %v1978
    %v1980 = vpop.f32.mrf.mxu0
    %v1981 = vadd.f32 %v1892, %v1980
    %1982 = vdwg.mxu0
    %1983 = vmatpush.bf16.msra.mxu0 %v1352
    %1984 = vmatpush.bf16.msra.mxu0 %v1348
    %1985 = vmatpush.bf16.msra.mxu0 %v1344
    %1986 = vmatpush.bf16.msra.mxu0 %v1340
    %1987 = vmatpush.bf16.msra.mxu0 %v1336
    %1988 = vmatpush.bf16.msra.mxu0 %v1332
    %1989 = vmatpush.bf16.msra.mxu0 %v1328
    %1990 = vmatpush.bf16.msra.mxu0 %v1324
    %1991 = vmatmul.bf16.gmra.mxu0 %v1033
    %v1992 = vpop.f32.mrf.mxu0
    %v1993 = vadd.f32 0.0, %v1992
    %v1994 = vpop.f32.mrf.mxu0
    %v1995 = vadd.f32 0.0, %v1994
    %1996 = vmatmul.bf16.gmra.mxu0 %v1035
    %v1997 = vpop.f32.mrf.mxu0
    %v1998 = vadd.f32 0.0, %v1997
    %v1999 = vpop.f32.mrf.mxu0
    %v2000 = vadd.f32 0.0, %v1999
    %2001 = vmatmul.bf16.gmra.mxu0 %v1037
    %v2002 = vpop.f32.mrf.mxu0
    %v2003 = vadd.f32 0.0, %v2002
    %v2004 = vpop.f32.mrf.mxu0
    %v2005 = vadd.f32 0.0, %v2004
    %2006 = vmatmul.bf16.gmra.mxu0 %v1039
    %v2007 = vpop.f32.mrf.mxu0
    %v2008 = vadd.f32 0.0, %v2007
    %v2009 = vpop.f32.mrf.mxu0
    %v2010 = vadd.f32 0.0, %v2009
    %2011 = vmatmul.bf16.gmra.mxu0 %v1041
    %v2012 = vpop.f32.mrf.mxu0
    %v2013 = vadd.f32 0.0, %v2012
    %v2014 = vpop.f32.mrf.mxu0
    %v2015 = vadd.f32 0.0, %v2014
    %2016 = vmatmul.bf16.gmra.mxu0 %v1043
    %v2017 = vpop.f32.mrf.mxu0
    %v2018 = vadd.f32 0.0, %v2017
    %v2019 = vpop.f32.mrf.mxu0
    %v2020 = vadd.f32 0.0, %v2019
    %2021 = vmatmul.bf16.gmra.mxu0 %v1045
    %v2022 = vpop.f32.mrf.mxu0
    %v2023 = vadd.f32 0.0, %v2022
    %v2024 = vpop.f32.mrf.mxu0
    %v2025 = vadd.f32 0.0, %v2024
    %2026 = vmatmul.bf16.gmra.mxu0 %v1047
    %v2027 = vpop.f32.mrf.mxu0
    %v2028 = vadd.f32 0.0, %v2027
    %v2029 = vpop.f32.mrf.mxu0
    %v2030 = vadd.f32 0.0, %v2029
    %2031 = vmatmul.bf16.gmra.mxu0 %v1049
    %v2032 = vpop.f32.mrf.mxu0
    %v2033 = vadd.f32 0.0, %v2032
    %v2034 = vpop.f32.mrf.mxu0
    %v2035 = vadd.f32 0.0, %v2034
    %2036 = vmatmul.bf16.gmra.mxu0 %v1051
    %v2037 = vpop.f32.mrf.mxu0
    %v2038 = vadd.f32 0.0, %v2037
    %v2039 = vpop.f32.mrf.mxu0
    %v2040 = vadd.f32 0.0, %v2039
    %2041 = vmatmul.bf16.gmra.mxu0 %v1053
    %v2042 = vpop.f32.mrf.mxu0
    %v2043 = vadd.f32 0.0, %v2042
    %v2044 = vpop.f32.mrf.mxu0
    %v2045 = vadd.f32 0.0, %v2044
    %2046 = vmatmul.bf16.gmra.mxu0 %v1055
    %v2047 = vpop.f32.mrf.mxu0
    %v2048 = vadd.f32 0.0, %v2047
    %v2049 = vpop.f32.mrf.mxu0
    %v2050 = vadd.f32 0.0, %v2049
    %2051 = vmatmul.bf16.gmra.mxu0 %v1057
    %v2052 = vpop.f32.mrf.mxu0
    %v2053 = vadd.f32 0.0, %v2052
    %v2054 = vpop.f32.mrf.mxu0
    %v2055 = vadd.f32 0.0, %v2054
    %2056 = vmatmul.bf16.gmra.mxu0 %v1059
    %v2057 = vpop.f32.mrf.mxu0
    %v2058 = vadd.f32 0.0, %v2057
    %v2059 = vpop.f32.mrf.mxu0
    %v2060 = vadd.f32 0.0, %v2059
    %2061 = vmatmul.bf16.gmra.mxu0 %v1061
    %v2062 = vpop.f32.mrf.mxu0
    %v2063 = vadd.f32 0.0, %v2062
    %v2064 = vpop.f32.mrf.mxu0
    %v2065 = vadd.f32 0.0, %v2064
    %2066 = vmatmul.bf16.gmra.mxu0 %v1063
    %v2067 = vpop.f32.mrf.mxu0
    %v2068 = vadd.f32 0.0, %v2067
    %v2069 = vpop.f32.mrf.mxu0
    %v2070 = vadd.f32 0.0, %v2069
    %2071 = vdwg.mxu0
    %2072 = vmatpush.bf16.msra.mxu0 %v1384
    %2073 = vmatpush.bf16.msra.mxu0 %v1380
    %2074 = vmatpush.bf16.msra.mxu0 %v1376
    %2075 = vmatpush.bf16.msra.mxu0 %v1372
    %2076 = vmatpush.bf16.msra.mxu0 %v1368
    %2077 = vmatpush.bf16.msra.mxu0 %v1364
    %2078 = vmatpush.bf16.msra.mxu0 %v1360
    %2079 = vmatpush.bf16.msra.mxu0 %v1356
    %2080 = vmatmul.bf16.gmra.mxu0 %v1034
    %v2081 = vpop.f32.mrf.mxu0
    %v2082 = vadd.f32 %v1993, %v2081
    %v2083 = vpop.f32.mrf.mxu0
    %v2084 = vadd.f32 %v1995, %v2083
    %2085 = vmatmul.bf16.gmra.mxu0 %v1036
    %v2086 = vpop.f32.mrf.mxu0
    %v2087 = vadd.f32 %v1998, %v2086
    %v2088 = vpop.f32.mrf.mxu0
    %v2089 = vadd.f32 %v2000, %v2088
    %2090 = vmatmul.bf16.gmra.mxu0 %v1038
    %v2091 = vpop.f32.mrf.mxu0
    %v2092 = vadd.f32 %v2003, %v2091
    %v2093 = vpop.f32.mrf.mxu0
    %v2094 = vadd.f32 %v2005, %v2093
    %2095 = vmatmul.bf16.gmra.mxu0 %v1040
    %v2096 = vpop.f32.mrf.mxu0
    %v2097 = vadd.f32 %v2008, %v2096
    %v2098 = vpop.f32.mrf.mxu0
    %v2099 = vadd.f32 %v2010, %v2098
    %2100 = vmatmul.bf16.gmra.mxu0 %v1042
    %v2101 = vpop.f32.mrf.mxu0
    %v2102 = vadd.f32 %v2013, %v2101
    %v2103 = vpop.f32.mrf.mxu0
    %v2104 = vadd.f32 %v2015, %v2103
    %2105 = vmatmul.bf16.gmra.mxu0 %v1044
    %v2106 = vpop.f32.mrf.mxu0
    %v2107 = vadd.f32 %v2018, %v2106
    %v2108 = vpop.f32.mrf.mxu0
    %v2109 = vadd.f32 %v2020, %v2108
    %2110 = vmatmul.bf16.gmra.mxu0 %v1046
    %v2111 = vpop.f32.mrf.mxu0
    %v2112 = vadd.f32 %v2023, %v2111
    %v2113 = vpop.f32.mrf.mxu0
    %v2114 = vadd.f32 %v2025, %v2113
    %2115 = vmatmul.bf16.gmra.mxu0 %v1048
    %v2116 = vpop.f32.mrf.mxu0
    %v2117 = vadd.f32 %v2028, %v2116
    %v2118 = vpop.f32.mrf.mxu0
    %v2119 = vadd.f32 %v2030, %v2118
    %2120 = vmatmul.bf16.gmra.mxu0 %v1050
    %v2121 = vpop.f32.mrf.mxu0
    %v2122 = vadd.f32 %v2033, %v2121
    %v2123 = vpop.f32.mrf.mxu0
    %v2124 = vadd.f32 %v2035, %v2123
    %2125 = vmatmul.bf16.gmra.mxu0 %v1052
    %v2126 = vpop.f32.mrf.mxu0
    %v2127 = vadd.f32 %v2038, %v2126
    %v2128 = vpop.f32.mrf.mxu0
    %v2129 = vadd.f32 %v2040, %v2128
    %2130 = vmatmul.bf16.gmra.mxu0 %v1054
    %v2131 = vpop.f32.mrf.mxu0
    %v2132 = vadd.f32 %v2043, %v2131
    %v2133 = vpop.f32.mrf.mxu0
    %v2134 = vadd.f32 %v2045, %v2133
    %2135 = vmatmul.bf16.gmra.mxu0 %v1056
    %v2136 = vpop.f32.mrf.mxu0
    %v2137 = vadd.f32 %v2048, %v2136
    %v2138 = vpop.f32.mrf.mxu0
    %v2139 = vadd.f32 %v2050, %v2138
    %2140 = vmatmul.bf16.gmra.mxu0 %v1058
    %v2141 = vpop.f32.mrf.mxu0
    %v2142 = vadd.f32 %v2053, %v2141
    %v2143 = vpop.f32.mrf.mxu0
    %v2144 = vadd.f32 %v2055, %v2143
    %2145 = vmatmul.bf16.gmra.mxu0 %v1060
    %v2146 = vpop.f32.mrf.mxu0
    %v2147 = vadd.f32 %v2058, %v2146
    %v2148 = vpop.f32.mrf.mxu0
    %v2149 = vadd.f32 %v2060, %v2148
    %2150 = vmatmul.bf16.gmra.mxu0 %v1062
    %v2151 = vpop.f32.mrf.mxu0
    %v2152 = vadd.f32 %v2063, %v2151
    %v2153 = vpop.f32.mrf.mxu0
    %v2154 = vadd.f32 %v2065, %v2153
    %2155 = vmatmul.bf16.gmra.mxu0 %v1064
    %v2156 = vpop.f32.mrf.mxu0
    %v2157 = vadd.f32 %v2068, %v2156
    %v2158 = vpop.f32.mrf.mxu0
    %v2159 = vadd.f32 %v2070, %v2158
    %2160 = vdwg.mxu0
    %v2193 = vunpack.c.l.b16 %v1001
    %v2194 = vunpack.c.h.b16 %v1001
    %v2195 = vunpack.c.l.b16 %v1002
    %v2196 = vunpack.c.h.b16 %v1002
    %v2197 = vunpack.c.l.b16 %v1003
    %v2198 = vunpack.c.h.b16 %v1003
    %v2199 = vunpack.c.l.b16 %v1004
    %v2200 = vunpack.c.h.b16 %v1004
    %v2201 = vunpack.c.l.b16 %v1005
    %v2202 = vunpack.c.h.b16 %v1005
    %v2203 = vunpack.c.l.b16 %v1006
    %v2204 = vunpack.c.h.b16 %v1006
    %v2205 = vunpack.c.l.b16 %v1007
    %v2206 = vunpack.c.h.b16 %v1007
    %v2207 = vunpack.c.l.b16 %v1008
    %v2208 = vunpack.c.h.b16 %v1008
    %v2209 = vunpack.c.l.b16 %v1009
    %v2210 = vunpack.c.h.b16 %v1009
    %v2211 = vunpack.c.l.b16 %v1010
    %v2212 = vunpack.c.h.b16 %v1010
    %v2213 = vunpack.c.l.b16 %v1011
    %v2214 = vunpack.c.h.b16 %v1011
    %v2215 = vunpack.c.l.b16 %v1012
    %v2216 = vunpack.c.h.b16 %v1012
    %v2217 = vunpack.c.l.b16 %v1013
    %v2218 = vunpack.c.h.b16 %v1013
    %v2219 = vunpack.c.l.b16 %v1014
    %v2220 = vunpack.c.h.b16 %v1014
    %v2221 = vunpack.c.l.b16 %v1015
    %v2222 = vunpack.c.h.b16 %v1015
    %v2223 = vunpack.c.l.b16 %v1016
    %v2224 = vunpack.c.h.b16 %v1016
    %v2225 = vunpack.c.l.b16 %v1017
    %v2226 = vunpack.c.h.b16 %v1017
    %v2227 = vunpack.c.l.b16 %v1018
    %v2228 = vunpack.c.h.b16 %v1018
    %v2229 = vunpack.c.l.b16 %v1019
    %v2230 = vunpack.c.h.b16 %v1019
    %v2231 = vunpack.c.l.b16 %v1020
    %v2232 = vunpack.c.h.b16 %v1020
    %v2233 = vunpack.c.l.b16 %v1021
    %v2234 = vunpack.c.h.b16 %v1021
    %v2235 = vunpack.c.l.b16 %v1022
    %v2236 = vunpack.c.h.b16 %v1022
    %v2237 = vunpack.c.l.b16 %v1023
    %v2238 = vunpack.c.h.b16 %v1023
    %v2239 = vunpack.c.l.b16 %v1024
    %v2240 = vunpack.c.h.b16 %v1024
    %v2241 = vunpack.c.l.b16 %v1025
    %v2242 = vunpack.c.h.b16 %v1025
    %v2243 = vunpack.c.l.b16 %v1026
    %v2244 = vunpack.c.h.b16 %v1026
    %v2245 = vunpack.c.l.b16 %v1027
    %v2246 = vunpack.c.h.b16 %v1027
    %v2247 = vunpack.c.l.b16 %v1028
    %v2248 = vunpack.c.h.b16 %v1028
    %v2249 = vunpack.c.l.b16 %v1029
    %v2250 = vunpack.c.h.b16 %v1029
    %v2251 = vunpack.c.l.b16 %v1030
    %v2252 = vunpack.c.h.b16 %v1030
    %v2253 = vunpack.c.l.b16 %v1031
    %v2254 = vunpack.c.h.b16 %v1031
    %v2255 = vunpack.c.l.b16 %v1032
    %v2256 = vunpack.c.h.b16 %v1032
    %v2257 = vpack.c.b16 %v2197, %v2193
    %v2258 = vpack.c.b16 %v2198, %v2194
    %v2259 = vpack.c.b16 %v2199, %v2195
    %v2260 = vpack.c.b16 %v2200, %v2196
    %v2261 = vpack.c.b16 %v2205, %v2201
    %v2262 = vpack.c.b16 %v2206, %v2202
    %v2263 = vpack.c.b16 %v2207, %v2203
    %v2264 = vpack.c.b16 %v2208, %v2204
    %v2265 = vpack.c.b16 %v2213, %v2209
    %v2266 = vpack.c.b16 %v2214, %v2210
    %v2267 = vpack.c.b16 %v2215, %v2211
    %v2268 = vpack.c.b16 %v2216, %v2212
    %v2269 = vpack.c.b16 %v2221, %v2217
    %v2270 = vpack.c.b16 %v2222, %v2218
    %v2271 = vpack.c.b16 %v2223, %v2219
    %v2272 = vpack.c.b16 %v2224, %v2220
    %v2273 = vpack.c.b16 %v2229, %v2225
    %v2274 = vpack.c.b16 %v2230, %v2226
    %v2275 = vpack.c.b16 %v2231, %v2227
    %v2276 = vpack.c.b16 %v2232, %v2228
    %v2277 = vpack.c.b16 %v2237, %v2233
    %v2278 = vpack.c.b16 %v2238, %v2234
    %v2279 = vpack.c.b16 %v2239, %v2235
    %v2280 = vpack.c.b16 %v2240, %v2236
    %v2281 = vpack.c.b16 %v2245, %v2241
    %v2282 = vpack.c.b16 %v2246, %v2242
    %v2283 = vpack.c.b16 %v2247, %v2243
    %v2284 = vpack.c.b16 %v2248, %v2244
    %v2285 = vpack.c.b16 %v2253, %v2249
    %v2286 = vpack.c.b16 %v2254, %v2250
    %v2287 = vpack.c.b16 %v2255, %v2251
    %v2288 = vpack.c.b16 %v2256, %v2252
    %2321 = vmatpush.bf16.msra.mxu0 %v2285
    %2322 = vmatpush.bf16.msra.mxu0 %v2281
    %2323 = vmatpush.bf16.msra.mxu0 %v2277
    %2324 = vmatpush.bf16.msra.mxu0 %v2273
    %2325 = vmatpush.bf16.msra.mxu0 %v2269
    %2326 = vmatpush.bf16.msra.mxu0 %v2265
    %2327 = vmatpush.bf16.msra.mxu0 %v2261
    %2328 = vmatpush.bf16.msra.mxu0 %v2257
    %2329 = vmatmul.bf16.gmra.mxu0 %v641
    %v2330 = vpop.f32.mrf.mxu0
    %v2331 = vadd.f32 %v1548, %v2330
    %v2332 = vpop.f32.mrf.mxu0
    %v2333 = vadd.f32 %v1550, %v2332
    %2334 = vmatmul.bf16.gmra.mxu0 %v642
    %v2335 = vpop.f32.mrf.mxu0
    %v2336 = vadd.f32 %v1553, %v2335
    %v2337 = vpop.f32.mrf.mxu0
    %v2338 = vadd.f32 %v1555, %v2337
    %2339 = vmatmul.bf16.gmra.mxu0 %v643
    %v2340 = vpop.f32.mrf.mxu0
    %v2341 = vadd.f32 %v1558, %v2340
    %v2342 = vpop.f32.mrf.mxu0
    %v2343 = vadd.f32 %v1560, %v2342
    %2344 = vmatmul.bf16.gmra.mxu0 %v644
    %v2345 = vpop.f32.mrf.mxu0
    %v2346 = vadd.f32 %v1563, %v2345
    %v2347 = vpop.f32.mrf.mxu0
    %v2348 = vadd.f32 %v1565, %v2347
    %2349 = vmatmul.bf16.gmra.mxu0 %v645
    %v2350 = vpop.f32.mrf.mxu0
    %v2351 = vadd.f32 %v1568, %v2350
    %v2352 = vpop.f32.mrf.mxu0
    %v2353 = vadd.f32 %v1570, %v2352
    %2354 = vmatmul.bf16.gmra.mxu0 %v646
    %v2355 = vpop.f32.mrf.mxu0
    %v2356 = vadd.f32 %v1573, %v2355
    %v2357 = vpop.f32.mrf.mxu0
    %v2358 = vadd.f32 %v1575, %v2357
    %2359 = vmatmul.bf16.gmra.mxu0 %v647
    %v2360 = vpop.f32.mrf.mxu0
    %v2361 = vadd.f32 %v1578, %v2360
    %v2362 = vpop.f32.mrf.mxu0
    %v2363 = vadd.f32 %v1580, %v2362
    %2364 = vmatmul.bf16.gmra.mxu0 %v648
    %v2365 = vpop.f32.mrf.mxu0
    %v2366 = vadd.f32 %v1583, %v2365
    %v2367 = vpop.f32.mrf.mxu0
    %v2368 = vadd.f32 %v1585, %v2367
    %2369 = vmatmul.bf16.gmra.mxu0 %v649
    %v2370 = vpop.f32.mrf.mxu0
    %v2371 = vadd.f32 %v1588, %v2370
    %v2372 = vpop.f32.mrf.mxu0
    %v2373 = vadd.f32 %v1590, %v2372
    %2374 = vmatmul.bf16.gmra.mxu0 %v650
    %v2375 = vpop.f32.mrf.mxu0
    %v2376 = vadd.f32 %v1593, %v2375
    %v2377 = vpop.f32.mrf.mxu0
    %v2378 = vadd.f32 %v1595, %v2377
    %2379 = vmatmul.bf16.gmra.mxu0 %v651
    %v2380 = vpop.f32.mrf.mxu0
    %v2381 = vadd.f32 %v1598, %v2380
    %v2382 = vpop.f32.mrf.mxu0
    %v2383 = vadd.f32 %v1600, %v2382
    %2384 = vmatmul.bf16.gmra.mxu0 %v652
    %v2385 = vpop.f32.mrf.mxu0
    %v2386 = vadd.f32 %v1603, %v2385
    %v2387 = vpop.f32.mrf.mxu0
    %v2388 = vadd.f32 %v1605, %v2387
    %2389 = vmatmul.bf16.gmra.mxu0 %v653
    %v2390 = vpop.f32.mrf.mxu0
    %v2391 = vadd.f32 %v1608, %v2390
    %v2392 = vpop.f32.mrf.mxu0
    %v2393 = vadd.f32 %v1610, %v2392
    %2394 = vmatmul.bf16.gmra.mxu0 %v654
    %v2395 = vpop.f32.mrf.mxu0
    %v2396 = vadd.f32 %v1613, %v2395
    %v2397 = vpop.f32.mrf.mxu0
    %v2398 = vadd.f32 %v1615, %v2397
    %2399 = vmatmul.bf16.gmra.mxu0 %v655
    %v2400 = vpop.f32.mrf.mxu0
    %v2401 = vadd.f32 %v1618, %v2400
    %v2402 = vpop.f32.mrf.mxu0
    %v2403 = vadd.f32 %v1620, %v2402
    %2404 = vmatmul.bf16.gmra.mxu0 %v656
    %v2405 = vpop.f32.mrf.mxu0
    %v2406 = vadd.f32 %v1623, %v2405
    %v2407 = vpop.f32.mrf.mxu0
    %v2408 = vadd.f32 %v1625, %v2407
    %2409 = vdwg.mxu0
    %2410 = vmatpush.bf16.msra.mxu0 %v2286
    %2411 = vmatpush.bf16.msra.mxu0 %v2282
    %2412 = vmatpush.bf16.msra.mxu0 %v2278
    %2413 = vmatpush.bf16.msra.mxu0 %v2274
    %2414 = vmatpush.bf16.msra.mxu0 %v2270
    %2415 = vmatpush.bf16.msra.mxu0 %v2266
    %2416 = vmatpush.bf16.msra.mxu0 %v2262
    %2417 = vmatpush.bf16.msra.mxu0 %v2258
    %2418 = vmatmul.bf16.gmra.mxu0 %v641
    %v2419 = vpop.f32.mrf.mxu0
    %v2420 = vadd.f32 %v1726, %v2419
    %v2421 = vpop.f32.mrf.mxu0
    %v2422 = vadd.f32 %v1728, %v2421
    %2423 = vmatmul.bf16.gmra.mxu0 %v642
    %v2424 = vpop.f32.mrf.mxu0
    %v2425 = vadd.f32 %v1731, %v2424
    %v2426 = vpop.f32.mrf.mxu0
    %v2427 = vadd.f32 %v1733, %v2426
    %2428 = vmatmul.bf16.gmra.mxu0 %v643
    %v2429 = vpop.f32.mrf.mxu0
    %v2430 = vadd.f32 %v1736, %v2429
    %v2431 = vpop.f32.mrf.mxu0
    %v2432 = vadd.f32 %v1738, %v2431
    %2433 = vmatmul.bf16.gmra.mxu0 %v644
    %v2434 = vpop.f32.mrf.mxu0
    %v2435 = vadd.f32 %v1741, %v2434
    %v2436 = vpop.f32.mrf.mxu0
    %v2437 = vadd.f32 %v1743, %v2436
    %2438 = vmatmul.bf16.gmra.mxu0 %v645
    %v2439 = vpop.f32.mrf.mxu0
    %v2440 = vadd.f32 %v1746, %v2439
    %v2441 = vpop.f32.mrf.mxu0
    %v2442 = vadd.f32 %v1748, %v2441
    %2443 = vmatmul.bf16.gmra.mxu0 %v646
    %v2444 = vpop.f32.mrf.mxu0
    %v2445 = vadd.f32 %v1751, %v2444
    %v2446 = vpop.f32.mrf.mxu0
    %v2447 = vadd.f32 %v1753, %v2446
    %2448 = vmatmul.bf16.gmra.mxu0 %v647
    %v2449 = vpop.f32.mrf.mxu0
    %v2450 = vadd.f32 %v1756, %v2449
    %v2451 = vpop.f32.mrf.mxu0
    %v2452 = vadd.f32 %v1758, %v2451
    %2453 = vmatmul.bf16.gmra.mxu0 %v648
    %v2454 = vpop.f32.mrf.mxu0
    %v2455 = vadd.f32 %v1761, %v2454
    %v2456 = vpop.f32.mrf.mxu0
    %v2457 = vadd.f32 %v1763, %v2456
    %2458 = vmatmul.bf16.gmra.mxu0 %v649
    %v2459 = vpop.f32.mrf.mxu0
    %v2460 = vadd.f32 %v1766, %v2459
    %v2461 = vpop.f32.mrf.mxu0
    %v2462 = vadd.f32 %v1768, %v2461
    %2463 = vmatmul.bf16.gmra.mxu0 %v650
    %v2464 = vpop.f32.mrf.mxu0
    %v2465 = vadd.f32 %v1771, %v2464
    %v2466 = vpop.f32.mrf.mxu0
    %v2467 = vadd.f32 %v1773, %v2466
    %2468 = vmatmul.bf16.gmra.mxu0 %v651
    %v2469 = vpop.f32.mrf.mxu0
    %v2470 = vadd.f32 %v1776, %v2469
    %v2471 = vpop.f32.mrf.mxu0
    %v2472 = vadd.f32 %v1778, %v2471
    %2473 = vmatmul.bf16.gmra.mxu0 %v652
    %v2474 = vpop.f32.mrf.mxu0
    %v2475 = vadd.f32 %v1781, %v2474
    %v2476 = vpop.f32.mrf.mxu0
    %v2477 = vadd.f32 %v1783, %v2476
    %2478 = vmatmul.bf16.gmra.mxu0 %v653
    %v2479 = vpop.f32.mrf.mxu0
    %v2480 = vadd.f32 %v1786, %v2479
    %v2481 = vpop.f32.mrf.mxu0
    %v2482 = vadd.f32 %v1788, %v2481
    %2483 = vmatmul.bf16.gmra.mxu0 %v654
    %v2484 = vpop.f32.mrf.mxu0
    %v2485 = vadd.f32 %v1791, %v2484
    %v2486 = vpop.f32.mrf.mxu0
    %v2487 = vadd.f32 %v1793, %v2486
    %2488 = vmatmul.bf16.gmra.mxu0 %v655
    %v2489 = vpop.f32.mrf.mxu0
    %v2490 = vadd.f32 %v1796, %v2489
    %v2491 = vpop.f32.mrf.mxu0
    %v2492 = vadd.f32 %v1798, %v2491
    %2493 = vmatmul.bf16.gmra.mxu0 %v656
    %v2494 = vpop.f32.mrf.mxu0
    %v2495 = vadd.f32 %v1801, %v2494
    %v2496 = vpop.f32.mrf.mxu0
    %v2497 = vadd.f32 %v1803, %v2496
    %2498 = vdwg.mxu0
    %2499 = vmatpush.bf16.msra.mxu0 %v2287
    %2500 = vmatpush.bf16.msra.mxu0 %v2283
    %2501 = vmatpush.bf16.msra.mxu0 %v2279
    %2502 = vmatpush.bf16.msra.mxu0 %v2275
    %2503 = vmatpush.bf16.msra.mxu0 %v2271
    %2504 = vmatpush.bf16.msra.mxu0 %v2267
    %2505 = vmatpush.bf16.msra.mxu0 %v2263
    %2506 = vmatpush.bf16.msra.mxu0 %v2259
    %2507 = vmatmul.bf16.gmra.mxu0 %v641
    %v2508 = vpop.f32.mrf.mxu0
    %v2509 = vadd.f32 %v1904, %v2508
    %v2510 = vpop.f32.mrf.mxu0
    %v2511 = vadd.f32 %v1906, %v2510
    %2512 = vmatmul.bf16.gmra.mxu0 %v642
    %v2513 = vpop.f32.mrf.mxu0
    %v2514 = vadd.f32 %v1909, %v2513
    %v2515 = vpop.f32.mrf.mxu0
    %v2516 = vadd.f32 %v1911, %v2515
    %2517 = vmatmul.bf16.gmra.mxu0 %v643
    %v2518 = vpop.f32.mrf.mxu0
    %v2519 = vadd.f32 %v1914, %v2518
    %v2520 = vpop.f32.mrf.mxu0
    %v2521 = vadd.f32 %v1916, %v2520
    %2522 = vmatmul.bf16.gmra.mxu0 %v644
    %v2523 = vpop.f32.mrf.mxu0
    %v2524 = vadd.f32 %v1919, %v2523
    %v2525 = vpop.f32.mrf.mxu0
    %v2526 = vadd.f32 %v1921, %v2525
    %2527 = vmatmul.bf16.gmra.mxu0 %v645
    %v2528 = vpop.f32.mrf.mxu0
    %v2529 = vadd.f32 %v1924, %v2528
    %v2530 = vpop.f32.mrf.mxu0
    %v2531 = vadd.f32 %v1926, %v2530
    %2532 = vmatmul.bf16.gmra.mxu0 %v646
    %v2533 = vpop.f32.mrf.mxu0
    %v2534 = vadd.f32 %v1929, %v2533
    %v2535 = vpop.f32.mrf.mxu0
    %v2536 = vadd.f32 %v1931, %v2535
    %2537 = vmatmul.bf16.gmra.mxu0 %v647
    %v2538 = vpop.f32.mrf.mxu0
    %v2539 = vadd.f32 %v1934, %v2538
    %v2540 = vpop.f32.mrf.mxu0
    %v2541 = vadd.f32 %v1936, %v2540
    %2542 = vmatmul.bf16.gmra.mxu0 %v648
    %v2543 = vpop.f32.mrf.mxu0
    %v2544 = vadd.f32 %v1939, %v2543
    %v2545 = vpop.f32.mrf.mxu0
    %v2546 = vadd.f32 %v1941, %v2545
    %2547 = vmatmul.bf16.gmra.mxu0 %v649
    %v2548 = vpop.f32.mrf.mxu0
    %v2549 = vadd.f32 %v1944, %v2548
    %v2550 = vpop.f32.mrf.mxu0
    %v2551 = vadd.f32 %v1946, %v2550
    %2552 = vmatmul.bf16.gmra.mxu0 %v650
    %v2553 = vpop.f32.mrf.mxu0
    %v2554 = vadd.f32 %v1949, %v2553
    %v2555 = vpop.f32.mrf.mxu0
    %v2556 = vadd.f32 %v1951, %v2555
    %2557 = vmatmul.bf16.gmra.mxu0 %v651
    %v2558 = vpop.f32.mrf.mxu0
    %v2559 = vadd.f32 %v1954, %v2558
    %v2560 = vpop.f32.mrf.mxu0
    %v2561 = vadd.f32 %v1956, %v2560
    %2562 = vmatmul.bf16.gmra.mxu0 %v652
    %v2563 = vpop.f32.mrf.mxu0
    %v2564 = vadd.f32 %v1959, %v2563
    %v2565 = vpop.f32.mrf.mxu0
    %v2566 = vadd.f32 %v1961, %v2565
    %2567 = vmatmul.bf16.gmra.mxu0 %v653
    %v2568 = vpop.f32.mrf.mxu0
    %v2569 = vadd.f32 %v1964, %v2568
    %v2570 = vpop.f32.mrf.mxu0
    %v2571 = vadd.f32 %v1966, %v2570
    %2572 = vmatmul.bf16.gmra.mxu0 %v654
    %v2573 = vpop.f32.mrf.mxu0
    %v2574 = vadd.f32 %v1969, %v2573
    %v2575 = vpop.f32.mrf.mxu0
    %v2576 = vadd.f32 %v1971, %v2575
    %2577 = vmatmul.bf16.gmra.mxu0 %v655
    %v2578 = vpop.f32.mrf.mxu0
    %v2579 = vadd.f32 %v1974, %v2578
    %v2580 = vpop.f32.mrf.mxu0
    %v2581 = vadd.f32 %v1976, %v2580
    %2582 = vmatmul.bf16.gmra.mxu0 %v656
    %v2583 = vpop.f32.mrf.mxu0
    %v2584 = vadd.f32 %v1979, %v2583
    %v2585 = vpop.f32.mrf.mxu0
    %v2586 = vadd.f32 %v1981, %v2585
    %2587 = vdwg.mxu0
    %2588 = vmatpush.bf16.msra.mxu0 %v2288
    %2589 = vmatpush.bf16.msra.mxu0 %v2284
    %2590 = vmatpush.bf16.msra.mxu0 %v2280
    %2591 = vmatpush.bf16.msra.mxu0 %v2276
    %2592 = vmatpush.bf16.msra.mxu0 %v2272
    %2593 = vmatpush.bf16.msra.mxu0 %v2268
    %2594 = vmatpush.bf16.msra.mxu0 %v2264
    %2595 = vmatpush.bf16.msra.mxu0 %v2260
    %2596 = vmatmul.bf16.gmra.mxu0 %v641
    %v2597 = vpop.f32.mrf.mxu0
    %v2598 = vadd.f32 %v2082, %v2597
    %v2599 = vpop.f32.mrf.mxu0
    %v2600 = vadd.f32 %v2084, %v2599
    %2601 = vmatmul.bf16.gmra.mxu0 %v642
    %v2602 = vpop.f32.mrf.mxu0
    %v2603 = vadd.f32 %v2087, %v2602
    %v2604 = vpop.f32.mrf.mxu0
    %v2605 = vadd.f32 %v2089, %v2604
    %2606 = vmatmul.bf16.gmra.mxu0 %v643
    %v2607 = vpop.f32.mrf.mxu0
    %v2608 = vadd.f32 %v2092, %v2607
    %v2609 = vpop.f32.mrf.mxu0
    %v2610 = vadd.f32 %v2094, %v2609
    %2611 = vmatmul.bf16.gmra.mxu0 %v644
    %v2612 = vpop.f32.mrf.mxu0
    %v2613 = vadd.f32 %v2097, %v2612
    %v2614 = vpop.f32.mrf.mxu0
    %v2615 = vadd.f32 %v2099, %v2614
    %2616 = vmatmul.bf16.gmra.mxu0 %v645
    %v2617 = vpop.f32.mrf.mxu0
    %v2618 = vadd.f32 %v2102, %v2617
    %v2619 = vpop.f32.mrf.mxu0
    %v2620 = vadd.f32 %v2104, %v2619
    %2621 = vmatmul.bf16.gmra.mxu0 %v646
    %v2622 = vpop.f32.mrf.mxu0
    %v2623 = vadd.f32 %v2107, %v2622
    %v2624 = vpop.f32.mrf.mxu0
    %v2625 = vadd.f32 %v2109, %v2624
    %2626 = vmatmul.bf16.gmra.mxu0 %v647
    %v2627 = vpop.f32.mrf.mxu0
    %v2628 = vadd.f32 %v2112, %v2627
    %v2629 = vpop.f32.mrf.mxu0
    %v2630 = vadd.f32 %v2114, %v2629
    %2631 = vmatmul.bf16.gmra.mxu0 %v648
    %v2632 = vpop.f32.mrf.mxu0
    %v2633 = vadd.f32 %v2117, %v2632
    %v2634 = vpop.f32.mrf.mxu0
    %v2635 = vadd.f32 %v2119, %v2634
    %2636 = vmatmul.bf16.gmra.mxu0 %v649
    %v2637 = vpop.f32.mrf.mxu0
    %v2638 = vadd.f32 %v2122, %v2637
    %v2639 = vpop.f32.mrf.mxu0
    %v2640 = vadd.f32 %v2124, %v2639
    %2641 = vmatmul.bf16.gmra.mxu0 %v650
    %v2642 = vpop.f32.mrf.mxu0
    %v2643 = vadd.f32 %v2127, %v2642
    %v2644 = vpop.f32.mrf.mxu0
    %v2645 = vadd.f32 %v2129, %v2644
    %2646 = vmatmul.bf16.gmra.mxu0 %v651
    %v2647 = vpop.f32.mrf.mxu0
    %v2648 = vadd.f32 %v2132, %v2647
    %v2649 = vpop.f32.mrf.mxu0
    %v2650 = vadd.f32 %v2134, %v2649
    %2651 = vmatmul.bf16.gmra.mxu0 %v652
    %v2652 = vpop.f32.mrf.mxu0
    %v2653 = vadd.f32 %v2137, %v2652
    %v2654 = vpop.f32.mrf.mxu0
    %v2655 = vadd.f32 %v2139, %v2654
    %2656 = vmatmul.bf16.gmra.mxu0 %v653
    %v2657 = vpop.f32.mrf.mxu0
    %v2658 = vadd.f32 %v2142, %v2657
    %v2659 = vpop.f32.mrf.mxu0
    %v2660 = vadd.f32 %v2144, %v2659
    %2661 = vmatmul.bf16.gmra.mxu0 %v654
    %v2662 = vpop.f32.mrf.mxu0
    %v2663 = vadd.f32 %v2147, %v2662
    %v2664 = vpop.f32.mrf.mxu0
    %v2665 = vadd.f32 %v2149, %v2664
    %2666 = vmatmul.bf16.gmra.mxu0 %v655
    %v2667 = vpop.f32.mrf.mxu0
    %v2668 = vadd.f32 %v2152, %v2667
    %v2669 = vpop.f32.mrf.mxu0
    %v2670 = vadd.f32 %v2154, %v2669
    %2671 = vmatmul.bf16.gmra.mxu0 %v656
    %v2672 = vpop.f32.mrf.mxu0
    %v2673 = vadd.f32 %v2157, %v2672
    %v2674 = vpop.f32.mrf.mxu0
    %v2675 = vadd.f32 %v2159, %v2674
    %2676 = vdwg.mxu0
    %v2677 = vld [vmem:[#allocation13] sm:$0xf]
    %v2679 = vperm.slane %v2677, 0
    %v2680 = vperm.slane %v2677, 1
    %v2681 = vperm.slane %v2677, 2
    %v2682 = vperm.slane %v2677, 3
    %v2687 = vadd.f32 %v2331, %v2679
    %v2688 = vadd.f32 %v2420, %v2680
    %v2689 = vadd.f32 %v2509, %v2681
    %v2690 = vadd.f32 %v2598, %v2682
    %v2691 = vadd.f32 %v2333, %v2679
    %v2692 = vadd.f32 %v2422, %v2680
    %v2693 = vadd.f32 %v2511, %v2681
    %v2694 = vadd.f32 %v2600, %v2682
    %v2695 = vadd.f32 %v2336, %v2679
    %v2696 = vadd.f32 %v2425, %v2680
    %v2697 = vadd.f32 %v2514, %v2681
    %v2698 = vadd.f32 %v2603, %v2682
    %v2699 = vadd.f32 %v2338, %v2679
    %v2700 = vadd.f32 %v2427, %v2680
    %v2701 = vadd.f32 %v2516, %v2681
    %v2702 = vadd.f32 %v2605, %v2682
    %v2703 = vadd.f32 %v2341, %v2679
    %v2704 = vadd.f32 %v2430, %v2680
    %v2705 = vadd.f32 %v2519, %v2681
    %v2706 = vadd.f32 %v2608, %v2682
    %v2707 = vadd.f32 %v2343, %v2679
    %v2708 = vadd.f32 %v2432, %v2680
    %v2709 = vadd.f32 %v2521, %v2681
    %v2710 = vadd.f32 %v2610, %v2682
    %v2711 = vadd.f32 %v2346, %v2679
    %v2712 = vadd.f32 %v2435, %v2680
    %v2713 = vadd.f32 %v2524, %v2681
    %v2714 = vadd.f32 %v2613, %v2682
    %v2715 = vadd.f32 %v2348, %v2679
    %v2716 = vadd.f32 %v2437, %v2680
    %v2717 = vadd.f32 %v2526, %v2681
    %v2718 = vadd.f32 %v2615, %v2682
    %v2719 = vadd.f32 %v2351, %v2679
    %v2720 = vadd.f32 %v2440, %v2680
    %v2721 = vadd.f32 %v2529, %v2681
    %v2722 = vadd.f32 %v2618, %v2682
    %v2723 = vadd.f32 %v2353, %v2679
    %v2724 = vadd.f32 %v2442, %v2680
    %v2725 = vadd.f32 %v2531, %v2681
    %v2726 = vadd.f32 %v2620, %v2682
    %v2727 = vadd.f32 %v2356, %v2679
    %v2728 = vadd.f32 %v2445, %v2680
    %v2729 = vadd.f32 %v2534, %v2681
    %v2730 = vadd.f32 %v2623, %v2682
    %v2731 = vadd.f32 %v2358, %v2679
    %v2732 = vadd.f32 %v2447, %v2680
    %v2733 = vadd.f32 %v2536, %v2681
    %v2734 = vadd.f32 %v2625, %v2682
    %v2735 = vadd.f32 %v2361, %v2679
    %v2736 = vadd.f32 %v2450, %v2680
    %v2737 = vadd.f32 %v2539, %v2681
    %v2738 = vadd.f32 %v2628, %v2682
    %v2739 = vadd.f32 %v2363, %v2679
    %v2740 = vadd.f32 %v2452, %v2680
    %v2741 = vadd.f32 %v2541, %v2681
    %v2742 = vadd.f32 %v2630, %v2682
    %v2743 = vadd.f32 %v2366, %v2679
    %v2744 = vadd.f32 %v2455, %v2680
    %v2745 = vadd.f32 %v2544, %v2681
    %v2746 = vadd.f32 %v2633, %v2682
    %v2747 = vadd.f32 %v2368, %v2679
    %v2748 = vadd.f32 %v2457, %v2680
    %v2749 = vadd.f32 %v2546, %v2681
    %v2750 = vadd.f32 %v2635, %v2682
    %v2751 = vadd.f32 %v2371, %v2679
    %v2752 = vadd.f32 %v2460, %v2680
    %v2753 = vadd.f32 %v2549, %v2681
    %v2754 = vadd.f32 %v2638, %v2682
    %v2755 = vadd.f32 %v2373, %v2679
    %v2756 = vadd.f32 %v2462, %v2680
    %v2757 = vadd.f32 %v2551, %v2681
    %v2758 = vadd.f32 %v2640, %v2682
    %v2759 = vadd.f32 %v2376, %v2679
    %v2760 = vadd.f32 %v2465, %v2680
    %v2761 = vadd.f32 %v2554, %v2681
    %v2762 = vadd.f32 %v2643, %v2682
    %v2763 = vadd.f32 %v2378, %v2679
    %v2764 = vadd.f32 %v2467, %v2680
    %v2765 = vadd.f32 %v2556, %v2681
    %v2766 = vadd.f32 %v2645, %v2682
    %v2767 = vadd.f32 %v2381, %v2679
    %v2768 = vadd.f32 %v2470, %v2680
    %v2769 = vadd.f32 %v2559, %v2681
    %v2770 = vadd.f32 %v2648, %v2682
    %v2771 = vadd.f32 %v2383, %v2679
    %v2772 = vadd.f32 %v2472, %v2680
    %v2773 = vadd.f32 %v2561, %v2681
    %v2774 = vadd.f32 %v2650, %v2682
    %v2775 = vadd.f32 %v2386, %v2679
    %v2776 = vadd.f32 %v2475, %v2680
    %v2777 = vadd.f32 %v2564, %v2681
    %v2778 = vadd.f32 %v2653, %v2682
    %v2779 = vadd.f32 %v2388, %v2679
    %v2780 = vadd.f32 %v2477, %v2680
    %v2781 = vadd.f32 %v2566, %v2681
    %v2782 = vadd.f32 %v2655, %v2682
    %v2783 = vadd.f32 %v2391, %v2679
    %v2784 = vadd.f32 %v2480, %v2680
    %v2785 = vadd.f32 %v2569, %v2681
    %v2786 = vadd.f32 %v2658, %v2682
    %v2787 = vadd.f32 %v2393, %v2679
    %v2788 = vadd.f32 %v2482, %v2680
    %v2789 = vadd.f32 %v2571, %v2681
    %v2790 = vadd.f32 %v2660, %v2682
    %v2791 = vadd.f32 %v2396, %v2679
    %v2792 = vadd.f32 %v2485, %v2680
    %v2793 = vadd.f32 %v2574, %v2681
    %v2794 = vadd.f32 %v2663, %v2682
    %v2795 = vadd.f32 %v2398, %v2679
    %v2796 = vadd.f32 %v2487, %v2680
    %v2797 = vadd.f32 %v2576, %v2681
    %v2798 = vadd.f32 %v2665, %v2682
    %v2799 = vadd.f32 %v2401, %v2679
    %v2800 = vadd.f32 %v2490, %v2680
    %v2801 = vadd.f32 %v2579, %v2681
    %v2802 = vadd.f32 %v2668, %v2682
    %v2803 = vadd.f32 %v2403, %v2679
    %v2804 = vadd.f32 %v2492, %v2680
    %v2805 = vadd.f32 %v2581, %v2681
    %v2806 = vadd.f32 %v2670, %v2682
    %v2807 = vadd.f32 %v2406, %v2679
    %v2808 = vadd.f32 %v2495, %v2680
    %v2809 = vadd.f32 %v2584, %v2681
    %v2810 = vadd.f32 %v2673, %v2682
    %v2811 = vadd.f32 %v2408, %v2679
    %v2812 = vadd.f32 %v2497, %v2680
    %v2813 = vadd.f32 %v2586, %v2681
    %v2814 = vadd.f32 %v2675, %v2682
    %v2815 = vmax.f32 %v2687, 0.0
    %v2816 = vmax.f32 %v2688, 0.0
    %v2817 = vmax.f32 %v2689, 0.0
    %v2818 = vmax.f32 %v2690, 0.0
    %v2819 = vmax.f32 %v2691, 0.0
    %v2820 = vmax.f32 %v2692, 0.0
    %v2821 = vmax.f32 %v2693, 0.0
    %v2822 = vmax.f32 %v2694, 0.0
    %v2823 = vmax.f32 %v2695, 0.0
    %v2824 = vmax.f32 %v2696, 0.0
    %v2825 = vmax.f32 %v2697, 0.0
    %v2826 = vmax.f32 %v2698, 0.0
    %v2827 = vmax.f32 %v2699, 0.0
    %v2828 = vmax.f32 %v2700, 0.0
    %v2829 = vmax.f32 %v2701, 0.0
    %v2830 = vmax.f32 %v2702, 0.0
    %v2831 = vmax.f32 %v2703, 0.0
    %v2832 = vmax.f32 %v2704, 0.0
    %v2833 = vmax.f32 %v2705, 0.0
    %v2834 = vmax.f32 %v2706, 0.0
    %v2835 = vmax.f32 %v2707, 0.0
    %v2836 = vmax.f32 %v2708, 0.0
    %v2837 = vmax.f32 %v2709, 0.0
    %v2838 = vmax.f32 %v2710, 0.0
    %v2839 = vmax.f32 %v2711, 0.0
    %v2840 = vmax.f32 %v2712, 0.0
    %v2841 = vmax.f32 %v2713, 0.0
    %v2842 = vmax.f32 %v2714, 0.0
    %v2843 = vmax.f32 %v2715, 0.0
    %v2844 = vmax.f32 %v2716, 0.0
    %v2845 = vmax.f32 %v2717, 0.0
    %v2846 = vmax.f32 %v2718, 0.0
    %v2847 = vmax.f32 %v2719, 0.0
    %v2848 = vmax.f32 %v2720, 0.0
    %v2849 = vmax.f32 %v2721, 0.0
    %v2850 = vmax.f32 %v2722, 0.0
    %v2851 = vmax.f32 %v2723, 0.0
    %v2852 = vmax.f32 %v2724, 0.0
    %v2853 = vmax.f32 %v2725, 0.0
    %v2854 = vmax.f32 %v2726, 0.0
    %v2855 = vmax.f32 %v2727, 0.0
    %v2856 = vmax.f32 %v2728, 0.0
    %v2857 = vmax.f32 %v2729, 0.0
    %v2858 = vmax.f32 %v2730, 0.0
    %v2859 = vmax.f32 %v2731, 0.0
    %v2860 = vmax.f32 %v2732, 0.0
    %v2861 = vmax.f32 %v2733, 0.0
    %v2862 = vmax.f32 %v2734, 0.0
    %v2863 = vmax.f32 %v2735, 0.0
    %v2864 = vmax.f32 %v2736, 0.0
    %v2865 = vmax.f32 %v2737, 0.0
    %v2866 = vmax.f32 %v2738, 0.0
    %v2867 = vmax.f32 %v2739, 0.0
    %v2868 = vmax.f32 %v2740, 0.0
    %v2869 = vmax.f32 %v2741, 0.0
    %v2870 = vmax.f32 %v2742, 0.0
    %v2871 = vmax.f32 %v2743, 0.0
    %v2872 = vmax.f32 %v2744, 0.0
    %v2873 = vmax.f32 %v2745, 0.0
    %v2874 = vmax.f32 %v2746, 0.0
    %v2875 = vmax.f32 %v2747, 0.0
    %v2876 = vmax.f32 %v2748, 0.0
    %v2877 = vmax.f32 %v2749, 0.0
    %v2878 = vmax.f32 %v2750, 0.0
    %v2879 = vmax.f32 %v2751, 0.0
    %v2880 = vmax.f32 %v2752, 0.0
    %v2881 = vmax.f32 %v2753, 0.0
    %v2882 = vmax.f32 %v2754, 0.0
    %v2883 = vmax.f32 %v2755, 0.0
    %v2884 = vmax.f32 %v2756, 0.0
    %v2885 = vmax.f32 %v2757, 0.0
    %v2886 = vmax.f32 %v2758, 0.0
    %v2887 = vmax.f32 %v2759, 0.0
    %v2888 = vmax.f32 %v2760, 0.0
    %v2889 = vmax.f32 %v2761, 0.0
    %v2890 = vmax.f32 %v2762, 0.0
    %v2891 = vmax.f32 %v2763, 0.0
    %v2892 = vmax.f32 %v2764, 0.0
    %v2893 = vmax.f32 %v2765, 0.0
    %v2894 = vmax.f32 %v2766, 0.0
    %v2895 = vmax.f32 %v2767, 0.0
    %v2896 = vmax.f32 %v2768, 0.0
    %v2897 = vmax.f32 %v2769, 0.0
    %v2898 = vmax.f32 %v2770, 0.0
    %v2899 = vmax.f32 %v2771, 0.0
    %v2900 = vmax.f32 %v2772, 0.0
    %v2901 = vmax.f32 %v2773, 0.0
    %v2902 = vmax.f32 %v2774, 0.0
    %v2903 = vmax.f32 %v2775, 0.0
    %v2904 = vmax.f32 %v2776, 0.0
    %v2905 = vmax.f32 %v2777, 0.0
    %v2906 = vmax.f32 %v2778, 0.0
    %v2907 = vmax.f32 %v2779, 0.0
    %v2908 = vmax.f32 %v2780, 0.0
    %v2909 = vmax.f32 %v2781, 0.0
    %v2910 = vmax.f32 %v2782, 0.0
    %v2911 = vmax.f32 %v2783, 0.0
    %v2912 = vmax.f32 %v2784, 0.0
    %v2913 = vmax.f32 %v2785, 0.0
    %v2914 = vmax.f32 %v2786, 0.0
    %v2915 = vmax.f32 %v2787, 0.0
    %v2916 = vmax.f32 %v2788, 0.0
    %v2917 = vmax.f32 %v2789, 0.0
    %v2918 = vmax.f32 %v2790, 0.0
    %v2919 = vmax.f32 %v2791, 0.0
    %v2920 = vmax.f32 %v2792, 0.0
    %v2921 = vmax.f32 %v2793, 0.0
    %v2922 = vmax.f32 %v2794, 0.0
    %v2923 = vmax.f32 %v2795, 0.0
    %v2924 = vmax.f32 %v2796, 0.0
    %v2925 = vmax.f32 %v2797, 0.0
    %v2926 = vmax.f32 %v2798, 0.0
    %v2927 = vmax.f32 %v2799, 0.0
    %v2928 = vmax.f32 %v2800, 0.0
    %v2929 = vmax.f32 %v2801, 0.0
    %v2930 = vmax.f32 %v2802, 0.0
    %v2931 = vmax.f32 %v2803, 0.0
    %v2932 = vmax.f32 %v2804, 0.0
    %v2933 = vmax.f32 %v2805, 0.0
    %v2934 = vmax.f32 %v2806, 0.0
    %v2935 = vmax.f32 %v2807, 0.0
    %v2936 = vmax.f32 %v2808, 0.0
    %v2937 = vmax.f32 %v2809, 0.0
    %v2938 = vmax.f32 %v2810, 0.0
    %v2939 = vmax.f32 %v2811, 0.0
    %v2940 = vmax.f32 %v2812, 0.0
    %v2941 = vmax.f32 %v2813, 0.0
    %v2942 = vmax.f32 %v2814, 0.0
    %v2943 = vpack.c.bf16 %v2819, %v2815
    %v2944 = vpack.c.bf16 %v2820, %v2816
    %v2945 = vpack.c.bf16 %v2821, %v2817
    %v2946 = vpack.c.bf16 %v2822, %v2818
    %v2947 = vpack.c.bf16 %v2827, %v2823
    %v2948 = vpack.c.bf16 %v2828, %v2824
    %v2949 = vpack.c.bf16 %v2829, %v2825
    %v2950 = vpack.c.bf16 %v2830, %v2826
    %v2951 = vpack.c.bf16 %v2835, %v2831
    %v2952 = vpack.c.bf16 %v2836, %v2832
    %v2953 = vpack.c.bf16 %v2837, %v2833
    %v2954 = vpack.c.bf16 %v2838, %v2834
    %v2955 = vpack.c.bf16 %v2843, %v2839
    %v2956 = vpack.c.bf16 %v2844, %v2840
    %v2957 = vpack.c.bf16 %v2845, %v2841
    %v2958 = vpack.c.bf16 %v2846, %v2842
    %v2959 = vpack.c.bf16 %v2851, %v2847
    %v2960 = vpack.c.bf16 %v2852, %v2848
    %v2961 = vpack.c.bf16 %v2853, %v2849
    %v2962 = vpack.c.bf16 %v2854, %v2850
    %v2963 = vpack.c.bf16 %v2859, %v2855
    %v2964 = vpack.c.bf16 %v2860, %v2856
    %v2965 = vpack.c.bf16 %v2861, %v2857
    %v2966 = vpack.c.bf16 %v2862, %v2858
    %v2967 = vpack.c.bf16 %v2867, %v2863
    %v2968 = vpack.c.bf16 %v2868, %v2864
    %v2969 = vpack.c.bf16 %v2869, %v2865
    %v2970 = vpack.c.bf16 %v2870, %v2866
    %v2971 = vpack.c.bf16 %v2875, %v2871
    %v2972 = vpack.c.bf16 %v2876, %v2872
    %v2973 = vpack.c.bf16 %v2877, %v2873
    %v2974 = vpack.c.bf16 %v2878, %v2874
    %v2975 = vpack.c.bf16 %v2883, %v2879
    %v2976 = vpack.c.bf16 %v2884, %v2880
    %v2977 = vpack.c.bf16 %v2885, %v2881
    %v2978 = vpack.c.bf16 %v2886, %v2882
    %v2979 = vpack.c.bf16 %v2891, %v2887
    %v2980 = vpack.c.bf16 %v2892, %v2888
    %v2981 = vpack.c.bf16 %v2893, %v2889
    %v2982 = vpack.c.bf16 %v2894, %v2890
    %v2983 = vpack.c.bf16 %v2899, %v2895
    %v2984 = vpack.c.bf16 %v2900, %v2896
    %v2985 = vpack.c.bf16 %v2901, %v2897
    %v2986 = vpack.c.bf16 %v2902, %v2898
    %v2987 = vpack.c.bf16 %v2907, %v2903
    %v2988 = vpack.c.bf16 %v2908, %v2904
    %v2989 = vpack.c.bf16 %v2909, %v2905
    %v2990 = vpack.c.bf16 %v2910, %v2906
    %v2991 = vpack.c.bf16 %v2915, %v2911
    %v2992 = vpack.c.bf16 %v2916, %v2912
    %v2993 = vpack.c.bf16 %v2917, %v2913
    %v2994 = vpack.c.bf16 %v2918, %v2914
    %v2995 = vpack.c.bf16 %v2923, %v2919
    %v2996 = vpack.c.bf16 %v2924, %v2920
    %v2997 = vpack.c.bf16 %v2925, %v2921
    %v2998 = vpack.c.bf16 %v2926, %v2922
    %v2999 = vpack.c.bf16 %v2931, %v2927
    %v3000 = vpack.c.bf16 %v2932, %v2928
    %v3001 = vpack.c.bf16 %v2933, %v2929
    %v3002 = vpack.c.bf16 %v2934, %v2930
    %v3003 = vpack.c.bf16 %v2939, %v2935
    %v3004 = vpack.c.bf16 %v2940, %v2936
    %v3005 = vpack.c.bf16 %v2941, %v2937
    %v3006 = vpack.c.bf16 %v2942, %v2938
    %v3007 = vld [vmem:[#allocation15] sm:$0xff]
    %v3008 = vld [vmem:[#allocation15 + $0x8] sm:$0xff]
    %v3009 = vld [vmem:[#allocation15 + $0x10] sm:$0xff]
    %v3010 = vld [vmem:[#allocation15 + $0x18] sm:$0xff]
    %v3011 = vld [vmem:[#allocation15 + $0x20] sm:$0xff]
    %v3012 = vld [vmem:[#allocation15 + $0x28] sm:$0xff]
    %v3013 = vld [vmem:[#allocation15 + $0x30] sm:$0xff]
    %v3014 = vld [vmem:[#allocation15 + $0x38] sm:$0xff]
    %v3015 = vld [vmem:[#allocation15 + $0x40] sm:$0xff]
    %v3016 = vld [vmem:[#allocation15 + $0x48] sm:$0xff]
    %v3017 = vld [vmem:[#allocation15 + $0x50] sm:$0xff]
    %v3018 = vld [vmem:[#allocation15 + $0x58] sm:$0xff]
    %v3019 = vld [vmem:[#allocation15 + $0x60] sm:$0xff]
    %v3020 = vld [vmem:[#allocation15 + $0x68] sm:$0xff]
    %v3021 = vld [vmem:[#allocation15 + $0x70] sm:$0xff]
    %v3022 = vld [vmem:[#allocation15 + $0x78] sm:$0xff]
    %v3023 = vld [vmem:[#allocation15 + $0x80] sm:$0xff]
    %v3024 = vld [vmem:[#allocation15 + $0x88] sm:$0xff]
    %v3025 = vld [vmem:[#allocation15 + $0x90] sm:$0xff]
    %v3026 = vld [vmem:[#allocation15 + $0x98] sm:$0xff]
    %v3027 = vld [vmem:[#allocation15 + $0xa0] sm:$0xff]
    %v3028 = vld [vmem:[#allocation15 + $0xa8] sm:$0xff]
    %v3029 = vld [vmem:[#allocation15 + $0xb0] sm:$0xff]
    %v3030 = vld [vmem:[#allocation15 + $0xb8] sm:$0xff]
    %v3031 = vld [vmem:[#allocation15 + $0xc0] sm:$0xff]
    %v3032 = vld [vmem:[#allocation15 + $0xc8] sm:$0xff]
    %v3033 = vld [vmem:[#allocation15 + $0xd0] sm:$0xff]
    %v3034 = vld [vmem:[#allocation15 + $0xd8] sm:$0xff]
    %v3035 = vld [vmem:[#allocation15 + $0xe0] sm:$0xff]
    %v3036 = vld [vmem:[#allocation15 + $0xe8] sm:$0xff]
    %v3037 = vld [vmem:[#allocation15 + $0xf0] sm:$0xff]
    %v3038 = vld [vmem:[#allocation15 + $0xf8] sm:$0xff]
    %v3039 = vld [vmem:[#allocation15 + $0x100] sm:$0xff]
    %v3040 = vld [vmem:[#allocation15 + $0x108] sm:$0xff]
    %v3041 = vld [vmem:[#allocation15 + $0x110] sm:$0xff]
    %v3042 = vld [vmem:[#allocation15 + $0x118] sm:$0xff]
    %v3043 = vld [vmem:[#allocation15 + $0x120] sm:$0xff]
    %v3044 = vld [vmem:[#allocation15 + $0x128] sm:$0xff]
    %v3045 = vld [vmem:[#allocation15 + $0x130] sm:$0xff]
    %v3046 = vld [vmem:[#allocation15 + $0x138] sm:$0xff]
    %v3047 = vld [vmem:[#allocation15 + $0x140] sm:$0xff]
    %v3048 = vld [vmem:[#allocation15 + $0x148] sm:$0xff]
    %v3049 = vld [vmem:[#allocation15 + $0x150] sm:$0xff]
    %v3050 = vld [vmem:[#allocation15 + $0x158] sm:$0xff]
    %v3051 = vld [vmem:[#allocation15 + $0x160] sm:$0xff]
    %v3052 = vld [vmem:[#allocation15 + $0x168] sm:$0xff]
    %v3053 = vld [vmem:[#allocation15 + $0x170] sm:$0xff]
    %v3054 = vld [vmem:[#allocation15 + $0x178] sm:$0xff]
    %v3055 = vld [vmem:[#allocation15 + $0x180] sm:$0xff]
    %v3056 = vld [vmem:[#allocation15 + $0x188] sm:$0xff]
    %v3057 = vld [vmem:[#allocation15 + $0x190] sm:$0xff]
    %v3058 = vld [vmem:[#allocation15 + $0x198] sm:$0xff]
    %v3059 = vld [vmem:[#allocation15 + $0x1a0] sm:$0xff]
    %v3060 = vld [vmem:[#allocation15 + $0x1a8] sm:$0xff]
    %v3061 = vld [vmem:[#allocation15 + $0x1b0] sm:$0xff]
    %v3062 = vld [vmem:[#allocation15 + $0x1b8] sm:$0xff]
    %v3063 = vld [vmem:[#allocation15 + $0x1c0] sm:$0xff]
    %v3064 = vld [vmem:[#allocation15 + $0x1c8] sm:$0xff]
    %v3065 = vld [vmem:[#allocation15 + $0x1d0] sm:$0xff]
    %v3066 = vld [vmem:[#allocation15 + $0x1d8] sm:$0xff]
    %v3067 = vld [vmem:[#allocation15 + $0x1e0] sm:$0xff]
    %v3068 = vld [vmem:[#allocation15 + $0x1e8] sm:$0xff]
    %v3069 = vld [vmem:[#allocation15 + $0x1f0] sm:$0xff]
    %v3070 = vld [vmem:[#allocation15 + $0x1f8] sm:$0xff]
    %v3071 = vld [vmem:[#allocation15 + $0x200] sm:$0xff]
    %v3072 = vld [vmem:[#allocation15 + $0x208] sm:$0xff]
    %v3073 = vld [vmem:[#allocation15 + $0x210] sm:$0xff]
    %v3074 = vld [vmem:[#allocation15 + $0x218] sm:$0xff]
    %v3075 = vld [vmem:[#allocation15 + $0x220] sm:$0xff]
    %v3076 = vld [vmem:[#allocation15 + $0x228] sm:$0xff]
    %v3077 = vld [vmem:[#allocation15 + $0x230] sm:$0xff]
    %v3078 = vld [vmem:[#allocation15 + $0x238] sm:$0xff]
    %v3079 = vld [vmem:[#allocation15 + $0x240] sm:$0xff]
    %v3080 = vld [vmem:[#allocation15 + $0x248] sm:$0xff]
    %v3081 = vld [vmem:[#allocation15 + $0x250] sm:$0xff]
    %v3082 = vld [vmem:[#allocation15 + $0x258] sm:$0xff]
    %v3083 = vld [vmem:[#allocation15 + $0x260] sm:$0xff]
    %v3084 = vld [vmem:[#allocation15 + $0x268] sm:$0xff]
    %v3085 = vld [vmem:[#allocation15 + $0x270] sm:$0xff]
    %v3086 = vld [vmem:[#allocation15 + $0x278] sm:$0xff]
    %v3087 = vld [vmem:[#allocation15 + $0x280] sm:$0xff]
    %v3088 = vld [vmem:[#allocation15 + $0x288] sm:$0xff]
    %v3089 = vld [vmem:[#allocation15 + $0x290] sm:$0xff]
    %v3090 = vld [vmem:[#allocation15 + $0x298] sm:$0xff]
    %v3091 = vld [vmem:[#allocation15 + $0x2a0] sm:$0xff]
    %v3092 = vld [vmem:[#allocation15 + $0x2a8] sm:$0xff]
    %v3093 = vld [vmem:[#allocation15 + $0x2b0] sm:$0xff]
    %v3094 = vld [vmem:[#allocation15 + $0x2b8] sm:$0xff]
    %v3095 = vld [vmem:[#allocation15 + $0x2c0] sm:$0xff]
    %v3096 = vld [vmem:[#allocation15 + $0x2c8] sm:$0xff]
    %v3097 = vld [vmem:[#allocation15 + $0x2d0] sm:$0xff]
    %v3098 = vld [vmem:[#allocation15 + $0x2d8] sm:$0xff]
    %v3099 = vld [vmem:[#allocation15 + $0x2e0] sm:$0xff]
    %v3100 = vld [vmem:[#allocation15 + $0x2e8] sm:$0xff]
    %v3101 = vld [vmem:[#allocation15 + $0x2f0] sm:$0xff]
    %v3102 = vld [vmem:[#allocation15 + $0x2f8] sm:$0xff]
    %v3103 = vld [vmem:[#allocation15 + $0x300] sm:$0xff]
    %v3104 = vld [vmem:[#allocation15 + $0x308] sm:$0xff]
    %v3105 = vld [vmem:[#allocation15 + $0x310] sm:$0xff]
    %v3106 = vld [vmem:[#allocation15 + $0x318] sm:$0xff]
    %v3107 = vld [vmem:[#allocation15 + $0x320] sm:$0xff]
    %v3108 = vld [vmem:[#allocation15 + $0x328] sm:$0xff]
    %v3109 = vld [vmem:[#allocation15 + $0x330] sm:$0xff]
    %v3110 = vld [vmem:[#allocation15 + $0x338] sm:$0xff]
    %v3111 = vld [vmem:[#allocation15 + $0x340] sm:$0xff]
    %v3112 = vld [vmem:[#allocation15 + $0x348] sm:$0xff]
    %v3113 = vld [vmem:[#allocation15 + $0x350] sm:$0xff]
    %v3114 = vld [vmem:[#allocation15 + $0x358] sm:$0xff]
    %v3115 = vld [vmem:[#allocation15 + $0x360] sm:$0xff]
    %v3116 = vld [vmem:[#allocation15 + $0x368] sm:$0xff]
    %v3117 = vld [vmem:[#allocation15 + $0x370] sm:$0xff]
    %v3118 = vld [vmem:[#allocation15 + $0x378] sm:$0xff]
    %v3119 = vld [vmem:[#allocation15 + $0x380] sm:$0xff]
    %v3120 = vld [vmem:[#allocation15 + $0x388] sm:$0xff]
    %v3121 = vld [vmem:[#allocation15 + $0x390] sm:$0xff]
    %v3122 = vld [vmem:[#allocation15 + $0x398] sm:$0xff]
    %v3123 = vld [vmem:[#allocation15 + $0x3a0] sm:$0xff]
    %v3124 = vld [vmem:[#allocation15 + $0x3a8] sm:$0xff]
    %v3125 = vld [vmem:[#allocation15 + $0x3b0] sm:$0xff]
    %v3126 = vld [vmem:[#allocation15 + $0x3b8] sm:$0xff]
    %v3127 = vld [vmem:[#allocation15 + $0x3c0] sm:$0xff]
    %v3128 = vld [vmem:[#allocation15 + $0x3c8] sm:$0xff]
    %v3129 = vld [vmem:[#allocation15 + $0x3d0] sm:$0xff]
    %v3130 = vld [vmem:[#allocation15 + $0x3d8] sm:$0xff]
    %v3131 = vld [vmem:[#allocation15 + $0x3e0] sm:$0xff]
    %v3132 = vld [vmem:[#allocation15 + $0x3e8] sm:$0xff]
    %v3133 = vld [vmem:[#allocation15 + $0x3f0] sm:$0xff]
    %v3134 = vld [vmem:[#allocation15 + $0x3f8] sm:$0xff]
    %v3135 = vld [vmem:[#allocation15 + $0x400] sm:$0xff]
    %v3136 = vld [vmem:[#allocation15 + $0x408] sm:$0xff]
    %v3137 = vld [vmem:[#allocation15 + $0x410] sm:$0xff]
    %v3138 = vld [vmem:[#allocation15 + $0x418] sm:$0xff]
    %v3139 = vld [vmem:[#allocation15 + $0x420] sm:$0xff]
    %v3140 = vld [vmem:[#allocation15 + $0x428] sm:$0xff]
    %v3141 = vld [vmem:[#allocation15 + $0x430] sm:$0xff]
    %v3142 = vld [vmem:[#allocation15 + $0x438] sm:$0xff]
    %v3143 = vld [vmem:[#allocation15 + $0x440] sm:$0xff]
    %v3144 = vld [vmem:[#allocation15 + $0x448] sm:$0xff]
    %v3145 = vld [vmem:[#allocation15 + $0x450] sm:$0xff]
    %v3146 = vld [vmem:[#allocation15 + $0x458] sm:$0xff]
    %v3147 = vld [vmem:[#allocation15 + $0x460] sm:$0xff]
    %v3148 = vld [vmem:[#allocation15 + $0x468] sm:$0xff]
    %v3149 = vld [vmem:[#allocation15 + $0x470] sm:$0xff]
    %v3150 = vld [vmem:[#allocation15 + $0x478] sm:$0xff]
    %v3151 = vld [vmem:[#allocation15 + $0x480] sm:$0xff]
    %v3152 = vld [vmem:[#allocation15 + $0x488] sm:$0xff]
    %v3153 = vld [vmem:[#allocation15 + $0x490] sm:$0xff]
    %v3154 = vld [vmem:[#allocation15 + $0x498] sm:$0xff]
    %v3155 = vld [vmem:[#allocation15 + $0x4a0] sm:$0xff]
    %v3156 = vld [vmem:[#allocation15 + $0x4a8] sm:$0xff]
    %v3157 = vld [vmem:[#allocation15 + $0x4b0] sm:$0xff]
    %v3158 = vld [vmem:[#allocation15 + $0x4b8] sm:$0xff]
    %v3159 = vld [vmem:[#allocation15 + $0x4c0] sm:$0xff]
    %v3160 = vld [vmem:[#allocation15 + $0x4c8] sm:$0xff]
    %v3161 = vld [vmem:[#allocation15 + $0x4d0] sm:$0xff]
    %v3162 = vld [vmem:[#allocation15 + $0x4d8] sm:$0xff]
    %v3163 = vld [vmem:[#allocation15 + $0x4e0] sm:$0xff]
    %v3164 = vld [vmem:[#allocation15 + $0x4e8] sm:$0xff]
    %v3165 = vld [vmem:[#allocation15 + $0x4f0] sm:$0xff]
    %v3166 = vld [vmem:[#allocation15 + $0x4f8] sm:$0xff]
    %v3167 = vld [vmem:[#allocation15 + $0x500] sm:$0xff]
    %v3168 = vld [vmem:[#allocation15 + $0x508] sm:$0xff]
    %v3169 = vld [vmem:[#allocation15 + $0x510] sm:$0xff]
    %v3170 = vld [vmem:[#allocation15 + $0x518] sm:$0xff]
    %v3171 = vld [vmem:[#allocation15 + $0x520] sm:$0xff]
    %v3172 = vld [vmem:[#allocation15 + $0x528] sm:$0xff]
    %v3173 = vld [vmem:[#allocation15 + $0x530] sm:$0xff]
    %v3174 = vld [vmem:[#allocation15 + $0x538] sm:$0xff]
    %v3175 = vld [vmem:[#allocation15 + $0x540] sm:$0xff]
    %v3176 = vld [vmem:[#allocation15 + $0x548] sm:$0xff]
    %v3177 = vld [vmem:[#allocation15 + $0x550] sm:$0xff]
    %v3178 = vld [vmem:[#allocation15 + $0x558] sm:$0xff]
    %v3179 = vld [vmem:[#allocation15 + $0x560] sm:$0xff]
    %v3180 = vld [vmem:[#allocation15 + $0x568] sm:$0xff]
    %v3181 = vld [vmem:[#allocation15 + $0x570] sm:$0xff]
    %v3182 = vld [vmem:[#allocation15 + $0x578] sm:$0xff]
    %v3183 = vld [vmem:[#allocation15 + $0x580] sm:$0xff]
    %v3184 = vld [vmem:[#allocation15 + $0x588] sm:$0xff]
    %v3185 = vld [vmem:[#allocation15 + $0x590] sm:$0xff]
    %v3186 = vld [vmem:[#allocation15 + $0x598] sm:$0xff]
    %v3187 = vld [vmem:[#allocation15 + $0x5a0] sm:$0xff]
    %v3188 = vld [vmem:[#allocation15 + $0x5a8] sm:$0xff]
    %v3189 = vld [vmem:[#allocation15 + $0x5b0] sm:$0xff]
    %v3190 = vld [vmem:[#allocation15 + $0x5b8] sm:$0xff]
    %v3191 = vld [vmem:[#allocation15 + $0x5c0] sm:$0xff]
    %v3192 = vld [vmem:[#allocation15 + $0x5c8] sm:$0xff]
    %v3193 = vld [vmem:[#allocation15 + $0x5d0] sm:$0xff]
    %v3194 = vld [vmem:[#allocation15 + $0x5d8] sm:$0xff]
    %v3195 = vld [vmem:[#allocation15 + $0x5e0] sm:$0xff]
    %v3196 = vld [vmem:[#allocation15 + $0x5e8] sm:$0xff]
    %v3197 = vld [vmem:[#allocation15 + $0x5f0] sm:$0xff]
    %v3198 = vld [vmem:[#allocation15 + $0x5f8] sm:$0xff]
    %v3199 = vld [vmem:[#allocation15 + $0x600] sm:$0xff]
    %v3200 = vld [vmem:[#allocation15 + $0x608] sm:$0xff]
    %v3201 = vld [vmem:[#allocation15 + $0x610] sm:$0xff]
    %v3202 = vld [vmem:[#allocation15 + $0x618] sm:$0xff]
    %v3203 = vld [vmem:[#allocation15 + $0x620] sm:$0xff]
    %v3204 = vld [vmem:[#allocation15 + $0x628] sm:$0xff]
    %v3205 = vld [vmem:[#allocation15 + $0x630] sm:$0xff]
    %v3206 = vld [vmem:[#allocation15 + $0x638] sm:$0xff]
    %v3207 = vld [vmem:[#allocation15 + $0x640] sm:$0xff]
    %v3208 = vld [vmem:[#allocation15 + $0x648] sm:$0xff]
    %v3209 = vld [vmem:[#allocation15 + $0x650] sm:$0xff]
    %v3210 = vld [vmem:[#allocation15 + $0x658] sm:$0xff]
    %v3211 = vld [vmem:[#allocation15 + $0x660] sm:$0xff]
    %v3212 = vld [vmem:[#allocation15 + $0x668] sm:$0xff]
    %v3213 = vld [vmem:[#allocation15 + $0x670] sm:$0xff]
    %v3214 = vld [vmem:[#allocation15 + $0x678] sm:$0xff]
    %v3215 = vld [vmem:[#allocation15 + $0x680] sm:$0xff]
    %v3216 = vld [vmem:[#allocation15 + $0x688] sm:$0xff]
    %v3217 = vld [vmem:[#allocation15 + $0x690] sm:$0xff]
    %v3218 = vld [vmem:[#allocation15 + $0x698] sm:$0xff]
    %v3219 = vld [vmem:[#allocation15 + $0x6a0] sm:$0xff]
    %v3220 = vld [vmem:[#allocation15 + $0x6a8] sm:$0xff]
    %v3221 = vld [vmem:[#allocation15 + $0x6b0] sm:$0xff]
    %v3222 = vld [vmem:[#allocation15 + $0x6b8] sm:$0xff]
    %v3223 = vld [vmem:[#allocation15 + $0x6c0] sm:$0xff]
    %v3224 = vld [vmem:[#allocation15 + $0x6c8] sm:$0xff]
    %v3225 = vld [vmem:[#allocation15 + $0x6d0] sm:$0xff]
    %v3226 = vld [vmem:[#allocation15 + $0x6d8] sm:$0xff]
    %v3227 = vld [vmem:[#allocation15 + $0x6e0] sm:$0xff]
    %v3228 = vld [vmem:[#allocation15 + $0x6e8] sm:$0xff]
    %v3229 = vld [vmem:[#allocation15 + $0x6f0] sm:$0xff]
    %v3230 = vld [vmem:[#allocation15 + $0x6f8] sm:$0xff]
    %v3231 = vld [vmem:[#allocation15 + $0x700] sm:$0xff]
    %v3232 = vld [vmem:[#allocation15 + $0x708] sm:$0xff]
    %v3233 = vld [vmem:[#allocation15 + $0x710] sm:$0xff]
    %v3234 = vld [vmem:[#allocation15 + $0x718] sm:$0xff]
    %v3235 = vld [vmem:[#allocation15 + $0x720] sm:$0xff]
    %v3236 = vld [vmem:[#allocation15 + $0x728] sm:$0xff]
    %v3237 = vld [vmem:[#allocation15 + $0x730] sm:$0xff]
    %v3238 = vld [vmem:[#allocation15 + $0x738] sm:$0xff]
    %v3239 = vld [vmem:[#allocation15 + $0x740] sm:$0xff]
    %v3240 = vld [vmem:[#allocation15 + $0x748] sm:$0xff]
    %v3241 = vld [vmem:[#allocation15 + $0x750] sm:$0xff]
    %v3242 = vld [vmem:[#allocation15 + $0x758] sm:$0xff]
    %v3243 = vld [vmem:[#allocation15 + $0x760] sm:$0xff]
    %v3244 = vld [vmem:[#allocation15 + $0x768] sm:$0xff]
    %v3245 = vld [vmem:[#allocation15 + $0x770] sm:$0xff]
    %v3246 = vld [vmem:[#allocation15 + $0x778] sm:$0xff]
    %v3247 = vld [vmem:[#allocation15 + $0x780] sm:$0xff]
    %v3248 = vld [vmem:[#allocation15 + $0x788] sm:$0xff]
    %v3249 = vld [vmem:[#allocation15 + $0x790] sm:$0xff]
    %v3250 = vld [vmem:[#allocation15 + $0x798] sm:$0xff]
    %v3251 = vld [vmem:[#allocation15 + $0x7a0] sm:$0xff]
    %v3252 = vld [vmem:[#allocation15 + $0x7a8] sm:$0xff]
    %v3253 = vld [vmem:[#allocation15 + $0x7b0] sm:$0xff]
    %v3254 = vld [vmem:[#allocation15 + $0x7b8] sm:$0xff]
    %v3255 = vld [vmem:[#allocation15 + $0x7c0] sm:$0xff]
    %v3256 = vld [vmem:[#allocation15 + $0x7c8] sm:$0xff]
    %v3257 = vld [vmem:[#allocation15 + $0x7d0] sm:$0xff]
    %v3258 = vld [vmem:[#allocation15 + $0x7d8] sm:$0xff]
    %v3259 = vld [vmem:[#allocation15 + $0x7e0] sm:$0xff]
    %v3260 = vld [vmem:[#allocation15 + $0x7e8] sm:$0xff]
    %v3261 = vld [vmem:[#allocation15 + $0x7f0] sm:$0xff]
    %v3262 = vld [vmem:[#allocation15 + $0x7f8] sm:$0xff]
    %v3263 = vld [vmem:[#allocation16] sm:$0xff]
    %v3265 = vperm.slane %v3263, 0
    %v3266 = vperm.slane %v3263, 1
    %v3267 = vperm.slane %v3263, 2
    %v3268 = vperm.slane %v3263, 3
    %v3269 = vperm.slane %v3263, 4
    %v3270 = vperm.slane %v3263, 5
    %v3271 = vperm.slane %v3263, 6
    %v3272 = vperm.slane %v3263, 7
    %v3537 = vunpack.c.l.b16 %v3007
    %v3538 = vunpack.c.h.b16 %v3007
    %v3539 = vunpack.c.l.b16 %v3008
    %v3540 = vunpack.c.h.b16 %v3008
    %v3541 = vunpack.c.l.b16 %v3009
    %v3542 = vunpack.c.h.b16 %v3009
    %v3543 = vunpack.c.l.b16 %v3010
    %v3544 = vunpack.c.h.b16 %v3010
    %v3545 = vunpack.c.l.b16 %v3011
    %v3546 = vunpack.c.h.b16 %v3011
    %v3547 = vunpack.c.l.b16 %v3012
    %v3548 = vunpack.c.h.b16 %v3012
    %v3549 = vunpack.c.l.b16 %v3013
    %v3550 = vunpack.c.h.b16 %v3013
    %v3551 = vunpack.c.l.b16 %v3014
    %v3552 = vunpack.c.h.b16 %v3014
    %v3553 = vunpack.c.l.b16 %v3015
    %v3554 = vunpack.c.h.b16 %v3015
    %v3555 = vunpack.c.l.b16 %v3016
    %v3556 = vunpack.c.h.b16 %v3016
    %v3557 = vunpack.c.l.b16 %v3017
    %v3558 = vunpack.c.h.b16 %v3017
    %v3559 = vunpack.c.l.b16 %v3018
    %v3560 = vunpack.c.h.b16 %v3018
    %v3561 = vunpack.c.l.b16 %v3019
    %v3562 = vunpack.c.h.b16 %v3019
    %v3563 = vunpack.c.l.b16 %v3020
    %v3564 = vunpack.c.h.b16 %v3020
    %v3565 = vunpack.c.l.b16 %v3021
    %v3566 = vunpack.c.h.b16 %v3021
    %v3567 = vunpack.c.l.b16 %v3022
    %v3568 = vunpack.c.h.b16 %v3022
    %v3569 = vunpack.c.l.b16 %v3023
    %v3570 = vunpack.c.h.b16 %v3023
    %v3571 = vunpack.c.l.b16 %v3024
    %v3572 = vunpack.c.h.b16 %v3024
    %v3573 = vunpack.c.l.b16 %v3025
    %v3574 = vunpack.c.h.b16 %v3025
    %v3575 = vunpack.c.l.b16 %v3026
    %v3576 = vunpack.c.h.b16 %v3026
    %v3577 = vunpack.c.l.b16 %v3027
    %v3578 = vunpack.c.h.b16 %v3027
    %v3579 = vunpack.c.l.b16 %v3028
    %v3580 = vunpack.c.h.b16 %v3028
    %v3581 = vunpack.c.l.b16 %v3029
    %v3582 = vunpack.c.h.b16 %v3029
    %v3583 = vunpack.c.l.b16 %v3030
    %v3584 = vunpack.c.h.b16 %v3030
    %v3585 = vunpack.c.l.b16 %v3031
    %v3586 = vunpack.c.h.b16 %v3031
    %v3587 = vunpack.c.l.b16 %v3032
    %v3588 = vunpack.c.h.b16 %v3032
    %v3589 = vunpack.c.l.b16 %v3033
    %v3590 = vunpack.c.h.b16 %v3033
    %v3591 = vunpack.c.l.b16 %v3034
    %v3592 = vunpack.c.h.b16 %v3034
    %v3593 = vunpack.c.l.b16 %v3035
    %v3594 = vunpack.c.h.b16 %v3035
    %v3595 = vunpack.c.l.b16 %v3036
    %v3596 = vunpack.c.h.b16 %v3036
    %v3597 = vunpack.c.l.b16 %v3037
    %v3598 = vunpack.c.h.b16 %v3037
    %v3599 = vunpack.c.l.b16 %v3038
    %v3600 = vunpack.c.h.b16 %v3038
    %v3601 = vunpack.c.l.b16 %v3039
    %v3602 = vunpack.c.h.b16 %v3039
    %v3603 = vunpack.c.l.b16 %v3040
    %v3604 = vunpack.c.h.b16 %v3040
    %v3605 = vunpack.c.l.b16 %v3041
    %v3606 = vunpack.c.h.b16 %v3041
    %v3607 = vunpack.c.l.b16 %v3042
    %v3608 = vunpack.c.h.b16 %v3042
    %v3609 = vunpack.c.l.b16 %v3043
    %v3610 = vunpack.c.h.b16 %v3043
    %v3611 = vunpack.c.l.b16 %v3044
    %v3612 = vunpack.c.h.b16 %v3044
    %v3613 = vunpack.c.l.b16 %v3045
    %v3614 = vunpack.c.h.b16 %v3045
    %v3615 = vunpack.c.l.b16 %v3046
    %v3616 = vunpack.c.h.b16 %v3046
    %v3617 = vunpack.c.l.b16 %v3047
    %v3618 = vunpack.c.h.b16 %v3047
    %v3619 = vunpack.c.l.b16 %v3048
    %v3620 = vunpack.c.h.b16 %v3048
    %v3621 = vunpack.c.l.b16 %v3049
    %v3622 = vunpack.c.h.b16 %v3049
    %v3623 = vunpack.c.l.b16 %v3050
    %v3624 = vunpack.c.h.b16 %v3050
    %v3625 = vunpack.c.l.b16 %v3051
    %v3626 = vunpack.c.h.b16 %v3051
    %v3627 = vunpack.c.l.b16 %v3052
    %v3628 = vunpack.c.h.b16 %v3052
    %v3629 = vunpack.c.l.b16 %v3053
    %v3630 = vunpack.c.h.b16 %v3053
    %v3631 = vunpack.c.l.b16 %v3054
    %v3632 = vunpack.c.h.b16 %v3054
    %v3633 = vunpack.c.l.b16 %v3055
    %v3634 = vunpack.c.h.b16 %v3055
    %v3635 = vunpack.c.l.b16 %v3056
    %v3636 = vunpack.c.h.b16 %v3056
    %v3637 = vunpack.c.l.b16 %v3057
    %v3638 = vunpack.c.h.b16 %v3057
    %v3639 = vunpack.c.l.b16 %v3058
    %v3640 = vunpack.c.h.b16 %v3058
    %v3641 = vunpack.c.l.b16 %v3059
    %v3642 = vunpack.c.h.b16 %v3059
    %v3643 = vunpack.c.l.b16 %v3060
    %v3644 = vunpack.c.h.b16 %v3060
    %v3645 = vunpack.c.l.b16 %v3061
    %v3646 = vunpack.c.h.b16 %v3061
    %v3647 = vunpack.c.l.b16 %v3062
    %v3648 = vunpack.c.h.b16 %v3062
    %v3649 = vunpack.c.l.b16 %v3063
    %v3650 = vunpack.c.h.b16 %v3063
    %v3651 = vunpack.c.l.b16 %v3064
    %v3652 = vunpack.c.h.b16 %v3064
    %v3653 = vunpack.c.l.b16 %v3065
    %v3654 = vunpack.c.h.b16 %v3065
    %v3655 = vunpack.c.l.b16 %v3066
    %v3656 = vunpack.c.h.b16 %v3066
    %v3657 = vunpack.c.l.b16 %v3067
    %v3658 = vunpack.c.h.b16 %v3067
    %v3659 = vunpack.c.l.b16 %v3068
    %v3660 = vunpack.c.h.b16 %v3068
    %v3661 = vunpack.c.l.b16 %v3069
    %v3662 = vunpack.c.h.b16 %v3069
    %v3663 = vunpack.c.l.b16 %v3070
    %v3664 = vunpack.c.h.b16 %v3070
    %v3665 = vunpack.c.l.b16 %v3071
    %v3666 = vunpack.c.h.b16 %v3071
    %v3667 = vunpack.c.l.b16 %v3072
    %v3668 = vunpack.c.h.b16 %v3072
    %v3669 = vunpack.c.l.b16 %v3073
    %v3670 = vunpack.c.h.b16 %v3073
    %v3671 = vunpack.c.l.b16 %v3074
    %v3672 = vunpack.c.h.b16 %v3074
    %v3673 = vunpack.c.l.b16 %v3075
    %v3674 = vunpack.c.h.b16 %v3075
    %v3675 = vunpack.c.l.b16 %v3076
    %v3676 = vunpack.c.h.b16 %v3076
    %v3677 = vunpack.c.l.b16 %v3077
    %v3678 = vunpack.c.h.b16 %v3077
    %v3679 = vunpack.c.l.b16 %v3078
    %v3680 = vunpack.c.h.b16 %v3078
    %v3681 = vunpack.c.l.b16 %v3079
    %v3682 = vunpack.c.h.b16 %v3079
    %v3683 = vunpack.c.l.b16 %v3080
    %v3684 = vunpack.c.h.b16 %v3080
    %v3685 = vunpack.c.l.b16 %v3081
    %v3686 = vunpack.c.h.b16 %v3081
    %v3687 = vunpack.c.l.b16 %v3082
    %v3688 = vunpack.c.h.b16 %v3082
    %v3689 = vunpack.c.l.b16 %v3083
    %v3690 = vunpack.c.h.b16 %v3083
    %v3691 = vunpack.c.l.b16 %v3084
    %v3692 = vunpack.c.h.b16 %v3084
    %v3693 = vunpack.c.l.b16 %v3085
    %v3694 = vunpack.c.h.b16 %v3085
    %v3695 = vunpack.c.l.b16 %v3086
    %v3696 = vunpack.c.h.b16 %v3086
    %v3697 = vunpack.c.l.b16 %v3087
    %v3698 = vunpack.c.h.b16 %v3087
    %v3699 = vunpack.c.l.b16 %v3088
    %v3700 = vunpack.c.h.b16 %v3088
    %v3701 = vunpack.c.l.b16 %v3089
    %v3702 = vunpack.c.h.b16 %v3089
    %v3703 = vunpack.c.l.b16 %v3090
    %v3704 = vunpack.c.h.b16 %v3090
    %v3705 = vunpack.c.l.b16 %v3091
    %v3706 = vunpack.c.h.b16 %v3091
    %v3707 = vunpack.c.l.b16 %v3092
    %v3708 = vunpack.c.h.b16 %v3092
    %v3709 = vunpack.c.l.b16 %v3093
    %v3710 = vunpack.c.h.b16 %v3093
    %v3711 = vunpack.c.l.b16 %v3094
    %v3712 = vunpack.c.h.b16 %v3094
    %v3713 = vunpack.c.l.b16 %v3095
    %v3714 = vunpack.c.h.b16 %v3095
    %v3715 = vunpack.c.l.b16 %v3096
    %v3716 = vunpack.c.h.b16 %v3096
    %v3717 = vunpack.c.l.b16 %v3097
    %v3718 = vunpack.c.h.b16 %v3097
    %v3719 = vunpack.c.l.b16 %v3098
    %v3720 = vunpack.c.h.b16 %v3098
    %v3721 = vunpack.c.l.b16 %v3099
    %v3722 = vunpack.c.h.b16 %v3099
    %v3723 = vunpack.c.l.b16 %v3100
    %v3724 = vunpack.c.h.b16 %v3100
    %v3725 = vunpack.c.l.b16 %v3101
    %v3726 = vunpack.c.h.b16 %v3101
    %v3727 = vunpack.c.l.b16 %v3102
    %v3728 = vunpack.c.h.b16 %v3102
    %v3729 = vunpack.c.l.b16 %v3103
    %v3730 = vunpack.c.h.b16 %v3103
    %v3731 = vunpack.c.l.b16 %v3104
    %v3732 = vunpack.c.h.b16 %v3104
    %v3733 = vunpack.c.l.b16 %v3105
    %v3734 = vunpack.c.h.b16 %v3105
    %v3735 = vunpack.c.l.b16 %v3106
    %v3736 = vunpack.c.h.b16 %v3106
    %v3737 = vunpack.c.l.b16 %v3107
    %v3738 = vunpack.c.h.b16 %v3107
    %v3739 = vunpack.c.l.b16 %v3108
    %v3740 = vunpack.c.h.b16 %v3108
    %v3741 = vunpack.c.l.b16 %v3109
    %v3742 = vunpack.c.h.b16 %v3109
    %v3743 = vunpack.c.l.b16 %v3110
    %v3744 = vunpack.c.h.b16 %v3110
    %v3745 = vunpack.c.l.b16 %v3111
    %v3746 = vunpack.c.h.b16 %v3111
    %v3747 = vunpack.c.l.b16 %v3112
    %v3748 = vunpack.c.h.b16 %v3112
    %v3749 = vunpack.c.l.b16 %v3113
    %v3750 = vunpack.c.h.b16 %v3113
    %v3751 = vunpack.c.l.b16 %v3114
    %v3752 = vunpack.c.h.b16 %v3114
    %v3753 = vunpack.c.l.b16 %v3115
    %v3754 = vunpack.c.h.b16 %v3115
    %v3755 = vunpack.c.l.b16 %v3116
    %v3756 = vunpack.c.h.b16 %v3116
    %v3757 = vunpack.c.l.b16 %v3117
    %v3758 = vunpack.c.h.b16 %v3117
    %v3759 = vunpack.c.l.b16 %v3118
    %v3760 = vunpack.c.h.b16 %v3118
    %v3761 = vunpack.c.l.b16 %v3119
    %v3762 = vunpack.c.h.b16 %v3119
    %v3763 = vunpack.c.l.b16 %v3120
    %v3764 = vunpack.c.h.b16 %v3120
    %v3765 = vunpack.c.l.b16 %v3121
    %v3766 = vunpack.c.h.b16 %v3121
    %v3767 = vunpack.c.l.b16 %v3122
    %v3768 = vunpack.c.h.b16 %v3122
    %v3769 = vunpack.c.l.b16 %v3123
    %v3770 = vunpack.c.h.b16 %v3123
    %v3771 = vunpack.c.l.b16 %v3124
    %v3772 = vunpack.c.h.b16 %v3124
    %v3773 = vunpack.c.l.b16 %v3125
    %v3774 = vunpack.c.h.b16 %v3125
    %v3775 = vunpack.c.l.b16 %v3126
    %v3776 = vunpack.c.h.b16 %v3126
    %v3777 = vunpack.c.l.b16 %v3127
    %v3778 = vunpack.c.h.b16 %v3127
    %v3779 = vunpack.c.l.b16 %v3128
    %v3780 = vunpack.c.h.b16 %v3128
    %v3781 = vunpack.c.l.b16 %v3129
    %v3782 = vunpack.c.h.b16 %v3129
    %v3783 = vunpack.c.l.b16 %v3130
    %v3784 = vunpack.c.h.b16 %v3130
    %v3785 = vunpack.c.l.b16 %v3131
    %v3786 = vunpack.c.h.b16 %v3131
    %v3787 = vunpack.c.l.b16 %v3132
    %v3788 = vunpack.c.h.b16 %v3132
    %v3789 = vunpack.c.l.b16 %v3133
    %v3790 = vunpack.c.h.b16 %v3133
    %v3791 = vunpack.c.l.b16 %v3134
    %v3792 = vunpack.c.h.b16 %v3134
    %v3793 = vunpack.c.l.b16 %v3135
    %v3794 = vunpack.c.h.b16 %v3135
    %v3795 = vunpack.c.l.b16 %v3136
    %v3796 = vunpack.c.h.b16 %v3136
    %v3797 = vunpack.c.l.b16 %v3137
    %v3798 = vunpack.c.h.b16 %v3137
    %v3799 = vunpack.c.l.b16 %v3138
    %v3800 = vunpack.c.h.b16 %v3138
    %v3801 = vunpack.c.l.b16 %v3139
    %v3802 = vunpack.c.h.b16 %v3139
    %v3803 = vunpack.c.l.b16 %v3140
    %v3804 = vunpack.c.h.b16 %v3140
    %v3805 = vunpack.c.l.b16 %v3141
    %v3806 = vunpack.c.h.b16 %v3141
    %v3807 = vunpack.c.l.b16 %v3142
    %v3808 = vunpack.c.h.b16 %v3142
    %v3809 = vunpack.c.l.b16 %v3143
    %v3810 = vunpack.c.h.b16 %v3143
    %v3811 = vunpack.c.l.b16 %v3144
    %v3812 = vunpack.c.h.b16 %v3144
    %v3813 = vunpack.c.l.b16 %v3145
    %v3814 = vunpack.c.h.b16 %v3145
    %v3815 = vunpack.c.l.b16 %v3146
    %v3816 = vunpack.c.h.b16 %v3146
    %v3817 = vunpack.c.l.b16 %v3147
    %v3818 = vunpack.c.h.b16 %v3147
    %v3819 = vunpack.c.l.b16 %v3148
    %v3820 = vunpack.c.h.b16 %v3148
    %v3821 = vunpack.c.l.b16 %v3149
    %v3822 = vunpack.c.h.b16 %v3149
    %v3823 = vunpack.c.l.b16 %v3150
    %v3824 = vunpack.c.h.b16 %v3150
    %v3825 = vunpack.c.l.b16 %v3151
    %v3826 = vunpack.c.h.b16 %v3151
    %v3827 = vunpack.c.l.b16 %v3152
    %v3828 = vunpack.c.h.b16 %v3152
    %v3829 = vunpack.c.l.b16 %v3153
    %v3830 = vunpack.c.h.b16 %v3153
    %v3831 = vunpack.c.l.b16 %v3154
    %v3832 = vunpack.c.h.b16 %v3154
    %v3833 = vunpack.c.l.b16 %v3155
    %v3834 = vunpack.c.h.b16 %v3155
    %v3835 = vunpack.c.l.b16 %v3156
    %v3836 = vunpack.c.h.b16 %v3156
    %v3837 = vunpack.c.l.b16 %v3157
    %v3838 = vunpack.c.h.b16 %v3157
    %v3839 = vunpack.c.l.b16 %v3158
    %v3840 = vunpack.c.h.b16 %v3158
    %v3841 = vunpack.c.l.b16 %v3159
    %v3842 = vunpack.c.h.b16 %v3159
    %v3843 = vunpack.c.l.b16 %v3160
    %v3844 = vunpack.c.h.b16 %v3160
    %v3845 = vunpack.c.l.b16 %v3161
    %v3846 = vunpack.c.h.b16 %v3161
    %v3847 = vunpack.c.l.b16 %v3162
    %v3848 = vunpack.c.h.b16 %v3162
    %v3849 = vunpack.c.l.b16 %v3163
    %v3850 = vunpack.c.h.b16 %v3163
    %v3851 = vunpack.c.l.b16 %v3164
    %v3852 = vunpack.c.h.b16 %v3164
    %v3853 = vunpack.c.l.b16 %v3165
    %v3854 = vunpack.c.h.b16 %v3165
    %v3855 = vunpack.c.l.b16 %v3166
    %v3856 = vunpack.c.h.b16 %v3166
    %v3857 = vunpack.c.l.b16 %v3167
    %v3858 = vunpack.c.h.b16 %v3167
    %v3859 = vunpack.c.l.b16 %v3168
    %v3860 = vunpack.c.h.b16 %v3168
    %v3861 = vunpack.c.l.b16 %v3169
    %v3862 = vunpack.c.h.b16 %v3169
    %v3863 = vunpack.c.l.b16 %v3170
    %v3864 = vunpack.c.h.b16 %v3170
    %v3865 = vunpack.c.l.b16 %v3171
    %v3866 = vunpack.c.h.b16 %v3171
    %v3867 = vunpack.c.l.b16 %v3172
    %v3868 = vunpack.c.h.b16 %v3172
    %v3869 = vunpack.c.l.b16 %v3173
    %v3870 = vunpack.c.h.b16 %v3173
    %v3871 = vunpack.c.l.b16 %v3174
    %v3872 = vunpack.c.h.b16 %v3174
    %v3873 = vunpack.c.l.b16 %v3175
    %v3874 = vunpack.c.h.b16 %v3175
    %v3875 = vunpack.c.l.b16 %v3176
    %v3876 = vunpack.c.h.b16 %v3176
    %v3877 = vunpack.c.l.b16 %v3177
    %v3878 = vunpack.c.h.b16 %v3177
    %v3879 = vunpack.c.l.b16 %v3178
    %v3880 = vunpack.c.h.b16 %v3178
    %v3881 = vunpack.c.l.b16 %v3179
    %v3882 = vunpack.c.h.b16 %v3179
    %v3883 = vunpack.c.l.b16 %v3180
    %v3884 = vunpack.c.h.b16 %v3180
    %v3885 = vunpack.c.l.b16 %v3181
    %v3886 = vunpack.c.h.b16 %v3181
    %v3887 = vunpack.c.l.b16 %v3182
    %v3888 = vunpack.c.h.b16 %v3182
    %v3889 = vunpack.c.l.b16 %v3183
    %v3890 = vunpack.c.h.b16 %v3183
    %v3891 = vunpack.c.l.b16 %v3184
    %v3892 = vunpack.c.h.b16 %v3184
    %v3893 = vunpack.c.l.b16 %v3185
    %v3894 = vunpack.c.h.b16 %v3185
    %v3895 = vunpack.c.l.b16 %v3186
    %v3896 = vunpack.c.h.b16 %v3186
    %v3897 = vunpack.c.l.b16 %v3187
    %v3898 = vunpack.c.h.b16 %v3187
    %v3899 = vunpack.c.l.b16 %v3188
    %v3900 = vunpack.c.h.b16 %v3188
    %v3901 = vunpack.c.l.b16 %v3189
    %v3902 = vunpack.c.h.b16 %v3189
    %v3903 = vunpack.c.l.b16 %v3190
    %v3904 = vunpack.c.h.b16 %v3190
    %v3905 = vunpack.c.l.b16 %v3191
    %v3906 = vunpack.c.h.b16 %v3191
    %v3907 = vunpack.c.l.b16 %v3192
    %v3908 = vunpack.c.h.b16 %v3192
    %v3909 = vunpack.c.l.b16 %v3193
    %v3910 = vunpack.c.h.b16 %v3193
    %v3911 = vunpack.c.l.b16 %v3194
    %v3912 = vunpack.c.h.b16 %v3194
    %v3913 = vunpack.c.l.b16 %v3195
    %v3914 = vunpack.c.h.b16 %v3195
    %v3915 = vunpack.c.l.b16 %v3196
    %v3916 = vunpack.c.h.b16 %v3196
    %v3917 = vunpack.c.l.b16 %v3197
    %v3918 = vunpack.c.h.b16 %v3197
    %v3919 = vunpack.c.l.b16 %v3198
    %v3920 = vunpack.c.h.b16 %v3198
    %v3921 = vunpack.c.l.b16 %v3199
    %v3922 = vunpack.c.h.b16 %v3199
    %v3923 = vunpack.c.l.b16 %v3200
    %v3924 = vunpack.c.h.b16 %v3200
    %v3925 = vunpack.c.l.b16 %v3201
    %v3926 = vunpack.c.h.b16 %v3201
    %v3927 = vunpack.c.l.b16 %v3202
    %v3928 = vunpack.c.h.b16 %v3202
    %v3929 = vunpack.c.l.b16 %v3203
    %v3930 = vunpack.c.h.b16 %v3203
    %v3931 = vunpack.c.l.b16 %v3204
    %v3932 = vunpack.c.h.b16 %v3204
    %v3933 = vunpack.c.l.b16 %v3205
    %v3934 = vunpack.c.h.b16 %v3205
    %v3935 = vunpack.c.l.b16 %v3206
    %v3936 = vunpack.c.h.b16 %v3206
    %v3937 = vunpack.c.l.b16 %v3207
    %v3938 = vunpack.c.h.b16 %v3207
    %v3939 = vunpack.c.l.b16 %v3208
    %v3940 = vunpack.c.h.b16 %v3208
    %v3941 = vunpack.c.l.b16 %v3209
    %v3942 = vunpack.c.h.b16 %v3209
    %v3943 = vunpack.c.l.b16 %v3210
    %v3944 = vunpack.c.h.b16 %v3210
    %v3945 = vunpack.c.l.b16 %v3211
    %v3946 = vunpack.c.h.b16 %v3211
    %v3947 = vunpack.c.l.b16 %v3212
    %v3948 = vunpack.c.h.b16 %v3212
    %v3949 = vunpack.c.l.b16 %v3213
    %v3950 = vunpack.c.h.b16 %v3213
    %v3951 = vunpack.c.l.b16 %v3214
    %v3952 = vunpack.c.h.b16 %v3214
    %v3953 = vunpack.c.l.b16 %v3215
    %v3954 = vunpack.c.h.b16 %v3215
    %v3955 = vunpack.c.l.b16 %v3216
    %v3956 = vunpack.c.h.b16 %v3216
    %v3957 = vunpack.c.l.b16 %v3217
    %v3958 = vunpack.c.h.b16 %v3217
    %v3959 = vunpack.c.l.b16 %v3218
    %v3960 = vunpack.c.h.b16 %v3218
    %v3961 = vunpack.c.l.b16 %v3219
    %v3962 = vunpack.c.h.b16 %v3219
    %v3963 = vunpack.c.l.b16 %v3220
    %v3964 = vunpack.c.h.b16 %v3220
    %v3965 = vunpack.c.l.b16 %v3221
    %v3966 = vunpack.c.h.b16 %v3221
    %v3967 = vunpack.c.l.b16 %v3222
    %v3968 = vunpack.c.h.b16 %v3222
    %v3969 = vunpack.c.l.b16 %v3223
    %v3970 = vunpack.c.h.b16 %v3223
    %v3971 = vunpack.c.l.b16 %v3224
    %v3972 = vunpack.c.h.b16 %v3224
    %v3973 = vunpack.c.l.b16 %v3225
    %v3974 = vunpack.c.h.b16 %v3225
    %v3975 = vunpack.c.l.b16 %v3226
    %v3976 = vunpack.c.h.b16 %v3226
    %v3977 = vunpack.c.l.b16 %v3227
    %v3978 = vunpack.c.h.b16 %v3227
    %v3979 = vunpack.c.l.b16 %v3228
    %v3980 = vunpack.c.h.b16 %v3228
    %v3981 = vunpack.c.l.b16 %v3229
    %v3982 = vunpack.c.h.b16 %v3229
    %v3983 = vunpack.c.l.b16 %v3230
    %v3984 = vunpack.c.h.b16 %v3230
    %v3985 = vunpack.c.l.b16 %v3231
    %v3986 = vunpack.c.h.b16 %v3231
    %v3987 = vunpack.c.l.b16 %v3232
    %v3988 = vunpack.c.h.b16 %v3232
    %v3989 = vunpack.c.l.b16 %v3233
    %v3990 = vunpack.c.h.b16 %v3233
    %v3991 = vunpack.c.l.b16 %v3234
    %v3992 = vunpack.c.h.b16 %v3234
    %v3993 = vunpack.c.l.b16 %v3235
    %v3994 = vunpack.c.h.b16 %v3235
    %v3995 = vunpack.c.l.b16 %v3236
    %v3996 = vunpack.c.h.b16 %v3236
    %v3997 = vunpack.c.l.b16 %v3237
    %v3998 = vunpack.c.h.b16 %v3237
    %v3999 = vunpack.c.l.b16 %v3238
    %v4000 = vunpack.c.h.b16 %v3238
    %v4001 = vunpack.c.l.b16 %v3239
    %v4002 = vunpack.c.h.b16 %v3239
    %v4003 = vunpack.c.l.b16 %v3240
    %v4004 = vunpack.c.h.b16 %v3240
    %v4005 = vunpack.c.l.b16 %v3241
    %v4006 = vunpack.c.h.b16 %v3241
    %v4007 = vunpack.c.l.b16 %v3242
    %v4008 = vunpack.c.h.b16 %v3242
    %v4009 = vunpack.c.l.b16 %v3243
    %v4010 = vunpack.c.h.b16 %v3243
    %v4011 = vunpack.c.l.b16 %v3244
    %v4012 = vunpack.c.h.b16 %v3244
    %v4013 = vunpack.c.l.b16 %v3245
    %v4014 = vunpack.c.h.b16 %v3245
    %v4015 = vunpack.c.l.b16 %v3246
    %v4016 = vunpack.c.h.b16 %v3246
    %v4017 = vunpack.c.l.b16 %v3247
    %v4018 = vunpack.c.h.b16 %v3247
    %v4019 = vunpack.c.l.b16 %v3248
    %v4020 = vunpack.c.h.b16 %v3248
    %v4021 = vunpack.c.l.b16 %v3249
    %v4022 = vunpack.c.h.b16 %v3249
    %v4023 = vunpack.c.l.b16 %v3250
    %v4024 = vunpack.c.h.b16 %v3250
    %v4025 = vunpack.c.l.b16 %v3251
    %v4026 = vunpack.c.h.b16 %v3251
    %v4027 = vunpack.c.l.b16 %v3252
    %v4028 = vunpack.c.h.b16 %v3252
    %v4029 = vunpack.c.l.b16 %v3253
    %v4030 = vunpack.c.h.b16 %v3253
    %v4031 = vunpack.c.l.b16 %v3254
    %v4032 = vunpack.c.h.b16 %v3254
    %v4033 = vunpack.c.l.b16 %v3255
    %v4034 = vunpack.c.h.b16 %v3255
    %v4035 = vunpack.c.l.b16 %v3256
    %v4036 = vunpack.c.h.b16 %v3256
    %v4037 = vunpack.c.l.b16 %v3257
    %v4038 = vunpack.c.h.b16 %v3257
    %v4039 = vunpack.c.l.b16 %v3258
    %v4040 = vunpack.c.h.b16 %v3258
    %v4041 = vunpack.c.l.b16 %v3259
    %v4042 = vunpack.c.h.b16 %v3259
    %v4043 = vunpack.c.l.b16 %v3260
    %v4044 = vunpack.c.h.b16 %v3260
    %v4045 = vunpack.c.l.b16 %v3261
    %v4046 = vunpack.c.h.b16 %v3261
    %v4047 = vunpack.c.l.b16 %v3262
    %v4048 = vunpack.c.h.b16 %v3262
    %v4049 = vpack.c.b16 %v3545, %v3537
    %v4050 = vpack.c.b16 %v3546, %v3538
    %v4051 = vpack.c.b16 %v3547, %v3539
    %v4052 = vpack.c.b16 %v3548, %v3540
    %v4053 = vpack.c.b16 %v3549, %v3541
    %v4054 = vpack.c.b16 %v3550, %v3542
    %v4055 = vpack.c.b16 %v3551, %v3543
    %v4056 = vpack.c.b16 %v3552, %v3544
    %v4057 = vpack.c.b16 %v3561, %v3553
    %v4058 = vpack.c.b16 %v3562, %v3554
    %v4059 = vpack.c.b16 %v3563, %v3555
    %v4060 = vpack.c.b16 %v3564, %v3556
    %v4061 = vpack.c.b16 %v3565, %v3557
    %v4062 = vpack.c.b16 %v3566, %v3558
    %v4063 = vpack.c.b16 %v3567, %v3559
    %v4064 = vpack.c.b16 %v3568, %v3560
    %v4065 = vpack.c.b16 %v3577, %v3569
    %v4066 = vpack.c.b16 %v3578, %v3570
    %v4067 = vpack.c.b16 %v3579, %v3571
    %v4068 = vpack.c.b16 %v3580, %v3572
    %v4069 = vpack.c.b16 %v3581, %v3573
    %v4070 = vpack.c.b16 %v3582, %v3574
    %v4071 = vpack.c.b16 %v3583, %v3575
    %v4072 = vpack.c.b16 %v3584, %v3576
    %v4073 = vpack.c.b16 %v3593, %v3585
    %v4074 = vpack.c.b16 %v3594, %v3586
    %v4075 = vpack.c.b16 %v3595, %v3587
    %v4076 = vpack.c.b16 %v3596, %v3588
    %v4077 = vpack.c.b16 %v3597, %v3589
    %v4078 = vpack.c.b16 %v3598, %v3590
    %v4079 = vpack.c.b16 %v3599, %v3591
    %v4080 = vpack.c.b16 %v3600, %v3592
    %v4081 = vpack.c.b16 %v3609, %v3601
    %v4082 = vpack.c.b16 %v3610, %v3602
    %v4083 = vpack.c.b16 %v3611, %v3603
    %v4084 = vpack.c.b16 %v3612, %v3604
    %v4085 = vpack.c.b16 %v3613, %v3605
    %v4086 = vpack.c.b16 %v3614, %v3606
    %v4087 = vpack.c.b16 %v3615, %v3607
    %v4088 = vpack.c.b16 %v3616, %v3608
    %v4089 = vpack.c.b16 %v3625, %v3617
    %v4090 = vpack.c.b16 %v3626, %v3618
    %v4091 = vpack.c.b16 %v3627, %v3619
    %v4092 = vpack.c.b16 %v3628, %v3620
    %v4093 = vpack.c.b16 %v3629, %v3621
    %v4094 = vpack.c.b16 %v3630, %v3622
    %v4095 = vpack.c.b16 %v3631, %v3623
    %v4096 = vpack.c.b16 %v3632, %v3624
    %v4097 = vpack.c.b16 %v3641, %v3633
    %v4098 = vpack.c.b16 %v3642, %v3634
    %v4099 = vpack.c.b16 %v3643, %v3635
    %v4100 = vpack.c.b16 %v3644, %v3636
    %v4101 = vpack.c.b16 %v3645, %v3637
    %v4102 = vpack.c.b16 %v3646, %v3638
    %v4103 = vpack.c.b16 %v3647, %v3639
    %v4104 = vpack.c.b16 %v3648, %v3640
    %v4105 = vpack.c.b16 %v3657, %v3649
    %v4106 = vpack.c.b16 %v3658, %v3650
    %v4107 = vpack.c.b16 %v3659, %v3651
    %v4108 = vpack.c.b16 %v3660, %v3652
    %v4109 = vpack.c.b16 %v3661, %v3653
    %v4110 = vpack.c.b16 %v3662, %v3654
    %v4111 = vpack.c.b16 %v3663, %v3655
    %v4112 = vpack.c.b16 %v3664, %v3656
    %v4113 = vpack.c.b16 %v3673, %v3665
    %v4114 = vpack.c.b16 %v3674, %v3666
    %v4115 = vpack.c.b16 %v3675, %v3667
    %v4116 = vpack.c.b16 %v3676, %v3668
    %v4117 = vpack.c.b16 %v3677, %v3669
    %v4118 = vpack.c.b16 %v3678, %v3670
    %v4119 = vpack.c.b16 %v3679, %v3671
    %v4120 = vpack.c.b16 %v3680, %v3672
    %v4121 = vpack.c.b16 %v3689, %v3681
    %v4122 = vpack.c.b16 %v3690, %v3682
    %v4123 = vpack.c.b16 %v3691, %v3683
    %v4124 = vpack.c.b16 %v3692, %v3684
    %v4125 = vpack.c.b16 %v3693, %v3685
    %v4126 = vpack.c.b16 %v3694, %v3686
    %v4127 = vpack.c.b16 %v3695, %v3687
    %v4128 = vpack.c.b16 %v3696, %v3688
    %v4129 = vpack.c.b16 %v3705, %v3697
    %v4130 = vpack.c.b16 %v3706, %v3698
    %v4131 = vpack.c.b16 %v3707, %v3699
    %v4132 = vpack.c.b16 %v3708, %v3700
    %v4133 = vpack.c.b16 %v3709, %v3701
    %v4134 = vpack.c.b16 %v3710, %v3702
    %v4135 = vpack.c.b16 %v3711, %v3703
    %v4136 = vpack.c.b16 %v3712, %v3704
    %v4137 = vpack.c.b16 %v3721, %v3713
    %v4138 = vpack.c.b16 %v3722, %v3714
    %v4139 = vpack.c.b16 %v3723, %v3715
    %v4140 = vpack.c.b16 %v3724, %v3716
    %v4141 = vpack.c.b16 %v3725, %v3717
    %v4142 = vpack.c.b16 %v3726, %v3718
    %v4143 = vpack.c.b16 %v3727, %v3719
    %v4144 = vpack.c.b16 %v3728, %v3720
    %v4145 = vpack.c.b16 %v3737, %v3729
    %v4146 = vpack.c.b16 %v3738, %v3730
    %v4147 = vpack.c.b16 %v3739, %v3731
    %v4148 = vpack.c.b16 %v3740, %v3732
    %v4149 = vpack.c.b16 %v3741, %v3733
    %v4150 = vpack.c.b16 %v3742, %v3734
    %v4151 = vpack.c.b16 %v3743, %v3735
    %v4152 = vpack.c.b16 %v3744, %v3736
    %v4153 = vpack.c.b16 %v3753, %v3745
    %v4154 = vpack.c.b16 %v3754, %v3746
    %v4155 = vpack.c.b16 %v3755, %v3747
    %v4156 = vpack.c.b16 %v3756, %v3748
    %v4157 = vpack.c.b16 %v3757, %v3749
    %v4158 = vpack.c.b16 %v3758, %v3750
    %v4159 = vpack.c.b16 %v3759, %v3751
    %v4160 = vpack.c.b16 %v3760, %v3752
    %v4161 = vpack.c.b16 %v3769, %v3761
    %v4162 = vpack.c.b16 %v3770, %v3762
    %v4163 = vpack.c.b16 %v3771, %v3763
    %v4164 = vpack.c.b16 %v3772, %v3764
    %v4165 = vpack.c.b16 %v3773, %v3765
    %v4166 = vpack.c.b16 %v3774, %v3766
    %v4167 = vpack.c.b16 %v3775, %v3767
    %v4168 = vpack.c.b16 %v3776, %v3768
    %v4169 = vpack.c.b16 %v3785, %v3777
    %v4170 = vpack.c.b16 %v3786, %v3778
    %v4171 = vpack.c.b16 %v3787, %v3779
    %v4172 = vpack.c.b16 %v3788, %v3780
    %v4173 = vpack.c.b16 %v3789, %v3781
    %v4174 = vpack.c.b16 %v3790, %v3782
    %v4175 = vpack.c.b16 %v3791, %v3783
    %v4176 = vpack.c.b16 %v3792, %v3784
    %v4177 = vpack.c.b16 %v3801, %v3793
    %v4178 = vpack.c.b16 %v3802, %v3794
    %v4179 = vpack.c.b16 %v3803, %v3795
    %v4180 = vpack.c.b16 %v3804, %v3796
    %v4181 = vpack.c.b16 %v3805, %v3797
    %v4182 = vpack.c.b16 %v3806, %v3798
    %v4183 = vpack.c.b16 %v3807, %v3799
    %v4184 = vpack.c.b16 %v3808, %v3800
    %v4185 = vpack.c.b16 %v3817, %v3809
    %v4186 = vpack.c.b16 %v3818, %v3810
    %v4187 = vpack.c.b16 %v3819, %v3811
    %v4188 = vpack.c.b16 %v3820, %v3812
    %v4189 = vpack.c.b16 %v3821, %v3813
    %v4190 = vpack.c.b16 %v3822, %v3814
    %v4191 = vpack.c.b16 %v3823, %v3815
    %v4192 = vpack.c.b16 %v3824, %v3816
    %v4193 = vpack.c.b16 %v3833, %v3825
    %v4194 = vpack.c.b16 %v3834, %v3826
    %v4195 = vpack.c.b16 %v3835, %v3827
    %v4196 = vpack.c.b16 %v3836, %v3828
    %v4197 = vpack.c.b16 %v3837, %v3829
    %v4198 = vpack.c.b16 %v3838, %v3830
    %v4199 = vpack.c.b16 %v3839, %v3831
    %v4200 = vpack.c.b16 %v3840, %v3832
    %v4201 = vpack.c.b16 %v3849, %v3841
    %v4202 = vpack.c.b16 %v3850, %v3842
    %v4203 = vpack.c.b16 %v3851, %v3843
    %v4204 = vpack.c.b16 %v3852, %v3844
    %v4205 = vpack.c.b16 %v3853, %v3845
    %v4206 = vpack.c.b16 %v3854, %v3846
    %v4207 = vpack.c.b16 %v3855, %v3847
    %v4208 = vpack.c.b16 %v3856, %v3848
    %v4209 = vpack.c.b16 %v3865, %v3857
    %v4210 = vpack.c.b16 %v3866, %v3858
    %v4211 = vpack.c.b16 %v3867, %v3859
    %v4212 = vpack.c.b16 %v3868, %v3860
    %v4213 = vpack.c.b16 %v3869, %v3861
    %v4214 = vpack.c.b16 %v3870, %v3862
    %v4215 = vpack.c.b16 %v3871, %v3863
    %v4216 = vpack.c.b16 %v3872, %v3864
    %v4217 = vpack.c.b16 %v3881, %v3873
    %v4218 = vpack.c.b16 %v3882, %v3874
    %v4219 = vpack.c.b16 %v3883, %v3875
    %v4220 = vpack.c.b16 %v3884, %v3876
    %v4221 = vpack.c.b16 %v3885, %v3877
    %v4222 = vpack.c.b16 %v3886, %v3878
    %v4223 = vpack.c.b16 %v3887, %v3879
    %v4224 = vpack.c.b16 %v3888, %v3880
    %v4225 = vpack.c.b16 %v3897, %v3889
    %v4226 = vpack.c.b16 %v3898, %v3890
    %v4227 = vpack.c.b16 %v3899, %v3891
    %v4228 = vpack.c.b16 %v3900, %v3892
    %v4229 = vpack.c.b16 %v3901, %v3893
    %v4230 = vpack.c.b16 %v3902, %v3894
    %v4231 = vpack.c.b16 %v3903, %v3895
    %v4232 = vpack.c.b16 %v3904, %v3896
    %v4233 = vpack.c.b16 %v3913, %v3905
    %v4234 = vpack.c.b16 %v3914, %v3906
    %v4235 = vpack.c.b16 %v3915, %v3907
    %v4236 = vpack.c.b16 %v3916, %v3908
    %v4237 = vpack.c.b16 %v3917, %v3909
    %v4238 = vpack.c.b16 %v3918, %v3910
    %v4239 = vpack.c.b16 %v3919, %v3911
    %v4240 = vpack.c.b16 %v3920, %v3912
    %v4241 = vpack.c.b16 %v3929, %v3921
    %v4242 = vpack.c.b16 %v3930, %v3922
    %v4243 = vpack.c.b16 %v3931, %v3923
    %v4244 = vpack.c.b16 %v3932, %v3924
    %v4245 = vpack.c.b16 %v3933, %v3925
    %v4246 = vpack.c.b16 %v3934, %v3926
    %v4247 = vpack.c.b16 %v3935, %v3927
    %v4248 = vpack.c.b16 %v3936, %v3928
    %v4249 = vpack.c.b16 %v3945, %v3937
    %v4250 = vpack.c.b16 %v3946, %v3938
    %v4251 = vpack.c.b16 %v3947, %v3939
    %v4252 = vpack.c.b16 %v3948, %v3940
    %v4253 = vpack.c.b16 %v3949, %v3941
    %v4254 = vpack.c.b16 %v3950, %v3942
    %v4255 = vpack.c.b16 %v3951, %v3943
    %v4256 = vpack.c.b16 %v3952, %v3944
    %v4257 = vpack.c.b16 %v3961, %v3953
    %v4258 = vpack.c.b16 %v3962, %v3954
    %v4259 = vpack.c.b16 %v3963, %v3955
    %v4260 = vpack.c.b16 %v3964, %v3956
    %v4261 = vpack.c.b16 %v3965, %v3957
    %v4262 = vpack.c.b16 %v3966, %v3958
    %v4263 = vpack.c.b16 %v3967, %v3959
    %v4264 = vpack.c.b16 %v3968, %v3960
    %v4265 = vpack.c.b16 %v3977, %v3969
    %v4266 = vpack.c.b16 %v3978, %v3970
    %v4267 = vpack.c.b16 %v3979, %v3971
    %v4268 = vpack.c.b16 %v3980, %v3972
    %v4269 = vpack.c.b16 %v3981, %v3973
    %v4270 = vpack.c.b16 %v3982, %v3974
    %v4271 = vpack.c.b16 %v3983, %v3975
    %v4272 = vpack.c.b16 %v3984, %v3976
    %v4273 = vpack.c.b16 %v3993, %v3985
    %v4274 = vpack.c.b16 %v3994, %v3986
    %v4275 = vpack.c.b16 %v3995, %v3987
    %v4276 = vpack.c.b16 %v3996, %v3988
    %v4277 = vpack.c.b16 %v3997, %v3989
    %v4278 = vpack.c.b16 %v3998, %v3990
    %v4279 = vpack.c.b16 %v3999, %v3991
    %v4280 = vpack.c.b16 %v4000, %v3992
    %v4281 = vpack.c.b16 %v4009, %v4001
    %v4282 = vpack.c.b16 %v4010, %v4002
    %v4283 = vpack.c.b16 %v4011, %v4003
    %v4284 = vpack.c.b16 %v4012, %v4004
    %v4285 = vpack.c.b16 %v4013, %v4005
    %v4286 = vpack.c.b16 %v4014, %v4006
    %v4287 = vpack.c.b16 %v4015, %v4007
    %v4288 = vpack.c.b16 %v4016, %v4008
    %v4289 = vpack.c.b16 %v4025, %v4017
    %v4290 = vpack.c.b16 %v4026, %v4018
    %v4291 = vpack.c.b16 %v4027, %v4019
    %v4292 = vpack.c.b16 %v4028, %v4020
    %v4293 = vpack.c.b16 %v4029, %v4021
    %v4294 = vpack.c.b16 %v4030, %v4022
    %v4295 = vpack.c.b16 %v4031, %v4023
    %v4296 = vpack.c.b16 %v4032, %v4024
    %v4297 = vpack.c.b16 %v4041, %v4033
    %v4298 = vpack.c.b16 %v4042, %v4034
    %v4299 = vpack.c.b16 %v4043, %v4035
    %v4300 = vpack.c.b16 %v4044, %v4036
    %v4301 = vpack.c.b16 %v4045, %v4037
    %v4302 = vpack.c.b16 %v4046, %v4038
    %v4303 = vpack.c.b16 %v4047, %v4039
    %v4304 = vpack.c.b16 %v4048, %v4040
    %4561 = vmatpush.bf16.msra.mxu0 %v4105
    %4562 = vmatpush.bf16.msra.mxu0 %v4097
    %4563 = vmatpush.bf16.msra.mxu0 %v4089
    %4564 = vmatpush.bf16.msra.mxu0 %v4081
    %4565 = vmatpush.bf16.msra.mxu0 %v4073
    %4566 = vmatpush.bf16.msra.mxu0 %v4065
    %4567 = vmatpush.bf16.msra.mxu0 %v4057
    %4568 = vmatpush.bf16.msra.mxu0 %v4049
    %4569 = vmatmul.bf16.gmra.mxu0 %v2943
    %v4570 = vpop.f32.mrf.mxu0
    %v4571 = vadd.f32 %v3265, %v4570
    %v4572 = vpop.f32.mrf.mxu0
    %v4573 = vadd.f32 %v3265, %v4572
    %4574 = vmatmul.bf16.gmra.mxu0 %v2947
    %v4575 = vpop.f32.mrf.mxu0
    %v4576 = vadd.f32 %v3265, %v4575
    %v4577 = vpop.f32.mrf.mxu0
    %v4578 = vadd.f32 %v3265, %v4577
    %4579 = vmatmul.bf16.gmra.mxu0 %v2951
    %v4580 = vpop.f32.mrf.mxu0
    %v4581 = vadd.f32 %v3265, %v4580
    %v4582 = vpop.f32.mrf.mxu0
    %v4583 = vadd.f32 %v3265, %v4582
    %4584 = vmatmul.bf16.gmra.mxu0 %v2955
    %v4585 = vpop.f32.mrf.mxu0
    %v4586 = vadd.f32 %v3265, %v4585
    %v4587 = vpop.f32.mrf.mxu0
    %v4588 = vadd.f32 %v3265, %v4587
    %4589 = vmatmul.bf16.gmra.mxu0 %v2959
    %v4590 = vpop.f32.mrf.mxu0
    %v4591 = vadd.f32 %v3265, %v4590
    %v4592 = vpop.f32.mrf.mxu0
    %v4593 = vadd.f32 %v3265, %v4592
    %4594 = vmatmul.bf16.gmra.mxu0 %v2963
    %v4595 = vpop.f32.mrf.mxu0
    %v4596 = vadd.f32 %v3265, %v4595
    %v4597 = vpop.f32.mrf.mxu0
    %v4598 = vadd.f32 %v3265, %v4597
    %4599 = vmatmul.bf16.gmra.mxu0 %v2967
    %v4600 = vpop.f32.mrf.mxu0
    %v4601 = vadd.f32 %v3265, %v4600
    %v4602 = vpop.f32.mrf.mxu0
    %v4603 = vadd.f32 %v3265, %v4602
    %4604 = vmatmul.bf16.gmra.mxu0 %v2971
    %v4605 = vpop.f32.mrf.mxu0
    %v4606 = vadd.f32 %v3265, %v4605
    %v4607 = vpop.f32.mrf.mxu0
    %v4608 = vadd.f32 %v3265, %v4607
    %4609 = vmatmul.bf16.gmra.mxu0 %v2975
    %v4610 = vpop.f32.mrf.mxu0
    %v4611 = vadd.f32 %v3265, %v4610
    %v4612 = vpop.f32.mrf.mxu0
    %v4613 = vadd.f32 %v3265, %v4612
    %4614 = vmatmul.bf16.gmra.mxu0 %v2979
    %v4615 = vpop.f32.mrf.mxu0
    %v4616 = vadd.f32 %v3265, %v4615
    %v4617 = vpop.f32.mrf.mxu0
    %v4618 = vadd.f32 %v3265, %v4617
    %4619 = vmatmul.bf16.gmra.mxu0 %v2983
    %v4620 = vpop.f32.mrf.mxu0
    %v4621 = vadd.f32 %v3265, %v4620
    %v4622 = vpop.f32.mrf.mxu0
    %v4623 = vadd.f32 %v3265, %v4622
    %4624 = vmatmul.bf16.gmra.mxu0 %v2987
    %v4625 = vpop.f32.mrf.mxu0
    %v4626 = vadd.f32 %v3265, %v4625
    %v4627 = vpop.f32.mrf.mxu0
    %v4628 = vadd.f32 %v3265, %v4627
    %4629 = vmatmul.bf16.gmra.mxu0 %v2991
    %v4630 = vpop.f32.mrf.mxu0
    %v4631 = vadd.f32 %v3265, %v4630
    %v4632 = vpop.f32.mrf.mxu0
    %v4633 = vadd.f32 %v3265, %v4632
    %4634 = vmatmul.bf16.gmra.mxu0 %v2995
    %v4635 = vpop.f32.mrf.mxu0
    %v4636 = vadd.f32 %v3265, %v4635
    %v4637 = vpop.f32.mrf.mxu0
    %v4638 = vadd.f32 %v3265, %v4637
    %4639 = vmatmul.bf16.gmra.mxu0 %v2999
    %v4640 = vpop.f32.mrf.mxu0
    %v4641 = vadd.f32 %v3265, %v4640
    %v4642 = vpop.f32.mrf.mxu0
    %v4643 = vadd.f32 %v3265, %v4642
    %4644 = vmatmul.bf16.gmra.mxu0 %v3003
    %v4645 = vpop.f32.mrf.mxu0
    %v4646 = vadd.f32 %v3265, %v4645
    %v4647 = vpop.f32.mrf.mxu0
    %v4648 = vadd.f32 %v3265, %v4647
    %4649 = vdwg.mxu0
    %4650 = vmatpush.bf16.msra.mxu0 %v4169
    %4651 = vmatpush.bf16.msra.mxu0 %v4161
    %4652 = vmatpush.bf16.msra.mxu0 %v4153
    %4653 = vmatpush.bf16.msra.mxu0 %v4145
    %4654 = vmatpush.bf16.msra.mxu0 %v4137
    %4655 = vmatpush.bf16.msra.mxu0 %v4129
    %4656 = vmatpush.bf16.msra.mxu0 %v4121
    %4657 = vmatpush.bf16.msra.mxu0 %v4113
    %4658 = vmatmul.bf16.gmra.mxu0 %v2944
    %v4659 = vpop.f32.mrf.mxu0
    %v4660 = vadd.f32 %v4571, %v4659
    %v4661 = vpop.f32.mrf.mxu0
    %v4662 = vadd.f32 %v4573, %v4661
    %4663 = vmatmul.bf16.gmra.mxu0 %v2948
    %v4664 = vpop.f32.mrf.mxu0
    %v4665 = vadd.f32 %v4576, %v4664
    %v4666 = vpop.f32.mrf.mxu0
    %v4667 = vadd.f32 %v4578, %v4666
    %4668 = vmatmul.bf16.gmra.mxu0 %v2952
    %v4669 = vpop.f32.mrf.mxu0
    %v4670 = vadd.f32 %v4581, %v4669
    %v4671 = vpop.f32.mrf.mxu0
    %v4672 = vadd.f32 %v4583, %v4671
    %4673 = vmatmul.bf16.gmra.mxu0 %v2956
    %v4674 = vpop.f32.mrf.mxu0
    %v4675 = vadd.f32 %v4586, %v4674
    %v4676 = vpop.f32.mrf.mxu0
    %v4677 = vadd.f32 %v4588, %v4676
    %4678 = vmatmul.bf16.gmra.mxu0 %v2960
    %v4679 = vpop.f32.mrf.mxu0
    %v4680 = vadd.f32 %v4591, %v4679
    %v4681 = vpop.f32.mrf.mxu0
    %v4682 = vadd.f32 %v4593, %v4681
    %4683 = vmatmul.bf16.gmra.mxu0 %v2964
    %v4684 = vpop.f32.mrf.mxu0
    %v4685 = vadd.f32 %v4596, %v4684
    %v4686 = vpop.f32.mrf.mxu0
    %v4687 = vadd.f32 %v4598, %v4686
    %4688 = vmatmul.bf16.gmra.mxu0 %v2968
    %v4689 = vpop.f32.mrf.mxu0
    %v4690 = vadd.f32 %v4601, %v4689
    %v4691 = vpop.f32.mrf.mxu0
    %v4692 = vadd.f32 %v4603, %v4691
    %4693 = vmatmul.bf16.gmra.mxu0 %v2972
    %v4694 = vpop.f32.mrf.mxu0
    %v4695 = vadd.f32 %v4606, %v4694
    %v4696 = vpop.f32.mrf.mxu0
    %v4697 = vadd.f32 %v4608, %v4696
    %4698 = vmatmul.bf16.gmra.mxu0 %v2976
    %v4699 = vpop.f32.mrf.mxu0
    %v4700 = vadd.f32 %v4611, %v4699
    %v4701 = vpop.f32.mrf.mxu0
    %v4702 = vadd.f32 %v4613, %v4701
    %4703 = vmatmul.bf16.gmra.mxu0 %v2980
    %v4704 = vpop.f32.mrf.mxu0
    %v4705 = vadd.f32 %v4616, %v4704
    %v4706 = vpop.f32.mrf.mxu0
    %v4707 = vadd.f32 %v4618, %v4706
    %4708 = vmatmul.bf16.gmra.mxu0 %v2984
    %v4709 = vpop.f32.mrf.mxu0
    %v4710 = vadd.f32 %v4621, %v4709
    %v4711 = vpop.f32.mrf.mxu0
    %v4712 = vadd.f32 %v4623, %v4711
    %4713 = vmatmul.bf16.gmra.mxu0 %v2988
    %v4714 = vpop.f32.mrf.mxu0
    %v4715 = vadd.f32 %v4626, %v4714
    %v4716 = vpop.f32.mrf.mxu0
    %v4717 = vadd.f32 %v4628, %v4716
    %4718 = vmatmul.bf16.gmra.mxu0 %v2992
    %v4719 = vpop.f32.mrf.mxu0
    %v4720 = vadd.f32 %v4631, %v4719
    %v4721 = vpop.f32.mrf.mxu0
    %v4722 = vadd.f32 %v4633, %v4721
    %4723 = vmatmul.bf16.gmra.mxu0 %v2996
    %v4724 = vpop.f32.mrf.mxu0
    %v4725 = vadd.f32 %v4636, %v4724
    %v4726 = vpop.f32.mrf.mxu0
    %v4727 = vadd.f32 %v4638, %v4726
    %4728 = vmatmul.bf16.gmra.mxu0 %v3000
    %v4729 = vpop.f32.mrf.mxu0
    %v4730 = vadd.f32 %v4641, %v4729
    %v4731 = vpop.f32.mrf.mxu0
    %v4732 = vadd.f32 %v4643, %v4731
    %4733 = vmatmul.bf16.gmra.mxu0 %v3004
    %v4734 = vpop.f32.mrf.mxu0
    %v4735 = vadd.f32 %v4646, %v4734
    %v4736 = vpop.f32.mrf.mxu0
    %v4737 = vadd.f32 %v4648, %v4736
    %4738 = vdwg.mxu0
    %4739 = vmatpush.bf16.msra.mxu0 %v4233
    %4740 = vmatpush.bf16.msra.mxu0 %v4225
    %4741 = vmatpush.bf16.msra.mxu0 %v4217
    %4742 = vmatpush.bf16.msra.mxu0 %v4209
    %4743 = vmatpush.bf16.msra.mxu0 %v4201
    %4744 = vmatpush.bf16.msra.mxu0 %v4193
    %4745 = vmatpush.bf16.msra.mxu0 %v4185
    %4746 = vmatpush.bf16.msra.mxu0 %v4177
    %4747 = vmatmul.bf16.gmra.mxu0 %v2945
    %v4748 = vpop.f32.mrf.mxu0
    %v4749 = vadd.f32 %v4660, %v4748
    %v4750 = vpop.f32.mrf.mxu0
    %v4751 = vadd.f32 %v4662, %v4750
    %4752 = vmatmul.bf16.gmra.mxu0 %v2949
    %v4753 = vpop.f32.mrf.mxu0
    %v4754 = vadd.f32 %v4665, %v4753
    %v4755 = vpop.f32.mrf.mxu0
    %v4756 = vadd.f32 %v4667, %v4755
    %4757 = vmatmul.bf16.gmra.mxu0 %v2953
    %v4758 = vpop.f32.mrf.mxu0
    %v4759 = vadd.f32 %v4670, %v4758
    %v4760 = vpop.f32.mrf.mxu0
    %v4761 = vadd.f32 %v4672, %v4760
    %4762 = vmatmul.bf16.gmra.mxu0 %v2957
    %v4763 = vpop.f32.mrf.mxu0
    %v4764 = vadd.f32 %v4675, %v4763
    %v4765 = vpop.f32.mrf.mxu0
    %v4766 = vadd.f32 %v4677, %v4765
    %4767 = vmatmul.bf16.gmra.mxu0 %v2961
    %v4768 = vpop.f32.mrf.mxu0
    %v4769 = vadd.f32 %v4680, %v4768
    %v4770 = vpop.f32.mrf.mxu0
    %v4771 = vadd.f32 %v4682, %v4770
    %4772 = vmatmul.bf16.gmra.mxu0 %v2965
    %v4773 = vpop.f32.mrf.mxu0
    %v4774 = vadd.f32 %v4685, %v4773
    %v4775 = vpop.f32.mrf.mxu0
    %v4776 = vadd.f32 %v4687, %v4775
    %4777 = vmatmul.bf16.gmra.mxu0 %v2969
    %v4778 = vpop.f32.mrf.mxu0
    %v4779 = vadd.f32 %v4690, %v4778
    %v4780 = vpop.f32.mrf.mxu0
    %v4781 = vadd.f32 %v4692, %v4780
    %4782 = vmatmul.bf16.gmra.mxu0 %v2973
    %v4783 = vpop.f32.mrf.mxu0
    %v4784 = vadd.f32 %v4695, %v4783
    %v4785 = vpop.f32.mrf.mxu0
    %v4786 = vadd.f32 %v4697, %v4785
    %4787 = vmatmul.bf16.gmra.mxu0 %v2977
    %v4788 = vpop.f32.mrf.mxu0
    %v4789 = vadd.f32 %v4700, %v4788
    %v4790 = vpop.f32.mrf.mxu0
    %v4791 = vadd.f32 %v4702, %v4790
    %4792 = vmatmul.bf16.gmra.mxu0 %v2981
    %v4793 = vpop.f32.mrf.mxu0
    %v4794 = vadd.f32 %v4705, %v4793
    %v4795 = vpop.f32.mrf.mxu0
    %v4796 = vadd.f32 %v4707, %v4795
    %4797 = vmatmul.bf16.gmra.mxu0 %v2985
    %v4798 = vpop.f32.mrf.mxu0
    %v4799 = vadd.f32 %v4710, %v4798
    %v4800 = vpop.f32.mrf.mxu0
    %v4801 = vadd.f32 %v4712, %v4800
    %4802 = vmatmul.bf16.gmra.mxu0 %v2989
    %v4803 = vpop.f32.mrf.mxu0
    %v4804 = vadd.f32 %v4715, %v4803
    %v4805 = vpop.f32.mrf.mxu0
    %v4806 = vadd.f32 %v4717, %v4805
    %4807 = vmatmul.bf16.gmra.mxu0 %v2993
    %v4808 = vpop.f32.mrf.mxu0
    %v4809 = vadd.f32 %v4720, %v4808
    %v4810 = vpop.f32.mrf.mxu0
    %v4811 = vadd.f32 %v4722, %v4810
    %4812 = vmatmul.bf16.gmra.mxu0 %v2997
    %v4813 = vpop.f32.mrf.mxu0
    %v4814 = vadd.f32 %v4725, %v4813
    %v4815 = vpop.f32.mrf.mxu0
    %v4816 = vadd.f32 %v4727, %v4815
    %4817 = vmatmul.bf16.gmra.mxu0 %v3001
    %v4818 = vpop.f32.mrf.mxu0
    %v4819 = vadd.f32 %v4730, %v4818
    %v4820 = vpop.f32.mrf.mxu0
    %v4821 = vadd.f32 %v4732, %v4820
    %4822 = vmatmul.bf16.gmra.mxu0 %v3005
    %v4823 = vpop.f32.mrf.mxu0
    %v4824 = vadd.f32 %v4735, %v4823
    %v4825 = vpop.f32.mrf.mxu0
    %v4826 = vadd.f32 %v4737, %v4825
    %4827 = vdwg.mxu0
    %4828 = vmatpush.bf16.msra.mxu0 %v4297
    %4829 = vmatpush.bf16.msra.mxu0 %v4289
    %4830 = vmatpush.bf16.msra.mxu0 %v4281
    %4831 = vmatpush.bf16.msra.mxu0 %v4273
    %4832 = vmatpush.bf16.msra.mxu0 %v4265
    %4833 = vmatpush.bf16.msra.mxu0 %v4257
    %4834 = vmatpush.bf16.msra.mxu0 %v4249
    %4835 = vmatpush.bf16.msra.mxu0 %v4241
    %4836 = vmatmul.bf16.gmra.mxu0 %v2946
    %v4837 = vpop.f32.mrf.mxu0
    %v4838 = vadd.f32 %v4749, %v4837
    %v4839 = vpop.f32.mrf.mxu0
    %v4840 = vadd.f32 %v4751, %v4839
    %4841 = vmatmul.bf16.gmra.mxu0 %v2950
    %v4842 = vpop.f32.mrf.mxu0
    %v4843 = vadd.f32 %v4754, %v4842
    %v4844 = vpop.f32.mrf.mxu0
    %v4845 = vadd.f32 %v4756, %v4844
    %4846 = vmatmul.bf16.gmra.mxu0 %v2954
    %v4847 = vpop.f32.mrf.mxu0
    %v4848 = vadd.f32 %v4759, %v4847
    %v4849 = vpop.f32.mrf.mxu0
    %v4850 = vadd.f32 %v4761, %v4849
    %4851 = vmatmul.bf16.gmra.mxu0 %v2958
    %v4852 = vpop.f32.mrf.mxu0
    %v4853 = vadd.f32 %v4764, %v4852
    %v4854 = vpop.f32.mrf.mxu0
    %v4855 = vadd.f32 %v4766, %v4854
    %4856 = vmatmul.bf16.gmra.mxu0 %v2962
    %v4857 = vpop.f32.mrf.mxu0
    %v4858 = vadd.f32 %v4769, %v4857
    %v4859 = vpop.f32.mrf.mxu0
    %v4860 = vadd.f32 %v4771, %v4859
    %4861 = vmatmul.bf16.gmra.mxu0 %v2966
    %v4862 = vpop.f32.mrf.mxu0
    %v4863 = vadd.f32 %v4774, %v4862
    %v4864 = vpop.f32.mrf.mxu0
    %v4865 = vadd.f32 %v4776, %v4864
    %4866 = vmatmul.bf16.gmra.mxu0 %v2970
    %v4867 = vpop.f32.mrf.mxu0
    %v4868 = vadd.f32 %v4779, %v4867
    %v4869 = vpop.f32.mrf.mxu0
    %v4870 = vadd.f32 %v4781, %v4869
    %4871 = vmatmul.bf16.gmra.mxu0 %v2974
    %v4872 = vpop.f32.mrf.mxu0
    %v4873 = vadd.f32 %v4784, %v4872
    %v4874 = vpop.f32.mrf.mxu0
    %v4875 = vadd.f32 %v4786, %v4874
    %4876 = vmatmul.bf16.gmra.mxu0 %v2978
    %v4877 = vpop.f32.mrf.mxu0
    %v4878 = vadd.f32 %v4789, %v4877
    %v4879 = vpop.f32.mrf.mxu0
    %v4880 = vadd.f32 %v4791, %v4879
    %4881 = vmatmul.bf16.gmra.mxu0 %v2982
    %v4882 = vpop.f32.mrf.mxu0
    %v4883 = vadd.f32 %v4794, %v4882
    %v4884 = vpop.f32.mrf.mxu0
    %v4885 = vadd.f32 %v4796, %v4884
    %4886 = vmatmul.bf16.gmra.mxu0 %v2986
    %v4887 = vpop.f32.mrf.mxu0
    %v4888 = vadd.f32 %v4799, %v4887
    %v4889 = vpop.f32.mrf.mxu0
    %v4890 = vadd.f32 %v4801, %v4889
    %4891 = vmatmul.bf16.gmra.mxu0 %v2990
    %v4892 = vpop.f32.mrf.mxu0
    %v4893 = vadd.f32 %v4804, %v4892
    %v4894 = vpop.f32.mrf.mxu0
    %v4895 = vadd.f32 %v4806, %v4894
    %4896 = vmatmul.bf16.gmra.mxu0 %v2994
    %v4897 = vpop.f32.mrf.mxu0
    %v4898 = vadd.f32 %v4809, %v4897
    %v4899 = vpop.f32.mrf.mxu0
    %v4900 = vadd.f32 %v4811, %v4899
    %4901 = vmatmul.bf16.gmra.mxu0 %v2998
    %v4902 = vpop.f32.mrf.mxu0
    %v4903 = vadd.f32 %v4814, %v4902
    %v4904 = vpop.f32.mrf.mxu0
    %v4905 = vadd.f32 %v4816, %v4904
    %4906 = vmatmul.bf16.gmra.mxu0 %v3002
    %v4907 = vpop.f32.mrf.mxu0
    %v4908 = vadd.f32 %v4819, %v4907
    %v4909 = vpop.f32.mrf.mxu0
    %v4910 = vadd.f32 %v4821, %v4909
    %4911 = vmatmul.bf16.gmra.mxu0 %v3006
    %v4912 = vpop.f32.mrf.mxu0
    %v4913 = vadd.f32 %v4824, %v4912
    %v4914 = vpop.f32.mrf.mxu0
    %v4915 = vadd.f32 %v4826, %v4914
    %4916 = vdwg.mxu0
    %4917 = vmatpush.bf16.msra.mxu0 %v4106
    %4918 = vmatpush.bf16.msra.mxu0 %v4098
    %4919 = vmatpush.bf16.msra.mxu0 %v4090
    %4920 = vmatpush.bf16.msra.mxu0 %v4082
    %4921 = vmatpush.bf16.msra.mxu0 %v4074
    %4922 = vmatpush.bf16.msra.mxu0 %v4066
    %4923 = vmatpush.bf16.msra.mxu0 %v4058
    %4924 = vmatpush.bf16.msra.mxu0 %v4050
    %4925 = vmatmul.bf16.gmra.mxu0 %v2943
    %v4926 = vpop.f32.mrf.mxu0
    %v4927 = vadd.f32 %v3266, %v4926
    %v4928 = vpop.f32.mrf.mxu0
    %v4929 = vadd.f32 %v3266, %v4928
    %4930 = vmatmul.bf16.gmra.mxu0 %v2947
    %v4931 = vpop.f32.mrf.mxu0
    %v4932 = vadd.f32 %v3266, %v4931
    %v4933 = vpop.f32.mrf.mxu0
    %v4934 = vadd.f32 %v3266, %v4933
    %4935 = vmatmul.bf16.gmra.mxu0 %v2951
    %v4936 = vpop.f32.mrf.mxu0
    %v4937 = vadd.f32 %v3266, %v4936
    %v4938 = vpop.f32.mrf.mxu0
    %v4939 = vadd.f32 %v3266, %v4938
    %4940 = vmatmul.bf16.gmra.mxu0 %v2955
    %v4941 = vpop.f32.mrf.mxu0
    %v4942 = vadd.f32 %v3266, %v4941
    %v4943 = vpop.f32.mrf.mxu0
    %v4944 = vadd.f32 %v3266, %v4943
    %4945 = vmatmul.bf16.gmra.mxu0 %v2959
    %v4946 = vpop.f32.mrf.mxu0
    %v4947 = vadd.f32 %v3266, %v4946
    %v4948 = vpop.f32.mrf.mxu0
    %v4949 = vadd.f32 %v3266, %v4948
    %4950 = vmatmul.bf16.gmra.mxu0 %v2963
    %v4951 = vpop.f32.mrf.mxu0
    %v4952 = vadd.f32 %v3266, %v4951
    %v4953 = vpop.f32.mrf.mxu0
    %v4954 = vadd.f32 %v3266, %v4953
    %4955 = vmatmul.bf16.gmra.mxu0 %v2967
    %v4956 = vpop.f32.mrf.mxu0
    %v4957 = vadd.f32 %v3266, %v4956
    %v4958 = vpop.f32.mrf.mxu0
    %v4959 = vadd.f32 %v3266, %v4958
    %4960 = vmatmul.bf16.gmra.mxu0 %v2971
    %v4961 = vpop.f32.mrf.mxu0
    %v4962 = vadd.f32 %v3266, %v4961
    %v4963 = vpop.f32.mrf.mxu0
    %v4964 = vadd.f32 %v3266, %v4963
    %4965 = vmatmul.bf16.gmra.mxu0 %v2975
    %v4966 = vpop.f32.mrf.mxu0
    %v4967 = vadd.f32 %v3266, %v4966
    %v4968 = vpop.f32.mrf.mxu0
    %v4969 = vadd.f32 %v3266, %v4968
    %4970 = vmatmul.bf16.gmra.mxu0 %v2979
    %v4971 = vpop.f32.mrf.mxu0
    %v4972 = vadd.f32 %v3266, %v4971
    %v4973 = vpop.f32.mrf.mxu0
    %v4974 = vadd.f32 %v3266, %v4973
    %4975 = vmatmul.bf16.gmra.mxu0 %v2983
    %v4976 = vpop.f32.mrf.mxu0
    %v4977 = vadd.f32 %v3266, %v4976
    %v4978 = vpop.f32.mrf.mxu0
    %v4979 = vadd.f32 %v3266, %v4978
    %4980 = vmatmul.bf16.gmra.mxu0 %v2987
    %v4981 = vpop.f32.mrf.mxu0
    %v4982 = vadd.f32 %v3266, %v4981
    %v4983 = vpop.f32.mrf.mxu0
    %v4984 = vadd.f32 %v3266, %v4983
    %4985 = vmatmul.bf16.gmra.mxu0 %v2991
    %v4986 = vpop.f32.mrf.mxu0
    %v4987 = vadd.f32 %v3266, %v4986
    %v4988 = vpop.f32.mrf.mxu0
    %v4989 = vadd.f32 %v3266, %v4988
    %4990 = vmatmul.bf16.gmra.mxu0 %v2995
    %v4991 = vpop.f32.mrf.mxu0
    %v4992 = vadd.f32 %v3266, %v4991
    %v4993 = vpop.f32.mrf.mxu0
    %v4994 = vadd.f32 %v3266, %v4993
    %4995 = vmatmul.bf16.gmra.mxu0 %v2999
    %v4996 = vpop.f32.mrf.mxu0
    %v4997 = vadd.f32 %v3266, %v4996
    %v4998 = vpop.f32.mrf.mxu0
    %v4999 = vadd.f32 %v3266, %v4998
    %5000 = vmatmul.bf16.gmra.mxu0 %v3003
    %v5001 = vpop.f32.mrf.mxu0
    %v5002 = vadd.f32 %v3266, %v5001
    %v5003 = vpop.f32.mrf.mxu0
    %v5004 = vadd.f32 %v3266, %v5003
    %5005 = vdwg.mxu0
    %5006 = vmatpush.bf16.msra.mxu0 %v4170
    %5007 = vmatpush.bf16.msra.mxu0 %v4162
    %5008 = vmatpush.bf16.msra.mxu0 %v4154
    %5009 = vmatpush.bf16.msra.mxu0 %v4146
    %5010 = vmatpush.bf16.msra.mxu0 %v4138
    %5011 = vmatpush.bf16.msra.mxu0 %v4130
    %5012 = vmatpush.bf16.msra.mxu0 %v4122
    %5013 = vmatpush.bf16.msra.mxu0 %v4114
    %5014 = vmatmul.bf16.gmra.mxu0 %v2944
    %v5015 = vpop.f32.mrf.mxu0
    %v5016 = vadd.f32 %v4927, %v5015
    %v5017 = vpop.f32.mrf.mxu0
    %v5018 = vadd.f32 %v4929, %v5017
    %5019 = vmatmul.bf16.gmra.mxu0 %v2948
    %v5020 = vpop.f32.mrf.mxu0
    %v5021 = vadd.f32 %v4932, %v5020
    %v5022 = vpop.f32.mrf.mxu0
    %v5023 = vadd.f32 %v4934, %v5022
    %5024 = vmatmul.bf16.gmra.mxu0 %v2952
    %v5025 = vpop.f32.mrf.mxu0
    %v5026 = vadd.f32 %v4937, %v5025
    %v5027 = vpop.f32.mrf.mxu0
    %v5028 = vadd.f32 %v4939, %v5027
    %5029 = vmatmul.bf16.gmra.mxu0 %v2956
    %v5030 = vpop.f32.mrf.mxu0
    %v5031 = vadd.f32 %v4942, %v5030
    %v5032 = vpop.f32.mrf.mxu0
    %v5033 = vadd.f32 %v4944, %v5032
    %5034 = vmatmul.bf16.gmra.mxu0 %v2960
    %v5035 = vpop.f32.mrf.mxu0
    %v5036 = vadd.f32 %v4947, %v5035
    %v5037 = vpop.f32.mrf.mxu0
    %v5038 = vadd.f32 %v4949, %v5037
    %5039 = vmatmul.bf16.gmra.mxu0 %v2964
    %v5040 = vpop.f32.mrf.mxu0
    %v5041 = vadd.f32 %v4952, %v5040
    %v5042 = vpop.f32.mrf.mxu0
    %v5043 = vadd.f32 %v4954, %v5042
    %5044 = vmatmul.bf16.gmra.mxu0 %v2968
    %v5045 = vpop.f32.mrf.mxu0
    %v5046 = vadd.f32 %v4957, %v5045
    %v5047 = vpop.f32.mrf.mxu0
    %v5048 = vadd.f32 %v4959, %v5047
    %5049 = vmatmul.bf16.gmra.mxu0 %v2972
    %v5050 = vpop.f32.mrf.mxu0
    %v5051 = vadd.f32 %v4962, %v5050
    %v5052 = vpop.f32.mrf.mxu0
    %v5053 = vadd.f32 %v4964, %v5052
    %5054 = vmatmul.bf16.gmra.mxu0 %v2976
    %v5055 = vpop.f32.mrf.mxu0
    %v5056 = vadd.f32 %v4967, %v5055
    %v5057 = vpop.f32.mrf.mxu0
    %v5058 = vadd.f32 %v4969, %v5057
    %5059 = vmatmul.bf16.gmra.mxu0 %v2980
    %v5060 = vpop.f32.mrf.mxu0
    %v5061 = vadd.f32 %v4972, %v5060
    %v5062 = vpop.f32.mrf.mxu0
    %v5063 = vadd.f32 %v4974, %v5062
    %5064 = vmatmul.bf16.gmra.mxu0 %v2984
    %v5065 = vpop.f32.mrf.mxu0
    %v5066 = vadd.f32 %v4977, %v5065
    %v5067 = vpop.f32.mrf.mxu0
    %v5068 = vadd.f32 %v4979, %v5067
    %5069 = vmatmul.bf16.gmra.mxu0 %v2988
    %v5070 = vpop.f32.mrf.mxu0
    %v5071 = vadd.f32 %v4982, %v5070
    %v5072 = vpop.f32.mrf.mxu0
    %v5073 = vadd.f32 %v4984, %v5072
    %5074 = vmatmul.bf16.gmra.mxu0 %v2992
    %v5075 = vpop.f32.mrf.mxu0
    %v5076 = vadd.f32 %v4987, %v5075
    %v5077 = vpop.f32.mrf.mxu0
    %v5078 = vadd.f32 %v4989, %v5077
    %5079 = vmatmul.bf16.gmra.mxu0 %v2996
    %v5080 = vpop.f32.mrf.mxu0
    %v5081 = vadd.f32 %v4992, %v5080
    %v5082 = vpop.f32.mrf.mxu0
    %v5083 = vadd.f32 %v4994, %v5082
    %5084 = vmatmul.bf16.gmra.mxu0 %v3000
    %v5085 = vpop.f32.mrf.mxu0
    %v5086 = vadd.f32 %v4997, %v5085
    %v5087 = vpop.f32.mrf.mxu0
    %v5088 = vadd.f32 %v4999, %v5087
    %5089 = vmatmul.bf16.gmra.mxu0 %v3004
    %v5090 = vpop.f32.mrf.mxu0
    %v5091 = vadd.f32 %v5002, %v5090
    %v5092 = vpop.f32.mrf.mxu0
    %v5093 = vadd.f32 %v5004, %v5092
    %5094 = vdwg.mxu0
    %5095 = vmatpush.bf16.msra.mxu0 %v4234
    %5096 = vmatpush.bf16.msra.mxu0 %v4226
    %5097 = vmatpush.bf16.msra.mxu0 %v4218
    %5098 = vmatpush.bf16.msra.mxu0 %v4210
    %5099 = vmatpush.bf16.msra.mxu0 %v4202
    %5100 = vmatpush.bf16.msra.mxu0 %v4194
    %5101 = vmatpush.bf16.msra.mxu0 %v4186
    %5102 = vmatpush.bf16.msra.mxu0 %v4178
    %5103 = vmatmul.bf16.gmra.mxu0 %v2945
    %v5104 = vpop.f32.mrf.mxu0
    %v5105 = vadd.f32 %v5016, %v5104
    %v5106 = vpop.f32.mrf.mxu0
    %v5107 = vadd.f32 %v5018, %v5106
    %5108 = vmatmul.bf16.gmra.mxu0 %v2949
    %v5109 = vpop.f32.mrf.mxu0
    %v5110 = vadd.f32 %v5021, %v5109
    %v5111 = vpop.f32.mrf.mxu0
    %v5112 = vadd.f32 %v5023, %v5111
    %5113 = vmatmul.bf16.gmra.mxu0 %v2953
    %v5114 = vpop.f32.mrf.mxu0
    %v5115 = vadd.f32 %v5026, %v5114
    %v5116 = vpop.f32.mrf.mxu0
    %v5117 = vadd.f32 %v5028, %v5116
    %5118 = vmatmul.bf16.gmra.mxu0 %v2957
    %v5119 = vpop.f32.mrf.mxu0
    %v5120 = vadd.f32 %v5031, %v5119
    %v5121 = vpop.f32.mrf.mxu0
    %v5122 = vadd.f32 %v5033, %v5121
    %5123 = vmatmul.bf16.gmra.mxu0 %v2961
    %v5124 = vpop.f32.mrf.mxu0
    %v5125 = vadd.f32 %v5036, %v5124
    %v5126 = vpop.f32.mrf.mxu0
    %v5127 = vadd.f32 %v5038, %v5126
    %5128 = vmatmul.bf16.gmra.mxu0 %v2965
    %v5129 = vpop.f32.mrf.mxu0
    %v5130 = vadd.f32 %v5041, %v5129
    %v5131 = vpop.f32.mrf.mxu0
    %v5132 = vadd.f32 %v5043, %v5131
    %5133 = vmatmul.bf16.gmra.mxu0 %v2969
    %v5134 = vpop.f32.mrf.mxu0
    %v5135 = vadd.f32 %v5046, %v5134
    %v5136 = vpop.f32.mrf.mxu0
    %v5137 = vadd.f32 %v5048, %v5136
    %5138 = vmatmul.bf16.gmra.mxu0 %v2973
    %v5139 = vpop.f32.mrf.mxu0
    %v5140 = vadd.f32 %v5051, %v5139
    %v5141 = vpop.f32.mrf.mxu0
    %v5142 = vadd.f32 %v5053, %v5141
    %5143 = vmatmul.bf16.gmra.mxu0 %v2977
    %v5144 = vpop.f32.mrf.mxu0
    %v5145 = vadd.f32 %v5056, %v5144
    %v5146 = vpop.f32.mrf.mxu0
    %v5147 = vadd.f32 %v5058, %v5146
    %5148 = vmatmul.bf16.gmra.mxu0 %v2981
    %v5149 = vpop.f32.mrf.mxu0
    %v5150 = vadd.f32 %v5061, %v5149
    %v5151 = vpop.f32.mrf.mxu0
    %v5152 = vadd.f32 %v5063, %v5151
    %5153 = vmatmul.bf16.gmra.mxu0 %v2985
    %v5154 = vpop.f32.mrf.mxu0
    %v5155 = vadd.f32 %v5066, %v5154
    %v5156 = vpop.f32.mrf.mxu0
    %v5157 = vadd.f32 %v5068, %v5156
    %5158 = vmatmul.bf16.gmra.mxu0 %v2989
    %v5159 = vpop.f32.mrf.mxu0
    %v5160 = vadd.f32 %v5071, %v5159
    %v5161 = vpop.f32.mrf.mxu0
    %v5162 = vadd.f32 %v5073, %v5161
    %5163 = vmatmul.bf16.gmra.mxu0 %v2993
    %v5164 = vpop.f32.mrf.mxu0
    %v5165 = vadd.f32 %v5076, %v5164
    %v5166 = vpop.f32.mrf.mxu0
    %v5167 = vadd.f32 %v5078, %v5166
    %5168 = vmatmul.bf16.gmra.mxu0 %v2997
    %v5169 = vpop.f32.mrf.mxu0
    %v5170 = vadd.f32 %v5081, %v5169
    %v5171 = vpop.f32.mrf.mxu0
    %v5172 = vadd.f32 %v5083, %v5171
    %5173 = vmatmul.bf16.gmra.mxu0 %v3001
    %v5174 = vpop.f32.mrf.mxu0
    %v5175 = vadd.f32 %v5086, %v5174
    %v5176 = vpop.f32.mrf.mxu0
    %v5177 = vadd.f32 %v5088, %v5176
    %5178 = vmatmul.bf16.gmra.mxu0 %v3005
    %v5179 = vpop.f32.mrf.mxu0
    %v5180 = vadd.f32 %v5091, %v5179
    %v5181 = vpop.f32.mrf.mxu0
    %v5182 = vadd.f32 %v5093, %v5181
    %5183 = vdwg.mxu0
    %5184 = vmatpush.bf16.msra.mxu0 %v4298
    %5185 = vmatpush.bf16.msra.mxu0 %v4290
    %5186 = vmatpush.bf16.msra.mxu0 %v4282
    %5187 = vmatpush.bf16.msra.mxu0 %v4274
    %5188 = vmatpush.bf16.msra.mxu0 %v4266
    %5189 = vmatpush.bf16.msra.mxu0 %v4258
    %5190 = vmatpush.bf16.msra.mxu0 %v4250
    %5191 = vmatpush.bf16.msra.mxu0 %v4242
    %5192 = vmatmul.bf16.gmra.mxu0 %v2946
    %v5193 = vpop.f32.mrf.mxu0
    %v5194 = vadd.f32 %v5105, %v5193
    %v5195 = vpop.f32.mrf.mxu0
    %v5196 = vadd.f32 %v5107, %v5195
    %5197 = vmatmul.bf16.gmra.mxu0 %v2950
    %v5198 = vpop.f32.mrf.mxu0
    %v5199 = vadd.f32 %v5110, %v5198
    %v5200 = vpop.f32.mrf.mxu0
    %v5201 = vadd.f32 %v5112, %v5200
    %5202 = vmatmul.bf16.gmra.mxu0 %v2954
    %v5203 = vpop.f32.mrf.mxu0
    %v5204 = vadd.f32 %v5115, %v5203
    %v5205 = vpop.f32.mrf.mxu0
    %v5206 = vadd.f32 %v5117, %v5205
    %5207 = vmatmul.bf16.gmra.mxu0 %v2958
    %v5208 = vpop.f32.mrf.mxu0
    %v5209 = vadd.f32 %v5120, %v5208
    %v5210 = vpop.f32.mrf.mxu0
    %v5211 = vadd.f32 %v5122, %v5210
    %5212 = vmatmul.bf16.gmra.mxu0 %v2962
    %v5213 = vpop.f32.mrf.mxu0
    %v5214 = vadd.f32 %v5125, %v5213
    %v5215 = vpop.f32.mrf.mxu0
    %v5216 = vadd.f32 %v5127, %v5215
    %5217 = vmatmul.bf16.gmra.mxu0 %v2966
    %v5218 = vpop.f32.mrf.mxu0
    %v5219 = vadd.f32 %v5130, %v5218
    %v5220 = vpop.f32.mrf.mxu0
    %v5221 = vadd.f32 %v5132, %v5220
    %5222 = vmatmul.bf16.gmra.mxu0 %v2970
    %v5223 = vpop.f32.mrf.mxu0
    %v5224 = vadd.f32 %v5135, %v5223
    %v5225 = vpop.f32.mrf.mxu0
    %v5226 = vadd.f32 %v5137, %v5225
    %5227 = vmatmul.bf16.gmra.mxu0 %v2974
    %v5228 = vpop.f32.mrf.mxu0
    %v5229 = vadd.f32 %v5140, %v5228
    %v5230 = vpop.f32.mrf.mxu0
    %v5231 = vadd.f32 %v5142, %v5230
    %5232 = vmatmul.bf16.gmra.mxu0 %v2978
    %v5233 = vpop.f32.mrf.mxu0
    %v5234 = vadd.f32 %v5145, %v5233
    %v5235 = vpop.f32.mrf.mxu0
    %v5236 = vadd.f32 %v5147, %v5235
    %5237 = vmatmul.bf16.gmra.mxu0 %v2982
    %v5238 = vpop.f32.mrf.mxu0
    %v5239 = vadd.f32 %v5150, %v5238
    %v5240 = vpop.f32.mrf.mxu0
    %v5241 = vadd.f32 %v5152, %v5240
    %5242 = vmatmul.bf16.gmra.mxu0 %v2986
    %v5243 = vpop.f32.mrf.mxu0
    %v5244 = vadd.f32 %v5155, %v5243
    %v5245 = vpop.f32.mrf.mxu0
    %v5246 = vadd.f32 %v5157, %v5245
    %5247 = vmatmul.bf16.gmra.mxu0 %v2990
    %v5248 = vpop.f32.mrf.mxu0
    %v5249 = vadd.f32 %v5160, %v5248
    %v5250 = vpop.f32.mrf.mxu0
    %v5251 = vadd.f32 %v5162, %v5250
    %5252 = vmatmul.bf16.gmra.mxu0 %v2994
    %v5253 = vpop.f32.mrf.mxu0
    %v5254 = vadd.f32 %v5165, %v5253
    %v5255 = vpop.f32.mrf.mxu0
    %v5256 = vadd.f32 %v5167, %v5255
    %5257 = vmatmul.bf16.gmra.mxu0 %v2998
    %v5258 = vpop.f32.mrf.mxu0
    %v5259 = vadd.f32 %v5170, %v5258
    %v5260 = vpop.f32.mrf.mxu0
    %v5261 = vadd.f32 %v5172, %v5260
    %5262 = vmatmul.bf16.gmra.mxu0 %v3002
    %v5263 = vpop.f32.mrf.mxu0
    %v5264 = vadd.f32 %v5175, %v5263
    %v5265 = vpop.f32.mrf.mxu0
    %v5266 = vadd.f32 %v5177, %v5265
    %5267 = vmatmul.bf16.gmra.mxu0 %v3006
    %v5268 = vpop.f32.mrf.mxu0
    %v5269 = vadd.f32 %v5180, %v5268
    %v5270 = vpop.f32.mrf.mxu0
    %v5271 = vadd.f32 %v5182, %v5270
    %5272 = vdwg.mxu0
    %5273 = vmatpush.bf16.msra.mxu0 %v4107
    %5274 = vmatpush.bf16.msra.mxu0 %v4099
    %5275 = vmatpush.bf16.msra.mxu0 %v4091
    %5276 = vmatpush.bf16.msra.mxu0 %v4083
    %5277 = vmatpush.bf16.msra.mxu0 %v4075
    %5278 = vmatpush.bf16.msra.mxu0 %v4067
    %5279 = vmatpush.bf16.msra.mxu0 %v4059
    %5280 = vmatpush.bf16.msra.mxu0 %v4051
    %5281 = vmatmul.bf16.gmra.mxu0 %v2943
    %v5282 = vpop.f32.mrf.mxu0
    %v5283 = vadd.f32 %v3267, %v5282
    %v5284 = vpop.f32.mrf.mxu0
    %v5285 = vadd.f32 %v3267, %v5284
    %5286 = vmatmul.bf16.gmra.mxu0 %v2947
    %v5287 = vpop.f32.mrf.mxu0
    %v5288 = vadd.f32 %v3267, %v5287
    %v5289 = vpop.f32.mrf.mxu0
    %v5290 = vadd.f32 %v3267, %v5289
    %5291 = vmatmul.bf16.gmra.mxu0 %v2951
    %v5292 = vpop.f32.mrf.mxu0
    %v5293 = vadd.f32 %v3267, %v5292
    %v5294 = vpop.f32.mrf.mxu0
    %v5295 = vadd.f32 %v3267, %v5294
    %5296 = vmatmul.bf16.gmra.mxu0 %v2955
    %v5297 = vpop.f32.mrf.mxu0
    %v5298 = vadd.f32 %v3267, %v5297
    %v5299 = vpop.f32.mrf.mxu0
    %v5300 = vadd.f32 %v3267, %v5299
    %5301 = vmatmul.bf16.gmra.mxu0 %v2959
    %v5302 = vpop.f32.mrf.mxu0
    %v5303 = vadd.f32 %v3267, %v5302
    %v5304 = vpop.f32.mrf.mxu0
    %v5305 = vadd.f32 %v3267, %v5304
    %5306 = vmatmul.bf16.gmra.mxu0 %v2963
    %v5307 = vpop.f32.mrf.mxu0
    %v5308 = vadd.f32 %v3267, %v5307
    %v5309 = vpop.f32.mrf.mxu0
    %v5310 = vadd.f32 %v3267, %v5309
    %5311 = vmatmul.bf16.gmra.mxu0 %v2967
    %v5312 = vpop.f32.mrf.mxu0
    %v5313 = vadd.f32 %v3267, %v5312
    %v5314 = vpop.f32.mrf.mxu0
    %v5315 = vadd.f32 %v3267, %v5314
    %5316 = vmatmul.bf16.gmra.mxu0 %v2971
    %v5317 = vpop.f32.mrf.mxu0
    %v5318 = vadd.f32 %v3267, %v5317
    %v5319 = vpop.f32.mrf.mxu0
    %v5320 = vadd.f32 %v3267, %v5319
    %5321 = vmatmul.bf16.gmra.mxu0 %v2975
    %v5322 = vpop.f32.mrf.mxu0
    %v5323 = vadd.f32 %v3267, %v5322
    %v5324 = vpop.f32.mrf.mxu0
    %v5325 = vadd.f32 %v3267, %v5324
    %5326 = vmatmul.bf16.gmra.mxu0 %v2979
    %v5327 = vpop.f32.mrf.mxu0
    %v5328 = vadd.f32 %v3267, %v5327
    %v5329 = vpop.f32.mrf.mxu0
    %v5330 = vadd.f32 %v3267, %v5329
    %5331 = vmatmul.bf16.gmra.mxu0 %v2983
    %v5332 = vpop.f32.mrf.mxu0
    %v5333 = vadd.f32 %v3267, %v5332
    %v5334 = vpop.f32.mrf.mxu0
    %v5335 = vadd.f32 %v3267, %v5334
    %5336 = vmatmul.bf16.gmra.mxu0 %v2987
    %v5337 = vpop.f32.mrf.mxu0
    %v5338 = vadd.f32 %v3267, %v5337
    %v5339 = vpop.f32.mrf.mxu0
    %v5340 = vadd.f32 %v3267, %v5339
    %5341 = vmatmul.bf16.gmra.mxu0 %v2991
    %v5342 = vpop.f32.mrf.mxu0
    %v5343 = vadd.f32 %v3267, %v5342
    %v5344 = vpop.f32.mrf.mxu0
    %v5345 = vadd.f32 %v3267, %v5344
    %5346 = vmatmul.bf16.gmra.mxu0 %v2995
    %v5347 = vpop.f32.mrf.mxu0
    %v5348 = vadd.f32 %v3267, %v5347
    %v5349 = vpop.f32.mrf.mxu0
    %v5350 = vadd.f32 %v3267, %v5349
    %5351 = vmatmul.bf16.gmra.mxu0 %v2999
    %v5352 = vpop.f32.mrf.mxu0
    %v5353 = vadd.f32 %v3267, %v5352
    %v5354 = vpop.f32.mrf.mxu0
    %v5355 = vadd.f32 %v3267, %v5354
    %5356 = vmatmul.bf16.gmra.mxu0 %v3003
    %v5357 = vpop.f32.mrf.mxu0
    %v5358 = vadd.f32 %v3267, %v5357
    %v5359 = vpop.f32.mrf.mxu0
    %v5360 = vadd.f32 %v3267, %v5359
    %5361 = vdwg.mxu0
    %5362 = vmatpush.bf16.msra.mxu0 %v4171
    %5363 = vmatpush.bf16.msra.mxu0 %v4163
    %5364 = vmatpush.bf16.msra.mxu0 %v4155
    %5365 = vmatpush.bf16.msra.mxu0 %v4147
    %5366 = vmatpush.bf16.msra.mxu0 %v4139
    %5367 = vmatpush.bf16.msra.mxu0 %v4131
    %5368 = vmatpush.bf16.msra.mxu0 %v4123
    %5369 = vmatpush.bf16.msra.mxu0 %v4115
    %5370 = vmatmul.bf16.gmra.mxu0 %v2944
    %v5371 = vpop.f32.mrf.mxu0
    %v5372 = vadd.f32 %v5283, %v5371
    %v5373 = vpop.f32.mrf.mxu0
    %v5374 = vadd.f32 %v5285, %v5373
    %5375 = vmatmul.bf16.gmra.mxu0 %v2948
    %v5376 = vpop.f32.mrf.mxu0
    %v5377 = vadd.f32 %v5288, %v5376
    %v5378 = vpop.f32.mrf.mxu0
    %v5379 = vadd.f32 %v5290, %v5378
    %5380 = vmatmul.bf16.gmra.mxu0 %v2952
    %v5381 = vpop.f32.mrf.mxu0
    %v5382 = vadd.f32 %v5293, %v5381
    %v5383 = vpop.f32.mrf.mxu0
    %v5384 = vadd.f32 %v5295, %v5383
    %5385 = vmatmul.bf16.gmra.mxu0 %v2956
    %v5386 = vpop.f32.mrf.mxu0
    %v5387 = vadd.f32 %v5298, %v5386
    %v5388 = vpop.f32.mrf.mxu0
    %v5389 = vadd.f32 %v5300, %v5388
    %5390 = vmatmul.bf16.gmra.mxu0 %v2960
    %v5391 = vpop.f32.mrf.mxu0
    %v5392 = vadd.f32 %v5303, %v5391
    %v5393 = vpop.f32.mrf.mxu0
    %v5394 = vadd.f32 %v5305, %v5393
    %5395 = vmatmul.bf16.gmra.mxu0 %v2964
    %v5396 = vpop.f32.mrf.mxu0
    %v5397 = vadd.f32 %v5308, %v5396
    %v5398 = vpop.f32.mrf.mxu0
    %v5399 = vadd.f32 %v5310, %v5398
    %5400 = vmatmul.bf16.gmra.mxu0 %v2968
    %v5401 = vpop.f32.mrf.mxu0
    %v5402 = vadd.f32 %v5313, %v5401
    %v5403 = vpop.f32.mrf.mxu0
    %v5404 = vadd.f32 %v5315, %v5403
    %5405 = vmatmul.bf16.gmra.mxu0 %v2972
    %v5406 = vpop.f32.mrf.mxu0
    %v5407 = vadd.f32 %v5318, %v5406
    %v5408 = vpop.f32.mrf.mxu0
    %v5409 = vadd.f32 %v5320, %v5408
    %5410 = vmatmul.bf16.gmra.mxu0 %v2976
    %v5411 = vpop.f32.mrf.mxu0
    %v5412 = vadd.f32 %v5323, %v5411
    %v5413 = vpop.f32.mrf.mxu0
    %v5414 = vadd.f32 %v5325, %v5413
    %5415 = vmatmul.bf16.gmra.mxu0 %v2980
    %v5416 = vpop.f32.mrf.mxu0
    %v5417 = vadd.f32 %v5328, %v5416
    %v5418 = vpop.f32.mrf.mxu0
    %v5419 = vadd.f32 %v5330, %v5418
    %5420 = vmatmul.bf16.gmra.mxu0 %v2984
    %v5421 = vpop.f32.mrf.mxu0
    %v5422 = vadd.f32 %v5333, %v5421
    %v5423 = vpop.f32.mrf.mxu0
    %v5424 = vadd.f32 %v5335, %v5423
    %5425 = vmatmul.bf16.gmra.mxu0 %v2988
    %v5426 = vpop.f32.mrf.mxu0
    %v5427 = vadd.f32 %v5338, %v5426
    %v5428 = vpop.f32.mrf.mxu0
    %v5429 = vadd.f32 %v5340, %v5428
    %5430 = vmatmul.bf16.gmra.mxu0 %v2992
    %v5431 = vpop.f32.mrf.mxu0
    %v5432 = vadd.f32 %v5343, %v5431
    %v5433 = vpop.f32.mrf.mxu0
    %v5434 = vadd.f32 %v5345, %v5433
    %5435 = vmatmul.bf16.gmra.mxu0 %v2996
    %v5436 = vpop.f32.mrf.mxu0
    %v5437 = vadd.f32 %v5348, %v5436
    %v5438 = vpop.f32.mrf.mxu0
    %v5439 = vadd.f32 %v5350, %v5438
    %5440 = vmatmul.bf16.gmra.mxu0 %v3000
    %v5441 = vpop.f32.mrf.mxu0
    %v5442 = vadd.f32 %v5353, %v5441
    %v5443 = vpop.f32.mrf.mxu0
    %v5444 = vadd.f32 %v5355, %v5443
    %5445 = vmatmul.bf16.gmra.mxu0 %v3004
    %v5446 = vpop.f32.mrf.mxu0
    %v5447 = vadd.f32 %v5358, %v5446
    %v5448 = vpop.f32.mrf.mxu0
    %v5449 = vadd.f32 %v5360, %v5448
    %5450 = vdwg.mxu0
    %5451 = vmatpush.bf16.msra.mxu0 %v4235
    %5452 = vmatpush.bf16.msra.mxu0 %v4227
    %5453 = vmatpush.bf16.msra.mxu0 %v4219
    %5454 = vmatpush.bf16.msra.mxu0 %v4211
    %5455 = vmatpush.bf16.msra.mxu0 %v4203
    %5456 = vmatpush.bf16.msra.mxu0 %v4195
    %5457 = vmatpush.bf16.msra.mxu0 %v4187
    %5458 = vmatpush.bf16.msra.mxu0 %v4179
    %5459 = vmatmul.bf16.gmra.mxu0 %v2945
    %v5460 = vpop.f32.mrf.mxu0
    %v5461 = vadd.f32 %v5372, %v5460
    %v5462 = vpop.f32.mrf.mxu0
    %v5463 = vadd.f32 %v5374, %v5462
    %5464 = vmatmul.bf16.gmra.mxu0 %v2949
    %v5465 = vpop.f32.mrf.mxu0
    %v5466 = vadd.f32 %v5377, %v5465
    %v5467 = vpop.f32.mrf.mxu0
    %v5468 = vadd.f32 %v5379, %v5467
    %5469 = vmatmul.bf16.gmra.mxu0 %v2953
    %v5470 = vpop.f32.mrf.mxu0
    %v5471 = vadd.f32 %v5382, %v5470
    %v5472 = vpop.f32.mrf.mxu0
    %v5473 = vadd.f32 %v5384, %v5472
    %5474 = vmatmul.bf16.gmra.mxu0 %v2957
    %v5475 = vpop.f32.mrf.mxu0
    %v5476 = vadd.f32 %v5387, %v5475
    %v5477 = vpop.f32.mrf.mxu0
    %v5478 = vadd.f32 %v5389, %v5477
    %5479 = vmatmul.bf16.gmra.mxu0 %v2961
    %v5480 = vpop.f32.mrf.mxu0
    %v5481 = vadd.f32 %v5392, %v5480
    %v5482 = vpop.f32.mrf.mxu0
    %v5483 = vadd.f32 %v5394, %v5482
    %5484 = vmatmul.bf16.gmra.mxu0 %v2965
    %v5485 = vpop.f32.mrf.mxu0
    %v5486 = vadd.f32 %v5397, %v5485
    %v5487 = vpop.f32.mrf.mxu0
    %v5488 = vadd.f32 %v5399, %v5487
    %5489 = vmatmul.bf16.gmra.mxu0 %v2969
    %v5490 = vpop.f32.mrf.mxu0
    %v5491 = vadd.f32 %v5402, %v5490
    %v5492 = vpop.f32.mrf.mxu0
    %v5493 = vadd.f32 %v5404, %v5492
    %5494 = vmatmul.bf16.gmra.mxu0 %v2973
    %v5495 = vpop.f32.mrf.mxu0
    %v5496 = vadd.f32 %v5407, %v5495
    %v5497 = vpop.f32.mrf.mxu0
    %v5498 = vadd.f32 %v5409, %v5497
    %5499 = vmatmul.bf16.gmra.mxu0 %v2977
    %v5500 = vpop.f32.mrf.mxu0
    %v5501 = vadd.f32 %v5412, %v5500
    %v5502 = vpop.f32.mrf.mxu0
    %v5503 = vadd.f32 %v5414, %v5502
    %5504 = vmatmul.bf16.gmra.mxu0 %v2981
    %v5505 = vpop.f32.mrf.mxu0
    %v5506 = vadd.f32 %v5417, %v5505
    %v5507 = vpop.f32.mrf.mxu0
    %v5508 = vadd.f32 %v5419, %v5507
    %5509 = vmatmul.bf16.gmra.mxu0 %v2985
    %v5510 = vpop.f32.mrf.mxu0
    %v5511 = vadd.f32 %v5422, %v5510
    %v5512 = vpop.f32.mrf.mxu0
    %v5513 = vadd.f32 %v5424, %v5512
    %5514 = vmatmul.bf16.gmra.mxu0 %v2989
    %v5515 = vpop.f32.mrf.mxu0
    %v5516 = vadd.f32 %v5427, %v5515
    %v5517 = vpop.f32.mrf.mxu0
    %v5518 = vadd.f32 %v5429, %v5517
    %5519 = vmatmul.bf16.gmra.mxu0 %v2993
    %v5520 = vpop.f32.mrf.mxu0
    %v5521 = vadd.f32 %v5432, %v5520
    %v5522 = vpop.f32.mrf.mxu0
    %v5523 = vadd.f32 %v5434, %v5522
    %5524 = vmatmul.bf16.gmra.mxu0 %v2997
    %v5525 = vpop.f32.mrf.mxu0
    %v5526 = vadd.f32 %v5437, %v5525
    %v5527 = vpop.f32.mrf.mxu0
    %v5528 = vadd.f32 %v5439, %v5527
    %5529 = vmatmul.bf16.gmra.mxu0 %v3001
    %v5530 = vpop.f32.mrf.mxu0
    %v5531 = vadd.f32 %v5442, %v5530
    %v5532 = vpop.f32.mrf.mxu0
    %v5533 = vadd.f32 %v5444, %v5532
    %5534 = vmatmul.bf16.gmra.mxu0 %v3005
    %v5535 = vpop.f32.mrf.mxu0
    %v5536 = vadd.f32 %v5447, %v5535
    %v5537 = vpop.f32.mrf.mxu0
    %v5538 = vadd.f32 %v5449, %v5537
    %5539 = vdwg.mxu0
    %5540 = vmatpush.bf16.msra.mxu0 %v4299
    %5541 = vmatpush.bf16.msra.mxu0 %v4291
    %5542 = vmatpush.bf16.msra.mxu0 %v4283
    %5543 = vmatpush.bf16.msra.mxu0 %v4275
    %5544 = vmatpush.bf16.msra.mxu0 %v4267
    %5545 = vmatpush.bf16.msra.mxu0 %v4259
    %5546 = vmatpush.bf16.msra.mxu0 %v4251
    %5547 = vmatpush.bf16.msra.mxu0 %v4243
    %5548 = vmatmul.bf16.gmra.mxu0 %v2946
    %v5549 = vpop.f32.mrf.mxu0
    %v5550 = vadd.f32 %v5461, %v5549
    %v5551 = vpop.f32.mrf.mxu0
    %v5552 = vadd.f32 %v5463, %v5551
    %5553 = vmatmul.bf16.gmra.mxu0 %v2950
    %v5554 = vpop.f32.mrf.mxu0
    %v5555 = vadd.f32 %v5466, %v5554
    %v5556 = vpop.f32.mrf.mxu0
    %v5557 = vadd.f32 %v5468, %v5556
    %5558 = vmatmul.bf16.gmra.mxu0 %v2954
    %v5559 = vpop.f32.mrf.mxu0
    %v5560 = vadd.f32 %v5471, %v5559
    %v5561 = vpop.f32.mrf.mxu0
    %v5562 = vadd.f32 %v5473, %v5561
    %5563 = vmatmul.bf16.gmra.mxu0 %v2958
    %v5564 = vpop.f32.mrf.mxu0
    %v5565 = vadd.f32 %v5476, %v5564
    %v5566 = vpop.f32.mrf.mxu0
    %v5567 = vadd.f32 %v5478, %v5566
    %5568 = vmatmul.bf16.gmra.mxu0 %v2962
    %v5569 = vpop.f32.mrf.mxu0
    %v5570 = vadd.f32 %v5481, %v5569
    %v5571 = vpop.f32.mrf.mxu0
    %v5572 = vadd.f32 %v5483, %v5571
    %5573 = vmatmul.bf16.gmra.mxu0 %v2966
    %v5574 = vpop.f32.mrf.mxu0
    %v5575 = vadd.f32 %v5486, %v5574
    %v5576 = vpop.f32.mrf.mxu0
    %v5577 = vadd.f32 %v5488, %v5576
    %5578 = vmatmul.bf16.gmra.mxu0 %v2970
    %v5579 = vpop.f32.mrf.mxu0
    %v5580 = vadd.f32 %v5491, %v5579
    %v5581 = vpop.f32.mrf.mxu0
    %v5582 = vadd.f32 %v5493, %v5581
    %5583 = vmatmul.bf16.gmra.mxu0 %v2974
    %v5584 = vpop.f32.mrf.mxu0
    %v5585 = vadd.f32 %v5496, %v5584
    %v5586 = vpop.f32.mrf.mxu0
    %v5587 = vadd.f32 %v5498, %v5586
    %5588 = vmatmul.bf16.gmra.mxu0 %v2978
    %v5589 = vpop.f32.mrf.mxu0
    %v5590 = vadd.f32 %v5501, %v5589
    %v5591 = vpop.f32.mrf.mxu0
    %v5592 = vadd.f32 %v5503, %v5591
    %5593 = vmatmul.bf16.gmra.mxu0 %v2982
    %v5594 = vpop.f32.mrf.mxu0
    %v5595 = vadd.f32 %v5506, %v5594
    %v5596 = vpop.f32.mrf.mxu0
    %v5597 = vadd.f32 %v5508, %v5596
    %5598 = vmatmul.bf16.gmra.mxu0 %v2986
    %v5599 = vpop.f32.mrf.mxu0
    %v5600 = vadd.f32 %v5511, %v5599
    %v5601 = vpop.f32.mrf.mxu0
    %v5602 = vadd.f32 %v5513, %v5601
    %5603 = vmatmul.bf16.gmra.mxu0 %v2990
    %v5604 = vpop.f32.mrf.mxu0
    %v5605 = vadd.f32 %v5516, %v5604
    %v5606 = vpop.f32.mrf.mxu0
    %v5607 = vadd.f32 %v5518, %v5606
    %5608 = vmatmul.bf16.gmra.mxu0 %v2994
    %v5609 = vpop.f32.mrf.mxu0
    %v5610 = vadd.f32 %v5521, %v5609
    %v5611 = vpop.f32.mrf.mxu0
    %v5612 = vadd.f32 %v5523, %v5611
    %5613 = vmatmul.bf16.gmra.mxu0 %v2998
    %v5614 = vpop.f32.mrf.mxu0
    %v5615 = vadd.f32 %v5526, %v5614
    %v5616 = vpop.f32.mrf.mxu0
    %v5617 = vadd.f32 %v5528, %v5616
    %5618 = vmatmul.bf16.gmra.mxu0 %v3002
    %v5619 = vpop.f32.mrf.mxu0
    %v5620 = vadd.f32 %v5531, %v5619
    %v5621 = vpop.f32.mrf.mxu0
    %v5622 = vadd.f32 %v5533, %v5621
    %5623 = vmatmul.bf16.gmra.mxu0 %v3006
    %v5624 = vpop.f32.mrf.mxu0
    %v5625 = vadd.f32 %v5536, %v5624
    %v5626 = vpop.f32.mrf.mxu0
    %v5627 = vadd.f32 %v5538, %v5626
    %5628 = vdwg.mxu0
    %5629 = vmatpush.bf16.msra.mxu0 %v4108
    %5630 = vmatpush.bf16.msra.mxu0 %v4100
    %5631 = vmatpush.bf16.msra.mxu0 %v4092
    %5632 = vmatpush.bf16.msra.mxu0 %v4084
    %5633 = vmatpush.bf16.msra.mxu0 %v4076
    %5634 = vmatpush.bf16.msra.mxu0 %v4068
    %5635 = vmatpush.bf16.msra.mxu0 %v4060
    %5636 = vmatpush.bf16.msra.mxu0 %v4052
    %5637 = vmatmul.bf16.gmra.mxu0 %v2943
    %v5638 = vpop.f32.mrf.mxu0
    %v5639 = vadd.f32 %v3268, %v5638
    %v5640 = vpop.f32.mrf.mxu0
    %v5641 = vadd.f32 %v3268, %v5640
    %5642 = vmatmul.bf16.gmra.mxu0 %v2947
    %v5643 = vpop.f32.mrf.mxu0
    %v5644 = vadd.f32 %v3268, %v5643
    %v5645 = vpop.f32.mrf.mxu0
    %v5646 = vadd.f32 %v3268, %v5645
    %5647 = vmatmul.bf16.gmra.mxu0 %v2951
    %v5648 = vpop.f32.mrf.mxu0
    %v5649 = vadd.f32 %v3268, %v5648
    %v5650 = vpop.f32.mrf.mxu0
    %v5651 = vadd.f32 %v3268, %v5650
    %5652 = vmatmul.bf16.gmra.mxu0 %v2955
    %v5653 = vpop.f32.mrf.mxu0
    %v5654 = vadd.f32 %v3268, %v5653
    %v5655 = vpop.f32.mrf.mxu0
    %v5656 = vadd.f32 %v3268, %v5655
    %5657 = vmatmul.bf16.gmra.mxu0 %v2959
    %v5658 = vpop.f32.mrf.mxu0
    %v5659 = vadd.f32 %v3268, %v5658
    %v5660 = vpop.f32.mrf.mxu0
    %v5661 = vadd.f32 %v3268, %v5660
    %5662 = vmatmul.bf16.gmra.mxu0 %v2963
    %v5663 = vpop.f32.mrf.mxu0
    %v5664 = vadd.f32 %v3268, %v5663
    %v5665 = vpop.f32.mrf.mxu0
    %v5666 = vadd.f32 %v3268, %v5665
    %5667 = vmatmul.bf16.gmra.mxu0 %v2967
    %v5668 = vpop.f32.mrf.mxu0
    %v5669 = vadd.f32 %v3268, %v5668
    %v5670 = vpop.f32.mrf.mxu0
    %v5671 = vadd.f32 %v3268, %v5670
    %5672 = vmatmul.bf16.gmra.mxu0 %v2971
    %v5673 = vpop.f32.mrf.mxu0
    %v5674 = vadd.f32 %v3268, %v5673
    %v5675 = vpop.f32.mrf.mxu0
    %v5676 = vadd.f32 %v3268, %v5675
    %5677 = vmatmul.bf16.gmra.mxu0 %v2975
    %v5678 = vpop.f32.mrf.mxu0
    %v5679 = vadd.f32 %v3268, %v5678
    %v5680 = vpop.f32.mrf.mxu0
    %v5681 = vadd.f32 %v3268, %v5680
    %5682 = vmatmul.bf16.gmra.mxu0 %v2979
    %v5683 = vpop.f32.mrf.mxu0
    %v5684 = vadd.f32 %v3268, %v5683
    %v5685 = vpop.f32.mrf.mxu0
    %v5686 = vadd.f32 %v3268, %v5685
    %5687 = vmatmul.bf16.gmra.mxu0 %v2983
    %v5688 = vpop.f32.mrf.mxu0
    %v5689 = vadd.f32 %v3268, %v5688
    %v5690 = vpop.f32.mrf.mxu0
    %v5691 = vadd.f32 %v3268, %v5690
    %5692 = vmatmul.bf16.gmra.mxu0 %v2987
    %v5693 = vpop.f32.mrf.mxu0
    %v5694 = vadd.f32 %v3268, %v5693
    %v5695 = vpop.f32.mrf.mxu0
    %v5696 = vadd.f32 %v3268, %v5695
    %5697 = vmatmul.bf16.gmra.mxu0 %v2991
    %v5698 = vpop.f32.mrf.mxu0
    %v5699 = vadd.f32 %v3268, %v5698
    %v5700 = vpop.f32.mrf.mxu0
    %v5701 = vadd.f32 %v3268, %v5700
    %5702 = vmatmul.bf16.gmra.mxu0 %v2995
    %v5703 = vpop.f32.mrf.mxu0
    %v5704 = vadd.f32 %v3268, %v5703
    %v5705 = vpop.f32.mrf.mxu0
    %v5706 = vadd.f32 %v3268, %v5705
    %5707 = vmatmul.bf16.gmra.mxu0 %v2999
    %v5708 = vpop.f32.mrf.mxu0
    %v5709 = vadd.f32 %v3268, %v5708
    %v5710 = vpop.f32.mrf.mxu0
    %v5711 = vadd.f32 %v3268, %v5710
    %5712 = vmatmul.bf16.gmra.mxu0 %v3003
    %v5713 = vpop.f32.mrf.mxu0
    %v5714 = vadd.f32 %v3268, %v5713
    %v5715 = vpop.f32.mrf.mxu0
    %v5716 = vadd.f32 %v3268, %v5715
    %5717 = vdwg.mxu0
    %5718 = vmatpush.bf16.msra.mxu0 %v4172
    %5719 = vmatpush.bf16.msra.mxu0 %v4164
    %5720 = vmatpush.bf16.msra.mxu0 %v4156
    %5721 = vmatpush.bf16.msra.mxu0 %v4148
    %5722 = vmatpush.bf16.msra.mxu0 %v4140
    %5723 = vmatpush.bf16.msra.mxu0 %v4132
    %5724 = vmatpush.bf16.msra.mxu0 %v4124
    %5725 = vmatpush.bf16.msra.mxu0 %v4116
    %5726 = vmatmul.bf16.gmra.mxu0 %v2944
    %v5727 = vpop.f32.mrf.mxu0
    %v5728 = vadd.f32 %v5639, %v5727
    %v5729 = vpop.f32.mrf.mxu0
    %v5730 = vadd.f32 %v5641, %v5729
    %5731 = vmatmul.bf16.gmra.mxu0 %v2948
    %v5732 = vpop.f32.mrf.mxu0
    %v5733 = vadd.f32 %v5644, %v5732
    %v5734 = vpop.f32.mrf.mxu0
    %v5735 = vadd.f32 %v5646, %v5734
    %5736 = vmatmul.bf16.gmra.mxu0 %v2952
    %v5737 = vpop.f32.mrf.mxu0
    %v5738 = vadd.f32 %v5649, %v5737
    %v5739 = vpop.f32.mrf.mxu0
    %v5740 = vadd.f32 %v5651, %v5739
    %5741 = vmatmul.bf16.gmra.mxu0 %v2956
    %v5742 = vpop.f32.mrf.mxu0
    %v5743 = vadd.f32 %v5654, %v5742
    %v5744 = vpop.f32.mrf.mxu0
    %v5745 = vadd.f32 %v5656, %v5744
    %5746 = vmatmul.bf16.gmra.mxu0 %v2960
    %v5747 = vpop.f32.mrf.mxu0
    %v5748 = vadd.f32 %v5659, %v5747
    %v5749 = vpop.f32.mrf.mxu0
    %v5750 = vadd.f32 %v5661, %v5749
    %5751 = vmatmul.bf16.gmra.mxu0 %v2964
    %v5752 = vpop.f32.mrf.mxu0
    %v5753 = vadd.f32 %v5664, %v5752
    %v5754 = vpop.f32.mrf.mxu0
    %v5755 = vadd.f32 %v5666, %v5754
    %5756 = vmatmul.bf16.gmra.mxu0 %v2968
    %v5757 = vpop.f32.mrf.mxu0
    %v5758 = vadd.f32 %v5669, %v5757
    %v5759 = vpop.f32.mrf.mxu0
    %v5760 = vadd.f32 %v5671, %v5759
    %5761 = vmatmul.bf16.gmra.mxu0 %v2972
    %v5762 = vpop.f32.mrf.mxu0
    %v5763 = vadd.f32 %v5674, %v5762
    %v5764 = vpop.f32.mrf.mxu0
    %v5765 = vadd.f32 %v5676, %v5764
    %5766 = vmatmul.bf16.gmra.mxu0 %v2976
    %v5767 = vpop.f32.mrf.mxu0
    %v5768 = vadd.f32 %v5679, %v5767
    %v5769 = vpop.f32.mrf.mxu0
    %v5770 = vadd.f32 %v5681, %v5769
    %5771 = vmatmul.bf16.gmra.mxu0 %v2980
    %v5772 = vpop.f32.mrf.mxu0
    %v5773 = vadd.f32 %v5684, %v5772
    %v5774 = vpop.f32.mrf.mxu0
    %v5775 = vadd.f32 %v5686, %v5774
    %5776 = vmatmul.bf16.gmra.mxu0 %v2984
    %v5777 = vpop.f32.mrf.mxu0
    %v5778 = vadd.f32 %v5689, %v5777
    %v5779 = vpop.f32.mrf.mxu0
    %v5780 = vadd.f32 %v5691, %v5779
    %5781 = vmatmul.bf16.gmra.mxu0 %v2988
    %v5782 = vpop.f32.mrf.mxu0
    %v5783 = vadd.f32 %v5694, %v5782
    %v5784 = vpop.f32.mrf.mxu0
    %v5785 = vadd.f32 %v5696, %v5784
    %5786 = vmatmul.bf16.gmra.mxu0 %v2992
    %v5787 = vpop.f32.mrf.mxu0
    %v5788 = vadd.f32 %v5699, %v5787
    %v5789 = vpop.f32.mrf.mxu0
    %v5790 = vadd.f32 %v5701, %v5789
    %5791 = vmatmul.bf16.gmra.mxu0 %v2996
    %v5792 = vpop.f32.mrf.mxu0
    %v5793 = vadd.f32 %v5704, %v5792
    %v5794 = vpop.f32.mrf.mxu0
    %v5795 = vadd.f32 %v5706, %v5794
    %5796 = vmatmul.bf16.gmra.mxu0 %v3000
    %v5797 = vpop.f32.mrf.mxu0
    %v5798 = vadd.f32 %v5709, %v5797
    %v5799 = vpop.f32.mrf.mxu0
    %v5800 = vadd.f32 %v5711, %v5799
    %5801 = vmatmul.bf16.gmra.mxu0 %v3004
    %v5802 = vpop.f32.mrf.mxu0
    %v5803 = vadd.f32 %v5714, %v5802
    %v5804 = vpop.f32.mrf.mxu0
    %v5805 = vadd.f32 %v5716, %v5804
    %5806 = vdwg.mxu0
    %5807 = vmatpush.bf16.msra.mxu0 %v4236
    %5808 = vmatpush.bf16.msra.mxu0 %v4228
    %5809 = vmatpush.bf16.msra.mxu0 %v4220
    %5810 = vmatpush.bf16.msra.mxu0 %v4212
    %5811 = vmatpush.bf16.msra.mxu0 %v4204
    %5812 = vmatpush.bf16.msra.mxu0 %v4196
    %5813 = vmatpush.bf16.msra.mxu0 %v4188
    %5814 = vmatpush.bf16.msra.mxu0 %v4180
    %5815 = vmatmul.bf16.gmra.mxu0 %v2945
    %v5816 = vpop.f32.mrf.mxu0
    %v5817 = vadd.f32 %v5728, %v5816
    %v5818 = vpop.f32.mrf.mxu0
    %v5819 = vadd.f32 %v5730, %v5818
    %5820 = vmatmul.bf16.gmra.mxu0 %v2949
    %v5821 = vpop.f32.mrf.mxu0
    %v5822 = vadd.f32 %v5733, %v5821
    %v5823 = vpop.f32.mrf.mxu0
    %v5824 = vadd.f32 %v5735, %v5823
    %5825 = vmatmul.bf16.gmra.mxu0 %v2953
    %v5826 = vpop.f32.mrf.mxu0
    %v5827 = vadd.f32 %v5738, %v5826
    %v5828 = vpop.f32.mrf.mxu0
    %v5829 = vadd.f32 %v5740, %v5828
    %5830 = vmatmul.bf16.gmra.mxu0 %v2957
    %v5831 = vpop.f32.mrf.mxu0
    %v5832 = vadd.f32 %v5743, %v5831
    %v5833 = vpop.f32.mrf.mxu0
    %v5834 = vadd.f32 %v5745, %v5833
    %5835 = vmatmul.bf16.gmra.mxu0 %v2961
    %v5836 = vpop.f32.mrf.mxu0
    %v5837 = vadd.f32 %v5748, %v5836
    %v5838 = vpop.f32.mrf.mxu0
    %v5839 = vadd.f32 %v5750, %v5838
    %5840 = vmatmul.bf16.gmra.mxu0 %v2965
    %v5841 = vpop.f32.mrf.mxu0
    %v5842 = vadd.f32 %v5753, %v5841
    %v5843 = vpop.f32.mrf.mxu0
    %v5844 = vadd.f32 %v5755, %v5843
    %5845 = vmatmul.bf16.gmra.mxu0 %v2969
    %v5846 = vpop.f32.mrf.mxu0
    %v5847 = vadd.f32 %v5758, %v5846
    %v5848 = vpop.f32.mrf.mxu0
    %v5849 = vadd.f32 %v5760, %v5848
    %5850 = vmatmul.bf16.gmra.mxu0 %v2973
    %v5851 = vpop.f32.mrf.mxu0
    %v5852 = vadd.f32 %v5763, %v5851
    %v5853 = vpop.f32.mrf.mxu0
    %v5854 = vadd.f32 %v5765, %v5853
    %5855 = vmatmul.bf16.gmra.mxu0 %v2977
    %v5856 = vpop.f32.mrf.mxu0
    %v5857 = vadd.f32 %v5768, %v5856
    %v5858 = vpop.f32.mrf.mxu0
    %v5859 = vadd.f32 %v5770, %v5858
    %5860 = vmatmul.bf16.gmra.mxu0 %v2981
    %v5861 = vpop.f32.mrf.mxu0
    %v5862 = vadd.f32 %v5773, %v5861
    %v5863 = vpop.f32.mrf.mxu0
    %v5864 = vadd.f32 %v5775, %v5863
    %5865 = vmatmul.bf16.gmra.mxu0 %v2985
    %v5866 = vpop.f32.mrf.mxu0
    %v5867 = vadd.f32 %v5778, %v5866
    %v5868 = vpop.f32.mrf.mxu0
    %v5869 = vadd.f32 %v5780, %v5868
    %5870 = vmatmul.bf16.gmra.mxu0 %v2989
    %v5871 = vpop.f32.mrf.mxu0
    %v5872 = vadd.f32 %v5783, %v5871
    %v5873 = vpop.f32.mrf.mxu0
    %v5874 = vadd.f32 %v5785, %v5873
    %5875 = vmatmul.bf16.gmra.mxu0 %v2993
    %v5876 = vpop.f32.mrf.mxu0
    %v5877 = vadd.f32 %v5788, %v5876
    %v5878 = vpop.f32.mrf.mxu0
    %v5879 = vadd.f32 %v5790, %v5878
    %5880 = vmatmul.bf16.gmra.mxu0 %v2997
    %v5881 = vpop.f32.mrf.mxu0
    %v5882 = vadd.f32 %v5793, %v5881
    %v5883 = vpop.f32.mrf.mxu0
    %v5884 = vadd.f32 %v5795, %v5883
    %5885 = vmatmul.bf16.gmra.mxu0 %v3001
    %v5886 = vpop.f32.mrf.mxu0
    %v5887 = vadd.f32 %v5798, %v5886
    %v5888 = vpop.f32.mrf.mxu0
    %v5889 = vadd.f32 %v5800, %v5888
    %5890 = vmatmul.bf16.gmra.mxu0 %v3005
    %v5891 = vpop.f32.mrf.mxu0
    %v5892 = vadd.f32 %v5803, %v5891
    %v5893 = vpop.f32.mrf.mxu0
    %v5894 = vadd.f32 %v5805, %v5893
    %5895 = vdwg.mxu0
    %5896 = vmatpush.bf16.msra.mxu0 %v4300
    %5897 = vmatpush.bf16.msra.mxu0 %v4292
    %5898 = vmatpush.bf16.msra.mxu0 %v4284
    %5899 = vmatpush.bf16.msra.mxu0 %v4276
    %5900 = vmatpush.bf16.msra.mxu0 %v4268
    %5901 = vmatpush.bf16.msra.mxu0 %v4260
    %5902 = vmatpush.bf16.msra.mxu0 %v4252
    %5903 = vmatpush.bf16.msra.mxu0 %v4244
    %5904 = vmatmul.bf16.gmra.mxu0 %v2946
    %v5905 = vpop.f32.mrf.mxu0
    %v5906 = vadd.f32 %v5817, %v5905
    %v5907 = vpop.f32.mrf.mxu0
    %v5908 = vadd.f32 %v5819, %v5907
    %5909 = vmatmul.bf16.gmra.mxu0 %v2950
    %v5910 = vpop.f32.mrf.mxu0
    %v5911 = vadd.f32 %v5822, %v5910
    %v5912 = vpop.f32.mrf.mxu0
    %v5913 = vadd.f32 %v5824, %v5912
    %5914 = vmatmul.bf16.gmra.mxu0 %v2954
    %v5915 = vpop.f32.mrf.mxu0
    %v5916 = vadd.f32 %v5827, %v5915
    %v5917 = vpop.f32.mrf.mxu0
    %v5918 = vadd.f32 %v5829, %v5917
    %5919 = vmatmul.bf16.gmra.mxu0 %v2958
    %v5920 = vpop.f32.mrf.mxu0
    %v5921 = vadd.f32 %v5832, %v5920
    %v5922 = vpop.f32.mrf.mxu0
    %v5923 = vadd.f32 %v5834, %v5922
    %5924 = vmatmul.bf16.gmra.mxu0 %v2962
    %v5925 = vpop.f32.mrf.mxu0
    %v5926 = vadd.f32 %v5837, %v5925
    %v5927 = vpop.f32.mrf.mxu0
    %v5928 = vadd.f32 %v5839, %v5927
    %5929 = vmatmul.bf16.gmra.mxu0 %v2966
    %v5930 = vpop.f32.mrf.mxu0
    %v5931 = vadd.f32 %v5842, %v5930
    %v5932 = vpop.f32.mrf.mxu0
    %v5933 = vadd.f32 %v5844, %v5932
    %5934 = vmatmul.bf16.gmra.mxu0 %v2970
    %v5935 = vpop.f32.mrf.mxu0
    %v5936 = vadd.f32 %v5847, %v5935
    %v5937 = vpop.f32.mrf.mxu0
    %v5938 = vadd.f32 %v5849, %v5937
    %5939 = vmatmul.bf16.gmra.mxu0 %v2974
    %v5940 = vpop.f32.mrf.mxu0
    %v5941 = vadd.f32 %v5852, %v5940
    %v5942 = vpop.f32.mrf.mxu0
    %v5943 = vadd.f32 %v5854, %v5942
    %5944 = vmatmul.bf16.gmra.mxu0 %v2978
    %v5945 = vpop.f32.mrf.mxu0
    %v5946 = vadd.f32 %v5857, %v5945
    %v5947 = vpop.f32.mrf.mxu0
    %v5948 = vadd.f32 %v5859, %v5947
    %5949 = vmatmul.bf16.gmra.mxu0 %v2982
    %v5950 = vpop.f32.mrf.mxu0
    %v5951 = vadd.f32 %v5862, %v5950
    %v5952 = vpop.f32.mrf.mxu0
    %v5953 = vadd.f32 %v5864, %v5952
    %5954 = vmatmul.bf16.gmra.mxu0 %v2986
    %v5955 = vpop.f32.mrf.mxu0
    %v5956 = vadd.f32 %v5867, %v5955
    %v5957 = vpop.f32.mrf.mxu0
    %v5958 = vadd.f32 %v5869, %v5957
    %5959 = vmatmul.bf16.gmra.mxu0 %v2990
    %v5960 = vpop.f32.mrf.mxu0
    %v5961 = vadd.f32 %v5872, %v5960
    %v5962 = vpop.f32.mrf.mxu0
    %v5963 = vadd.f32 %v5874, %v5962
    %5964 = vmatmul.bf16.gmra.mxu0 %v2994
    %v5965 = vpop.f32.mrf.mxu0
    %v5966 = vadd.f32 %v5877, %v5965
    %v5967 = vpop.f32.mrf.mxu0
    %v5968 = vadd.f32 %v5879, %v5967
    %5969 = vmatmul.bf16.gmra.mxu0 %v2998
    %v5970 = vpop.f32.mrf.mxu0
    %v5971 = vadd.f32 %v5882, %v5970
    %v5972 = vpop.f32.mrf.mxu0
    %v5973 = vadd.f32 %v5884, %v5972
    %5974 = vmatmul.bf16.gmra.mxu0 %v3002
    %v5975 = vpop.f32.mrf.mxu0
    %v5976 = vadd.f32 %v5887, %v5975
    %v5977 = vpop.f32.mrf.mxu0
    %v5978 = vadd.f32 %v5889, %v5977
    %5979 = vmatmul.bf16.gmra.mxu0 %v3006
    %v5980 = vpop.f32.mrf.mxu0
    %v5981 = vadd.f32 %v5892, %v5980
    %v5982 = vpop.f32.mrf.mxu0
    %v5983 = vadd.f32 %v5894, %v5982
    %5984 = vdwg.mxu0
    %5985 = vmatpush.bf16.msra.mxu0 %v4109
    %5986 = vmatpush.bf16.msra.mxu0 %v4101
    %5987 = vmatpush.bf16.msra.mxu0 %v4093
    %5988 = vmatpush.bf16.msra.mxu0 %v4085
    %5989 = vmatpush.bf16.msra.mxu0 %v4077
    %5990 = vmatpush.bf16.msra.mxu0 %v4069
    %5991 = vmatpush.bf16.msra.mxu0 %v4061
    %5992 = vmatpush.bf16.msra.mxu0 %v4053
    %5993 = vmatmul.bf16.gmra.mxu0 %v2943
    %v5994 = vpop.f32.mrf.mxu0
    %v5995 = vadd.f32 %v3269, %v5994
    %v5996 = vpop.f32.mrf.mxu0
    %v5997 = vadd.f32 %v3269, %v5996
    %5998 = vmatmul.bf16.gmra.mxu0 %v2947
    %v5999 = vpop.f32.mrf.mxu0
    %v6000 = vadd.f32 %v3269, %v5999
    %v6001 = vpop.f32.mrf.mxu0
    %v6002 = vadd.f32 %v3269, %v6001
    %6003 = vmatmul.bf16.gmra.mxu0 %v2951
    %v6004 = vpop.f32.mrf.mxu0
    %v6005 = vadd.f32 %v3269, %v6004
    %v6006 = vpop.f32.mrf.mxu0
    %v6007 = vadd.f32 %v3269, %v6006
    %6008 = vmatmul.bf16.gmra.mxu0 %v2955
    %v6009 = vpop.f32.mrf.mxu0
    %v6010 = vadd.f32 %v3269, %v6009
    %v6011 = vpop.f32.mrf.mxu0
    %v6012 = vadd.f32 %v3269, %v6011
    %6013 = vmatmul.bf16.gmra.mxu0 %v2959
    %v6014 = vpop.f32.mrf.mxu0
    %v6015 = vadd.f32 %v3269, %v6014
    %v6016 = vpop.f32.mrf.mxu0
    %v6017 = vadd.f32 %v3269, %v6016
    %6018 = vmatmul.bf16.gmra.mxu0 %v2963
    %v6019 = vpop.f32.mrf.mxu0
    %v6020 = vadd.f32 %v3269, %v6019
    %v6021 = vpop.f32.mrf.mxu0
    %v6022 = vadd.f32 %v3269, %v6021
    %6023 = vmatmul.bf16.gmra.mxu0 %v2967
    %v6024 = vpop.f32.mrf.mxu0
    %v6025 = vadd.f32 %v3269, %v6024
    %v6026 = vpop.f32.mrf.mxu0
    %v6027 = vadd.f32 %v3269, %v6026
    %6028 = vmatmul.bf16.gmra.mxu0 %v2971
    %v6029 = vpop.f32.mrf.mxu0
    %v6030 = vadd.f32 %v3269, %v6029
    %v6031 = vpop.f32.mrf.mxu0
    %v6032 = vadd.f32 %v3269, %v6031
    %6033 = vmatmul.bf16.gmra.mxu0 %v2975
    %v6034 = vpop.f32.mrf.mxu0
    %v6035 = vadd.f32 %v3269, %v6034
    %v6036 = vpop.f32.mrf.mxu0
    %v6037 = vadd.f32 %v3269, %v6036
    %6038 = vmatmul.bf16.gmra.mxu0 %v2979
    %v6039 = vpop.f32.mrf.mxu0
    %v6040 = vadd.f32 %v3269, %v6039
    %v6041 = vpop.f32.mrf.mxu0
    %v6042 = vadd.f32 %v3269, %v6041
    %6043 = vmatmul.bf16.gmra.mxu0 %v2983
    %v6044 = vpop.f32.mrf.mxu0
    %v6045 = vadd.f32 %v3269, %v6044
    %v6046 = vpop.f32.mrf.mxu0
    %v6047 = vadd.f32 %v3269, %v6046
    %6048 = vmatmul.bf16.gmra.mxu0 %v2987
    %v6049 = vpop.f32.mrf.mxu0
    %v6050 = vadd.f32 %v3269, %v6049
    %v6051 = vpop.f32.mrf.mxu0
    %v6052 = vadd.f32 %v3269, %v6051
    %6053 = vmatmul.bf16.gmra.mxu0 %v2991
    %v6054 = vpop.f32.mrf.mxu0
    %v6055 = vadd.f32 %v3269, %v6054
    %v6056 = vpop.f32.mrf.mxu0
    %v6057 = vadd.f32 %v3269, %v6056
    %6058 = vmatmul.bf16.gmra.mxu0 %v2995
    %v6059 = vpop.f32.mrf.mxu0
    %v6060 = vadd.f32 %v3269, %v6059
    %v6061 = vpop.f32.mrf.mxu0
    %v6062 = vadd.f32 %v3269, %v6061
    %6063 = vmatmul.bf16.gmra.mxu0 %v2999
    %v6064 = vpop.f32.mrf.mxu0
    %v6065 = vadd.f32 %v3269, %v6064
    %v6066 = vpop.f32.mrf.mxu0
    %v6067 = vadd.f32 %v3269, %v6066
    %6068 = vmatmul.bf16.gmra.mxu0 %v3003
    %v6069 = vpop.f32.mrf.mxu0
    %v6070 = vadd.f32 %v3269, %v6069
    %v6071 = vpop.f32.mrf.mxu0
    %v6072 = vadd.f32 %v3269, %v6071
    %6073 = vdwg.mxu0
    %6074 = vmatpush.bf16.msra.mxu0 %v4173
    %6075 = vmatpush.bf16.msra.mxu0 %v4165
    %6076 = vmatpush.bf16.msra.mxu0 %v4157
    %6077 = vmatpush.bf16.msra.mxu0 %v4149
    %6078 = vmatpush.bf16.msra.mxu0 %v4141
    %6079 = vmatpush.bf16.msra.mxu0 %v4133
    %6080 = vmatpush.bf16.msra.mxu0 %v4125
    %6081 = vmatpush.bf16.msra.mxu0 %v4117
    %6082 = vmatmul.bf16.gmra.mxu0 %v2944
    %v6083 = vpop.f32.mrf.mxu0
    %v6084 = vadd.f32 %v5995, %v6083
    %v6085 = vpop.f32.mrf.mxu0
    %v6086 = vadd.f32 %v5997, %v6085
    %6087 = vmatmul.bf16.gmra.mxu0 %v2948
    %v6088 = vpop.f32.mrf.mxu0
    %v6089 = vadd.f32 %v6000, %v6088
    %v6090 = vpop.f32.mrf.mxu0
    %v6091 = vadd.f32 %v6002, %v6090
    %6092 = vmatmul.bf16.gmra.mxu0 %v2952
    %v6093 = vpop.f32.mrf.mxu0
    %v6094 = vadd.f32 %v6005, %v6093
    %v6095 = vpop.f32.mrf.mxu0
    %v6096 = vadd.f32 %v6007, %v6095
    %6097 = vmatmul.bf16.gmra.mxu0 %v2956
    %v6098 = vpop.f32.mrf.mxu0
    %v6099 = vadd.f32 %v6010, %v6098
    %v6100 = vpop.f32.mrf.mxu0
    %v6101 = vadd.f32 %v6012, %v6100
    %6102 = vmatmul.bf16.gmra.mxu0 %v2960
    %v6103 = vpop.f32.mrf.mxu0
    %v6104 = vadd.f32 %v6015, %v6103
    %v6105 = vpop.f32.mrf.mxu0
    %v6106 = vadd.f32 %v6017, %v6105
    %6107 = vmatmul.bf16.gmra.mxu0 %v2964
    %v6108 = vpop.f32.mrf.mxu0
    %v6109 = vadd.f32 %v6020, %v6108
    %v6110 = vpop.f32.mrf.mxu0
    %v6111 = vadd.f32 %v6022, %v6110
    %6112 = vmatmul.bf16.gmra.mxu0 %v2968
    %v6113 = vpop.f32.mrf.mxu0
    %v6114 = vadd.f32 %v6025, %v6113
    %v6115 = vpop.f32.mrf.mxu0
    %v6116 = vadd.f32 %v6027, %v6115
    %6117 = vmatmul.bf16.gmra.mxu0 %v2972
    %v6118 = vpop.f32.mrf.mxu0
    %v6119 = vadd.f32 %v6030, %v6118
    %v6120 = vpop.f32.mrf.mxu0
    %v6121 = vadd.f32 %v6032, %v6120
    %6122 = vmatmul.bf16.gmra.mxu0 %v2976
    %v6123 = vpop.f32.mrf.mxu0
    %v6124 = vadd.f32 %v6035, %v6123
    %v6125 = vpop.f32.mrf.mxu0
    %v6126 = vadd.f32 %v6037, %v6125
    %6127 = vmatmul.bf16.gmra.mxu0 %v2980
    %v6128 = vpop.f32.mrf.mxu0
    %v6129 = vadd.f32 %v6040, %v6128
    %v6130 = vpop.f32.mrf.mxu0
    %v6131 = vadd.f32 %v6042, %v6130
    %6132 = vmatmul.bf16.gmra.mxu0 %v2984
    %v6133 = vpop.f32.mrf.mxu0
    %v6134 = vadd.f32 %v6045, %v6133
    %v6135 = vpop.f32.mrf.mxu0
    %v6136 = vadd.f32 %v6047, %v6135
    %6137 = vmatmul.bf16.gmra.mxu0 %v2988
    %v6138 = vpop.f32.mrf.mxu0
    %v6139 = vadd.f32 %v6050, %v6138
    %v6140 = vpop.f32.mrf.mxu0
    %v6141 = vadd.f32 %v6052, %v6140
    %6142 = vmatmul.bf16.gmra.mxu0 %v2992
    %v6143 = vpop.f32.mrf.mxu0
    %v6144 = vadd.f32 %v6055, %v6143
    %v6145 = vpop.f32.mrf.mxu0
    %v6146 = vadd.f32 %v6057, %v6145
    %6147 = vmatmul.bf16.gmra.mxu0 %v2996
    %v6148 = vpop.f32.mrf.mxu0
    %v6149 = vadd.f32 %v6060, %v6148
    %v6150 = vpop.f32.mrf.mxu0
    %v6151 = vadd.f32 %v6062, %v6150
    %6152 = vmatmul.bf16.gmra.mxu0 %v3000
    %v6153 = vpop.f32.mrf.mxu0
    %v6154 = vadd.f32 %v6065, %v6153
    %v6155 = vpop.f32.mrf.mxu0
    %v6156 = vadd.f32 %v6067, %v6155
    %6157 = vmatmul.bf16.gmra.mxu0 %v3004
    %v6158 = vpop.f32.mrf.mxu0
    %v6159 = vadd.f32 %v6070, %v6158
    %v6160 = vpop.f32.mrf.mxu0
    %v6161 = vadd.f32 %v6072, %v6160
    %6162 = vdwg.mxu0
    %6163 = vmatpush.bf16.msra.mxu0 %v4237
    %6164 = vmatpush.bf16.msra.mxu0 %v4229
    %6165 = vmatpush.bf16.msra.mxu0 %v4221
    %6166 = vmatpush.bf16.msra.mxu0 %v4213
    %6167 = vmatpush.bf16.msra.mxu0 %v4205
    %6168 = vmatpush.bf16.msra.mxu0 %v4197
    %6169 = vmatpush.bf16.msra.mxu0 %v4189
    %6170 = vmatpush.bf16.msra.mxu0 %v4181
    %6171 = vmatmul.bf16.gmra.mxu0 %v2945
    %v6172 = vpop.f32.mrf.mxu0
    %v6173 = vadd.f32 %v6084, %v6172
    %v6174 = vpop.f32.mrf.mxu0
    %v6175 = vadd.f32 %v6086, %v6174
    %6176 = vmatmul.bf16.gmra.mxu0 %v2949
    %v6177 = vpop.f32.mrf.mxu0
    %v6178 = vadd.f32 %v6089, %v6177
    %v6179 = vpop.f32.mrf.mxu0
    %v6180 = vadd.f32 %v6091, %v6179
    %6181 = vmatmul.bf16.gmra.mxu0 %v2953
    %v6182 = vpop.f32.mrf.mxu0
    %v6183 = vadd.f32 %v6094, %v6182
    %v6184 = vpop.f32.mrf.mxu0
    %v6185 = vadd.f32 %v6096, %v6184
    %6186 = vmatmul.bf16.gmra.mxu0 %v2957
    %v6187 = vpop.f32.mrf.mxu0
    %v6188 = vadd.f32 %v6099, %v6187
    %v6189 = vpop.f32.mrf.mxu0
    %v6190 = vadd.f32 %v6101, %v6189
    %6191 = vmatmul.bf16.gmra.mxu0 %v2961
    %v6192 = vpop.f32.mrf.mxu0
    %v6193 = vadd.f32 %v6104, %v6192
    %v6194 = vpop.f32.mrf.mxu0
    %v6195 = vadd.f32 %v6106, %v6194
    %6196 = vmatmul.bf16.gmra.mxu0 %v2965
    %v6197 = vpop.f32.mrf.mxu0
    %v6198 = vadd.f32 %v6109, %v6197
    %v6199 = vpop.f32.mrf.mxu0
    %v6200 = vadd.f32 %v6111, %v6199
    %6201 = vmatmul.bf16.gmra.mxu0 %v2969
    %v6202 = vpop.f32.mrf.mxu0
    %v6203 = vadd.f32 %v6114, %v6202
    %v6204 = vpop.f32.mrf.mxu0
    %v6205 = vadd.f32 %v6116, %v6204
    %6206 = vmatmul.bf16.gmra.mxu0 %v2973
    %v6207 = vpop.f32.mrf.mxu0
    %v6208 = vadd.f32 %v6119, %v6207
    %v6209 = vpop.f32.mrf.mxu0
    %v6210 = vadd.f32 %v6121, %v6209
    %6211 = vmatmul.bf16.gmra.mxu0 %v2977
    %v6212 = vpop.f32.mrf.mxu0
    %v6213 = vadd.f32 %v6124, %v6212
    %v6214 = vpop.f32.mrf.mxu0
    %v6215 = vadd.f32 %v6126, %v6214
    %6216 = vmatmul.bf16.gmra.mxu0 %v2981
    %v6217 = vpop.f32.mrf.mxu0
    %v6218 = vadd.f32 %v6129, %v6217
    %v6219 = vpop.f32.mrf.mxu0
    %v6220 = vadd.f32 %v6131, %v6219
    %6221 = vmatmul.bf16.gmra.mxu0 %v2985
    %v6222 = vpop.f32.mrf.mxu0
    %v6223 = vadd.f32 %v6134, %v6222
    %v6224 = vpop.f32.mrf.mxu0
    %v6225 = vadd.f32 %v6136, %v6224
    %6226 = vmatmul.bf16.gmra.mxu0 %v2989
    %v6227 = vpop.f32.mrf.mxu0
    %v6228 = vadd.f32 %v6139, %v6227
    %v6229 = vpop.f32.mrf.mxu0
    %v6230 = vadd.f32 %v6141, %v6229
    %6231 = vmatmul.bf16.gmra.mxu0 %v2993
    %v6232 = vpop.f32.mrf.mxu0
    %v6233 = vadd.f32 %v6144, %v6232
    %v6234 = vpop.f32.mrf.mxu0
    %v6235 = vadd.f32 %v6146, %v6234
    %6236 = vmatmul.bf16.gmra.mxu0 %v2997
    %v6237 = vpop.f32.mrf.mxu0
    %v6238 = vadd.f32 %v6149, %v6237
    %v6239 = vpop.f32.mrf.mxu0
    %v6240 = vadd.f32 %v6151, %v6239
    %6241 = vmatmul.bf16.gmra.mxu0 %v3001
    %v6242 = vpop.f32.mrf.mxu0
    %v6243 = vadd.f32 %v6154, %v6242
    %v6244 = vpop.f32.mrf.mxu0
    %v6245 = vadd.f32 %v6156, %v6244
    %6246 = vmatmul.bf16.gmra.mxu0 %v3005
    %v6247 = vpop.f32.mrf.mxu0
    %v6248 = vadd.f32 %v6159, %v6247
    %v6249 = vpop.f32.mrf.mxu0
    %v6250 = vadd.f32 %v6161, %v6249
    %6251 = vdwg.mxu0
    %6252 = vmatpush.bf16.msra.mxu0 %v4301
    %6253 = vmatpush.bf16.msra.mxu0 %v4293
    %6254 = vmatpush.bf16.msra.mxu0 %v4285
    %6255 = vmatpush.bf16.msra.mxu0 %v4277
    %6256 = vmatpush.bf16.msra.mxu0 %v4269
    %6257 = vmatpush.bf16.msra.mxu0 %v4261
    %6258 = vmatpush.bf16.msra.mxu0 %v4253
    %6259 = vmatpush.bf16.msra.mxu0 %v4245
    %6260 = vmatmul.bf16.gmra.mxu0 %v2946
    %v6261 = vpop.f32.mrf.mxu0
    %v6262 = vadd.f32 %v6173, %v6261
    %v6263 = vpop.f32.mrf.mxu0
    %v6264 = vadd.f32 %v6175, %v6263
    %6265 = vmatmul.bf16.gmra.mxu0 %v2950
    %v6266 = vpop.f32.mrf.mxu0
    %v6267 = vadd.f32 %v6178, %v6266
    %v6268 = vpop.f32.mrf.mxu0
    %v6269 = vadd.f32 %v6180, %v6268
    %6270 = vmatmul.bf16.gmra.mxu0 %v2954
    %v6271 = vpop.f32.mrf.mxu0
    %v6272 = vadd.f32 %v6183, %v6271
    %v6273 = vpop.f32.mrf.mxu0
    %v6274 = vadd.f32 %v6185, %v6273
    %6275 = vmatmul.bf16.gmra.mxu0 %v2958
    %v6276 = vpop.f32.mrf.mxu0
    %v6277 = vadd.f32 %v6188, %v6276
    %v6278 = vpop.f32.mrf.mxu0
    %v6279 = vadd.f32 %v6190, %v6278
    %6280 = vmatmul.bf16.gmra.mxu0 %v2962
    %v6281 = vpop.f32.mrf.mxu0
    %v6282 = vadd.f32 %v6193, %v6281
    %v6283 = vpop.f32.mrf.mxu0
    %v6284 = vadd.f32 %v6195, %v6283
    %6285 = vmatmul.bf16.gmra.mxu0 %v2966
    %v6286 = vpop.f32.mrf.mxu0
    %v6287 = vadd.f32 %v6198, %v6286
    %v6288 = vpop.f32.mrf.mxu0
    %v6289 = vadd.f32 %v6200, %v6288
    %6290 = vmatmul.bf16.gmra.mxu0 %v2970
    %v6291 = vpop.f32.mrf.mxu0
    %v6292 = vadd.f32 %v6203, %v6291
    %v6293 = vpop.f32.mrf.mxu0
    %v6294 = vadd.f32 %v6205, %v6293
    %6295 = vmatmul.bf16.gmra.mxu0 %v2974
    %v6296 = vpop.f32.mrf.mxu0
    %v6297 = vadd.f32 %v6208, %v6296
    %v6298 = vpop.f32.mrf.mxu0
    %v6299 = vadd.f32 %v6210, %v6298
    %6300 = vmatmul.bf16.gmra.mxu0 %v2978
    %v6301 = vpop.f32.mrf.mxu0
    %v6302 = vadd.f32 %v6213, %v6301
    %v6303 = vpop.f32.mrf.mxu0
    %v6304 = vadd.f32 %v6215, %v6303
    %6305 = vmatmul.bf16.gmra.mxu0 %v2982
    %v6306 = vpop.f32.mrf.mxu0
    %v6307 = vadd.f32 %v6218, %v6306
    %v6308 = vpop.f32.mrf.mxu0
    %v6309 = vadd.f32 %v6220, %v6308
    %6310 = vmatmul.bf16.gmra.mxu0 %v2986
    %v6311 = vpop.f32.mrf.mxu0
    %v6312 = vadd.f32 %v6223, %v6311
    %v6313 = vpop.f32.mrf.mxu0
    %v6314 = vadd.f32 %v6225, %v6313
    %6315 = vmatmul.bf16.gmra.mxu0 %v2990
    %v6316 = vpop.f32.mrf.mxu0
    %v6317 = vadd.f32 %v6228, %v6316
    %v6318 = vpop.f32.mrf.mxu0
    %v6319 = vadd.f32 %v6230, %v6318
    %6320 = vmatmul.bf16.gmra.mxu0 %v2994
    %v6321 = vpop.f32.mrf.mxu0
    %v6322 = vadd.f32 %v6233, %v6321
    %v6323 = vpop.f32.mrf.mxu0
    %v6324 = vadd.f32 %v6235, %v6323
    %6325 = vmatmul.bf16.gmra.mxu0 %v2998
    %v6326 = vpop.f32.mrf.mxu0
    %v6327 = vadd.f32 %v6238, %v6326
    %v6328 = vpop.f32.mrf.mxu0
    %v6329 = vadd.f32 %v6240, %v6328
    %6330 = vmatmul.bf16.gmra.mxu0 %v3002
    %v6331 = vpop.f32.mrf.mxu0
    %v6332 = vadd.f32 %v6243, %v6331
    %v6333 = vpop.f32.mrf.mxu0
    %v6334 = vadd.f32 %v6245, %v6333
    %6335 = vmatmul.bf16.gmra.mxu0 %v3006
    %v6336 = vpop.f32.mrf.mxu0
    %v6337 = vadd.f32 %v6248, %v6336
    %v6338 = vpop.f32.mrf.mxu0
    %v6339 = vadd.f32 %v6250, %v6338
    %6340 = vdwg.mxu0
    %6341 = vmatpush.bf16.msra.mxu0 %v4110
    %6342 = vmatpush.bf16.msra.mxu0 %v4102
    %6343 = vmatpush.bf16.msra.mxu0 %v4094
    %6344 = vmatpush.bf16.msra.mxu0 %v4086
    %6345 = vmatpush.bf16.msra.mxu0 %v4078
    %6346 = vmatpush.bf16.msra.mxu0 %v4070
    %6347 = vmatpush.bf16.msra.mxu0 %v4062
    %6348 = vmatpush.bf16.msra.mxu0 %v4054
    %6349 = vmatmul.bf16.gmra.mxu0 %v2943
    %v6350 = vpop.f32.mrf.mxu0
    %v6351 = vadd.f32 %v3270, %v6350
    %v6352 = vpop.f32.mrf.mxu0
    %v6353 = vadd.f32 %v3270, %v6352
    %6354 = vmatmul.bf16.gmra.mxu0 %v2947
    %v6355 = vpop.f32.mrf.mxu0
    %v6356 = vadd.f32 %v3270, %v6355
    %v6357 = vpop.f32.mrf.mxu0
    %v6358 = vadd.f32 %v3270, %v6357
    %6359 = vmatmul.bf16.gmra.mxu0 %v2951
    %v6360 = vpop.f32.mrf.mxu0
    %v6361 = vadd.f32 %v3270, %v6360
    %v6362 = vpop.f32.mrf.mxu0
    %v6363 = vadd.f32 %v3270, %v6362
    %6364 = vmatmul.bf16.gmra.mxu0 %v2955
    %v6365 = vpop.f32.mrf.mxu0
    %v6366 = vadd.f32 %v3270, %v6365
    %v6367 = vpop.f32.mrf.mxu0
    %v6368 = vadd.f32 %v3270, %v6367
    %6369 = vmatmul.bf16.gmra.mxu0 %v2959
    %v6370 = vpop.f32.mrf.mxu0
    %v6371 = vadd.f32 %v3270, %v6370
    %v6372 = vpop.f32.mrf.mxu0
    %v6373 = vadd.f32 %v3270, %v6372
    %6374 = vmatmul.bf16.gmra.mxu0 %v2963
    %v6375 = vpop.f32.mrf.mxu0
    %v6376 = vadd.f32 %v3270, %v6375
    %v6377 = vpop.f32.mrf.mxu0
    %v6378 = vadd.f32 %v3270, %v6377
    %6379 = vmatmul.bf16.gmra.mxu0 %v2967
    %v6380 = vpop.f32.mrf.mxu0
    %v6381 = vadd.f32 %v3270, %v6380
    %v6382 = vpop.f32.mrf.mxu0
    %v6383 = vadd.f32 %v3270, %v6382
    %6384 = vmatmul.bf16.gmra.mxu0 %v2971
    %v6385 = vpop.f32.mrf.mxu0
    %v6386 = vadd.f32 %v3270, %v6385
    %v6387 = vpop.f32.mrf.mxu0
    %v6388 = vadd.f32 %v3270, %v6387
    %6389 = vmatmul.bf16.gmra.mxu0 %v2975
    %v6390 = vpop.f32.mrf.mxu0
    %v6391 = vadd.f32 %v3270, %v6390
    %v6392 = vpop.f32.mrf.mxu0
    %v6393 = vadd.f32 %v3270, %v6392
    %6394 = vmatmul.bf16.gmra.mxu0 %v2979
    %v6395 = vpop.f32.mrf.mxu0
    %v6396 = vadd.f32 %v3270, %v6395
    %v6397 = vpop.f32.mrf.mxu0
    %v6398 = vadd.f32 %v3270, %v6397
    %6399 = vmatmul.bf16.gmra.mxu0 %v2983
    %v6400 = vpop.f32.mrf.mxu0
    %v6401 = vadd.f32 %v3270, %v6400
    %v6402 = vpop.f32.mrf.mxu0
    %v6403 = vadd.f32 %v3270, %v6402
    %6404 = vmatmul.bf16.gmra.mxu0 %v2987
    %v6405 = vpop.f32.mrf.mxu0
    %v6406 = vadd.f32 %v3270, %v6405
    %v6407 = vpop.f32.mrf.mxu0
    %v6408 = vadd.f32 %v3270, %v6407
    %6409 = vmatmul.bf16.gmra.mxu0 %v2991
    %v6410 = vpop.f32.mrf.mxu0
    %v6411 = vadd.f32 %v3270, %v6410
    %v6412 = vpop.f32.mrf.mxu0
    %v6413 = vadd.f32 %v3270, %v6412
    %6414 = vmatmul.bf16.gmra.mxu0 %v2995
    %v6415 = vpop.f32.mrf.mxu0
    %v6416 = vadd.f32 %v3270, %v6415
    %v6417 = vpop.f32.mrf.mxu0
    %v6418 = vadd.f32 %v3270, %v6417
    %6419 = vmatmul.bf16.gmra.mxu0 %v2999
    %v6420 = vpop.f32.mrf.mxu0
    %v6421 = vadd.f32 %v3270, %v6420
    %v6422 = vpop.f32.mrf.mxu0
    %v6423 = vadd.f32 %v3270, %v6422
    %6424 = vmatmul.bf16.gmra.mxu0 %v3003
    %v6425 = vpop.f32.mrf.mxu0
    %v6426 = vadd.f32 %v3270, %v6425
    %v6427 = vpop.f32.mrf.mxu0
    %v6428 = vadd.f32 %v3270, %v6427
    %6429 = vdwg.mxu0
    %6430 = vmatpush.bf16.msra.mxu0 %v4174
    %6431 = vmatpush.bf16.msra.mxu0 %v4166
    %6432 = vmatpush.bf16.msra.mxu0 %v4158
    %6433 = vmatpush.bf16.msra.mxu0 %v4150
    %6434 = vmatpush.bf16.msra.mxu0 %v4142
    %6435 = vmatpush.bf16.msra.mxu0 %v4134
    %6436 = vmatpush.bf16.msra.mxu0 %v4126
    %6437 = vmatpush.bf16.msra.mxu0 %v4118
    %6438 = vmatmul.bf16.gmra.mxu0 %v2944
    %v6439 = vpop.f32.mrf.mxu0
    %v6440 = vadd.f32 %v6351, %v6439
    %v6441 = vpop.f32.mrf.mxu0
    %v6442 = vadd.f32 %v6353, %v6441
    %6443 = vmatmul.bf16.gmra.mxu0 %v2948
    %v6444 = vpop.f32.mrf.mxu0
    %v6445 = vadd.f32 %v6356, %v6444
    %v6446 = vpop.f32.mrf.mxu0
    %v6447 = vadd.f32 %v6358, %v6446
    %6448 = vmatmul.bf16.gmra.mxu0 %v2952
    %v6449 = vpop.f32.mrf.mxu0
    %v6450 = vadd.f32 %v6361, %v6449
    %v6451 = vpop.f32.mrf.mxu0
    %v6452 = vadd.f32 %v6363, %v6451
    %6453 = vmatmul.bf16.gmra.mxu0 %v2956
    %v6454 = vpop.f32.mrf.mxu0
    %v6455 = vadd.f32 %v6366, %v6454
    %v6456 = vpop.f32.mrf.mxu0
    %v6457 = vadd.f32 %v6368, %v6456
    %6458 = vmatmul.bf16.gmra.mxu0 %v2960
    %v6459 = vpop.f32.mrf.mxu0
    %v6460 = vadd.f32 %v6371, %v6459
    %v6461 = vpop.f32.mrf.mxu0
    %v6462 = vadd.f32 %v6373, %v6461
    %6463 = vmatmul.bf16.gmra.mxu0 %v2964
    %v6464 = vpop.f32.mrf.mxu0
    %v6465 = vadd.f32 %v6376, %v6464
    %v6466 = vpop.f32.mrf.mxu0
    %v6467 = vadd.f32 %v6378, %v6466
    %6468 = vmatmul.bf16.gmra.mxu0 %v2968
    %v6469 = vpop.f32.mrf.mxu0
    %v6470 = vadd.f32 %v6381, %v6469
    %v6471 = vpop.f32.mrf.mxu0
    %v6472 = vadd.f32 %v6383, %v6471
    %6473 = vmatmul.bf16.gmra.mxu0 %v2972
    %v6474 = vpop.f32.mrf.mxu0
    %v6475 = vadd.f32 %v6386, %v6474
    %v6476 = vpop.f32.mrf.mxu0
    %v6477 = vadd.f32 %v6388, %v6476
    %6478 = vmatmul.bf16.gmra.mxu0 %v2976
    %v6479 = vpop.f32.mrf.mxu0
    %v6480 = vadd.f32 %v6391, %v6479
    %v6481 = vpop.f32.mrf.mxu0
    %v6482 = vadd.f32 %v6393, %v6481
    %6483 = vmatmul.bf16.gmra.mxu0 %v2980
    %v6484 = vpop.f32.mrf.mxu0
    %v6485 = vadd.f32 %v6396, %v6484
    %v6486 = vpop.f32.mrf.mxu0
    %v6487 = vadd.f32 %v6398, %v6486
    %6488 = vmatmul.bf16.gmra.mxu0 %v2984
    %v6489 = vpop.f32.mrf.mxu0
    %v6490 = vadd.f32 %v6401, %v6489
    %v6491 = vpop.f32.mrf.mxu0
    %v6492 = vadd.f32 %v6403, %v6491
    %6493 = vmatmul.bf16.gmra.mxu0 %v2988
    %v6494 = vpop.f32.mrf.mxu0
    %v6495 = vadd.f32 %v6406, %v6494
    %v6496 = vpop.f32.mrf.mxu0
    %v6497 = vadd.f32 %v6408, %v6496
    %6498 = vmatmul.bf16.gmra.mxu0 %v2992
    %v6499 = vpop.f32.mrf.mxu0
    %v6500 = vadd.f32 %v6411, %v6499
    %v6501 = vpop.f32.mrf.mxu0
    %v6502 = vadd.f32 %v6413, %v6501
    %6503 = vmatmul.bf16.gmra.mxu0 %v2996
    %v6504 = vpop.f32.mrf.mxu0
    %v6505 = vadd.f32 %v6416, %v6504
    %v6506 = vpop.f32.mrf.mxu0
    %v6507 = vadd.f32 %v6418, %v6506
    %6508 = vmatmul.bf16.gmra.mxu0 %v3000
    %v6509 = vpop.f32.mrf.mxu0
    %v6510 = vadd.f32 %v6421, %v6509
    %v6511 = vpop.f32.mrf.mxu0
    %v6512 = vadd.f32 %v6423, %v6511
    %6513 = vmatmul.bf16.gmra.mxu0 %v3004
    %v6514 = vpop.f32.mrf.mxu0
    %v6515 = vadd.f32 %v6426, %v6514
    %v6516 = vpop.f32.mrf.mxu0
    %v6517 = vadd.f32 %v6428, %v6516
    %6518 = vdwg.mxu0
    %6519 = vmatpush.bf16.msra.mxu0 %v4238
    %6520 = vmatpush.bf16.msra.mxu0 %v4230
    %6521 = vmatpush.bf16.msra.mxu0 %v4222
    %6522 = vmatpush.bf16.msra.mxu0 %v4214
    %6523 = vmatpush.bf16.msra.mxu0 %v4206
    %6524 = vmatpush.bf16.msra.mxu0 %v4198
    %6525 = vmatpush.bf16.msra.mxu0 %v4190
    %6526 = vmatpush.bf16.msra.mxu0 %v4182
    %6527 = vmatmul.bf16.gmra.mxu0 %v2945
    %v6528 = vpop.f32.mrf.mxu0
    %v6529 = vadd.f32 %v6440, %v6528
    %v6530 = vpop.f32.mrf.mxu0
    %v6531 = vadd.f32 %v6442, %v6530
    %6532 = vmatmul.bf16.gmra.mxu0 %v2949
    %v6533 = vpop.f32.mrf.mxu0
    %v6534 = vadd.f32 %v6445, %v6533
    %v6535 = vpop.f32.mrf.mxu0
    %v6536 = vadd.f32 %v6447, %v6535
    %6537 = vmatmul.bf16.gmra.mxu0 %v2953
    %v6538 = vpop.f32.mrf.mxu0
    %v6539 = vadd.f32 %v6450, %v6538
    %v6540 = vpop.f32.mrf.mxu0
    %v6541 = vadd.f32 %v6452, %v6540
    %6542 = vmatmul.bf16.gmra.mxu0 %v2957
    %v6543 = vpop.f32.mrf.mxu0
    %v6544 = vadd.f32 %v6455, %v6543
    %v6545 = vpop.f32.mrf.mxu0
    %v6546 = vadd.f32 %v6457, %v6545
    %6547 = vmatmul.bf16.gmra.mxu0 %v2961
    %v6548 = vpop.f32.mrf.mxu0
    %v6549 = vadd.f32 %v6460, %v6548
    %v6550 = vpop.f32.mrf.mxu0
    %v6551 = vadd.f32 %v6462, %v6550
    %6552 = vmatmul.bf16.gmra.mxu0 %v2965
    %v6553 = vpop.f32.mrf.mxu0
    %v6554 = vadd.f32 %v6465, %v6553
    %v6555 = vpop.f32.mrf.mxu0
    %v6556 = vadd.f32 %v6467, %v6555
    %6557 = vmatmul.bf16.gmra.mxu0 %v2969
    %v6558 = vpop.f32.mrf.mxu0
    %v6559 = vadd.f32 %v6470, %v6558
    %v6560 = vpop.f32.mrf.mxu0
    %v6561 = vadd.f32 %v6472, %v6560
    %6562 = vmatmul.bf16.gmra.mxu0 %v2973
    %v6563 = vpop.f32.mrf.mxu0
    %v6564 = vadd.f32 %v6475, %v6563
    %v6565 = vpop.f32.mrf.mxu0
    %v6566 = vadd.f32 %v6477, %v6565
    %6567 = vmatmul.bf16.gmra.mxu0 %v2977
    %v6568 = vpop.f32.mrf.mxu0
    %v6569 = vadd.f32 %v6480, %v6568
    %v6570 = vpop.f32.mrf.mxu0
    %v6571 = vadd.f32 %v6482, %v6570
    %6572 = vmatmul.bf16.gmra.mxu0 %v2981
    %v6573 = vpop.f32.mrf.mxu0
    %v6574 = vadd.f32 %v6485, %v6573
    %v6575 = vpop.f32.mrf.mxu0
    %v6576 = vadd.f32 %v6487, %v6575
    %6577 = vmatmul.bf16.gmra.mxu0 %v2985
    %v6578 = vpop.f32.mrf.mxu0
    %v6579 = vadd.f32 %v6490, %v6578
    %v6580 = vpop.f32.mrf.mxu0
    %v6581 = vadd.f32 %v6492, %v6580
    %6582 = vmatmul.bf16.gmra.mxu0 %v2989
    %v6583 = vpop.f32.mrf.mxu0
    %v6584 = vadd.f32 %v6495, %v6583
    %v6585 = vpop.f32.mrf.mxu0
    %v6586 = vadd.f32 %v6497, %v6585
    %6587 = vmatmul.bf16.gmra.mxu0 %v2993
    %v6588 = vpop.f32.mrf.mxu0
    %v6589 = vadd.f32 %v6500, %v6588
    %v6590 = vpop.f32.mrf.mxu0
    %v6591 = vadd.f32 %v6502, %v6590
    %6592 = vmatmul.bf16.gmra.mxu0 %v2997
    %v6593 = vpop.f32.mrf.mxu0
    %v6594 = vadd.f32 %v6505, %v6593
    %v6595 = vpop.f32.mrf.mxu0
    %v6596 = vadd.f32 %v6507, %v6595
    %6597 = vmatmul.bf16.gmra.mxu0 %v3001
    %v6598 = vpop.f32.mrf.mxu0
    %v6599 = vadd.f32 %v6510, %v6598
    %v6600 = vpop.f32.mrf.mxu0
    %v6601 = vadd.f32 %v6512, %v6600
    %6602 = vmatmul.bf16.gmra.mxu0 %v3005
    %v6603 = vpop.f32.mrf.mxu0
    %v6604 = vadd.f32 %v6515, %v6603
    %v6605 = vpop.f32.mrf.mxu0
    %v6606 = vadd.f32 %v6517, %v6605
    %6607 = vdwg.mxu0
    %6608 = vmatpush.bf16.msra.mxu0 %v4302
    %6609 = vmatpush.bf16.msra.mxu0 %v4294
    %6610 = vmatpush.bf16.msra.mxu0 %v4286
    %6611 = vmatpush.bf16.msra.mxu0 %v4278
    %6612 = vmatpush.bf16.msra.mxu0 %v4270
    %6613 = vmatpush.bf16.msra.mxu0 %v4262
    %6614 = vmatpush.bf16.msra.mxu0 %v4254
    %6615 = vmatpush.bf16.msra.mxu0 %v4246
    %6616 = vmatmul.bf16.gmra.mxu0 %v2946
    %v6617 = vpop.f32.mrf.mxu0
    %v6618 = vadd.f32 %v6529, %v6617
    %v6619 = vpop.f32.mrf.mxu0
    %v6620 = vadd.f32 %v6531, %v6619
    %6621 = vmatmul.bf16.gmra.mxu0 %v2950
    %v6622 = vpop.f32.mrf.mxu0
    %v6623 = vadd.f32 %v6534, %v6622
    %v6624 = vpop.f32.mrf.mxu0
    %v6625 = vadd.f32 %v6536, %v6624
    %6626 = vmatmul.bf16.gmra.mxu0 %v2954
    %v6627 = vpop.f32.mrf.mxu0
    %v6628 = vadd.f32 %v6539, %v6627
    %v6629 = vpop.f32.mrf.mxu0
    %v6630 = vadd.f32 %v6541, %v6629
    %6631 = vmatmul.bf16.gmra.mxu0 %v2958
    %v6632 = vpop.f32.mrf.mxu0
    %v6633 = vadd.f32 %v6544, %v6632
    %v6634 = vpop.f32.mrf.mxu0
    %v6635 = vadd.f32 %v6546, %v6634
    %6636 = vmatmul.bf16.gmra.mxu0 %v2962
    %v6637 = vpop.f32.mrf.mxu0
    %v6638 = vadd.f32 %v6549, %v6637
    %v6639 = vpop.f32.mrf.mxu0
    %v6640 = vadd.f32 %v6551, %v6639
    %6641 = vmatmul.bf16.gmra.mxu0 %v2966
    %v6642 = vpop.f32.mrf.mxu0
    %v6643 = vadd.f32 %v6554, %v6642
    %v6644 = vpop.f32.mrf.mxu0
    %v6645 = vadd.f32 %v6556, %v6644
    %6646 = vmatmul.bf16.gmra.mxu0 %v2970
    %v6647 = vpop.f32.mrf.mxu0
    %v6648 = vadd.f32 %v6559, %v6647
    %v6649 = vpop.f32.mrf.mxu0
    %v6650 = vadd.f32 %v6561, %v6649
    %6651 = vmatmul.bf16.gmra.mxu0 %v2974
    %v6652 = vpop.f32.mrf.mxu0
    %v6653 = vadd.f32 %v6564, %v6652
    %v6654 = vpop.f32.mrf.mxu0
    %v6655 = vadd.f32 %v6566, %v6654
    %6656 = vmatmul.bf16.gmra.mxu0 %v2978
    %v6657 = vpop.f32.mrf.mxu0
    %v6658 = vadd.f32 %v6569, %v6657
    %v6659 = vpop.f32.mrf.mxu0
    %v6660 = vadd.f32 %v6571, %v6659
    %6661 = vmatmul.bf16.gmra.mxu0 %v2982
    %v6662 = vpop.f32.mrf.mxu0
    %v6663 = vadd.f32 %v6574, %v6662
    %v6664 = vpop.f32.mrf.mxu0
    %v6665 = vadd.f32 %v6576, %v6664
    %6666 = vmatmul.bf16.gmra.mxu0 %v2986
    %v6667 = vpop.f32.mrf.mxu0
    %v6668 = vadd.f32 %v6579, %v6667
    %v6669 = vpop.f32.mrf.mxu0
    %v6670 = vadd.f32 %v6581, %v6669
    %6671 = vmatmul.bf16.gmra.mxu0 %v2990
    %v6672 = vpop.f32.mrf.mxu0
    %v6673 = vadd.f32 %v6584, %v6672
    %v6674 = vpop.f32.mrf.mxu0
    %v6675 = vadd.f32 %v6586, %v6674
    %6676 = vmatmul.bf16.gmra.mxu0 %v2994
    %v6677 = vpop.f32.mrf.mxu0
    %v6678 = vadd.f32 %v6589, %v6677
    %v6679 = vpop.f32.mrf.mxu0
    %v6680 = vadd.f32 %v6591, %v6679
    %6681 = vmatmul.bf16.gmra.mxu0 %v2998
    %v6682 = vpop.f32.mrf.mxu0
    %v6683 = vadd.f32 %v6594, %v6682
    %v6684 = vpop.f32.mrf.mxu0
    %v6685 = vadd.f32 %v6596, %v6684
    %6686 = vmatmul.bf16.gmra.mxu0 %v3002
    %v6687 = vpop.f32.mrf.mxu0
    %v6688 = vadd.f32 %v6599, %v6687
    %v6689 = vpop.f32.mrf.mxu0
    %v6690 = vadd.f32 %v6601, %v6689
    %6691 = vmatmul.bf16.gmra.mxu0 %v3006
    %v6692 = vpop.f32.mrf.mxu0
    %v6693 = vadd.f32 %v6604, %v6692
    %v6694 = vpop.f32.mrf.mxu0
    %v6695 = vadd.f32 %v6606, %v6694
    %6696 = vdwg.mxu0
    %6697 = vmatpush.bf16.msra.mxu0 %v4111
    %6698 = vmatpush.bf16.msra.mxu0 %v4103
    %6699 = vmatpush.bf16.msra.mxu0 %v4095
    %6700 = vmatpush.bf16.msra.mxu0 %v4087
    %6701 = vmatpush.bf16.msra.mxu0 %v4079
    %6702 = vmatpush.bf16.msra.mxu0 %v4071
    %6703 = vmatpush.bf16.msra.mxu0 %v4063
    %6704 = vmatpush.bf16.msra.mxu0 %v4055
    %6705 = vmatmul.bf16.gmra.mxu0 %v2943
    %v6706 = vpop.f32.mrf.mxu0
    %v6707 = vadd.f32 %v3271, %v6706
    %v6708 = vpop.f32.mrf.mxu0
    %v6709 = vadd.f32 %v3271, %v6708
    %6710 = vmatmul.bf16.gmra.mxu0 %v2947
    %v6711 = vpop.f32.mrf.mxu0
    %v6712 = vadd.f32 %v3271, %v6711
    %v6713 = vpop.f32.mrf.mxu0
    %v6714 = vadd.f32 %v3271, %v6713
    %6715 = vmatmul.bf16.gmra.mxu0 %v2951
    %v6716 = vpop.f32.mrf.mxu0
    %v6717 = vadd.f32 %v3271, %v6716
    %v6718 = vpop.f32.mrf.mxu0
    %v6719 = vadd.f32 %v3271, %v6718
    %6720 = vmatmul.bf16.gmra.mxu0 %v2955
    %v6721 = vpop.f32.mrf.mxu0
    %v6722 = vadd.f32 %v3271, %v6721
    %v6723 = vpop.f32.mrf.mxu0
    %v6724 = vadd.f32 %v3271, %v6723
    %6725 = vmatmul.bf16.gmra.mxu0 %v2959
    %v6726 = vpop.f32.mrf.mxu0
    %v6727 = vadd.f32 %v3271, %v6726
    %v6728 = vpop.f32.mrf.mxu0
    %v6729 = vadd.f32 %v3271, %v6728
    %6730 = vmatmul.bf16.gmra.mxu0 %v2963
    %v6731 = vpop.f32.mrf.mxu0
    %v6732 = vadd.f32 %v3271, %v6731
    %v6733 = vpop.f32.mrf.mxu0
    %v6734 = vadd.f32 %v3271, %v6733
    %6735 = vmatmul.bf16.gmra.mxu0 %v2967
    %v6736 = vpop.f32.mrf.mxu0
    %v6737 = vadd.f32 %v3271, %v6736
    %v6738 = vpop.f32.mrf.mxu0
    %v6739 = vadd.f32 %v3271, %v6738
    %6740 = vmatmul.bf16.gmra.mxu0 %v2971
    %v6741 = vpop.f32.mrf.mxu0
    %v6742 = vadd.f32 %v3271, %v6741
    %v6743 = vpop.f32.mrf.mxu0
    %v6744 = vadd.f32 %v3271, %v6743
    %6745 = vmatmul.bf16.gmra.mxu0 %v2975
    %v6746 = vpop.f32.mrf.mxu0
    %v6747 = vadd.f32 %v3271, %v6746
    %v6748 = vpop.f32.mrf.mxu0
    %v6749 = vadd.f32 %v3271, %v6748
    %6750 = vmatmul.bf16.gmra.mxu0 %v2979
    %v6751 = vpop.f32.mrf.mxu0
    %v6752 = vadd.f32 %v3271, %v6751
    %v6753 = vpop.f32.mrf.mxu0
    %v6754 = vadd.f32 %v3271, %v6753
    %6755 = vmatmul.bf16.gmra.mxu0 %v2983
    %v6756 = vpop.f32.mrf.mxu0
    %v6757 = vadd.f32 %v3271, %v6756
    %v6758 = vpop.f32.mrf.mxu0
    %v6759 = vadd.f32 %v3271, %v6758
    %6760 = vmatmul.bf16.gmra.mxu0 %v2987
    %v6761 = vpop.f32.mrf.mxu0
    %v6762 = vadd.f32 %v3271, %v6761
    %v6763 = vpop.f32.mrf.mxu0
    %v6764 = vadd.f32 %v3271, %v6763
    %6765 = vmatmul.bf16.gmra.mxu0 %v2991
    %v6766 = vpop.f32.mrf.mxu0
    %v6767 = vadd.f32 %v3271, %v6766
    %v6768 = vpop.f32.mrf.mxu0
    %v6769 = vadd.f32 %v3271, %v6768
    %6770 = vmatmul.bf16.gmra.mxu0 %v2995
    %v6771 = vpop.f32.mrf.mxu0
    %v6772 = vadd.f32 %v3271, %v6771
    %v6773 = vpop.f32.mrf.mxu0
    %v6774 = vadd.f32 %v3271, %v6773
    %6775 = vmatmul.bf16.gmra.mxu0 %v2999
    %v6776 = vpop.f32.mrf.mxu0
    %v6777 = vadd.f32 %v3271, %v6776
    %v6778 = vpop.f32.mrf.mxu0
    %v6779 = vadd.f32 %v3271, %v6778
    %6780 = vmatmul.bf16.gmra.mxu0 %v3003
    %v6781 = vpop.f32.mrf.mxu0
    %v6782 = vadd.f32 %v3271, %v6781
    %v6783 = vpop.f32.mrf.mxu0
    %v6784 = vadd.f32 %v3271, %v6783
    %6785 = vdwg.mxu0
    %6786 = vmatpush.bf16.msra.mxu0 %v4175
    %6787 = vmatpush.bf16.msra.mxu0 %v4167
    %6788 = vmatpush.bf16.msra.mxu0 %v4159
    %6789 = vmatpush.bf16.msra.mxu0 %v4151
    %6790 = vmatpush.bf16.msra.mxu0 %v4143
    %6791 = vmatpush.bf16.msra.mxu0 %v4135
    %6792 = vmatpush.bf16.msra.mxu0 %v4127
    %6793 = vmatpush.bf16.msra.mxu0 %v4119
    %6794 = vmatmul.bf16.gmra.mxu0 %v2944
    %v6795 = vpop.f32.mrf.mxu0
    %v6796 = vadd.f32 %v6707, %v6795
    %v6797 = vpop.f32.mrf.mxu0
    %v6798 = vadd.f32 %v6709, %v6797
    %6799 = vmatmul.bf16.gmra.mxu0 %v2948
    %v6800 = vpop.f32.mrf.mxu0
    %v6801 = vadd.f32 %v6712, %v6800
    %v6802 = vpop.f32.mrf.mxu0
    %v6803 = vadd.f32 %v6714, %v6802
    %6804 = vmatmul.bf16.gmra.mxu0 %v2952
    %v6805 = vpop.f32.mrf.mxu0
    %v6806 = vadd.f32 %v6717, %v6805
    %v6807 = vpop.f32.mrf.mxu0
    %v6808 = vadd.f32 %v6719, %v6807
    %6809 = vmatmul.bf16.gmra.mxu0 %v2956
    %v6810 = vpop.f32.mrf.mxu0
    %v6811 = vadd.f32 %v6722, %v6810
    %v6812 = vpop.f32.mrf.mxu0
    %v6813 = vadd.f32 %v6724, %v6812
    %6814 = vmatmul.bf16.gmra.mxu0 %v2960
    %v6815 = vpop.f32.mrf.mxu0
    %v6816 = vadd.f32 %v6727, %v6815
    %v6817 = vpop.f32.mrf.mxu0
    %v6818 = vadd.f32 %v6729, %v6817
    %6819 = vmatmul.bf16.gmra.mxu0 %v2964
    %v6820 = vpop.f32.mrf.mxu0
    %v6821 = vadd.f32 %v6732, %v6820
    %v6822 = vpop.f32.mrf.mxu0
    %v6823 = vadd.f32 %v6734, %v6822
    %6824 = vmatmul.bf16.gmra.mxu0 %v2968
    %v6825 = vpop.f32.mrf.mxu0
    %v6826 = vadd.f32 %v6737, %v6825
    %v6827 = vpop.f32.mrf.mxu0
    %v6828 = vadd.f32 %v6739, %v6827
    %6829 = vmatmul.bf16.gmra.mxu0 %v2972
    %v6830 = vpop.f32.mrf.mxu0
    %v6831 = vadd.f32 %v6742, %v6830
    %v6832 = vpop.f32.mrf.mxu0
    %v6833 = vadd.f32 %v6744, %v6832
    %6834 = vmatmul.bf16.gmra.mxu0 %v2976
    %v6835 = vpop.f32.mrf.mxu0
    %v6836 = vadd.f32 %v6747, %v6835
    %v6837 = vpop.f32.mrf.mxu0
    %v6838 = vadd.f32 %v6749, %v6837
    %6839 = vmatmul.bf16.gmra.mxu0 %v2980
    %v6840 = vpop.f32.mrf.mxu0
    %v6841 = vadd.f32 %v6752, %v6840
    %v6842 = vpop.f32.mrf.mxu0
    %v6843 = vadd.f32 %v6754, %v6842
    %6844 = vmatmul.bf16.gmra.mxu0 %v2984
    %v6845 = vpop.f32.mrf.mxu0
    %v6846 = vadd.f32 %v6757, %v6845
    %v6847 = vpop.f32.mrf.mxu0
    %v6848 = vadd.f32 %v6759, %v6847
    %6849 = vmatmul.bf16.gmra.mxu0 %v2988
    %v6850 = vpop.f32.mrf.mxu0
    %v6851 = vadd.f32 %v6762, %v6850
    %v6852 = vpop.f32.mrf.mxu0
    %v6853 = vadd.f32 %v6764, %v6852
    %6854 = vmatmul.bf16.gmra.mxu0 %v2992
    %v6855 = vpop.f32.mrf.mxu0
    %v6856 = vadd.f32 %v6767, %v6855
    %v6857 = vpop.f32.mrf.mxu0
    %v6858 = vadd.f32 %v6769, %v6857
    %6859 = vmatmul.bf16.gmra.mxu0 %v2996
    %v6860 = vpop.f32.mrf.mxu0
    %v6861 = vadd.f32 %v6772, %v6860
    %v6862 = vpop.f32.mrf.mxu0
    %v6863 = vadd.f32 %v6774, %v6862
    %6864 = vmatmul.bf16.gmra.mxu0 %v3000
    %v6865 = vpop.f32.mrf.mxu0
    %v6866 = vadd.f32 %v6777, %v6865
    %v6867 = vpop.f32.mrf.mxu0
    %v6868 = vadd.f32 %v6779, %v6867
    %6869 = vmatmul.bf16.gmra.mxu0 %v3004
    %v6870 = vpop.f32.mrf.mxu0
    %v6871 = vadd.f32 %v6782, %v6870
    %v6872 = vpop.f32.mrf.mxu0
    %v6873 = vadd.f32 %v6784, %v6872
    %6874 = vdwg.mxu0
    %6875 = vmatpush.bf16.msra.mxu0 %v4239
    %6876 = vmatpush.bf16.msra.mxu0 %v4231
    %6877 = vmatpush.bf16.msra.mxu0 %v4223
    %6878 = vmatpush.bf16.msra.mxu0 %v4215
    %6879 = vmatpush.bf16.msra.mxu0 %v4207
    %6880 = vmatpush.bf16.msra.mxu0 %v4199
    %6881 = vmatpush.bf16.msra.mxu0 %v4191
    %6882 = vmatpush.bf16.msra.mxu0 %v4183
    %6883 = vmatmul.bf16.gmra.mxu0 %v2945
    %v6884 = vpop.f32.mrf.mxu0
    %v6885 = vadd.f32 %v6796, %v6884
    %v6886 = vpop.f32.mrf.mxu0
    %v6887 = vadd.f32 %v6798, %v6886
    %6888 = vmatmul.bf16.gmra.mxu0 %v2949
    %v6889 = vpop.f32.mrf.mxu0
    %v6890 = vadd.f32 %v6801, %v6889
    %v6891 = vpop.f32.mrf.mxu0
    %v6892 = vadd.f32 %v6803, %v6891
    %6893 = vmatmul.bf16.gmra.mxu0 %v2953
    %v6894 = vpop.f32.mrf.mxu0
    %v6895 = vadd.f32 %v6806, %v6894
    %v6896 = vpop.f32.mrf.mxu0
    %v6897 = vadd.f32 %v6808, %v6896
    %6898 = vmatmul.bf16.gmra.mxu0 %v2957
    %v6899 = vpop.f32.mrf.mxu0
    %v6900 = vadd.f32 %v6811, %v6899
    %v6901 = vpop.f32.mrf.mxu0
    %v6902 = vadd.f32 %v6813, %v6901
    %6903 = vmatmul.bf16.gmra.mxu0 %v2961
    %v6904 = vpop.f32.mrf.mxu0
    %v6905 = vadd.f32 %v6816, %v6904
    %v6906 = vpop.f32.mrf.mxu0
    %v6907 = vadd.f32 %v6818, %v6906
    %6908 = vmatmul.bf16.gmra.mxu0 %v2965
    %v6909 = vpop.f32.mrf.mxu0
    %v6910 = vadd.f32 %v6821, %v6909
    %v6911 = vpop.f32.mrf.mxu0
    %v6912 = vadd.f32 %v6823, %v6911
    %6913 = vmatmul.bf16.gmra.mxu0 %v2969
    %v6914 = vpop.f32.mrf.mxu0
    %v6915 = vadd.f32 %v6826, %v6914
    %v6916 = vpop.f32.mrf.mxu0
    %v6917 = vadd.f32 %v6828, %v6916
    %6918 = vmatmul.bf16.gmra.mxu0 %v2973
    %v6919 = vpop.f32.mrf.mxu0
    %v6920 = vadd.f32 %v6831, %v6919
    %v6921 = vpop.f32.mrf.mxu0
    %v6922 = vadd.f32 %v6833, %v6921
    %6923 = vmatmul.bf16.gmra.mxu0 %v2977
    %v6924 = vpop.f32.mrf.mxu0
    %v6925 = vadd.f32 %v6836, %v6924
    %v6926 = vpop.f32.mrf.mxu0
    %v6927 = vadd.f32 %v6838, %v6926
    %6928 = vmatmul.bf16.gmra.mxu0 %v2981
    %v6929 = vpop.f32.mrf.mxu0
    %v6930 = vadd.f32 %v6841, %v6929
    %v6931 = vpop.f32.mrf.mxu0
    %v6932 = vadd.f32 %v6843, %v6931
    %6933 = vmatmul.bf16.gmra.mxu0 %v2985
    %v6934 = vpop.f32.mrf.mxu0
    %v6935 = vadd.f32 %v6846, %v6934
    %v6936 = vpop.f32.mrf.mxu0
    %v6937 = vadd.f32 %v6848, %v6936
    %6938 = vmatmul.bf16.gmra.mxu0 %v2989
    %v6939 = vpop.f32.mrf.mxu0
    %v6940 = vadd.f32 %v6851, %v6939
    %v6941 = vpop.f32.mrf.mxu0
    %v6942 = vadd.f32 %v6853, %v6941
    %6943 = vmatmul.bf16.gmra.mxu0 %v2993
    %v6944 = vpop.f32.mrf.mxu0
    %v6945 = vadd.f32 %v6856, %v6944
    %v6946 = vpop.f32.mrf.mxu0
    %v6947 = vadd.f32 %v6858, %v6946
    %6948 = vmatmul.bf16.gmra.mxu0 %v2997
    %v6949 = vpop.f32.mrf.mxu0
    %v6950 = vadd.f32 %v6861, %v6949
    %v6951 = vpop.f32.mrf.mxu0
    %v6952 = vadd.f32 %v6863, %v6951
    %6953 = vmatmul.bf16.gmra.mxu0 %v3001
    %v6954 = vpop.f32.mrf.mxu0
    %v6955 = vadd.f32 %v6866, %v6954
    %v6956 = vpop.f32.mrf.mxu0
    %v6957 = vadd.f32 %v6868, %v6956
    %6958 = vmatmul.bf16.gmra.mxu0 %v3005
    %v6959 = vpop.f32.mrf.mxu0
    %v6960 = vadd.f32 %v6871, %v6959
    %v6961 = vpop.f32.mrf.mxu0
    %v6962 = vadd.f32 %v6873, %v6961
    %6963 = vdwg.mxu0
    %6964 = vmatpush.bf16.msra.mxu0 %v4303
    %6965 = vmatpush.bf16.msra.mxu0 %v4295
    %6966 = vmatpush.bf16.msra.mxu0 %v4287
    %6967 = vmatpush.bf16.msra.mxu0 %v4279
    %6968 = vmatpush.bf16.msra.mxu0 %v4271
    %6969 = vmatpush.bf16.msra.mxu0 %v4263
    %6970 = vmatpush.bf16.msra.mxu0 %v4255
    %6971 = vmatpush.bf16.msra.mxu0 %v4247
    %6972 = vmatmul.bf16.gmra.mxu0 %v2946
    %v6973 = vpop.f32.mrf.mxu0
    %v6974 = vadd.f32 %v6885, %v6973
    %v6975 = vpop.f32.mrf.mxu0
    %v6976 = vadd.f32 %v6887, %v6975
    %6977 = vmatmul.bf16.gmra.mxu0 %v2950
    %v6978 = vpop.f32.mrf.mxu0
    %v6979 = vadd.f32 %v6890, %v6978
    %v6980 = vpop.f32.mrf.mxu0
    %v6981 = vadd.f32 %v6892, %v6980
    %6982 = vmatmul.bf16.gmra.mxu0 %v2954
    %v6983 = vpop.f32.mrf.mxu0
    %v6984 = vadd.f32 %v6895, %v6983
    %v6985 = vpop.f32.mrf.mxu0
    %v6986 = vadd.f32 %v6897, %v6985
    %6987 = vmatmul.bf16.gmra.mxu0 %v2958
    %v6988 = vpop.f32.mrf.mxu0
    %v6989 = vadd.f32 %v6900, %v6988
    %v6990 = vpop.f32.mrf.mxu0
    %v6991 = vadd.f32 %v6902, %v6990
    %6992 = vmatmul.bf16.gmra.mxu0 %v2962
    %v6993 = vpop.f32.mrf.mxu0
    %v6994 = vadd.f32 %v6905, %v6993
    %v6995 = vpop.f32.mrf.mxu0
    %v6996 = vadd.f32 %v6907, %v6995
    %6997 = vmatmul.bf16.gmra.mxu0 %v2966
    %v6998 = vpop.f32.mrf.mxu0
    %v6999 = vadd.f32 %v6910, %v6998
    %v7000 = vpop.f32.mrf.mxu0
    %v7001 = vadd.f32 %v6912, %v7000
    %7002 = vmatmul.bf16.gmra.mxu0 %v2970
    %v7003 = vpop.f32.mrf.mxu0
    %v7004 = vadd.f32 %v6915, %v7003
    %v7005 = vpop.f32.mrf.mxu0
    %v7006 = vadd.f32 %v6917, %v7005
    %7007 = vmatmul.bf16.gmra.mxu0 %v2974
    %v7008 = vpop.f32.mrf.mxu0
    %v7009 = vadd.f32 %v6920, %v7008
    %v7010 = vpop.f32.mrf.mxu0
    %v7011 = vadd.f32 %v6922, %v7010
    %7012 = vmatmul.bf16.gmra.mxu0 %v2978
    %v7013 = vpop.f32.mrf.mxu0
    %v7014 = vadd.f32 %v6925, %v7013
    %v7015 = vpop.f32.mrf.mxu0
    %v7016 = vadd.f32 %v6927, %v7015
    %7017 = vmatmul.bf16.gmra.mxu0 %v2982
    %v7018 = vpop.f32.mrf.mxu0
    %v7019 = vadd.f32 %v6930, %v7018
    %v7020 = vpop.f32.mrf.mxu0
    %v7021 = vadd.f32 %v6932, %v7020
    %7022 = vmatmul.bf16.gmra.mxu0 %v2986
    %v7023 = vpop.f32.mrf.mxu0
    %v7024 = vadd.f32 %v6935, %v7023
    %v7025 = vpop.f32.mrf.mxu0
    %v7026 = vadd.f32 %v6937, %v7025
    %7027 = vmatmul.bf16.gmra.mxu0 %v2990
    %v7028 = vpop.f32.mrf.mxu0
    %v7029 = vadd.f32 %v6940, %v7028
    %v7030 = vpop.f32.mrf.mxu0
    %v7031 = vadd.f32 %v6942, %v7030
    %7032 = vmatmul.bf16.gmra.mxu0 %v2994
    %v7033 = vpop.f32.mrf.mxu0
    %v7034 = vadd.f32 %v6945, %v7033
    %v7035 = vpop.f32.mrf.mxu0
    %v7036 = vadd.f32 %v6947, %v7035
    %7037 = vmatmul.bf16.gmra.mxu0 %v2998
    %v7038 = vpop.f32.mrf.mxu0
    %v7039 = vadd.f32 %v6950, %v7038
    %v7040 = vpop.f32.mrf.mxu0
    %v7041 = vadd.f32 %v6952, %v7040
    %7042 = vmatmul.bf16.gmra.mxu0 %v3002
    %v7043 = vpop.f32.mrf.mxu0
    %v7044 = vadd.f32 %v6955, %v7043
    %v7045 = vpop.f32.mrf.mxu0
    %v7046 = vadd.f32 %v6957, %v7045
    %7047 = vmatmul.bf16.gmra.mxu0 %v3006
    %v7048 = vpop.f32.mrf.mxu0
    %v7049 = vadd.f32 %v6960, %v7048
    %v7050 = vpop.f32.mrf.mxu0
    %v7051 = vadd.f32 %v6962, %v7050
    %7052 = vdwg.mxu0
    %7053 = vmatpush.bf16.msra.mxu0 %v4112
    %7054 = vmatpush.bf16.msra.mxu0 %v4104
    %7055 = vmatpush.bf16.msra.mxu0 %v4096
    %7056 = vmatpush.bf16.msra.mxu0 %v4088
    %7057 = vmatpush.bf16.msra.mxu0 %v4080
    %7058 = vmatpush.bf16.msra.mxu0 %v4072
    %7059 = vmatpush.bf16.msra.mxu0 %v4064
    %7060 = vmatpush.bf16.msra.mxu0 %v4056
    %7061 = vmatmul.bf16.gmra.mxu0 %v2943
    %v7062 = vpop.f32.mrf.mxu0
    %v7063 = vadd.f32 %v3272, %v7062
    %v7064 = vpop.f32.mrf.mxu0
    %v7065 = vadd.f32 %v3272, %v7064
    %7066 = vmatmul.bf16.gmra.mxu0 %v2947
    %v7067 = vpop.f32.mrf.mxu0
    %v7068 = vadd.f32 %v3272, %v7067
    %v7069 = vpop.f32.mrf.mxu0
    %v7070 = vadd.f32 %v3272, %v7069
    %7071 = vmatmul.bf16.gmra.mxu0 %v2951
    %v7072 = vpop.f32.mrf.mxu0
    %v7073 = vadd.f32 %v3272, %v7072
    %v7074 = vpop.f32.mrf.mxu0
    %v7075 = vadd.f32 %v3272, %v7074
    %7076 = vmatmul.bf16.gmra.mxu0 %v2955
    %v7077 = vpop.f32.mrf.mxu0
    %v7078 = vadd.f32 %v3272, %v7077
    %v7079 = vpop.f32.mrf.mxu0
    %v7080 = vadd.f32 %v3272, %v7079
    %7081 = vmatmul.bf16.gmra.mxu0 %v2959
    %v7082 = vpop.f32.mrf.mxu0
    %v7083 = vadd.f32 %v3272, %v7082
    %v7084 = vpop.f32.mrf.mxu0
    %v7085 = vadd.f32 %v3272, %v7084
    %7086 = vmatmul.bf16.gmra.mxu0 %v2963
    %v7087 = vpop.f32.mrf.mxu0
    %v7088 = vadd.f32 %v3272, %v7087
    %v7089 = vpop.f32.mrf.mxu0
    %v7090 = vadd.f32 %v3272, %v7089
    %7091 = vmatmul.bf16.gmra.mxu0 %v2967
    %v7092 = vpop.f32.mrf.mxu0
    %v7093 = vadd.f32 %v3272, %v7092
    %v7094 = vpop.f32.mrf.mxu0
    %v7095 = vadd.f32 %v3272, %v7094
    %7096 = vmatmul.bf16.gmra.mxu0 %v2971
    %v7097 = vpop.f32.mrf.mxu0
    %v7098 = vadd.f32 %v3272, %v7097
    %v7099 = vpop.f32.mrf.mxu0
    %v7100 = vadd.f32 %v3272, %v7099
    %7101 = vmatmul.bf16.gmra.mxu0 %v2975
    %v7102 = vpop.f32.mrf.mxu0
    %v7103 = vadd.f32 %v3272, %v7102
    %v7104 = vpop.f32.mrf.mxu0
    %v7105 = vadd.f32 %v3272, %v7104
    %7106 = vmatmul.bf16.gmra.mxu0 %v2979
    %v7107 = vpop.f32.mrf.mxu0
    %v7108 = vadd.f32 %v3272, %v7107
    %v7109 = vpop.f32.mrf.mxu0
    %v7110 = vadd.f32 %v3272, %v7109
    %7111 = vmatmul.bf16.gmra.mxu0 %v2983
    %v7112 = vpop.f32.mrf.mxu0
    %v7113 = vadd.f32 %v3272, %v7112
    %v7114 = vpop.f32.mrf.mxu0
    %v7115 = vadd.f32 %v3272, %v7114
    %7116 = vmatmul.bf16.gmra.mxu0 %v2987
    %v7117 = vpop.f32.mrf.mxu0
    %v7118 = vadd.f32 %v3272, %v7117
    %v7119 = vpop.f32.mrf.mxu0
    %v7120 = vadd.f32 %v3272, %v7119
    %7121 = vmatmul.bf16.gmra.mxu0 %v2991
    %v7122 = vpop.f32.mrf.mxu0
    %v7123 = vadd.f32 %v3272, %v7122
    %v7124 = vpop.f32.mrf.mxu0
    %v7125 = vadd.f32 %v3272, %v7124
    %7126 = vmatmul.bf16.gmra.mxu0 %v2995
    %v7127 = vpop.f32.mrf.mxu0
    %v7128 = vadd.f32 %v3272, %v7127
    %v7129 = vpop.f32.mrf.mxu0
    %v7130 = vadd.f32 %v3272, %v7129
    %7131 = vmatmul.bf16.gmra.mxu0 %v2999
    %v7132 = vpop.f32.mrf.mxu0
    %v7133 = vadd.f32 %v3272, %v7132
    %v7134 = vpop.f32.mrf.mxu0
    %v7135 = vadd.f32 %v3272, %v7134
    %7136 = vmatmul.bf16.gmra.mxu0 %v3003
    %v7137 = vpop.f32.mrf.mxu0
    %v7138 = vadd.f32 %v3272, %v7137
    %v7139 = vpop.f32.mrf.mxu0
    %v7140 = vadd.f32 %v3272, %v7139
    %7141 = vdwg.mxu0
    %7142 = vmatpush.bf16.msra.mxu0 %v4176
    %7143 = vmatpush.bf16.msra.mxu0 %v4168
    %7144 = vmatpush.bf16.msra.mxu0 %v4160
    %7145 = vmatpush.bf16.msra.mxu0 %v4152
    %7146 = vmatpush.bf16.msra.mxu0 %v4144
    %7147 = vmatpush.bf16.msra.mxu0 %v4136
    %7148 = vmatpush.bf16.msra.mxu0 %v4128
    %7149 = vmatpush.bf16.msra.mxu0 %v4120
    %7150 = vmatmul.bf16.gmra.mxu0 %v2944
    %v7151 = vpop.f32.mrf.mxu0
    %v7152 = vadd.f32 %v7063, %v7151
    %v7153 = vpop.f32.mrf.mxu0
    %v7154 = vadd.f32 %v7065, %v7153
    %7155 = vmatmul.bf16.gmra.mxu0 %v2948
    %v7156 = vpop.f32.mrf.mxu0
    %v7157 = vadd.f32 %v7068, %v7156
    %v7158 = vpop.f32.mrf.mxu0
    %v7159 = vadd.f32 %v7070, %v7158
    %7160 = vmatmul.bf16.gmra.mxu0 %v2952
    %v7161 = vpop.f32.mrf.mxu0
    %v7162 = vadd.f32 %v7073, %v7161
    %v7163 = vpop.f32.mrf.mxu0
    %v7164 = vadd.f32 %v7075, %v7163
    %7165 = vmatmul.bf16.gmra.mxu0 %v2956
    %v7166 = vpop.f32.mrf.mxu0
    %v7167 = vadd.f32 %v7078, %v7166
    %v7168 = vpop.f32.mrf.mxu0
    %v7169 = vadd.f32 %v7080, %v7168
    %7170 = vmatmul.bf16.gmra.mxu0 %v2960
    %v7171 = vpop.f32.mrf.mxu0
    %v7172 = vadd.f32 %v7083, %v7171
    %v7173 = vpop.f32.mrf.mxu0
    %v7174 = vadd.f32 %v7085, %v7173
    %7175 = vmatmul.bf16.gmra.mxu0 %v2964
    %v7176 = vpop.f32.mrf.mxu0
    %v7177 = vadd.f32 %v7088, %v7176
    %v7178 = vpop.f32.mrf.mxu0
    %v7179 = vadd.f32 %v7090, %v7178
    %7180 = vmatmul.bf16.gmra.mxu0 %v2968
    %v7181 = vpop.f32.mrf.mxu0
    %v7182 = vadd.f32 %v7093, %v7181
    %v7183 = vpop.f32.mrf.mxu0
    %v7184 = vadd.f32 %v7095, %v7183
    %7185 = vmatmul.bf16.gmra.mxu0 %v2972
    %v7186 = vpop.f32.mrf.mxu0
    %v7187 = vadd.f32 %v7098, %v7186
    %v7188 = vpop.f32.mrf.mxu0
    %v7189 = vadd.f32 %v7100, %v7188
    %7190 = vmatmul.bf16.gmra.mxu0 %v2976
    %v7191 = vpop.f32.mrf.mxu0
    %v7192 = vadd.f32 %v7103, %v7191
    %v7193 = vpop.f32.mrf.mxu0
    %v7194 = vadd.f32 %v7105, %v7193
    %7195 = vmatmul.bf16.gmra.mxu0 %v2980
    %v7196 = vpop.f32.mrf.mxu0
    %v7197 = vadd.f32 %v7108, %v7196
    %v7198 = vpop.f32.mrf.mxu0
    %v7199 = vadd.f32 %v7110, %v7198
    %7200 = vmatmul.bf16.gmra.mxu0 %v2984
    %v7201 = vpop.f32.mrf.mxu0
    %v7202 = vadd.f32 %v7113, %v7201
    %v7203 = vpop.f32.mrf.mxu0
    %v7204 = vadd.f32 %v7115, %v7203
    %7205 = vmatmul.bf16.gmra.mxu0 %v2988
    %v7206 = vpop.f32.mrf.mxu0
    %v7207 = vadd.f32 %v7118, %v7206
    %v7208 = vpop.f32.mrf.mxu0
    %v7209 = vadd.f32 %v7120, %v7208
    %7210 = vmatmul.bf16.gmra.mxu0 %v2992
    %v7211 = vpop.f32.mrf.mxu0
    %v7212 = vadd.f32 %v7123, %v7211
    %v7213 = vpop.f32.mrf.mxu0
    %v7214 = vadd.f32 %v7125, %v7213
    %7215 = vmatmul.bf16.gmra.mxu0 %v2996
    %v7216 = vpop.f32.mrf.mxu0
    %v7217 = vadd.f32 %v7128, %v7216
    %v7218 = vpop.f32.mrf.mxu0
    %v7219 = vadd.f32 %v7130, %v7218
    %7220 = vmatmul.bf16.gmra.mxu0 %v3000
    %v7221 = vpop.f32.mrf.mxu0
    %v7222 = vadd.f32 %v7133, %v7221
    %v7223 = vpop.f32.mrf.mxu0
    %v7224 = vadd.f32 %v7135, %v7223
    %7225 = vmatmul.bf16.gmra.mxu0 %v3004
    %v7226 = vpop.f32.mrf.mxu0
    %v7227 = vadd.f32 %v7138, %v7226
    %v7228 = vpop.f32.mrf.mxu0
    %v7229 = vadd.f32 %v7140, %v7228
    %7230 = vdwg.mxu0
    %7231 = vmatpush.bf16.msra.mxu0 %v4240
    %7232 = vmatpush.bf16.msra.mxu0 %v4232
    %7233 = vmatpush.bf16.msra.mxu0 %v4224
    %7234 = vmatpush.bf16.msra.mxu0 %v4216
    %7235 = vmatpush.bf16.msra.mxu0 %v4208
    %7236 = vmatpush.bf16.msra.mxu0 %v4200
    %7237 = vmatpush.bf16.msra.mxu0 %v4192
    %7238 = vmatpush.bf16.msra.mxu0 %v4184
    %7239 = vmatmul.bf16.gmra.mxu0 %v2945
    %v7240 = vpop.f32.mrf.mxu0
    %v7241 = vadd.f32 %v7152, %v7240
    %v7242 = vpop.f32.mrf.mxu0
    %v7243 = vadd.f32 %v7154, %v7242
    %7244 = vmatmul.bf16.gmra.mxu0 %v2949
    %v7245 = vpop.f32.mrf.mxu0
    %v7246 = vadd.f32 %v7157, %v7245
    %v7247 = vpop.f32.mrf.mxu0
    %v7248 = vadd.f32 %v7159, %v7247
    %7249 = vmatmul.bf16.gmra.mxu0 %v2953
    %v7250 = vpop.f32.mrf.mxu0
    %v7251 = vadd.f32 %v7162, %v7250
    %v7252 = vpop.f32.mrf.mxu0
    %v7253 = vadd.f32 %v7164, %v7252
    %7254 = vmatmul.bf16.gmra.mxu0 %v2957
    %v7255 = vpop.f32.mrf.mxu0
    %v7256 = vadd.f32 %v7167, %v7255
    %v7257 = vpop.f32.mrf.mxu0
    %v7258 = vadd.f32 %v7169, %v7257
    %7259 = vmatmul.bf16.gmra.mxu0 %v2961
    %v7260 = vpop.f32.mrf.mxu0
    %v7261 = vadd.f32 %v7172, %v7260
    %v7262 = vpop.f32.mrf.mxu0
    %v7263 = vadd.f32 %v7174, %v7262
    %7264 = vmatmul.bf16.gmra.mxu0 %v2965
    %v7265 = vpop.f32.mrf.mxu0
    %v7266 = vadd.f32 %v7177, %v7265
    %v7267 = vpop.f32.mrf.mxu0
    %v7268 = vadd.f32 %v7179, %v7267
    %7269 = vmatmul.bf16.gmra.mxu0 %v2969
    %v7270 = vpop.f32.mrf.mxu0
    %v7271 = vadd.f32 %v7182, %v7270
    %v7272 = vpop.f32.mrf.mxu0
    %v7273 = vadd.f32 %v7184, %v7272
    %7274 = vmatmul.bf16.gmra.mxu0 %v2973
    %v7275 = vpop.f32.mrf.mxu0
    %v7276 = vadd.f32 %v7187, %v7275
    %v7277 = vpop.f32.mrf.mxu0
    %v7278 = vadd.f32 %v7189, %v7277
    %7279 = vmatmul.bf16.gmra.mxu0 %v2977
    %v7280 = vpop.f32.mrf.mxu0
    %v7281 = vadd.f32 %v7192, %v7280
    %v7282 = vpop.f32.mrf.mxu0
    %v7283 = vadd.f32 %v7194, %v7282
    %7284 = vmatmul.bf16.gmra.mxu0 %v2981
    %v7285 = vpop.f32.mrf.mxu0
    %v7286 = vadd.f32 %v7197, %v7285
    %v7287 = vpop.f32.mrf.mxu0
    %v7288 = vadd.f32 %v7199, %v7287
    %7289 = vmatmul.bf16.gmra.mxu0 %v2985
    %v7290 = vpop.f32.mrf.mxu0
    %v7291 = vadd.f32 %v7202, %v7290
    %v7292 = vpop.f32.mrf.mxu0
    %v7293 = vadd.f32 %v7204, %v7292
    %7294 = vmatmul.bf16.gmra.mxu0 %v2989
    %v7295 = vpop.f32.mrf.mxu0
    %v7296 = vadd.f32 %v7207, %v7295
    %v7297 = vpop.f32.mrf.mxu0
    %v7298 = vadd.f32 %v7209, %v7297
    %7299 = vmatmul.bf16.gmra.mxu0 %v2993
    %v7300 = vpop.f32.mrf.mxu0
    %v7301 = vadd.f32 %v7212, %v7300
    %v7302 = vpop.f32.mrf.mxu0
    %v7303 = vadd.f32 %v7214, %v7302
    %7304 = vmatmul.bf16.gmra.mxu0 %v2997
    %v7305 = vpop.f32.mrf.mxu0
    %v7306 = vadd.f32 %v7217, %v7305
    %v7307 = vpop.f32.mrf.mxu0
    %v7308 = vadd.f32 %v7219, %v7307
    %7309 = vmatmul.bf16.gmra.mxu0 %v3001
    %v7310 = vpop.f32.mrf.mxu0
    %v7311 = vadd.f32 %v7222, %v7310
    %v7312 = vpop.f32.mrf.mxu0
    %v7313 = vadd.f32 %v7224, %v7312
    %7314 = vmatmul.bf16.gmra.mxu0 %v3005
    %v7315 = vpop.f32.mrf.mxu0
    %v7316 = vadd.f32 %v7227, %v7315
    %v7317 = vpop.f32.mrf.mxu0
    %v7318 = vadd.f32 %v7229, %v7317
    %7319 = vdwg.mxu0
    %7320 = vmatpush.bf16.msra.mxu0 %v4304
    %7321 = vmatpush.bf16.msra.mxu0 %v4296
    %7322 = vmatpush.bf16.msra.mxu0 %v4288
    %7323 = vmatpush.bf16.msra.mxu0 %v4280
    %7324 = vmatpush.bf16.msra.mxu0 %v4272
    %7325 = vmatpush.bf16.msra.mxu0 %v4264
    %7326 = vmatpush.bf16.msra.mxu0 %v4256
    %7327 = vmatpush.bf16.msra.mxu0 %v4248
    %7328 = vmatmul.bf16.gmra.mxu0 %v2946
    %v7329 = vpop.f32.mrf.mxu0
    %v7330 = vadd.f32 %v7241, %v7329
    %v7331 = vpop.f32.mrf.mxu0
    %v7332 = vadd.f32 %v7243, %v7331
    %7333 = vmatmul.bf16.gmra.mxu0 %v2950
    %v7334 = vpop.f32.mrf.mxu0
    %v7335 = vadd.f32 %v7246, %v7334
    %v7336 = vpop.f32.mrf.mxu0
    %v7337 = vadd.f32 %v7248, %v7336
    %7338 = vmatmul.bf16.gmra.mxu0 %v2954
    %v7339 = vpop.f32.mrf.mxu0
    %v7340 = vadd.f32 %v7251, %v7339
    %v7341 = vpop.f32.mrf.mxu0
    %v7342 = vadd.f32 %v7253, %v7341
    %7343 = vmatmul.bf16.gmra.mxu0 %v2958
    %v7344 = vpop.f32.mrf.mxu0
    %v7345 = vadd.f32 %v7256, %v7344
    %v7346 = vpop.f32.mrf.mxu0
    %v7347 = vadd.f32 %v7258, %v7346
    %7348 = vmatmul.bf16.gmra.mxu0 %v2962
    %v7349 = vpop.f32.mrf.mxu0
    %v7350 = vadd.f32 %v7261, %v7349
    %v7351 = vpop.f32.mrf.mxu0
    %v7352 = vadd.f32 %v7263, %v7351
    %7353 = vmatmul.bf16.gmra.mxu0 %v2966
    %v7354 = vpop.f32.mrf.mxu0
    %v7355 = vadd.f32 %v7266, %v7354
    %v7356 = vpop.f32.mrf.mxu0
    %v7357 = vadd.f32 %v7268, %v7356
    %7358 = vmatmul.bf16.gmra.mxu0 %v2970
    %v7359 = vpop.f32.mrf.mxu0
    %v7360 = vadd.f32 %v7271, %v7359
    %v7361 = vpop.f32.mrf.mxu0
    %v7362 = vadd.f32 %v7273, %v7361
    %7363 = vmatmul.bf16.gmra.mxu0 %v2974
    %v7364 = vpop.f32.mrf.mxu0
    %v7365 = vadd.f32 %v7276, %v7364
    %v7366 = vpop.f32.mrf.mxu0
    %v7367 = vadd.f32 %v7278, %v7366
    %7368 = vmatmul.bf16.gmra.mxu0 %v2978
    %v7369 = vpop.f32.mrf.mxu0
    %v7370 = vadd.f32 %v7281, %v7369
    %v7371 = vpop.f32.mrf.mxu0
    %v7372 = vadd.f32 %v7283, %v7371
    %7373 = vmatmul.bf16.gmra.mxu0 %v2982
    %v7374 = vpop.f32.mrf.mxu0
    %v7375 = vadd.f32 %v7286, %v7374
    %v7376 = vpop.f32.mrf.mxu0
    %v7377 = vadd.f32 %v7288, %v7376
    %7378 = vmatmul.bf16.gmra.mxu0 %v2986
    %v7379 = vpop.f32.mrf.mxu0
    %v7380 = vadd.f32 %v7291, %v7379
    %v7381 = vpop.f32.mrf.mxu0
    %v7382 = vadd.f32 %v7293, %v7381
    %7383 = vmatmul.bf16.gmra.mxu0 %v2990
    %v7384 = vpop.f32.mrf.mxu0
    %v7385 = vadd.f32 %v7296, %v7384
    %v7386 = vpop.f32.mrf.mxu0
    %v7387 = vadd.f32 %v7298, %v7386
    %7388 = vmatmul.bf16.gmra.mxu0 %v2994
    %v7389 = vpop.f32.mrf.mxu0
    %v7390 = vadd.f32 %v7301, %v7389
    %v7391 = vpop.f32.mrf.mxu0
    %v7392 = vadd.f32 %v7303, %v7391
    %7393 = vmatmul.bf16.gmra.mxu0 %v2998
    %v7394 = vpop.f32.mrf.mxu0
    %v7395 = vadd.f32 %v7306, %v7394
    %v7396 = vpop.f32.mrf.mxu0
    %v7397 = vadd.f32 %v7308, %v7396
    %7398 = vmatmul.bf16.gmra.mxu0 %v3002
    %v7399 = vpop.f32.mrf.mxu0
    %v7400 = vadd.f32 %v7311, %v7399
    %v7401 = vpop.f32.mrf.mxu0
    %v7402 = vadd.f32 %v7313, %v7401
    %7403 = vmatmul.bf16.gmra.mxu0 %v3006
    %v7404 = vpop.f32.mrf.mxu0
    %v7405 = vadd.f32 %v7316, %v7404
    %v7406 = vpop.f32.mrf.mxu0
    %v7407 = vadd.f32 %v7318, %v7406
    %7408 = vdwg.mxu0
    %v7409 = vmax.f32 %v4838, 0.0
    %v7410 = vmax.f32 %v5194, 0.0
    %v7411 = vmax.f32 %v5550, 0.0
    %v7412 = vmax.f32 %v5906, 0.0
    %v7413 = vmax.f32 %v6262, 0.0
    %v7414 = vmax.f32 %v6618, 0.0
    %v7415 = vmax.f32 %v6974, 0.0
    %v7416 = vmax.f32 %v7330, 0.0
    %v7417 = vmax.f32 %v4840, 0.0
    %v7418 = vmax.f32 %v5196, 0.0
    %v7419 = vmax.f32 %v5552, 0.0
    %v7420 = vmax.f32 %v5908, 0.0
    %v7421 = vmax.f32 %v6264, 0.0
    %v7422 = vmax.f32 %v6620, 0.0
    %v7423 = vmax.f32 %v6976, 0.0
    %v7424 = vmax.f32 %v7332, 0.0
    %v7425 = vmax.f32 %v4843, 0.0
    %v7426 = vmax.f32 %v5199, 0.0
    %v7427 = vmax.f32 %v5555, 0.0
    %v7428 = vmax.f32 %v5911, 0.0
    %v7429 = vmax.f32 %v6267, 0.0
    %v7430 = vmax.f32 %v6623, 0.0
    %v7431 = vmax.f32 %v6979, 0.0
    %v7432 = vmax.f32 %v7335, 0.0
    %v7433 = vmax.f32 %v4845, 0.0
    %v7434 = vmax.f32 %v5201, 0.0
    %v7435 = vmax.f32 %v5557, 0.0
    %v7436 = vmax.f32 %v5913, 0.0
    %v7437 = vmax.f32 %v6269, 0.0
    %v7438 = vmax.f32 %v6625, 0.0
    %v7439 = vmax.f32 %v6981, 0.0
    %v7440 = vmax.f32 %v7337, 0.0
    %v7441 = vmax.f32 %v4848, 0.0
    %v7442 = vmax.f32 %v5204, 0.0
    %v7443 = vmax.f32 %v5560, 0.0
    %v7444 = vmax.f32 %v5916, 0.0
    %v7445 = vmax.f32 %v6272, 0.0
    %v7446 = vmax.f32 %v6628, 0.0
    %v7447 = vmax.f32 %v6984, 0.0
    %v7448 = vmax.f32 %v7340, 0.0
    %v7449 = vmax.f32 %v4850, 0.0
    %v7450 = vmax.f32 %v5206, 0.0
    %v7451 = vmax.f32 %v5562, 0.0
    %v7452 = vmax.f32 %v5918, 0.0
    %v7453 = vmax.f32 %v6274, 0.0
    %v7454 = vmax.f32 %v6630, 0.0
    %v7455 = vmax.f32 %v6986, 0.0
    %v7456 = vmax.f32 %v7342, 0.0
    %v7457 = vmax.f32 %v4853, 0.0
    %v7458 = vmax.f32 %v5209, 0.0
    %v7459 = vmax.f32 %v5565, 0.0
    %v7460 = vmax.f32 %v5921, 0.0
    %v7461 = vmax.f32 %v6277, 0.0
    %v7462 = vmax.f32 %v6633, 0.0
    %v7463 = vmax.f32 %v6989, 0.0
    %v7464 = vmax.f32 %v7345, 0.0
    %v7465 = vmax.f32 %v4855, 0.0
    %v7466 = vmax.f32 %v5211, 0.0
    %v7467 = vmax.f32 %v5567, 0.0
    %v7468 = vmax.f32 %v5923, 0.0
    %v7469 = vmax.f32 %v6279, 0.0
    %v7470 = vmax.f32 %v6635, 0.0
    %v7471 = vmax.f32 %v6991, 0.0
    %v7472 = vmax.f32 %v7347, 0.0
    %v7473 = vmax.f32 %v4858, 0.0
    %v7474 = vmax.f32 %v5214, 0.0
    %v7475 = vmax.f32 %v5570, 0.0
    %v7476 = vmax.f32 %v5926, 0.0
    %v7477 = vmax.f32 %v6282, 0.0
    %v7478 = vmax.f32 %v6638, 0.0
    %v7479 = vmax.f32 %v6994, 0.0
    %v7480 = vmax.f32 %v7350, 0.0
    %v7481 = vmax.f32 %v4860, 0.0
    %v7482 = vmax.f32 %v5216, 0.0
    %v7483 = vmax.f32 %v5572, 0.0
    %v7484 = vmax.f32 %v5928, 0.0
    %v7485 = vmax.f32 %v6284, 0.0
    %v7486 = vmax.f32 %v6640, 0.0
    %v7487 = vmax.f32 %v6996, 0.0
    %v7488 = vmax.f32 %v7352, 0.0
    %v7489 = vmax.f32 %v4863, 0.0
    %v7490 = vmax.f32 %v5219, 0.0
    %v7491 = vmax.f32 %v5575, 0.0
    %v7492 = vmax.f32 %v5931, 0.0
    %v7493 = vmax.f32 %v6287, 0.0
    %v7494 = vmax.f32 %v6643, 0.0
    %v7495 = vmax.f32 %v6999, 0.0
    %v7496 = vmax.f32 %v7355, 0.0
    %v7497 = vmax.f32 %v4865, 0.0
    %v7498 = vmax.f32 %v5221, 0.0
    %v7499 = vmax.f32 %v5577, 0.0
    %v7500 = vmax.f32 %v5933, 0.0
    %v7501 = vmax.f32 %v6289, 0.0
    %v7502 = vmax.f32 %v6645, 0.0
    %v7503 = vmax.f32 %v7001, 0.0
    %v7504 = vmax.f32 %v7357, 0.0
    %v7505 = vmax.f32 %v4868, 0.0
    %v7506 = vmax.f32 %v5224, 0.0
    %v7507 = vmax.f32 %v5580, 0.0
    %v7508 = vmax.f32 %v5936, 0.0
    %v7509 = vmax.f32 %v6292, 0.0
    %v7510 = vmax.f32 %v6648, 0.0
    %v7511 = vmax.f32 %v7004, 0.0
    %v7512 = vmax.f32 %v7360, 0.0
    %v7513 = vmax.f32 %v4870, 0.0
    %v7514 = vmax.f32 %v5226, 0.0
    %v7515 = vmax.f32 %v5582, 0.0
    %v7516 = vmax.f32 %v5938, 0.0
    %v7517 = vmax.f32 %v6294, 0.0
    %v7518 = vmax.f32 %v6650, 0.0
    %v7519 = vmax.f32 %v7006, 0.0
    %v7520 = vmax.f32 %v7362, 0.0
    %v7521 = vmax.f32 %v4873, 0.0
    %v7522 = vmax.f32 %v5229, 0.0
    %v7523 = vmax.f32 %v5585, 0.0
    %v7524 = vmax.f32 %v5941, 0.0
    %v7525 = vmax.f32 %v6297, 0.0
    %v7526 = vmax.f32 %v6653, 0.0
    %v7527 = vmax.f32 %v7009, 0.0
    %v7528 = vmax.f32 %v7365, 0.0
    %v7529 = vmax.f32 %v4875, 0.0
    %v7530 = vmax.f32 %v5231, 0.0
    %v7531 = vmax.f32 %v5587, 0.0
    %v7532 = vmax.f32 %v5943, 0.0
    %v7533 = vmax.f32 %v6299, 0.0
    %v7534 = vmax.f32 %v6655, 0.0
    %v7535 = vmax.f32 %v7011, 0.0
    %v7536 = vmax.f32 %v7367, 0.0
    %v7537 = vmax.f32 %v4878, 0.0
    %v7538 = vmax.f32 %v5234, 0.0
    %v7539 = vmax.f32 %v5590, 0.0
    %v7540 = vmax.f32 %v5946, 0.0
    %v7541 = vmax.f32 %v6302, 0.0
    %v7542 = vmax.f32 %v6658, 0.0
    %v7543 = vmax.f32 %v7014, 0.0
    %v7544 = vmax.f32 %v7370, 0.0
    %v7545 = vmax.f32 %v4880, 0.0
    %v7546 = vmax.f32 %v5236, 0.0
    %v7547 = vmax.f32 %v5592, 0.0
    %v7548 = vmax.f32 %v5948, 0.0
    %v7549 = vmax.f32 %v6304, 0.0
    %v7550 = vmax.f32 %v6660, 0.0
    %v7551 = vmax.f32 %v7016, 0.0
    %v7552 = vmax.f32 %v7372, 0.0
    %v7553 = vmax.f32 %v4883, 0.0
    %v7554 = vmax.f32 %v5239, 0.0
    %v7555 = vmax.f32 %v5595, 0.0
    %v7556 = vmax.f32 %v5951, 0.0
    %v7557 = vmax.f32 %v6307, 0.0
    %v7558 = vmax.f32 %v6663, 0.0
    %v7559 = vmax.f32 %v7019, 0.0
    %v7560 = vmax.f32 %v7375, 0.0
    %v7561 = vmax.f32 %v4885, 0.0
    %v7562 = vmax.f32 %v5241, 0.0
    %v7563 = vmax.f32 %v5597, 0.0
    %v7564 = vmax.f32 %v5953, 0.0
    %v7565 = vmax.f32 %v6309, 0.0
    %v7566 = vmax.f32 %v6665, 0.0
    %v7567 = vmax.f32 %v7021, 0.0
    %v7568 = vmax.f32 %v7377, 0.0
    %v7569 = vmax.f32 %v4888, 0.0
    %v7570 = vmax.f32 %v5244, 0.0
    %v7571 = vmax.f32 %v5600, 0.0
    %v7572 = vmax.f32 %v5956, 0.0
    %v7573 = vmax.f32 %v6312, 0.0
    %v7574 = vmax.f32 %v6668, 0.0
    %v7575 = vmax.f32 %v7024, 0.0
    %v7576 = vmax.f32 %v7380, 0.0
    %v7577 = vmax.f32 %v4890, 0.0
    %v7578 = vmax.f32 %v5246, 0.0
    %v7579 = vmax.f32 %v5602, 0.0
    %v7580 = vmax.f32 %v5958, 0.0
    %v7581 = vmax.f32 %v6314, 0.0
    %v7582 = vmax.f32 %v6670, 0.0
    %v7583 = vmax.f32 %v7026, 0.0
    %v7584 = vmax.f32 %v7382, 0.0
    %v7585 = vmax.f32 %v4893, 0.0
    %v7586 = vmax.f32 %v5249, 0.0
    %v7587 = vmax.f32 %v5605, 0.0
    %v7588 = vmax.f32 %v5961, 0.0
    %v7589 = vmax.f32 %v6317, 0.0
    %v7590 = vmax.f32 %v6673, 0.0
    %v7591 = vmax.f32 %v7029, 0.0
    %v7592 = vmax.f32 %v7385, 0.0
    %v7593 = vmax.f32 %v4895, 0.0
    %v7594 = vmax.f32 %v5251, 0.0
    %v7595 = vmax.f32 %v5607, 0.0
    %v7596 = vmax.f32 %v5963, 0.0
    %v7597 = vmax.f32 %v6319, 0.0
    %v7598 = vmax.f32 %v6675, 0.0
    %v7599 = vmax.f32 %v7031, 0.0
    %v7600 = vmax.f32 %v7387, 0.0
    %v7601 = vmax.f32 %v4898, 0.0
    %v7602 = vmax.f32 %v5254, 0.0
    %v7603 = vmax.f32 %v5610, 0.0
    %v7604 = vmax.f32 %v5966, 0.0
    %v7605 = vmax.f32 %v6322, 0.0
    %v7606 = vmax.f32 %v6678, 0.0
    %v7607 = vmax.f32 %v7034, 0.0
    %v7608 = vmax.f32 %v7390, 0.0
    %v7609 = vmax.f32 %v4900, 0.0
    %v7610 = vmax.f32 %v5256, 0.0
    %v7611 = vmax.f32 %v5612, 0.0
    %v7612 = vmax.f32 %v5968, 0.0
    %v7613 = vmax.f32 %v6324, 0.0
    %v7614 = vmax.f32 %v6680, 0.0
    %v7615 = vmax.f32 %v7036, 0.0
    %v7616 = vmax.f32 %v7392, 0.0
    %v7617 = vmax.f32 %v4903, 0.0
    %v7618 = vmax.f32 %v5259, 0.0
    %v7619 = vmax.f32 %v5615, 0.0
    %v7620 = vmax.f32 %v5971, 0.0
    %v7621 = vmax.f32 %v6327, 0.0
    %v7622 = vmax.f32 %v6683, 0.0
    %v7623 = vmax.f32 %v7039, 0.0
    %v7624 = vmax.f32 %v7395, 0.0
    %v7625 = vmax.f32 %v4905, 0.0
    %v7626 = vmax.f32 %v5261, 0.0
    %v7627 = vmax.f32 %v5617, 0.0
    %v7628 = vmax.f32 %v5973, 0.0
    %v7629 = vmax.f32 %v6329, 0.0
    %v7630 = vmax.f32 %v6685, 0.0
    %v7631 = vmax.f32 %v7041, 0.0
    %v7632 = vmax.f32 %v7397, 0.0
    %v7633 = vmax.f32 %v4908, 0.0
    %v7634 = vmax.f32 %v5264, 0.0
    %v7635 = vmax.f32 %v5620, 0.0
    %v7636 = vmax.f32 %v5976, 0.0
    %v7637 = vmax.f32 %v6332, 0.0
    %v7638 = vmax.f32 %v6688, 0.0
    %v7639 = vmax.f32 %v7044, 0.0
    %v7640 = vmax.f32 %v7400, 0.0
    %v7641 = vmax.f32 %v4910, 0.0
    %v7642 = vmax.f32 %v5266, 0.0
    %v7643 = vmax.f32 %v5622, 0.0
    %v7644 = vmax.f32 %v5978, 0.0
    %v7645 = vmax.f32 %v6334, 0.0
    %v7646 = vmax.f32 %v6690, 0.0
    %v7647 = vmax.f32 %v7046, 0.0
    %v7648 = vmax.f32 %v7402, 0.0
    %v7649 = vmax.f32 %v4913, 0.0
    %v7650 = vmax.f32 %v5269, 0.0
    %v7651 = vmax.f32 %v5625, 0.0
    %v7652 = vmax.f32 %v5981, 0.0
    %v7653 = vmax.f32 %v6337, 0.0
    %v7654 = vmax.f32 %v6693, 0.0
    %v7655 = vmax.f32 %v7049, 0.0
    %v7656 = vmax.f32 %v7405, 0.0
    %v7657 = vmax.f32 %v4915, 0.0
    %v7658 = vmax.f32 %v5271, 0.0
    %v7659 = vmax.f32 %v5627, 0.0
    %v7660 = vmax.f32 %v5983, 0.0
    %v7661 = vmax.f32 %v6339, 0.0
    %v7662 = vmax.f32 %v6695, 0.0
    %v7663 = vmax.f32 %v7051, 0.0
    %v7664 = vmax.f32 %v7407, 0.0
    %v7665 = vld [vmem:[#allocation2] sm:$0x3]
    %v7666 = vpack.c.bf16 %v7417, %v7409
    %v7667 = vpack.c.bf16 %v7418, %v7410
    %v7668 = vpack.c.bf16 %v7419, %v7411
    %v7669 = vpack.c.bf16 %v7420, %v7412
    %v7670 = vpack.c.bf16 %v7421, %v7413
    %v7671 = vpack.c.bf16 %v7422, %v7414
    %v7672 = vpack.c.bf16 %v7423, %v7415
    %v7673 = vpack.c.bf16 %v7424, %v7416
    %v7674 = vpack.c.bf16 %v7433, %v7425
    %v7675 = vpack.c.bf16 %v7434, %v7426
    %v7676 = vpack.c.bf16 %v7435, %v7427
    %v7677 = vpack.c.bf16 %v7436, %v7428
    %v7678 = vpack.c.bf16 %v7437, %v7429
    %v7679 = vpack.c.bf16 %v7438, %v7430
    %v7680 = vpack.c.bf16 %v7439, %v7431
    %v7681 = vpack.c.bf16 %v7440, %v7432
    %v7682 = vpack.c.bf16 %v7449, %v7441
    %v7683 = vpack.c.bf16 %v7450, %v7442
    %v7684 = vpack.c.bf16 %v7451, %v7443
    %v7685 = vpack.c.bf16 %v7452, %v7444
    %v7686 = vpack.c.bf16 %v7453, %v7445
    %v7687 = vpack.c.bf16 %v7454, %v7446
    %v7688 = vpack.c.bf16 %v7455, %v7447
    %v7689 = vpack.c.bf16 %v7456, %v7448
    %v7690 = vpack.c.bf16 %v7465, %v7457
    %v7691 = vpack.c.bf16 %v7466, %v7458
    %v7692 = vpack.c.bf16 %v7467, %v7459
    %v7693 = vpack.c.bf16 %v7468, %v7460
    %v7694 = vpack.c.bf16 %v7469, %v7461
    %v7695 = vpack.c.bf16 %v7470, %v7462
    %v7696 = vpack.c.bf16 %v7471, %v7463
    %v7697 = vpack.c.bf16 %v7472, %v7464
    %v7698 = vpack.c.bf16 %v7481, %v7473
    %v7699 = vpack.c.bf16 %v7482, %v7474
    %v7700 = vpack.c.bf16 %v7483, %v7475
    %v7701 = vpack.c.bf16 %v7484, %v7476
    %v7702 = vpack.c.bf16 %v7485, %v7477
    %v7703 = vpack.c.bf16 %v7486, %v7478
    %v7704 = vpack.c.bf16 %v7487, %v7479
    %v7705 = vpack.c.bf16 %v7488, %v7480
    %v7706 = vpack.c.bf16 %v7497, %v7489
    %v7707 = vpack.c.bf16 %v7498, %v7490
    %v7708 = vpack.c.bf16 %v7499, %v7491
    %v7709 = vpack.c.bf16 %v7500, %v7492
    %v7710 = vpack.c.bf16 %v7501, %v7493
    %v7711 = vpack.c.bf16 %v7502, %v7494
    %v7712 = vpack.c.bf16 %v7503, %v7495
    %v7713 = vpack.c.bf16 %v7504, %v7496
    %v7714 = vpack.c.bf16 %v7513, %v7505
    %v7715 = vpack.c.bf16 %v7514, %v7506
    %v7716 = vpack.c.bf16 %v7515, %v7507
    %v7717 = vpack.c.bf16 %v7516, %v7508
    %v7718 = vpack.c.bf16 %v7517, %v7509
    %v7719 = vpack.c.bf16 %v7518, %v7510
    %v7720 = vpack.c.bf16 %v7519, %v7511
    %v7721 = vpack.c.bf16 %v7520, %v7512
    %v7722 = vpack.c.bf16 %v7529, %v7521
    %v7723 = vpack.c.bf16 %v7530, %v7522
    %v7724 = vpack.c.bf16 %v7531, %v7523
    %v7725 = vpack.c.bf16 %v7532, %v7524
    %v7726 = vpack.c.bf16 %v7533, %v7525
    %v7727 = vpack.c.bf16 %v7534, %v7526
    %v7728 = vpack.c.bf16 %v7535, %v7527
    %v7729 = vpack.c.bf16 %v7536, %v7528
    %v7730 = vpack.c.bf16 %v7545, %v7537
    %v7731 = vpack.c.bf16 %v7546, %v7538
    %v7732 = vpack.c.bf16 %v7547, %v7539
    %v7733 = vpack.c.bf16 %v7548, %v7540
    %v7734 = vpack.c.bf16 %v7549, %v7541
    %v7735 = vpack.c.bf16 %v7550, %v7542
    %v7736 = vpack.c.bf16 %v7551, %v7543
    %v7737 = vpack.c.bf16 %v7552, %v7544
    %v7738 = vpack.c.bf16 %v7561, %v7553
    %v7739 = vpack.c.bf16 %v7562, %v7554
    %v7740 = vpack.c.bf16 %v7563, %v7555
    %v7741 = vpack.c.bf16 %v7564, %v7556
    %v7742 = vpack.c.bf16 %v7565, %v7557
    %v7743 = vpack.c.bf16 %v7566, %v7558
    %v7744 = vpack.c.bf16 %v7567, %v7559
    %v7745 = vpack.c.bf16 %v7568, %v7560
    %v7746 = vpack.c.bf16 %v7577, %v7569
    %v7747 = vpack.c.bf16 %v7578, %v7570
    %v7748 = vpack.c.bf16 %v7579, %v7571
    %v7749 = vpack.c.bf16 %v7580, %v7572
    %v7750 = vpack.c.bf16 %v7581, %v7573
    %v7751 = vpack.c.bf16 %v7582, %v7574
    %v7752 = vpack.c.bf16 %v7583, %v7575
    %v7753 = vpack.c.bf16 %v7584, %v7576
    %v7754 = vpack.c.bf16 %v7593, %v7585
    %v7755 = vpack.c.bf16 %v7594, %v7586
    %v7756 = vpack.c.bf16 %v7595, %v7587
    %v7757 = vpack.c.bf16 %v7596, %v7588
    %v7758 = vpack.c.bf16 %v7597, %v7589
    %v7759 = vpack.c.bf16 %v7598, %v7590
    %v7760 = vpack.c.bf16 %v7599, %v7591
    %v7761 = vpack.c.bf16 %v7600, %v7592
    %v7762 = vpack.c.bf16 %v7609, %v7601
    %v7763 = vpack.c.bf16 %v7610, %v7602
    %v7764 = vpack.c.bf16 %v7611, %v7603
    %v7765 = vpack.c.bf16 %v7612, %v7604
    %v7766 = vpack.c.bf16 %v7613, %v7605
    %v7767 = vpack.c.bf16 %v7614, %v7606
    %v7768 = vpack.c.bf16 %v7615, %v7607
    %v7769 = vpack.c.bf16 %v7616, %v7608
    %v7770 = vpack.c.bf16 %v7625, %v7617
    %v7771 = vpack.c.bf16 %v7626, %v7618
    %v7772 = vpack.c.bf16 %v7627, %v7619
    %v7773 = vpack.c.bf16 %v7628, %v7620
    %v7774 = vpack.c.bf16 %v7629, %v7621
    %v7775 = vpack.c.bf16 %v7630, %v7622
    %v7776 = vpack.c.bf16 %v7631, %v7623
    %v7777 = vpack.c.bf16 %v7632, %v7624
    %v7778 = vpack.c.bf16 %v7641, %v7633
    %v7779 = vpack.c.bf16 %v7642, %v7634
    %v7780 = vpack.c.bf16 %v7643, %v7635
    %v7781 = vpack.c.bf16 %v7644, %v7636
    %v7782 = vpack.c.bf16 %v7645, %v7637
    %v7783 = vpack.c.bf16 %v7646, %v7638
    %v7784 = vpack.c.bf16 %v7647, %v7639
    %v7785 = vpack.c.bf16 %v7648, %v7640
    %v7786 = vpack.c.bf16 %v7657, %v7649
    %v7787 = vpack.c.bf16 %v7658, %v7650
    %v7788 = vpack.c.bf16 %v7659, %v7651
    %v7789 = vpack.c.bf16 %v7660, %v7652
    %v7790 = vpack.c.bf16 %v7661, %v7653
    %v7791 = vpack.c.bf16 %v7662, %v7654
    %v7792 = vpack.c.bf16 %v7663, %v7655
    %v7793 = vpack.c.bf16 %v7664, %v7656
    %7795 = vst [vmem:[#allocation1] ss:$9 sm:$0xff] %v7665
    %v7796 = vld [vmem:[#allocation1] sm:$0xff]
    %v7797 = vld [vmem:[#allocation1 + $0x9] sm:$0xff]
    %7800 = vmatpush.bf16.msra.mxu0 %v7722
    %7801 = vmatpush.bf16.msra.mxu0 %v7714
    %7802 = vmatpush.bf16.msra.mxu0 %v7706
    %7803 = vmatpush.bf16.msra.mxu0 %v7698
    %7804 = vmatpush.bf16.msra.mxu0 %v7690
    %7805 = vmatpush.bf16.msra.mxu0 %v7682
    %7806 = vmatpush.bf16.msra.mxu0 %v7674
    %7807 = vmatpush.bf16.msra.mxu0 %v7666
    %7808 = vmatmul.bf16.gmra.mxu0 %v7796
    %v7809 = vpop.f32.mrf.mxu0
    %v7810 = vadd.f32 0.0, %v7809
    %v7811 = vpop.f32.mrf.mxu0
    %7812 = vdwg.mxu0
    %7813 = vmatpush.bf16.msra.mxu0 %v7786
    %7814 = vmatpush.bf16.msra.mxu0 %v7778
    %7815 = vmatpush.bf16.msra.mxu0 %v7770
    %7816 = vmatpush.bf16.msra.mxu0 %v7762
    %7817 = vmatpush.bf16.msra.mxu0 %v7754
    %7818 = vmatpush.bf16.msra.mxu0 %v7746
    %7819 = vmatpush.bf16.msra.mxu0 %v7738
    %7820 = vmatpush.bf16.msra.mxu0 %v7730
    %7821 = vmatmul.bf16.gmra.mxu0 %v7797
    %v7822 = vpop.f32.mrf.mxu0
    %v7823 = vadd.f32 %v7810, %v7822
    %v7824 = vpop.f32.mrf.mxu0
    %7825 = vdwg.mxu0
    %7826 = vmatpush.bf16.msra.mxu0 %v7723
    %7827 = vmatpush.bf16.msra.mxu0 %v7715
    %7828 = vmatpush.bf16.msra.mxu0 %v7707
    %7829 = vmatpush.bf16.msra.mxu0 %v7699
    %7830 = vmatpush.bf16.msra.mxu0 %v7691
    %7831 = vmatpush.bf16.msra.mxu0 %v7683
    %7832 = vmatpush.bf16.msra.mxu0 %v7675
    %7833 = vmatpush.bf16.msra.mxu0 %v7667
    %7834 = vmatmul.bf16.gmra.mxu0 %v7796
    %v7835 = vpop.f32.mrf.mxu0
    %v7836 = vadd.f32 0.0, %v7835
    %v7837 = vpop.f32.mrf.mxu0
    %7838 = vdwg.mxu0
    %7839 = vmatpush.bf16.msra.mxu0 %v7787
    %7840 = vmatpush.bf16.msra.mxu0 %v7779
    %7841 = vmatpush.bf16.msra.mxu0 %v7771
    %7842 = vmatpush.bf16.msra.mxu0 %v7763
    %7843 = vmatpush.bf16.msra.mxu0 %v7755
    %7844 = vmatpush.bf16.msra.mxu0 %v7747
    %7845 = vmatpush.bf16.msra.mxu0 %v7739
    %7846 = vmatpush.bf16.msra.mxu0 %v7731
    %7847 = vmatmul.bf16.gmra.mxu0 %v7797
    %v7848 = vpop.f32.mrf.mxu0
    %v7849 = vadd.f32 %v7836, %v7848
    %v7850 = vpop.f32.mrf.mxu0
    %7851 = vdwg.mxu0
    %7852 = vmatpush.bf16.msra.mxu0 %v7724
    %7853 = vmatpush.bf16.msra.mxu0 %v7716
    %7854 = vmatpush.bf16.msra.mxu0 %v7708
    %7855 = vmatpush.bf16.msra.mxu0 %v7700
    %7856 = vmatpush.bf16.msra.mxu0 %v7692
    %7857 = vmatpush.bf16.msra.mxu0 %v7684
    %7858 = vmatpush.bf16.msra.mxu0 %v7676
    %7859 = vmatpush.bf16.msra.mxu0 %v7668
    %7860 = vmatmul.bf16.gmra.mxu0 %v7796
    %v7861 = vpop.f32.mrf.mxu0
    %v7862 = vadd.f32 0.0, %v7861
    %v7863 = vpop.f32.mrf.mxu0
    %7864 = vdwg.mxu0
    %7865 = vmatpush.bf16.msra.mxu0 %v7788
    %7866 = vmatpush.bf16.msra.mxu0 %v7780
    %7867 = vmatpush.bf16.msra.mxu0 %v7772
    %7868 = vmatpush.bf16.msra.mxu0 %v7764
    %7869 = vmatpush.bf16.msra.mxu0 %v7756
    %7870 = vmatpush.bf16.msra.mxu0 %v7748
    %7871 = vmatpush.bf16.msra.mxu0 %v7740
    %7872 = vmatpush.bf16.msra.mxu0 %v7732
    %7873 = vmatmul.bf16.gmra.mxu0 %v7797
    %v7874 = vpop.f32.mrf.mxu0
    %v7875 = vadd.f32 %v7862, %v7874
    %v7876 = vpop.f32.mrf.mxu0
    %7877 = vdwg.mxu0
    %7878 = vmatpush.bf16.msra.mxu0 %v7725
    %7879 = vmatpush.bf16.msra.mxu0 %v7717
    %7880 = vmatpush.bf16.msra.mxu0 %v7709
    %7881 = vmatpush.bf16.msra.mxu0 %v7701
    %7882 = vmatpush.bf16.msra.mxu0 %v7693
    %7883 = vmatpush.bf16.msra.mxu0 %v7685
    %7884 = vmatpush.bf16.msra.mxu0 %v7677
    %7885 = vmatpush.bf16.msra.mxu0 %v7669
    %7886 = vmatmul.bf16.gmra.mxu0 %v7796
    %v7887 = vpop.f32.mrf.mxu0
    %v7888 = vadd.f32 0.0, %v7887
    %v7889 = vpop.f32.mrf.mxu0
    %7890 = vdwg.mxu0
    %7891 = vmatpush.bf16.msra.mxu0 %v7789
    %7892 = vmatpush.bf16.msra.mxu0 %v7781
    %7893 = vmatpush.bf16.msra.mxu0 %v7773
    %7894 = vmatpush.bf16.msra.mxu0 %v7765
    %7895 = vmatpush.bf16.msra.mxu0 %v7757
    %7896 = vmatpush.bf16.msra.mxu0 %v7749
    %7897 = vmatpush.bf16.msra.mxu0 %v7741
    %7898 = vmatpush.bf16.msra.mxu0 %v7733
    %7899 = vmatmul.bf16.gmra.mxu0 %v7797
    %v7900 = vpop.f32.mrf.mxu0
    %v7901 = vadd.f32 %v7888, %v7900
    %v7902 = vpop.f32.mrf.mxu0
    %7903 = vdwg.mxu0
    %7904 = vmatpush.bf16.msra.mxu0 %v7726
    %7905 = vmatpush.bf16.msra.mxu0 %v7718
    %7906 = vmatpush.bf16.msra.mxu0 %v7710
    %7907 = vmatpush.bf16.msra.mxu0 %v7702
    %7908 = vmatpush.bf16.msra.mxu0 %v7694
    %7909 = vmatpush.bf16.msra.mxu0 %v7686
    %7910 = vmatpush.bf16.msra.mxu0 %v7678
    %7911 = vmatpush.bf16.msra.mxu0 %v7670
    %7912 = vmatmul.bf16.gmra.mxu0 %v7796
    %v7913 = vpop.f32.mrf.mxu0
    %v7914 = vadd.f32 0.0, %v7913
    %v7915 = vpop.f32.mrf.mxu0
    %7916 = vdwg.mxu0
    %7917 = vmatpush.bf16.msra.mxu0 %v7790
    %7918 = vmatpush.bf16.msra.mxu0 %v7782
    %7919 = vmatpush.bf16.msra.mxu0 %v7774
    %7920 = vmatpush.bf16.msra.mxu0 %v7766
    %7921 = vmatpush.bf16.msra.mxu0 %v7758
    %7922 = vmatpush.bf16.msra.mxu0 %v7750
    %7923 = vmatpush.bf16.msra.mxu0 %v7742
    %7924 = vmatpush.bf16.msra.mxu0 %v7734
    %7925 = vmatmul.bf16.gmra.mxu0 %v7797
    %v7926 = vpop.f32.mrf.mxu0
    %v7927 = vadd.f32 %v7914, %v7926
    %v7928 = vpop.f32.mrf.mxu0
    %7929 = vdwg.mxu0
    %7930 = vmatpush.bf16.msra.mxu0 %v7727
    %7931 = vmatpush.bf16.msra.mxu0 %v7719
    %7932 = vmatpush.bf16.msra.mxu0 %v7711
    %7933 = vmatpush.bf16.msra.mxu0 %v7703
    %7934 = vmatpush.bf16.msra.mxu0 %v7695
    %7935 = vmatpush.bf16.msra.mxu0 %v7687
    %7936 = vmatpush.bf16.msra.mxu0 %v7679
    %7937 = vmatpush.bf16.msra.mxu0 %v7671
    %7938 = vmatmul.bf16.gmra.mxu0 %v7796
    %v7939 = vpop.f32.mrf.mxu0
    %v7940 = vadd.f32 0.0, %v7939
    %v7941 = vpop.f32.mrf.mxu0
    %7942 = vdwg.mxu0
    %7943 = vmatpush.bf16.msra.mxu0 %v7791
    %7944 = vmatpush.bf16.msra.mxu0 %v7783
    %7945 = vmatpush.bf16.msra.mxu0 %v7775
    %7946 = vmatpush.bf16.msra.mxu0 %v7767
    %7947 = vmatpush.bf16.msra.mxu0 %v7759
    %7948 = vmatpush.bf16.msra.mxu0 %v7751
    %7949 = vmatpush.bf16.msra.mxu0 %v7743
    %7950 = vmatpush.bf16.msra.mxu0 %v7735
    %7951 = vmatmul.bf16.gmra.mxu0 %v7797
    %v7952 = vpop.f32.mrf.mxu0
    %v7953 = vadd.f32 %v7940, %v7952
    %v7954 = vpop.f32.mrf.mxu0
    %7955 = vdwg.mxu0
    %7956 = vmatpush.bf16.msra.mxu0 %v7728
    %7957 = vmatpush.bf16.msra.mxu0 %v7720
    %7958 = vmatpush.bf16.msra.mxu0 %v7712
    %7959 = vmatpush.bf16.msra.mxu0 %v7704
    %7960 = vmatpush.bf16.msra.mxu0 %v7696
    %7961 = vmatpush.bf16.msra.mxu0 %v7688
    %7962 = vmatpush.bf16.msra.mxu0 %v7680
    %7963 = vmatpush.bf16.msra.mxu0 %v7672
    %7964 = vmatmul.bf16.gmra.mxu0 %v7796
    %v7965 = vpop.f32.mrf.mxu0
    %v7966 = vadd.f32 0.0, %v7965
    %v7967 = vpop.f32.mrf.mxu0
    %7968 = vdwg.mxu0
    %7969 = vmatpush.bf16.msra.mxu0 %v7792
    %7970 = vmatpush.bf16.msra.mxu0 %v7784
    %7971 = vmatpush.bf16.msra.mxu0 %v7776
    %7972 = vmatpush.bf16.msra.mxu0 %v7768
    %7973 = vmatpush.bf16.msra.mxu0 %v7760
    %7974 = vmatpush.bf16.msra.mxu0 %v7752
    %7975 = vmatpush.bf16.msra.mxu0 %v7744
    %7976 = vmatpush.bf16.msra.mxu0 %v7736
    %7977 = vmatmul.bf16.gmra.mxu0 %v7797
    %v7978 = vpop.f32.mrf.mxu0
    %v7979 = vadd.f32 %v7966, %v7978
    %v7980 = vpop.f32.mrf.mxu0
    %7981 = vdwg.mxu0
    %7982 = vmatpush.bf16.msra.mxu0 %v7729
    %7983 = vmatpush.bf16.msra.mxu0 %v7721
    %7984 = vmatpush.bf16.msra.mxu0 %v7713
    %7985 = vmatpush.bf16.msra.mxu0 %v7705
    %7986 = vmatpush.bf16.msra.mxu0 %v7697
    %7987 = vmatpush.bf16.msra.mxu0 %v7689
    %7988 = vmatpush.bf16.msra.mxu0 %v7681
    %7989 = vmatpush.bf16.msra.mxu0 %v7673
    %7990 = vmatmul.bf16.gmra.mxu0 %v7796
    %v7991 = vpop.f32.mrf.mxu0
    %v7992 = vadd.f32 0.0, %v7991
    %v7993 = vpop.f32.mrf.mxu0
    %7994 = vdwg.mxu0
    %7995 = vmatpush.bf16.msra.mxu0 %v7793
    %7996 = vmatpush.bf16.msra.mxu0 %v7785
    %7997 = vmatpush.bf16.msra.mxu0 %v7777
    %7998 = vmatpush.bf16.msra.mxu0 %v7769
    %7999 = vmatpush.bf16.msra.mxu0 %v7761
    %8000 = vmatpush.bf16.msra.mxu0 %v7753
    %8001 = vmatpush.bf16.msra.mxu0 %v7745
    %8002 = vmatpush.bf16.msra.mxu0 %v7737
    %8003 = vmatmul.bf16.gmra.mxu0 %v7797
    %v8004 = vpop.f32.mrf.mxu0
    %v8005 = vadd.f32 %v7992, %v8004
    %v8006 = vpop.f32.mrf.mxu0
    %8007 = vdwg.mxu0
    %v8008 = vpack.c.bf16 %v7823, %v7823
    %v8009 = vpack.c.bf16 %v7849, %v7849
    %v8010 = vpack.c.bf16 %v7875, %v7875
    %v8011 = vpack.c.bf16 %v7901, %v7901
    %v8012 = vpack.c.bf16 %v7927, %v7927
    %v8013 = vpack.c.bf16 %v7953, %v7953
    %v8014 = vpack.c.bf16 %v7979, %v7979
    %v8015 = vpack.c.bf16 %v8005, %v8005
    %v8016 = vld [vmem:[#allocation18] sm:$0xff]
    %v8017 = vld [vmem:[#allocation18 + $0x8] sm:$0xff]
    %v8018 = vld [vmem:[#allocation18 + $0x10] sm:$0xff]
    %v8019 = vld [vmem:[#allocation18 + $0x18] sm:$0xff]
    %v8020 = vld [vmem:[#allocation18 + $0x20] sm:$0xff]
    %v8021 = vld [vmem:[#allocation18 + $0x28] sm:$0xff]
    %v8022 = vld [vmem:[#allocation18 + $0x30] sm:$0xff]
    %v8023 = vld [vmem:[#allocation18 + $0x38] sm:$0xff]
    %v8024 = vld [vmem:[#allocation18 + $0x40] sm:$0xff]
    %v8025 = vld [vmem:[#allocation18 + $0x48] sm:$0xff]
    %v8026 = vld [vmem:[#allocation18 + $0x50] sm:$0xff]
    %v8027 = vld [vmem:[#allocation18 + $0x58] sm:$0xff]
    %v8028 = vld [vmem:[#allocation18 + $0x60] sm:$0xff]
    %v8029 = vld [vmem:[#allocation18 + $0x68] sm:$0xff]
    %v8030 = vld [vmem:[#allocation18 + $0x70] sm:$0xff]
    %v8031 = vld [vmem:[#allocation18 + $0x78] sm:$0xff]
    %v8032 = vld [vmem:[#allocation18 + $0x80] sm:$0xff]
    %v8033 = vld [vmem:[#allocation18 + $0x88] sm:$0xff]
    %v8034 = vld [vmem:[#allocation18 + $0x90] sm:$0xff]
    %v8035 = vld [vmem:[#allocation18 + $0x98] sm:$0xff]
    %v8036 = vld [vmem:[#allocation18 + $0xa0] sm:$0xff]
    %v8037 = vld [vmem:[#allocation18 + $0xa8] sm:$0xff]
    %v8038 = vld [vmem:[#allocation18 + $0xb0] sm:$0xff]
    %v8039 = vld [vmem:[#allocation18 + $0xb8] sm:$0xff]
    %v8040 = vld [vmem:[#allocation18 + $0xc0] sm:$0xff]
    %v8041 = vld [vmem:[#allocation18 + $0xc8] sm:$0xff]
    %v8042 = vld [vmem:[#allocation18 + $0xd0] sm:$0xff]
    %v8043 = vld [vmem:[#allocation18 + $0xd8] sm:$0xff]
    %v8044 = vld [vmem:[#allocation18 + $0xe0] sm:$0xff]
    %v8045 = vld [vmem:[#allocation18 + $0xe8] sm:$0xff]
    %v8046 = vld [vmem:[#allocation18 + $0xf0] sm:$0xff]
    %v8047 = vld [vmem:[#allocation18 + $0xf8] sm:$0xff]
    %v8048 = vld [vmem:[#allocation18 + $0x100] sm:$0xff]
    %v8049 = vld [vmem:[#allocation18 + $0x108] sm:$0xff]
    %v8050 = vld [vmem:[#allocation18 + $0x110] sm:$0xff]
    %v8051 = vld [vmem:[#allocation18 + $0x118] sm:$0xff]
    %v8052 = vld [vmem:[#allocation18 + $0x120] sm:$0xff]
    %v8053 = vld [vmem:[#allocation18 + $0x128] sm:$0xff]
    %v8054 = vld [vmem:[#allocation18 + $0x130] sm:$0xff]
    %v8055 = vld [vmem:[#allocation18 + $0x138] sm:$0xff]
    %v8056 = vld [vmem:[#allocation18 + $0x140] sm:$0xff]
    %v8057 = vld [vmem:[#allocation18 + $0x148] sm:$0xff]
    %v8058 = vld [vmem:[#allocation18 + $0x150] sm:$0xff]
    %v8059 = vld [vmem:[#allocation18 + $0x158] sm:$0xff]
    %v8060 = vld [vmem:[#allocation18 + $0x160] sm:$0xff]
    %v8061 = vld [vmem:[#allocation18 + $0x168] sm:$0xff]
    %v8062 = vld [vmem:[#allocation18 + $0x170] sm:$0xff]
    %v8063 = vld [vmem:[#allocation18 + $0x178] sm:$0xff]
    %v8064 = vld [vmem:[#allocation18 + $0x180] sm:$0xff]
    %v8065 = vld [vmem:[#allocation18 + $0x188] sm:$0xff]
    %v8066 = vld [vmem:[#allocation18 + $0x190] sm:$0xff]
    %v8067 = vld [vmem:[#allocation18 + $0x198] sm:$0xff]
    %v8068 = vld [vmem:[#allocation18 + $0x1a0] sm:$0xff]
    %v8069 = vld [vmem:[#allocation18 + $0x1a8] sm:$0xff]
    %v8070 = vld [vmem:[#allocation18 + $0x1b0] sm:$0xff]
    %v8071 = vld [vmem:[#allocation18 + $0x1b8] sm:$0xff]
    %v8072 = vld [vmem:[#allocation18 + $0x1c0] sm:$0xff]
    %v8073 = vld [vmem:[#allocation18 + $0x1c8] sm:$0xff]
    %v8074 = vld [vmem:[#allocation18 + $0x1d0] sm:$0xff]
    %v8075 = vld [vmem:[#allocation18 + $0x1d8] sm:$0xff]
    %v8076 = vld [vmem:[#allocation18 + $0x1e0] sm:$0xff]
    %v8077 = vld [vmem:[#allocation18 + $0x1e8] sm:$0xff]
    %v8078 = vld [vmem:[#allocation18 + $0x1f0] sm:$0xff]
    %v8079 = vld [vmem:[#allocation18 + $0x1f8] sm:$0xff]
    %v8080 = vld [vmem:[#allocation18 + $0x200] sm:$0xff]
    %v8081 = vld [vmem:[#allocation18 + $0x208] sm:$0xff]
    %v8082 = vld [vmem:[#allocation18 + $0x210] sm:$0xff]
    %v8083 = vld [vmem:[#allocation18 + $0x218] sm:$0xff]
    %v8084 = vld [vmem:[#allocation18 + $0x220] sm:$0xff]
    %v8085 = vld [vmem:[#allocation18 + $0x228] sm:$0xff]
    %v8086 = vld [vmem:[#allocation18 + $0x230] sm:$0xff]
    %v8087 = vld [vmem:[#allocation18 + $0x238] sm:$0xff]
    %v8088 = vld [vmem:[#allocation18 + $0x240] sm:$0xff]
    %v8089 = vld [vmem:[#allocation18 + $0x248] sm:$0xff]
    %v8090 = vld [vmem:[#allocation18 + $0x250] sm:$0xff]
    %v8091 = vld [vmem:[#allocation18 + $0x258] sm:$0xff]
    %v8092 = vld [vmem:[#allocation18 + $0x260] sm:$0xff]
    %v8093 = vld [vmem:[#allocation18 + $0x268] sm:$0xff]
    %v8094 = vld [vmem:[#allocation18 + $0x270] sm:$0xff]
    %v8095 = vld [vmem:[#allocation18 + $0x278] sm:$0xff]
    %v8096 = vld [vmem:[#allocation18 + $0x280] sm:$0xff]
    %v8097 = vld [vmem:[#allocation18 + $0x288] sm:$0xff]
    %v8098 = vld [vmem:[#allocation18 + $0x290] sm:$0xff]
    %v8099 = vld [vmem:[#allocation18 + $0x298] sm:$0xff]
    %v8100 = vld [vmem:[#allocation18 + $0x2a0] sm:$0xff]
    %v8101 = vld [vmem:[#allocation18 + $0x2a8] sm:$0xff]
    %v8102 = vld [vmem:[#allocation18 + $0x2b0] sm:$0xff]
    %v8103 = vld [vmem:[#allocation18 + $0x2b8] sm:$0xff]
    %v8104 = vld [vmem:[#allocation18 + $0x2c0] sm:$0xff]
    %v8105 = vld [vmem:[#allocation18 + $0x2c8] sm:$0xff]
    %v8106 = vld [vmem:[#allocation18 + $0x2d0] sm:$0xff]
    %v8107 = vld [vmem:[#allocation18 + $0x2d8] sm:$0xff]
    %v8108 = vld [vmem:[#allocation18 + $0x2e0] sm:$0xff]
    %v8109 = vld [vmem:[#allocation18 + $0x2e8] sm:$0xff]
    %v8110 = vld [vmem:[#allocation18 + $0x2f0] sm:$0xff]
    %v8111 = vld [vmem:[#allocation18 + $0x2f8] sm:$0xff]
    %v8112 = vld [vmem:[#allocation18 + $0x300] sm:$0xff]
    %v8113 = vld [vmem:[#allocation18 + $0x308] sm:$0xff]
    %v8114 = vld [vmem:[#allocation18 + $0x310] sm:$0xff]
    %v8115 = vld [vmem:[#allocation18 + $0x318] sm:$0xff]
    %v8116 = vld [vmem:[#allocation18 + $0x320] sm:$0xff]
    %v8117 = vld [vmem:[#allocation18 + $0x328] sm:$0xff]
    %v8118 = vld [vmem:[#allocation18 + $0x330] sm:$0xff]
    %v8119 = vld [vmem:[#allocation18 + $0x338] sm:$0xff]
    %v8120 = vld [vmem:[#allocation18 + $0x340] sm:$0xff]
    %v8121 = vld [vmem:[#allocation18 + $0x348] sm:$0xff]
    %v8122 = vld [vmem:[#allocation18 + $0x350] sm:$0xff]
    %v8123 = vld [vmem:[#allocation18 + $0x358] sm:$0xff]
    %v8124 = vld [vmem:[#allocation18 + $0x360] sm:$0xff]
    %v8125 = vld [vmem:[#allocation18 + $0x368] sm:$0xff]
    %v8126 = vld [vmem:[#allocation18 + $0x370] sm:$0xff]
    %v8127 = vld [vmem:[#allocation18 + $0x378] sm:$0xff]
    %v8128 = vld [vmem:[#allocation18 + $0x380] sm:$0xff]
    %v8129 = vld [vmem:[#allocation18 + $0x388] sm:$0xff]
    %v8130 = vld [vmem:[#allocation18 + $0x390] sm:$0xff]
    %v8131 = vld [vmem:[#allocation18 + $0x398] sm:$0xff]
    %v8132 = vld [vmem:[#allocation18 + $0x3a0] sm:$0xff]
    %v8133 = vld [vmem:[#allocation18 + $0x3a8] sm:$0xff]
    %v8134 = vld [vmem:[#allocation18 + $0x3b0] sm:$0xff]
    %v8135 = vld [vmem:[#allocation18 + $0x3b8] sm:$0xff]
    %v8136 = vld [vmem:[#allocation18 + $0x3c0] sm:$0xff]
    %v8137 = vld [vmem:[#allocation18 + $0x3c8] sm:$0xff]
    %v8138 = vld [vmem:[#allocation18 + $0x3d0] sm:$0xff]
    %v8139 = vld [vmem:[#allocation18 + $0x3d8] sm:$0xff]
    %v8140 = vld [vmem:[#allocation18 + $0x3e0] sm:$0xff]
    %v8141 = vld [vmem:[#allocation18 + $0x3e8] sm:$0xff]
    %v8142 = vld [vmem:[#allocation18 + $0x3f0] sm:$0xff]
    %v8143 = vld [vmem:[#allocation18 + $0x3f8] sm:$0xff]
    %v8144 = vld [vmem:[#allocation18 + $0x400] sm:$0xff]
    %v8145 = vld [vmem:[#allocation18 + $0x408] sm:$0xff]
    %v8146 = vld [vmem:[#allocation18 + $0x410] sm:$0xff]
    %v8147 = vld [vmem:[#allocation18 + $0x418] sm:$0xff]
    %v8148 = vld [vmem:[#allocation18 + $0x420] sm:$0xff]
    %v8149 = vld [vmem:[#allocation18 + $0x428] sm:$0xff]
    %v8150 = vld [vmem:[#allocation18 + $0x430] sm:$0xff]
    %v8151 = vld [vmem:[#allocation18 + $0x438] sm:$0xff]
    %v8152 = vld [vmem:[#allocation18 + $0x440] sm:$0xff]
    %v8153 = vld [vmem:[#allocation18 + $0x448] sm:$0xff]
    %v8154 = vld [vmem:[#allocation18 + $0x450] sm:$0xff]
    %v8155 = vld [vmem:[#allocation18 + $0x458] sm:$0xff]
    %v8156 = vld [vmem:[#allocation18 + $0x460] sm:$0xff]
    %v8157 = vld [vmem:[#allocation18 + $0x468] sm:$0xff]
    %v8158 = vld [vmem:[#allocation18 + $0x470] sm:$0xff]
    %v8159 = vld [vmem:[#allocation18 + $0x478] sm:$0xff]
    %v8160 = vld [vmem:[#allocation18 + $0x480] sm:$0xff]
    %v8161 = vld [vmem:[#allocation18 + $0x488] sm:$0xff]
    %v8162 = vld [vmem:[#allocation18 + $0x490] sm:$0xff]
    %v8163 = vld [vmem:[#allocation18 + $0x498] sm:$0xff]
    %v8164 = vld [vmem:[#allocation18 + $0x4a0] sm:$0xff]
    %v8165 = vld [vmem:[#allocation18 + $0x4a8] sm:$0xff]
    %v8166 = vld [vmem:[#allocation18 + $0x4b0] sm:$0xff]
    %v8167 = vld [vmem:[#allocation18 + $0x4b8] sm:$0xff]
    %v8168 = vld [vmem:[#allocation18 + $0x4c0] sm:$0xff]
    %v8169 = vld [vmem:[#allocation18 + $0x4c8] sm:$0xff]
    %v8170 = vld [vmem:[#allocation18 + $0x4d0] sm:$0xff]
    %v8171 = vld [vmem:[#allocation18 + $0x4d8] sm:$0xff]
    %v8172 = vld [vmem:[#allocation18 + $0x4e0] sm:$0xff]
    %v8173 = vld [vmem:[#allocation18 + $0x4e8] sm:$0xff]
    %v8174 = vld [vmem:[#allocation18 + $0x4f0] sm:$0xff]
    %v8175 = vld [vmem:[#allocation18 + $0x4f8] sm:$0xff]
    %v8176 = vld [vmem:[#allocation18 + $0x500] sm:$0xff]
    %v8177 = vld [vmem:[#allocation18 + $0x508] sm:$0xff]
    %v8178 = vld [vmem:[#allocation18 + $0x510] sm:$0xff]
    %v8179 = vld [vmem:[#allocation18 + $0x518] sm:$0xff]
    %v8180 = vld [vmem:[#allocation18 + $0x520] sm:$0xff]
    %v8181 = vld [vmem:[#allocation18 + $0x528] sm:$0xff]
    %v8182 = vld [vmem:[#allocation18 + $0x530] sm:$0xff]
    %v8183 = vld [vmem:[#allocation18 + $0x538] sm:$0xff]
    %v8184 = vld [vmem:[#allocation18 + $0x540] sm:$0xff]
    %v8185 = vld [vmem:[#allocation18 + $0x548] sm:$0xff]
    %v8186 = vld [vmem:[#allocation18 + $0x550] sm:$0xff]
    %v8187 = vld [vmem:[#allocation18 + $0x558] sm:$0xff]
    %v8188 = vld [vmem:[#allocation18 + $0x560] sm:$0xff]
    %v8189 = vld [vmem:[#allocation18 + $0x568] sm:$0xff]
    %v8190 = vld [vmem:[#allocation18 + $0x570] sm:$0xff]
    %v8191 = vld [vmem:[#allocation18 + $0x578] sm:$0xff]
    %v8192 = vld [vmem:[#allocation18 + $0x580] sm:$0xff]
    %v8193 = vld [vmem:[#allocation18 + $0x588] sm:$0xff]
    %v8194 = vld [vmem:[#allocation18 + $0x590] sm:$0xff]
    %v8195 = vld [vmem:[#allocation18 + $0x598] sm:$0xff]
    %v8196 = vld [vmem:[#allocation18 + $0x5a0] sm:$0xff]
    %v8197 = vld [vmem:[#allocation18 + $0x5a8] sm:$0xff]
    %v8198 = vld [vmem:[#allocation18 + $0x5b0] sm:$0xff]
    %v8199 = vld [vmem:[#allocation18 + $0x5b8] sm:$0xff]
    %v8200 = vld [vmem:[#allocation18 + $0x5c0] sm:$0xff]
    %v8201 = vld [vmem:[#allocation18 + $0x5c8] sm:$0xff]
    %v8202 = vld [vmem:[#allocation18 + $0x5d0] sm:$0xff]
    %v8203 = vld [vmem:[#allocation18 + $0x5d8] sm:$0xff]
    %v8204 = vld [vmem:[#allocation18 + $0x5e0] sm:$0xff]
    %v8205 = vld [vmem:[#allocation18 + $0x5e8] sm:$0xff]
    %v8206 = vld [vmem:[#allocation18 + $0x5f0] sm:$0xff]
    %v8207 = vld [vmem:[#allocation18 + $0x5f8] sm:$0xff]
    %v8208 = vld [vmem:[#allocation18 + $0x600] sm:$0xff]
    %v8209 = vld [vmem:[#allocation18 + $0x608] sm:$0xff]
    %v8210 = vld [vmem:[#allocation18 + $0x610] sm:$0xff]
    %v8211 = vld [vmem:[#allocation18 + $0x618] sm:$0xff]
    %v8212 = vld [vmem:[#allocation18 + $0x620] sm:$0xff]
    %v8213 = vld [vmem:[#allocation18 + $0x628] sm:$0xff]
    %v8214 = vld [vmem:[#allocation18 + $0x630] sm:$0xff]
    %v8215 = vld [vmem:[#allocation18 + $0x638] sm:$0xff]
    %v8216 = vld [vmem:[#allocation18 + $0x640] sm:$0xff]
    %v8217 = vld [vmem:[#allocation18 + $0x648] sm:$0xff]
    %v8218 = vld [vmem:[#allocation18 + $0x650] sm:$0xff]
    %v8219 = vld [vmem:[#allocation18 + $0x658] sm:$0xff]
    %v8220 = vld [vmem:[#allocation18 + $0x660] sm:$0xff]
    %v8221 = vld [vmem:[#allocation18 + $0x668] sm:$0xff]
    %v8222 = vld [vmem:[#allocation18 + $0x670] sm:$0xff]
    %v8223 = vld [vmem:[#allocation18 + $0x678] sm:$0xff]
    %v8224 = vld [vmem:[#allocation18 + $0x680] sm:$0xff]
    %v8225 = vld [vmem:[#allocation18 + $0x688] sm:$0xff]
    %v8226 = vld [vmem:[#allocation18 + $0x690] sm:$0xff]
    %v8227 = vld [vmem:[#allocation18 + $0x698] sm:$0xff]
    %v8228 = vld [vmem:[#allocation18 + $0x6a0] sm:$0xff]
    %v8229 = vld [vmem:[#allocation18 + $0x6a8] sm:$0xff]
    %v8230 = vld [vmem:[#allocation18 + $0x6b0] sm:$0xff]
    %v8231 = vld [vmem:[#allocation18 + $0x6b8] sm:$0xff]
    %v8232 = vld [vmem:[#allocation18 + $0x6c0] sm:$0xff]
    %v8233 = vld [vmem:[#allocation18 + $0x6c8] sm:$0xff]
    %v8234 = vld [vmem:[#allocation18 + $0x6d0] sm:$0xff]
    %v8235 = vld [vmem:[#allocation18 + $0x6d8] sm:$0xff]
    %v8236 = vld [vmem:[#allocation18 + $0x6e0] sm:$0xff]
    %v8237 = vld [vmem:[#allocation18 + $0x6e8] sm:$0xff]
    %v8238 = vld [vmem:[#allocation18 + $0x6f0] sm:$0xff]
    %v8239 = vld [vmem:[#allocation18 + $0x6f8] sm:$0xff]
    %v8240 = vld [vmem:[#allocation18 + $0x700] sm:$0xff]
    %v8241 = vld [vmem:[#allocation18 + $0x708] sm:$0xff]
    %v8242 = vld [vmem:[#allocation18 + $0x710] sm:$0xff]
    %v8243 = vld [vmem:[#allocation18 + $0x718] sm:$0xff]
    %v8244 = vld [vmem:[#allocation18 + $0x720] sm:$0xff]
    %v8245 = vld [vmem:[#allocation18 + $0x728] sm:$0xff]
    %v8246 = vld [vmem:[#allocation18 + $0x730] sm:$0xff]
    %v8247 = vld [vmem:[#allocation18 + $0x738] sm:$0xff]
    %v8248 = vld [vmem:[#allocation18 + $0x740] sm:$0xff]
    %v8249 = vld [vmem:[#allocation18 + $0x748] sm:$0xff]
    %v8250 = vld [vmem:[#allocation18 + $0x750] sm:$0xff]
    %v8251 = vld [vmem:[#allocation18 + $0x758] sm:$0xff]
    %v8252 = vld [vmem:[#allocation18 + $0x760] sm:$0xff]
    %v8253 = vld [vmem:[#allocation18 + $0x768] sm:$0xff]
    %v8254 = vld [vmem:[#allocation18 + $0x770] sm:$0xff]
    %v8255 = vld [vmem:[#allocation18 + $0x778] sm:$0xff]
    %v8256 = vld [vmem:[#allocation18 + $0x780] sm:$0xff]
    %v8257 = vld [vmem:[#allocation18 + $0x788] sm:$0xff]
    %v8258 = vld [vmem:[#allocation18 + $0x790] sm:$0xff]
    %v8259 = vld [vmem:[#allocation18 + $0x798] sm:$0xff]
    %v8260 = vld [vmem:[#allocation18 + $0x7a0] sm:$0xff]
    %v8261 = vld [vmem:[#allocation18 + $0x7a8] sm:$0xff]
    %v8262 = vld [vmem:[#allocation18 + $0x7b0] sm:$0xff]
    %v8263 = vld [vmem:[#allocation18 + $0x7b8] sm:$0xff]
    %v8264 = vld [vmem:[#allocation18 + $0x7c0] sm:$0xff]
    %v8265 = vld [vmem:[#allocation18 + $0x7c8] sm:$0xff]
    %v8266 = vld [vmem:[#allocation18 + $0x7d0] sm:$0xff]
    %v8267 = vld [vmem:[#allocation18 + $0x7d8] sm:$0xff]
    %v8268 = vld [vmem:[#allocation18 + $0x7e0] sm:$0xff]
    %v8269 = vld [vmem:[#allocation18 + $0x7e8] sm:$0xff]
    %v8270 = vld [vmem:[#allocation18 + $0x7f0] sm:$0xff]
    %v8271 = vld [vmem:[#allocation18 + $0x7f8] sm:$0xff]
    %v8272 = vld [vmem:[#allocation18 + $0x800] sm:$0xff]
    %v8273 = vld [vmem:[#allocation18 + $0x808] sm:$0xff]
    %v8274 = vld [vmem:[#allocation18 + $0x810] sm:$0xff]
    %v8275 = vld [vmem:[#allocation18 + $0x818] sm:$0xff]
    %v8276 = vld [vmem:[#allocation18 + $0x820] sm:$0xff]
    %v8277 = vld [vmem:[#allocation18 + $0x828] sm:$0xff]
    %v8278 = vld [vmem:[#allocation18 + $0x830] sm:$0xff]
    %v8279 = vld [vmem:[#allocation18 + $0x838] sm:$0xff]
    %v8280 = vld [vmem:[#allocation18 + $0x840] sm:$0xff]
    %v8281 = vld [vmem:[#allocation18 + $0x848] sm:$0xff]
    %v8282 = vld [vmem:[#allocation18 + $0x850] sm:$0xff]
    %v8283 = vld [vmem:[#allocation18 + $0x858] sm:$0xff]
    %v8284 = vld [vmem:[#allocation18 + $0x860] sm:$0xff]
    %v8285 = vld [vmem:[#allocation18 + $0x868] sm:$0xff]
    %v8286 = vld [vmem:[#allocation18 + $0x870] sm:$0xff]
    %v8287 = vld [vmem:[#allocation18 + $0x878] sm:$0xff]
    %v8288 = vld [vmem:[#allocation18 + $0x880] sm:$0xff]
    %v8289 = vld [vmem:[#allocation18 + $0x888] sm:$0xff]
    %v8290 = vld [vmem:[#allocation18 + $0x890] sm:$0xff]
    %v8291 = vld [vmem:[#allocation18 + $0x898] sm:$0xff]
    %v8292 = vld [vmem:[#allocation18 + $0x8a0] sm:$0xff]
    %v8293 = vld [vmem:[#allocation18 + $0x8a8] sm:$0xff]
    %v8294 = vld [vmem:[#allocation18 + $0x8b0] sm:$0xff]
    %v8295 = vld [vmem:[#allocation18 + $0x8b8] sm:$0xff]
    %v8296 = vld [vmem:[#allocation18 + $0x8c0] sm:$0xff]
    %v8297 = vld [vmem:[#allocation18 + $0x8c8] sm:$0xff]
    %v8298 = vld [vmem:[#allocation18 + $0x8d0] sm:$0xff]
    %v8299 = vld [vmem:[#allocation18 + $0x8d8] sm:$0xff]
    %v8300 = vld [vmem:[#allocation18 + $0x8e0] sm:$0xff]
    %v8301 = vld [vmem:[#allocation18 + $0x8e8] sm:$0xff]
    %v8302 = vld [vmem:[#allocation18 + $0x8f0] sm:$0xff]
    %v8303 = vld [vmem:[#allocation18 + $0x8f8] sm:$0xff]
    %v8304 = vld [vmem:[#allocation18 + $0x900] sm:$0xff]
    %v8305 = vld [vmem:[#allocation18 + $0x908] sm:$0xff]
    %v8306 = vld [vmem:[#allocation18 + $0x910] sm:$0xff]
    %v8307 = vld [vmem:[#allocation18 + $0x918] sm:$0xff]
    %v8308 = vld [vmem:[#allocation18 + $0x920] sm:$0xff]
    %v8309 = vld [vmem:[#allocation18 + $0x928] sm:$0xff]
    %v8310 = vld [vmem:[#allocation18 + $0x930] sm:$0xff]
    %v8311 = vld [vmem:[#allocation18 + $0x938] sm:$0xff]
    %v8312 = vld [vmem:[#allocation18 + $0x940] sm:$0xff]
    %v8313 = vld [vmem:[#allocation18 + $0x948] sm:$0xff]
    %v8314 = vld [vmem:[#allocation18 + $0x950] sm:$0xff]
    %v8315 = vld [vmem:[#allocation18 + $0x958] sm:$0xff]
    %v8316 = vld [vmem:[#allocation18 + $0x960] sm:$0xff]
    %v8317 = vld [vmem:[#allocation18 + $0x968] sm:$0xff]
    %v8318 = vld [vmem:[#allocation18 + $0x970] sm:$0xff]
    %v8319 = vld [vmem:[#allocation18 + $0x978] sm:$0xff]
    %v8320 = vld [vmem:[#allocation18 + $0x980] sm:$0xff]
    %v8321 = vld [vmem:[#allocation18 + $0x988] sm:$0xff]
    %v8322 = vld [vmem:[#allocation18 + $0x990] sm:$0xff]
    %v8323 = vld [vmem:[#allocation18 + $0x998] sm:$0xff]
    %v8324 = vld [vmem:[#allocation18 + $0x9a0] sm:$0xff]
    %v8325 = vld [vmem:[#allocation18 + $0x9a8] sm:$0xff]
    %v8326 = vld [vmem:[#allocation18 + $0x9b0] sm:$0xff]
    %v8327 = vld [vmem:[#allocation18 + $0x9b8] sm:$0xff]
    %v8328 = vld [vmem:[#allocation18 + $0x9c0] sm:$0xff]
    %v8329 = vld [vmem:[#allocation18 + $0x9c8] sm:$0xff]
    %v8330 = vld [vmem:[#allocation18 + $0x9d0] sm:$0xff]
    %v8331 = vld [vmem:[#allocation18 + $0x9d8] sm:$0xff]
    %v8332 = vld [vmem:[#allocation18 + $0x9e0] sm:$0xff]
    %v8333 = vld [vmem:[#allocation18 + $0x9e8] sm:$0xff]
    %v8334 = vld [vmem:[#allocation18 + $0x9f0] sm:$0xff]
    %v8335 = vld [vmem:[#allocation18 + $0x9f8] sm:$0xff]
    %v8336 = vld [vmem:[#allocation18 + $0xa00] sm:$0xff]
    %v8337 = vld [vmem:[#allocation18 + $0xa08] sm:$0xff]
    %v8338 = vld [vmem:[#allocation18 + $0xa10] sm:$0xff]
    %v8339 = vld [vmem:[#allocation18 + $0xa18] sm:$0xff]
    %v8340 = vld [vmem:[#allocation18 + $0xa20] sm:$0xff]
    %v8341 = vld [vmem:[#allocation18 + $0xa28] sm:$0xff]
    %v8342 = vld [vmem:[#allocation18 + $0xa30] sm:$0xff]
    %v8343 = vld [vmem:[#allocation18 + $0xa38] sm:$0xff]
    %v8344 = vld [vmem:[#allocation18 + $0xa40] sm:$0xff]
    %v8345 = vld [vmem:[#allocation18 + $0xa48] sm:$0xff]
    %v8346 = vld [vmem:[#allocation18 + $0xa50] sm:$0xff]
    %v8347 = vld [vmem:[#allocation18 + $0xa58] sm:$0xff]
    %v8348 = vld [vmem:[#allocation18 + $0xa60] sm:$0xff]
    %v8349 = vld [vmem:[#allocation18 + $0xa68] sm:$0xff]
    %v8350 = vld [vmem:[#allocation18 + $0xa70] sm:$0xff]
    %v8351 = vld [vmem:[#allocation18 + $0xa78] sm:$0xff]
    %v8352 = vld [vmem:[#allocation18 + $0xa80] sm:$0xff]
    %v8353 = vld [vmem:[#allocation18 + $0xa88] sm:$0xff]
    %v8354 = vld [vmem:[#allocation18 + $0xa90] sm:$0xff]
    %v8355 = vld [vmem:[#allocation18 + $0xa98] sm:$0xff]
    %v8356 = vld [vmem:[#allocation18 + $0xaa0] sm:$0xff]
    %v8357 = vld [vmem:[#allocation18 + $0xaa8] sm:$0xff]
    %v8358 = vld [vmem:[#allocation18 + $0xab0] sm:$0xff]
    %v8359 = vld [vmem:[#allocation18 + $0xab8] sm:$0xff]
    %v8360 = vld [vmem:[#allocation18 + $0xac0] sm:$0xff]
    %v8361 = vld [vmem:[#allocation18 + $0xac8] sm:$0xff]
    %v8362 = vld [vmem:[#allocation18 + $0xad0] sm:$0xff]
    %v8363 = vld [vmem:[#allocation18 + $0xad8] sm:$0xff]
    %v8364 = vld [vmem:[#allocation18 + $0xae0] sm:$0xff]
    %v8365 = vld [vmem:[#allocation18 + $0xae8] sm:$0xff]
    %v8366 = vld [vmem:[#allocation18 + $0xaf0] sm:$0xff]
    %v8367 = vld [vmem:[#allocation18 + $0xaf8] sm:$0xff]
    %v8368 = vld [vmem:[#allocation18 + $0xb00] sm:$0xff]
    %v8369 = vld [vmem:[#allocation18 + $0xb08] sm:$0xff]
    %v8370 = vld [vmem:[#allocation18 + $0xb10] sm:$0xff]
    %v8371 = vld [vmem:[#allocation18 + $0xb18] sm:$0xff]
    %v8372 = vld [vmem:[#allocation18 + $0xb20] sm:$0xff]
    %v8373 = vld [vmem:[#allocation18 + $0xb28] sm:$0xff]
    %v8374 = vld [vmem:[#allocation18 + $0xb30] sm:$0xff]
    %v8375 = vld [vmem:[#allocation18 + $0xb38] sm:$0xff]
    %v8376 = vld [vmem:[#allocation18 + $0xb40] sm:$0xff]
    %v8377 = vld [vmem:[#allocation18 + $0xb48] sm:$0xff]
    %v8378 = vld [vmem:[#allocation18 + $0xb50] sm:$0xff]
    %v8379 = vld [vmem:[#allocation18 + $0xb58] sm:$0xff]
    %v8380 = vld [vmem:[#allocation18 + $0xb60] sm:$0xff]
    %v8381 = vld [vmem:[#allocation18 + $0xb68] sm:$0xff]
    %v8382 = vld [vmem:[#allocation18 + $0xb70] sm:$0xff]
    %v8383 = vld [vmem:[#allocation18 + $0xb78] sm:$0xff]
    %v8384 = vld [vmem:[#allocation18 + $0xb80] sm:$0xff]
    %v8385 = vld [vmem:[#allocation18 + $0xb88] sm:$0xff]
    %v8386 = vld [vmem:[#allocation18 + $0xb90] sm:$0xff]
    %v8387 = vld [vmem:[#allocation18 + $0xb98] sm:$0xff]
    %v8388 = vld [vmem:[#allocation18 + $0xba0] sm:$0xff]
    %v8389 = vld [vmem:[#allocation18 + $0xba8] sm:$0xff]
    %v8390 = vld [vmem:[#allocation18 + $0xbb0] sm:$0xff]
    %v8391 = vld [vmem:[#allocation18 + $0xbb8] sm:$0xff]
    %v8392 = vld [vmem:[#allocation18 + $0xbc0] sm:$0xff]
    %v8393 = vld [vmem:[#allocation18 + $0xbc8] sm:$0xff]
    %v8394 = vld [vmem:[#allocation18 + $0xbd0] sm:$0xff]
    %v8395 = vld [vmem:[#allocation18 + $0xbd8] sm:$0xff]
    %v8396 = vld [vmem:[#allocation18 + $0xbe0] sm:$0xff]
    %v8397 = vld [vmem:[#allocation18 + $0xbe8] sm:$0xff]
    %v8398 = vld [vmem:[#allocation18 + $0xbf0] sm:$0xff]
    %v8399 = vld [vmem:[#allocation18 + $0xbf8] sm:$0xff]
    %v8400 = vld [vmem:[#allocation18 + $0xc00] sm:$0xff]
    %v8401 = vld [vmem:[#allocation18 + $0xc08] sm:$0xff]
    %v8402 = vld [vmem:[#allocation18 + $0xc10] sm:$0xff]
    %v8403 = vld [vmem:[#allocation18 + $0xc18] sm:$0xff]
    %v8404 = vld [vmem:[#allocation18 + $0xc20] sm:$0xff]
    %v8405 = vld [vmem:[#allocation18 + $0xc28] sm:$0xff]
    %v8406 = vld [vmem:[#allocation18 + $0xc30] sm:$0xff]
    %v8407 = vld [vmem:[#allocation18 + $0xc38] sm:$0xff]
    %v8408 = vld [vmem:[#allocation18 + $0xc40] sm:$0xff]
    %v8409 = vld [vmem:[#allocation18 + $0xc48] sm:$0xff]
    %v8410 = vld [vmem:[#allocation18 + $0xc50] sm:$0xff]
    %v8411 = vld [vmem:[#allocation18 + $0xc58] sm:$0xff]
    %v8412 = vld [vmem:[#allocation18 + $0xc60] sm:$0xff]
    %v8413 = vld [vmem:[#allocation18 + $0xc68] sm:$0xff]
    %v8414 = vld [vmem:[#allocation18 + $0xc70] sm:$0xff]
    %v8415 = vld [vmem:[#allocation18 + $0xc78] sm:$0xff]
    %v8416 = vld [vmem:[#allocation18 + $0xc80] sm:$0xff]
    %v8417 = vld [vmem:[#allocation18 + $0xc88] sm:$0xff]
    %v8418 = vld [vmem:[#allocation18 + $0xc90] sm:$0xff]
    %v8419 = vld [vmem:[#allocation18 + $0xc98] sm:$0xff]
    %v8420 = vld [vmem:[#allocation18 + $0xca0] sm:$0xff]
    %v8421 = vld [vmem:[#allocation18 + $0xca8] sm:$0xff]
    %v8422 = vld [vmem:[#allocation18 + $0xcb0] sm:$0xff]
    %v8423 = vld [vmem:[#allocation18 + $0xcb8] sm:$0xff]
    %v8424 = vld [vmem:[#allocation18 + $0xcc0] sm:$0xff]
    %v8425 = vld [vmem:[#allocation18 + $0xcc8] sm:$0xff]
    %v8426 = vld [vmem:[#allocation18 + $0xcd0] sm:$0xff]
    %v8427 = vld [vmem:[#allocation18 + $0xcd8] sm:$0xff]
    %v8428 = vld [vmem:[#allocation18 + $0xce0] sm:$0xff]
    %v8429 = vld [vmem:[#allocation18 + $0xce8] sm:$0xff]
    %v8430 = vld [vmem:[#allocation18 + $0xcf0] sm:$0xff]
    %v8431 = vld [vmem:[#allocation18 + $0xcf8] sm:$0xff]
    %v8432 = vld [vmem:[#allocation18 + $0xd00] sm:$0xff]
    %v8433 = vld [vmem:[#allocation18 + $0xd08] sm:$0xff]
    %v8434 = vld [vmem:[#allocation18 + $0xd10] sm:$0xff]
    %v8435 = vld [vmem:[#allocation18 + $0xd18] sm:$0xff]
    %v8436 = vld [vmem:[#allocation18 + $0xd20] sm:$0xff]
    %v8437 = vld [vmem:[#allocation18 + $0xd28] sm:$0xff]
    %v8438 = vld [vmem:[#allocation18 + $0xd30] sm:$0xff]
    %v8439 = vld [vmem:[#allocation18 + $0xd38] sm:$0xff]
    %v8440 = vld [vmem:[#allocation18 + $0xd40] sm:$0xff]
    %v8441 = vld [vmem:[#allocation18 + $0xd48] sm:$0xff]
    %v8442 = vld [vmem:[#allocation18 + $0xd50] sm:$0xff]
    %v8443 = vld [vmem:[#allocation18 + $0xd58] sm:$0xff]
    %v8444 = vld [vmem:[#allocation18 + $0xd60] sm:$0xff]
    %v8445 = vld [vmem:[#allocation18 + $0xd68] sm:$0xff]
    %v8446 = vld [vmem:[#allocation18 + $0xd70] sm:$0xff]
    %v8447 = vld [vmem:[#allocation18 + $0xd78] sm:$0xff]
    %v8448 = vld [vmem:[#allocation18 + $0xd80] sm:$0xff]
    %v8449 = vld [vmem:[#allocation18 + $0xd88] sm:$0xff]
    %v8450 = vld [vmem:[#allocation18 + $0xd90] sm:$0xff]
    %v8451 = vld [vmem:[#allocation18 + $0xd98] sm:$0xff]
    %v8452 = vld [vmem:[#allocation18 + $0xda0] sm:$0xff]
    %v8453 = vld [vmem:[#allocation18 + $0xda8] sm:$0xff]
    %v8454 = vld [vmem:[#allocation18 + $0xdb0] sm:$0xff]
    %v8455 = vld [vmem:[#allocation18 + $0xdb8] sm:$0xff]
    %v8456 = vld [vmem:[#allocation18 + $0xdc0] sm:$0xff]
    %v8457 = vld [vmem:[#allocation18 + $0xdc8] sm:$0xff]
    %v8458 = vld [vmem:[#allocation18 + $0xdd0] sm:$0xff]
    %v8459 = vld [vmem:[#allocation18 + $0xdd8] sm:$0xff]
    %v8460 = vld [vmem:[#allocation18 + $0xde0] sm:$0xff]
    %v8461 = vld [vmem:[#allocation18 + $0xde8] sm:$0xff]
    %v8462 = vld [vmem:[#allocation18 + $0xdf0] sm:$0xff]
    %v8463 = vld [vmem:[#allocation18 + $0xdf8] sm:$0xff]
    %v8464 = vld [vmem:[#allocation18 + $0xe00] sm:$0xff]
    %v8465 = vld [vmem:[#allocation18 + $0xe08] sm:$0xff]
    %v8466 = vld [vmem:[#allocation18 + $0xe10] sm:$0xff]
    %v8467 = vld [vmem:[#allocation18 + $0xe18] sm:$0xff]
    %v8468 = vld [vmem:[#allocation18 + $0xe20] sm:$0xff]
    %v8469 = vld [vmem:[#allocation18 + $0xe28] sm:$0xff]
    %v8470 = vld [vmem:[#allocation18 + $0xe30] sm:$0xff]
    %v8471 = vld [vmem:[#allocation18 + $0xe38] sm:$0xff]
    %v8472 = vld [vmem:[#allocation18 + $0xe40] sm:$0xff]
    %v8473 = vld [vmem:[#allocation18 + $0xe48] sm:$0xff]
    %v8474 = vld [vmem:[#allocation18 + $0xe50] sm:$0xff]
    %v8475 = vld [vmem:[#allocation18 + $0xe58] sm:$0xff]
    %v8476 = vld [vmem:[#allocation18 + $0xe60] sm:$0xff]
    %v8477 = vld [vmem:[#allocation18 + $0xe68] sm:$0xff]
    %v8478 = vld [vmem:[#allocation18 + $0xe70] sm:$0xff]
    %v8479 = vld [vmem:[#allocation18 + $0xe78] sm:$0xff]
    %v8480 = vld [vmem:[#allocation18 + $0xe80] sm:$0xff]
    %v8481 = vld [vmem:[#allocation18 + $0xe88] sm:$0xff]
    %v8482 = vld [vmem:[#allocation18 + $0xe90] sm:$0xff]
    %v8483 = vld [vmem:[#allocation18 + $0xe98] sm:$0xff]
    %v8484 = vld [vmem:[#allocation18 + $0xea0] sm:$0xff]
    %v8485 = vld [vmem:[#allocation18 + $0xea8] sm:$0xff]
    %v8486 = vld [vmem:[#allocation18 + $0xeb0] sm:$0xff]
    %v8487 = vld [vmem:[#allocation18 + $0xeb8] sm:$0xff]
    %v8488 = vld [vmem:[#allocation18 + $0xec0] sm:$0xff]
    %v8489 = vld [vmem:[#allocation18 + $0xec8] sm:$0xff]
    %v8490 = vld [vmem:[#allocation18 + $0xed0] sm:$0xff]
    %v8491 = vld [vmem:[#allocation18 + $0xed8] sm:$0xff]
    %v8492 = vld [vmem:[#allocation18 + $0xee0] sm:$0xff]
    %v8493 = vld [vmem:[#allocation18 + $0xee8] sm:$0xff]
    %v8494 = vld [vmem:[#allocation18 + $0xef0] sm:$0xff]
    %v8495 = vld [vmem:[#allocation18 + $0xef8] sm:$0xff]
    %v8496 = vld [vmem:[#allocation18 + $0xf00] sm:$0xff]
    %v8497 = vld [vmem:[#allocation18 + $0xf08] sm:$0xff]
    %v8498 = vld [vmem:[#allocation18 + $0xf10] sm:$0xff]
    %v8499 = vld [vmem:[#allocation18 + $0xf18] sm:$0xff]
    %v8500 = vld [vmem:[#allocation18 + $0xf20] sm:$0xff]
    %v8501 = vld [vmem:[#allocation18 + $0xf28] sm:$0xff]
    %v8502 = vld [vmem:[#allocation18 + $0xf30] sm:$0xff]
    %v8503 = vld [vmem:[#allocation18 + $0xf38] sm:$0xff]
    %v8504 = vld [vmem:[#allocation18 + $0xf40] sm:$0xff]
    %v8505 = vld [vmem:[#allocation18 + $0xf48] sm:$0xff]
    %v8506 = vld [vmem:[#allocation18 + $0xf50] sm:$0xff]
    %v8507 = vld [vmem:[#allocation18 + $0xf58] sm:$0xff]
    %v8508 = vld [vmem:[#allocation18 + $0xf60] sm:$0xff]
    %v8509 = vld [vmem:[#allocation18 + $0xf68] sm:$0xff]
    %v8510 = vld [vmem:[#allocation18 + $0xf70] sm:$0xff]
    %v8511 = vld [vmem:[#allocation18 + $0xf78] sm:$0xff]
    %v8512 = vld [vmem:[#allocation18 + $0xf80] sm:$0xff]
    %v8513 = vld [vmem:[#allocation18 + $0xf88] sm:$0xff]
    %v8514 = vld [vmem:[#allocation18 + $0xf90] sm:$0xff]
    %v8515 = vld [vmem:[#allocation18 + $0xf98] sm:$0xff]
    %v8516 = vld [vmem:[#allocation18 + $0xfa0] sm:$0xff]
    %v8517 = vld [vmem:[#allocation18 + $0xfa8] sm:$0xff]
    %v8518 = vld [vmem:[#allocation18 + $0xfb0] sm:$0xff]
    %v8519 = vld [vmem:[#allocation18 + $0xfb8] sm:$0xff]
    %v8520 = vld [vmem:[#allocation18 + $0xfc0] sm:$0xff]
    %v8521 = vld [vmem:[#allocation18 + $0xfc8] sm:$0xff]
    %v8522 = vld [vmem:[#allocation18 + $0xfd0] sm:$0xff]
    %v8523 = vld [vmem:[#allocation18 + $0xfd8] sm:$0xff]
    %v8524 = vld [vmem:[#allocation18 + $0xfe0] sm:$0xff]
    %v8525 = vld [vmem:[#allocation18 + $0xfe8] sm:$0xff]
    %v8526 = vld [vmem:[#allocation18 + $0xff0] sm:$0xff]
    %v8527 = vld [vmem:[#allocation18 + $0xff8] sm:$0xff]
    %v8528 = vld [vmem:[#allocation19] sm:$0xff]
    %v8530 = vperm.slane %v8528, 0
    %v8531 = vperm.slane %v8528, 1
    %v8532 = vperm.slane %v8528, 2
    %v8533 = vperm.slane %v8528, 3
    %v8534 = vperm.slane %v8528, 4
    %v8535 = vperm.slane %v8528, 5
    %v8536 = vperm.slane %v8528, 6
    %v8537 = vperm.slane %v8528, 7
    %v9058 = vunpack.c.l.b16 %v8016
    %v9059 = vunpack.c.h.b16 %v8016
    %v9060 = vunpack.c.l.b16 %v8017
    %v9061 = vunpack.c.h.b16 %v8017
    %v9062 = vunpack.c.l.b16 %v8018
    %v9063 = vunpack.c.h.b16 %v8018
    %v9064 = vunpack.c.l.b16 %v8019
    %v9065 = vunpack.c.h.b16 %v8019
    %v9066 = vunpack.c.l.b16 %v8020
    %v9067 = vunpack.c.h.b16 %v8020
    %v9068 = vunpack.c.l.b16 %v8021
    %v9069 = vunpack.c.h.b16 %v8021
    %v9070 = vunpack.c.l.b16 %v8022
    %v9071 = vunpack.c.h.b16 %v8022
    %v9072 = vunpack.c.l.b16 %v8023
    %v9073 = vunpack.c.h.b16 %v8023
    %v9074 = vunpack.c.l.b16 %v8024
    %v9075 = vunpack.c.h.b16 %v8024
    %v9076 = vunpack.c.l.b16 %v8025
    %v9077 = vunpack.c.h.b16 %v8025
    %v9078 = vunpack.c.l.b16 %v8026
    %v9079 = vunpack.c.h.b16 %v8026
    %v9080 = vunpack.c.l.b16 %v8027
    %v9081 = vunpack.c.h.b16 %v8027
    %v9082 = vunpack.c.l.b16 %v8028
    %v9083 = vunpack.c.h.b16 %v8028
    %v9084 = vunpack.c.l.b16 %v8029
    %v9085 = vunpack.c.h.b16 %v8029
    %v9086 = vunpack.c.l.b16 %v8030
    %v9087 = vunpack.c.h.b16 %v8030
    %v9088 = vunpack.c.l.b16 %v8031
    %v9089 = vunpack.c.h.b16 %v8031
    %v9090 = vunpack.c.l.b16 %v8032
    %v9091 = vunpack.c.h.b16 %v8032
    %v9092 = vunpack.c.l.b16 %v8033
    %v9093 = vunpack.c.h.b16 %v8033
    %v9094 = vunpack.c.l.b16 %v8034
    %v9095 = vunpack.c.h.b16 %v8034
    %v9096 = vunpack.c.l.b16 %v8035
    %v9097 = vunpack.c.h.b16 %v8035
    %v9098 = vunpack.c.l.b16 %v8036
    %v9099 = vunpack.c.h.b16 %v8036
    %v9100 = vunpack.c.l.b16 %v8037
    %v9101 = vunpack.c.h.b16 %v8037
    %v9102 = vunpack.c.l.b16 %v8038
    %v9103 = vunpack.c.h.b16 %v8038
    %v9104 = vunpack.c.l.b16 %v8039
    %v9105 = vunpack.c.h.b16 %v8039
    %v9106 = vunpack.c.l.b16 %v8040
    %v9107 = vunpack.c.h.b16 %v8040
    %v9108 = vunpack.c.l.b16 %v8041
    %v9109 = vunpack.c.h.b16 %v8041
    %v9110 = vunpack.c.l.b16 %v8042
    %v9111 = vunpack.c.h.b16 %v8042
    %v9112 = vunpack.c.l.b16 %v8043
    %v9113 = vunpack.c.h.b16 %v8043
    %v9114 = vunpack.c.l.b16 %v8044
    %v9115 = vunpack.c.h.b16 %v8044
    %v9116 = vunpack.c.l.b16 %v8045
    %v9117 = vunpack.c.h.b16 %v8045
    %v9118 = vunpack.c.l.b16 %v8046
    %v9119 = vunpack.c.h.b16 %v8046
    %v9120 = vunpack.c.l.b16 %v8047
    %v9121 = vunpack.c.h.b16 %v8047
    %v9122 = vunpack.c.l.b16 %v8048
    %v9123 = vunpack.c.h.b16 %v8048
    %v9124 = vunpack.c.l.b16 %v8049
    %v9125 = vunpack.c.h.b16 %v8049
    %v9126 = vunpack.c.l.b16 %v8050
    %v9127 = vunpack.c.h.b16 %v8050
    %v9128 = vunpack.c.l.b16 %v8051
    %v9129 = vunpack.c.h.b16 %v8051
    %v9130 = vunpack.c.l.b16 %v8052
    %v9131 = vunpack.c.h.b16 %v8052
    %v9132 = vunpack.c.l.b16 %v8053
    %v9133 = vunpack.c.h.b16 %v8053
    %v9134 = vunpack.c.l.b16 %v8054
    %v9135 = vunpack.c.h.b16 %v8054
    %v9136 = vunpack.c.l.b16 %v8055
    %v9137 = vunpack.c.h.b16 %v8055
    %v9138 = vunpack.c.l.b16 %v8056
    %v9139 = vunpack.c.h.b16 %v8056
    %v9140 = vunpack.c.l.b16 %v8057
    %v9141 = vunpack.c.h.b16 %v8057
    %v9142 = vunpack.c.l.b16 %v8058
    %v9143 = vunpack.c.h.b16 %v8058
    %v9144 = vunpack.c.l.b16 %v8059
    %v9145 = vunpack.c.h.b16 %v8059
    %v9146 = vunpack.c.l.b16 %v8060
    %v9147 = vunpack.c.h.b16 %v8060
    %v9148 = vunpack.c.l.b16 %v8061
    %v9149 = vunpack.c.h.b16 %v8061
    %v9150 = vunpack.c.l.b16 %v8062
    %v9151 = vunpack.c.h.b16 %v8062
    %v9152 = vunpack.c.l.b16 %v8063
    %v9153 = vunpack.c.h.b16 %v8063
    %v9154 = vunpack.c.l.b16 %v8064
    %v9155 = vunpack.c.h.b16 %v8064
    %v9156 = vunpack.c.l.b16 %v8065
    %v9157 = vunpack.c.h.b16 %v8065
    %v9158 = vunpack.c.l.b16 %v8066
    %v9159 = vunpack.c.h.b16 %v8066
    %v9160 = vunpack.c.l.b16 %v8067
    %v9161 = vunpack.c.h.b16 %v8067
    %v9162 = vunpack.c.l.b16 %v8068
    %v9163 = vunpack.c.h.b16 %v8068
    %v9164 = vunpack.c.l.b16 %v8069
    %v9165 = vunpack.c.h.b16 %v8069
    %v9166 = vunpack.c.l.b16 %v8070
    %v9167 = vunpack.c.h.b16 %v8070
    %v9168 = vunpack.c.l.b16 %v8071
    %v9169 = vunpack.c.h.b16 %v8071
    %v9170 = vunpack.c.l.b16 %v8072
    %v9171 = vunpack.c.h.b16 %v8072
    %v9172 = vunpack.c.l.b16 %v8073
    %v9173 = vunpack.c.h.b16 %v8073
    %v9174 = vunpack.c.l.b16 %v8074
    %v9175 = vunpack.c.h.b16 %v8074
    %v9176 = vunpack.c.l.b16 %v8075
    %v9177 = vunpack.c.h.b16 %v8075
    %v9178 = vunpack.c.l.b16 %v8076
    %v9179 = vunpack.c.h.b16 %v8076
    %v9180 = vunpack.c.l.b16 %v8077
    %v9181 = vunpack.c.h.b16 %v8077
    %v9182 = vunpack.c.l.b16 %v8078
    %v9183 = vunpack.c.h.b16 %v8078
    %v9184 = vunpack.c.l.b16 %v8079
    %v9185 = vunpack.c.h.b16 %v8079
    %v9186 = vunpack.c.l.b16 %v8080
    %v9187 = vunpack.c.h.b16 %v8080
    %v9188 = vunpack.c.l.b16 %v8081
    %v9189 = vunpack.c.h.b16 %v8081
    %v9190 = vunpack.c.l.b16 %v8082
    %v9191 = vunpack.c.h.b16 %v8082
    %v9192 = vunpack.c.l.b16 %v8083
    %v9193 = vunpack.c.h.b16 %v8083
    %v9194 = vunpack.c.l.b16 %v8084
    %v9195 = vunpack.c.h.b16 %v8084
    %v9196 = vunpack.c.l.b16 %v8085
    %v9197 = vunpack.c.h.b16 %v8085
    %v9198 = vunpack.c.l.b16 %v8086
    %v9199 = vunpack.c.h.b16 %v8086
    %v9200 = vunpack.c.l.b16 %v8087
    %v9201 = vunpack.c.h.b16 %v8087
    %v9202 = vunpack.c.l.b16 %v8088
    %v9203 = vunpack.c.h.b16 %v8088
    %v9204 = vunpack.c.l.b16 %v8089
    %v9205 = vunpack.c.h.b16 %v8089
    %v9206 = vunpack.c.l.b16 %v8090
    %v9207 = vunpack.c.h.b16 %v8090
    %v9208 = vunpack.c.l.b16 %v8091
    %v9209 = vunpack.c.h.b16 %v8091
    %v9210 = vunpack.c.l.b16 %v8092
    %v9211 = vunpack.c.h.b16 %v8092
    %v9212 = vunpack.c.l.b16 %v8093
    %v9213 = vunpack.c.h.b16 %v8093
    %v9214 = vunpack.c.l.b16 %v8094
    %v9215 = vunpack.c.h.b16 %v8094
    %v9216 = vunpack.c.l.b16 %v8095
    %v9217 = vunpack.c.h.b16 %v8095
    %v9218 = vunpack.c.l.b16 %v8096
    %v9219 = vunpack.c.h.b16 %v8096
    %v9220 = vunpack.c.l.b16 %v8097
    %v9221 = vunpack.c.h.b16 %v8097
    %v9222 = vunpack.c.l.b16 %v8098
    %v9223 = vunpack.c.h.b16 %v8098
    %v9224 = vunpack.c.l.b16 %v8099
    %v9225 = vunpack.c.h.b16 %v8099
    %v9226 = vunpack.c.l.b16 %v8100
    %v9227 = vunpack.c.h.b16 %v8100
    %v9228 = vunpack.c.l.b16 %v8101
    %v9229 = vunpack.c.h.b16 %v8101
    %v9230 = vunpack.c.l.b16 %v8102
    %v9231 = vunpack.c.h.b16 %v8102
    %v9232 = vunpack.c.l.b16 %v8103
    %v9233 = vunpack.c.h.b16 %v8103
    %v9234 = vunpack.c.l.b16 %v8104
    %v9235 = vunpack.c.h.b16 %v8104
    %v9236 = vunpack.c.l.b16 %v8105
    %v9237 = vunpack.c.h.b16 %v8105
    %v9238 = vunpack.c.l.b16 %v8106
    %v9239 = vunpack.c.h.b16 %v8106
    %v9240 = vunpack.c.l.b16 %v8107
    %v9241 = vunpack.c.h.b16 %v8107
    %v9242 = vunpack.c.l.b16 %v8108
    %v9243 = vunpack.c.h.b16 %v8108
    %v9244 = vunpack.c.l.b16 %v8109
    %v9245 = vunpack.c.h.b16 %v8109
    %v9246 = vunpack.c.l.b16 %v8110
    %v9247 = vunpack.c.h.b16 %v8110
    %v9248 = vunpack.c.l.b16 %v8111
    %v9249 = vunpack.c.h.b16 %v8111
    %v9250 = vunpack.c.l.b16 %v8112
    %v9251 = vunpack.c.h.b16 %v8112
    %v9252 = vunpack.c.l.b16 %v8113
    %v9253 = vunpack.c.h.b16 %v8113
    %v9254 = vunpack.c.l.b16 %v8114
    %v9255 = vunpack.c.h.b16 %v8114
    %v9256 = vunpack.c.l.b16 %v8115
    %v9257 = vunpack.c.h.b16 %v8115
    %v9258 = vunpack.c.l.b16 %v8116
    %v9259 = vunpack.c.h.b16 %v8116
    %v9260 = vunpack.c.l.b16 %v8117
    %v9261 = vunpack.c.h.b16 %v8117
    %v9262 = vunpack.c.l.b16 %v8118
    %v9263 = vunpack.c.h.b16 %v8118
    %v9264 = vunpack.c.l.b16 %v8119
    %v9265 = vunpack.c.h.b16 %v8119
    %v9266 = vunpack.c.l.b16 %v8120
    %v9267 = vunpack.c.h.b16 %v8120
    %v9268 = vunpack.c.l.b16 %v8121
    %v9269 = vunpack.c.h.b16 %v8121
    %v9270 = vunpack.c.l.b16 %v8122
    %v9271 = vunpack.c.h.b16 %v8122
    %v9272 = vunpack.c.l.b16 %v8123
    %v9273 = vunpack.c.h.b16 %v8123
    %v9274 = vunpack.c.l.b16 %v8124
    %v9275 = vunpack.c.h.b16 %v8124
    %v9276 = vunpack.c.l.b16 %v8125
    %v9277 = vunpack.c.h.b16 %v8125
    %v9278 = vunpack.c.l.b16 %v8126
    %v9279 = vunpack.c.h.b16 %v8126
    %v9280 = vunpack.c.l.b16 %v8127
    %v9281 = vunpack.c.h.b16 %v8127
    %v9282 = vunpack.c.l.b16 %v8128
    %v9283 = vunpack.c.h.b16 %v8128
    %v9284 = vunpack.c.l.b16 %v8129
    %v9285 = vunpack.c.h.b16 %v8129
    %v9286 = vunpack.c.l.b16 %v8130
    %v9287 = vunpack.c.h.b16 %v8130
    %v9288 = vunpack.c.l.b16 %v8131
    %v9289 = vunpack.c.h.b16 %v8131
    %v9290 = vunpack.c.l.b16 %v8132
    %v9291 = vunpack.c.h.b16 %v8132
    %v9292 = vunpack.c.l.b16 %v8133
    %v9293 = vunpack.c.h.b16 %v8133
    %v9294 = vunpack.c.l.b16 %v8134
    %v9295 = vunpack.c.h.b16 %v8134
    %v9296 = vunpack.c.l.b16 %v8135
    %v9297 = vunpack.c.h.b16 %v8135
    %v9298 = vunpack.c.l.b16 %v8136
    %v9299 = vunpack.c.h.b16 %v8136
    %v9300 = vunpack.c.l.b16 %v8137
    %v9301 = vunpack.c.h.b16 %v8137
    %v9302 = vunpack.c.l.b16 %v8138
    %v9303 = vunpack.c.h.b16 %v8138
    %v9304 = vunpack.c.l.b16 %v8139
    %v9305 = vunpack.c.h.b16 %v8139
    %v9306 = vunpack.c.l.b16 %v8140
    %v9307 = vunpack.c.h.b16 %v8140
    %v9308 = vunpack.c.l.b16 %v8141
    %v9309 = vunpack.c.h.b16 %v8141
    %v9310 = vunpack.c.l.b16 %v8142
    %v9311 = vunpack.c.h.b16 %v8142
    %v9312 = vunpack.c.l.b16 %v8143
    %v9313 = vunpack.c.h.b16 %v8143
    %v9314 = vunpack.c.l.b16 %v8144
    %v9315 = vunpack.c.h.b16 %v8144
    %v9316 = vunpack.c.l.b16 %v8145
    %v9317 = vunpack.c.h.b16 %v8145
    %v9318 = vunpack.c.l.b16 %v8146
    %v9319 = vunpack.c.h.b16 %v8146
    %v9320 = vunpack.c.l.b16 %v8147
    %v9321 = vunpack.c.h.b16 %v8147
    %v9322 = vunpack.c.l.b16 %v8148
    %v9323 = vunpack.c.h.b16 %v8148
    %v9324 = vunpack.c.l.b16 %v8149
    %v9325 = vunpack.c.h.b16 %v8149
    %v9326 = vunpack.c.l.b16 %v8150
    %v9327 = vunpack.c.h.b16 %v8150
    %v9328 = vunpack.c.l.b16 %v8151
    %v9329 = vunpack.c.h.b16 %v8151
    %v9330 = vunpack.c.l.b16 %v8152
    %v9331 = vunpack.c.h.b16 %v8152
    %v9332 = vunpack.c.l.b16 %v8153
    %v9333 = vunpack.c.h.b16 %v8153
    %v9334 = vunpack.c.l.b16 %v8154
    %v9335 = vunpack.c.h.b16 %v8154
    %v9336 = vunpack.c.l.b16 %v8155
    %v9337 = vunpack.c.h.b16 %v8155
    %v9338 = vunpack.c.l.b16 %v8156
    %v9339 = vunpack.c.h.b16 %v8156
    %v9340 = vunpack.c.l.b16 %v8157
    %v9341 = vunpack.c.h.b16 %v8157
    %v9342 = vunpack.c.l.b16 %v8158
    %v9343 = vunpack.c.h.b16 %v8158
    %v9344 = vunpack.c.l.b16 %v8159
    %v9345 = vunpack.c.h.b16 %v8159
    %v9346 = vunpack.c.l.b16 %v8160
    %v9347 = vunpack.c.h.b16 %v8160
    %v9348 = vunpack.c.l.b16 %v8161
    %v9349 = vunpack.c.h.b16 %v8161
    %v9350 = vunpack.c.l.b16 %v8162
    %v9351 = vunpack.c.h.b16 %v8162
    %v9352 = vunpack.c.l.b16 %v8163
    %v9353 = vunpack.c.h.b16 %v8163
    %v9354 = vunpack.c.l.b16 %v8164
    %v9355 = vunpack.c.h.b16 %v8164
    %v9356 = vunpack.c.l.b16 %v8165
    %v9357 = vunpack.c.h.b16 %v8165
    %v9358 = vunpack.c.l.b16 %v8166
    %v9359 = vunpack.c.h.b16 %v8166
    %v9360 = vunpack.c.l.b16 %v8167
    %v9361 = vunpack.c.h.b16 %v8167
    %v9362 = vunpack.c.l.b16 %v8168
    %v9363 = vunpack.c.h.b16 %v8168
    %v9364 = vunpack.c.l.b16 %v8169
    %v9365 = vunpack.c.h.b16 %v8169
    %v9366 = vunpack.c.l.b16 %v8170
    %v9367 = vunpack.c.h.b16 %v8170
    %v9368 = vunpack.c.l.b16 %v8171
    %v9369 = vunpack.c.h.b16 %v8171
    %v9370 = vunpack.c.l.b16 %v8172
    %v9371 = vunpack.c.h.b16 %v8172
    %v9372 = vunpack.c.l.b16 %v8173
    %v9373 = vunpack.c.h.b16 %v8173
    %v9374 = vunpack.c.l.b16 %v8174
    %v9375 = vunpack.c.h.b16 %v8174
    %v9376 = vunpack.c.l.b16 %v8175
    %v9377 = vunpack.c.h.b16 %v8175
    %v9378 = vunpack.c.l.b16 %v8176
    %v9379 = vunpack.c.h.b16 %v8176
    %v9380 = vunpack.c.l.b16 %v8177
    %v9381 = vunpack.c.h.b16 %v8177
    %v9382 = vunpack.c.l.b16 %v8178
    %v9383 = vunpack.c.h.b16 %v8178
    %v9384 = vunpack.c.l.b16 %v8179
    %v9385 = vunpack.c.h.b16 %v8179
    %v9386 = vunpack.c.l.b16 %v8180
    %v9387 = vunpack.c.h.b16 %v8180
    %v9388 = vunpack.c.l.b16 %v8181
    %v9389 = vunpack.c.h.b16 %v8181
    %v9390 = vunpack.c.l.b16 %v8182
    %v9391 = vunpack.c.h.b16 %v8182
    %v9392 = vunpack.c.l.b16 %v8183
    %v9393 = vunpack.c.h.b16 %v8183
    %v9394 = vunpack.c.l.b16 %v8184
    %v9395 = vunpack.c.h.b16 %v8184
    %v9396 = vunpack.c.l.b16 %v8185
    %v9397 = vunpack.c.h.b16 %v8185
    %v9398 = vunpack.c.l.b16 %v8186
    %v9399 = vunpack.c.h.b16 %v8186
    %v9400 = vunpack.c.l.b16 %v8187
    %v9401 = vunpack.c.h.b16 %v8187
    %v9402 = vunpack.c.l.b16 %v8188
    %v9403 = vunpack.c.h.b16 %v8188
    %v9404 = vunpack.c.l.b16 %v8189
    %v9405 = vunpack.c.h.b16 %v8189
    %v9406 = vunpack.c.l.b16 %v8190
    %v9407 = vunpack.c.h.b16 %v8190
    %v9408 = vunpack.c.l.b16 %v8191
    %v9409 = vunpack.c.h.b16 %v8191
    %v9410 = vunpack.c.l.b16 %v8192
    %v9411 = vunpack.c.h.b16 %v8192
    %v9412 = vunpack.c.l.b16 %v8193
    %v9413 = vunpack.c.h.b16 %v8193
    %v9414 = vunpack.c.l.b16 %v8194
    %v9415 = vunpack.c.h.b16 %v8194
    %v9416 = vunpack.c.l.b16 %v8195
    %v9417 = vunpack.c.h.b16 %v8195
    %v9418 = vunpack.c.l.b16 %v8196
    %v9419 = vunpack.c.h.b16 %v8196
    %v9420 = vunpack.c.l.b16 %v8197
    %v9421 = vunpack.c.h.b16 %v8197
    %v9422 = vunpack.c.l.b16 %v8198
    %v9423 = vunpack.c.h.b16 %v8198
    %v9424 = vunpack.c.l.b16 %v8199
    %v9425 = vunpack.c.h.b16 %v8199
    %v9426 = vunpack.c.l.b16 %v8200
    %v9427 = vunpack.c.h.b16 %v8200
    %v9428 = vunpack.c.l.b16 %v8201
    %v9429 = vunpack.c.h.b16 %v8201
    %v9430 = vunpack.c.l.b16 %v8202
    %v9431 = vunpack.c.h.b16 %v8202
    %v9432 = vunpack.c.l.b16 %v8203
    %v9433 = vunpack.c.h.b16 %v8203
    %v9434 = vunpack.c.l.b16 %v8204
    %v9435 = vunpack.c.h.b16 %v8204
    %v9436 = vunpack.c.l.b16 %v8205
    %v9437 = vunpack.c.h.b16 %v8205
    %v9438 = vunpack.c.l.b16 %v8206
    %v9439 = vunpack.c.h.b16 %v8206
    %v9440 = vunpack.c.l.b16 %v8207
    %v9441 = vunpack.c.h.b16 %v8207
    %v9442 = vunpack.c.l.b16 %v8208
    %v9443 = vunpack.c.h.b16 %v8208
    %v9444 = vunpack.c.l.b16 %v8209
    %v9445 = vunpack.c.h.b16 %v8209
    %v9446 = vunpack.c.l.b16 %v8210
    %v9447 = vunpack.c.h.b16 %v8210
    %v9448 = vunpack.c.l.b16 %v8211
    %v9449 = vunpack.c.h.b16 %v8211
    %v9450 = vunpack.c.l.b16 %v8212
    %v9451 = vunpack.c.h.b16 %v8212
    %v9452 = vunpack.c.l.b16 %v8213
    %v9453 = vunpack.c.h.b16 %v8213
    %v9454 = vunpack.c.l.b16 %v8214
    %v9455 = vunpack.c.h.b16 %v8214
    %v9456 = vunpack.c.l.b16 %v8215
    %v9457 = vunpack.c.h.b16 %v8215
    %v9458 = vunpack.c.l.b16 %v8216
    %v9459 = vunpack.c.h.b16 %v8216
    %v9460 = vunpack.c.l.b16 %v8217
    %v9461 = vunpack.c.h.b16 %v8217
    %v9462 = vunpack.c.l.b16 %v8218
    %v9463 = vunpack.c.h.b16 %v8218
    %v9464 = vunpack.c.l.b16 %v8219
    %v9465 = vunpack.c.h.b16 %v8219
    %v9466 = vunpack.c.l.b16 %v8220
    %v9467 = vunpack.c.h.b16 %v8220
    %v9468 = vunpack.c.l.b16 %v8221
    %v9469 = vunpack.c.h.b16 %v8221
    %v9470 = vunpack.c.l.b16 %v8222
    %v9471 = vunpack.c.h.b16 %v8222
    %v9472 = vunpack.c.l.b16 %v8223
    %v9473 = vunpack.c.h.b16 %v8223
    %v9474 = vunpack.c.l.b16 %v8224
    %v9475 = vunpack.c.h.b16 %v8224
    %v9476 = vunpack.c.l.b16 %v8225
    %v9477 = vunpack.c.h.b16 %v8225
    %v9478 = vunpack.c.l.b16 %v8226
    %v9479 = vunpack.c.h.b16 %v8226
    %v9480 = vunpack.c.l.b16 %v8227
    %v9481 = vunpack.c.h.b16 %v8227
    %v9482 = vunpack.c.l.b16 %v8228
    %v9483 = vunpack.c.h.b16 %v8228
    %v9484 = vunpack.c.l.b16 %v8229
    %v9485 = vunpack.c.h.b16 %v8229
    %v9486 = vunpack.c.l.b16 %v8230
    %v9487 = vunpack.c.h.b16 %v8230
    %v9488 = vunpack.c.l.b16 %v8231
    %v9489 = vunpack.c.h.b16 %v8231
    %v9490 = vunpack.c.l.b16 %v8232
    %v9491 = vunpack.c.h.b16 %v8232
    %v9492 = vunpack.c.l.b16 %v8233
    %v9493 = vunpack.c.h.b16 %v8233
    %v9494 = vunpack.c.l.b16 %v8234
    %v9495 = vunpack.c.h.b16 %v8234
    %v9496 = vunpack.c.l.b16 %v8235
    %v9497 = vunpack.c.h.b16 %v8235
    %v9498 = vunpack.c.l.b16 %v8236
    %v9499 = vunpack.c.h.b16 %v8236
    %v9500 = vunpack.c.l.b16 %v8237
    %v9501 = vunpack.c.h.b16 %v8237
    %v9502 = vunpack.c.l.b16 %v8238
    %v9503 = vunpack.c.h.b16 %v8238
    %v9504 = vunpack.c.l.b16 %v8239
    %v9505 = vunpack.c.h.b16 %v8239
    %v9506 = vunpack.c.l.b16 %v8240
    %v9507 = vunpack.c.h.b16 %v8240
    %v9508 = vunpack.c.l.b16 %v8241
    %v9509 = vunpack.c.h.b16 %v8241
    %v9510 = vunpack.c.l.b16 %v8242
    %v9511 = vunpack.c.h.b16 %v8242
    %v9512 = vunpack.c.l.b16 %v8243
    %v9513 = vunpack.c.h.b16 %v8243
    %v9514 = vunpack.c.l.b16 %v8244
    %v9515 = vunpack.c.h.b16 %v8244
    %v9516 = vunpack.c.l.b16 %v8245
    %v9517 = vunpack.c.h.b16 %v8245
    %v9518 = vunpack.c.l.b16 %v8246
    %v9519 = vunpack.c.h.b16 %v8246
    %v9520 = vunpack.c.l.b16 %v8247
    %v9521 = vunpack.c.h.b16 %v8247
    %v9522 = vunpack.c.l.b16 %v8248
    %v9523 = vunpack.c.h.b16 %v8248
    %v9524 = vunpack.c.l.b16 %v8249
    %v9525 = vunpack.c.h.b16 %v8249
    %v9526 = vunpack.c.l.b16 %v8250
    %v9527 = vunpack.c.h.b16 %v8250
    %v9528 = vunpack.c.l.b16 %v8251
    %v9529 = vunpack.c.h.b16 %v8251
    %v9530 = vunpack.c.l.b16 %v8252
    %v9531 = vunpack.c.h.b16 %v8252
    %v9532 = vunpack.c.l.b16 %v8253
    %v9533 = vunpack.c.h.b16 %v8253
    %v9534 = vunpack.c.l.b16 %v8254
    %v9535 = vunpack.c.h.b16 %v8254
    %v9536 = vunpack.c.l.b16 %v8255
    %v9537 = vunpack.c.h.b16 %v8255
    %v9538 = vunpack.c.l.b16 %v8256
    %v9539 = vunpack.c.h.b16 %v8256
    %v9540 = vunpack.c.l.b16 %v8257
    %v9541 = vunpack.c.h.b16 %v8257
    %v9542 = vunpack.c.l.b16 %v8258
    %v9543 = vunpack.c.h.b16 %v8258
    %v9544 = vunpack.c.l.b16 %v8259
    %v9545 = vunpack.c.h.b16 %v8259
    %v9546 = vunpack.c.l.b16 %v8260
    %v9547 = vunpack.c.h.b16 %v8260
    %v9548 = vunpack.c.l.b16 %v8261
    %v9549 = vunpack.c.h.b16 %v8261
    %v9550 = vunpack.c.l.b16 %v8262
    %v9551 = vunpack.c.h.b16 %v8262
    %v9552 = vunpack.c.l.b16 %v8263
    %v9553 = vunpack.c.h.b16 %v8263
    %v9554 = vunpack.c.l.b16 %v8264
    %v9555 = vunpack.c.h.b16 %v8264
    %v9556 = vunpack.c.l.b16 %v8265
    %v9557 = vunpack.c.h.b16 %v8265
    %v9558 = vunpack.c.l.b16 %v8266
    %v9559 = vunpack.c.h.b16 %v8266
    %v9560 = vunpack.c.l.b16 %v8267
    %v9561 = vunpack.c.h.b16 %v8267
    %v9562 = vunpack.c.l.b16 %v8268
    %v9563 = vunpack.c.h.b16 %v8268
    %v9564 = vunpack.c.l.b16 %v8269
    %v9565 = vunpack.c.h.b16 %v8269
    %v9566 = vunpack.c.l.b16 %v8270
    %v9567 = vunpack.c.h.b16 %v8270
    %v9568 = vunpack.c.l.b16 %v8271
    %v9569 = vunpack.c.h.b16 %v8271
    %v9570 = vunpack.c.l.b16 %v8272
    %v9571 = vunpack.c.h.b16 %v8272
    %v9572 = vunpack.c.l.b16 %v8273
    %v9573 = vunpack.c.h.b16 %v8273
    %v9574 = vunpack.c.l.b16 %v8274
    %v9575 = vunpack.c.h.b16 %v8274
    %v9576 = vunpack.c.l.b16 %v8275
    %v9577 = vunpack.c.h.b16 %v8275
    %v9578 = vunpack.c.l.b16 %v8276
    %v9579 = vunpack.c.h.b16 %v8276
    %v9580 = vunpack.c.l.b16 %v8277
    %v9581 = vunpack.c.h.b16 %v8277
    %v9582 = vunpack.c.l.b16 %v8278
    %v9583 = vunpack.c.h.b16 %v8278
    %v9584 = vunpack.c.l.b16 %v8279
    %v9585 = vunpack.c.h.b16 %v8279
    %v9586 = vunpack.c.l.b16 %v8280
    %v9587 = vunpack.c.h.b16 %v8280
    %v9588 = vunpack.c.l.b16 %v8281
    %v9589 = vunpack.c.h.b16 %v8281
    %v9590 = vunpack.c.l.b16 %v8282
    %v9591 = vunpack.c.h.b16 %v8282
    %v9592 = vunpack.c.l.b16 %v8283
    %v9593 = vunpack.c.h.b16 %v8283
    %v9594 = vunpack.c.l.b16 %v8284
    %v9595 = vunpack.c.h.b16 %v8284
    %v9596 = vunpack.c.l.b16 %v8285
    %v9597 = vunpack.c.h.b16 %v8285
    %v9598 = vunpack.c.l.b16 %v8286
    %v9599 = vunpack.c.h.b16 %v8286
    %v9600 = vunpack.c.l.b16 %v8287
    %v9601 = vunpack.c.h.b16 %v8287
    %v9602 = vunpack.c.l.b16 %v8288
    %v9603 = vunpack.c.h.b16 %v8288
    %v9604 = vunpack.c.l.b16 %v8289
    %v9605 = vunpack.c.h.b16 %v8289
    %v9606 = vunpack.c.l.b16 %v8290
    %v9607 = vunpack.c.h.b16 %v8290
    %v9608 = vunpack.c.l.b16 %v8291
    %v9609 = vunpack.c.h.b16 %v8291
    %v9610 = vunpack.c.l.b16 %v8292
    %v9611 = vunpack.c.h.b16 %v8292
    %v9612 = vunpack.c.l.b16 %v8293
    %v9613 = vunpack.c.h.b16 %v8293
    %v9614 = vunpack.c.l.b16 %v8294
    %v9615 = vunpack.c.h.b16 %v8294
    %v9616 = vunpack.c.l.b16 %v8295
    %v9617 = vunpack.c.h.b16 %v8295
    %v9618 = vunpack.c.l.b16 %v8296
    %v9619 = vunpack.c.h.b16 %v8296
    %v9620 = vunpack.c.l.b16 %v8297
    %v9621 = vunpack.c.h.b16 %v8297
    %v9622 = vunpack.c.l.b16 %v8298
    %v9623 = vunpack.c.h.b16 %v8298
    %v9624 = vunpack.c.l.b16 %v8299
    %v9625 = vunpack.c.h.b16 %v8299
    %v9626 = vunpack.c.l.b16 %v8300
    %v9627 = vunpack.c.h.b16 %v8300
    %v9628 = vunpack.c.l.b16 %v8301
    %v9629 = vunpack.c.h.b16 %v8301
    %v9630 = vunpack.c.l.b16 %v8302
    %v9631 = vunpack.c.h.b16 %v8302
    %v9632 = vunpack.c.l.b16 %v8303
    %v9633 = vunpack.c.h.b16 %v8303
    %v9634 = vunpack.c.l.b16 %v8304
    %v9635 = vunpack.c.h.b16 %v8304
    %v9636 = vunpack.c.l.b16 %v8305
    %v9637 = vunpack.c.h.b16 %v8305
    %v9638 = vunpack.c.l.b16 %v8306
    %v9639 = vunpack.c.h.b16 %v8306
    %v9640 = vunpack.c.l.b16 %v8307
    %v9641 = vunpack.c.h.b16 %v8307
    %v9642 = vunpack.c.l.b16 %v8308
    %v9643 = vunpack.c.h.b16 %v8308
    %v9644 = vunpack.c.l.b16 %v8309
    %v9645 = vunpack.c.h.b16 %v8309
    %v9646 = vunpack.c.l.b16 %v8310
    %v9647 = vunpack.c.h.b16 %v8310
    %v9648 = vunpack.c.l.b16 %v8311
    %v9649 = vunpack.c.h.b16 %v8311
    %v9650 = vunpack.c.l.b16 %v8312
    %v9651 = vunpack.c.h.b16 %v8312
    %v9652 = vunpack.c.l.b16 %v8313
    %v9653 = vunpack.c.h.b16 %v8313
    %v9654 = vunpack.c.l.b16 %v8314
    %v9655 = vunpack.c.h.b16 %v8314
    %v9656 = vunpack.c.l.b16 %v8315
    %v9657 = vunpack.c.h.b16 %v8315
    %v9658 = vunpack.c.l.b16 %v8316
    %v9659 = vunpack.c.h.b16 %v8316
    %v9660 = vunpack.c.l.b16 %v8317
    %v9661 = vunpack.c.h.b16 %v8317
    %v9662 = vunpack.c.l.b16 %v8318
    %v9663 = vunpack.c.h.b16 %v8318
    %v9664 = vunpack.c.l.b16 %v8319
    %v9665 = vunpack.c.h.b16 %v8319
    %v9666 = vunpack.c.l.b16 %v8320
    %v9667 = vunpack.c.h.b16 %v8320
    %v9668 = vunpack.c.l.b16 %v8321
    %v9669 = vunpack.c.h.b16 %v8321
    %v9670 = vunpack.c.l.b16 %v8322
    %v9671 = vunpack.c.h.b16 %v8322
    %v9672 = vunpack.c.l.b16 %v8323
    %v9673 = vunpack.c.h.b16 %v8323
    %v9674 = vunpack.c.l.b16 %v8324
    %v9675 = vunpack.c.h.b16 %v8324
    %v9676 = vunpack.c.l.b16 %v8325
    %v9677 = vunpack.c.h.b16 %v8325
    %v9678 = vunpack.c.l.b16 %v8326
    %v9679 = vunpack.c.h.b16 %v8326
    %v9680 = vunpack.c.l.b16 %v8327
    %v9681 = vunpack.c.h.b16 %v8327
    %v9682 = vunpack.c.l.b16 %v8328
    %v9683 = vunpack.c.h.b16 %v8328
    %v9684 = vunpack.c.l.b16 %v8329
    %v9685 = vunpack.c.h.b16 %v8329
    %v9686 = vunpack.c.l.b16 %v8330
    %v9687 = vunpack.c.h.b16 %v8330
    %v9688 = vunpack.c.l.b16 %v8331
    %v9689 = vunpack.c.h.b16 %v8331
    %v9690 = vunpack.c.l.b16 %v8332
    %v9691 = vunpack.c.h.b16 %v8332
    %v9692 = vunpack.c.l.b16 %v8333
    %v9693 = vunpack.c.h.b16 %v8333
    %v9694 = vunpack.c.l.b16 %v8334
    %v9695 = vunpack.c.h.b16 %v8334
    %v9696 = vunpack.c.l.b16 %v8335
    %v9697 = vunpack.c.h.b16 %v8335
    %v9698 = vunpack.c.l.b16 %v8336
    %v9699 = vunpack.c.h.b16 %v8336
    %v9700 = vunpack.c.l.b16 %v8337
    %v9701 = vunpack.c.h.b16 %v8337
    %v9702 = vunpack.c.l.b16 %v8338
    %v9703 = vunpack.c.h.b16 %v8338
    %v9704 = vunpack.c.l.b16 %v8339
    %v9705 = vunpack.c.h.b16 %v8339
    %v9706 = vunpack.c.l.b16 %v8340
    %v9707 = vunpack.c.h.b16 %v8340
    %v9708 = vunpack.c.l.b16 %v8341
    %v9709 = vunpack.c.h.b16 %v8341
    %v9710 = vunpack.c.l.b16 %v8342
    %v9711 = vunpack.c.h.b16 %v8342
    %v9712 = vunpack.c.l.b16 %v8343
    %v9713 = vunpack.c.h.b16 %v8343
    %v9714 = vunpack.c.l.b16 %v8344
    %v9715 = vunpack.c.h.b16 %v8344
    %v9716 = vunpack.c.l.b16 %v8345
    %v9717 = vunpack.c.h.b16 %v8345
    %v9718 = vunpack.c.l.b16 %v8346
    %v9719 = vunpack.c.h.b16 %v8346
    %v9720 = vunpack.c.l.b16 %v8347
    %v9721 = vunpack.c.h.b16 %v8347
    %v9722 = vunpack.c.l.b16 %v8348
    %v9723 = vunpack.c.h.b16 %v8348
    %v9724 = vunpack.c.l.b16 %v8349
    %v9725 = vunpack.c.h.b16 %v8349
    %v9726 = vunpack.c.l.b16 %v8350
    %v9727 = vunpack.c.h.b16 %v8350
    %v9728 = vunpack.c.l.b16 %v8351
    %v9729 = vunpack.c.h.b16 %v8351
    %v9730 = vunpack.c.l.b16 %v8352
    %v9731 = vunpack.c.h.b16 %v8352
    %v9732 = vunpack.c.l.b16 %v8353
    %v9733 = vunpack.c.h.b16 %v8353
    %v9734 = vunpack.c.l.b16 %v8354
    %v9735 = vunpack.c.h.b16 %v8354
    %v9736 = vunpack.c.l.b16 %v8355
    %v9737 = vunpack.c.h.b16 %v8355
    %v9738 = vunpack.c.l.b16 %v8356
    %v9739 = vunpack.c.h.b16 %v8356
    %v9740 = vunpack.c.l.b16 %v8357
    %v9741 = vunpack.c.h.b16 %v8357
    %v9742 = vunpack.c.l.b16 %v8358
    %v9743 = vunpack.c.h.b16 %v8358
    %v9744 = vunpack.c.l.b16 %v8359
    %v9745 = vunpack.c.h.b16 %v8359
    %v9746 = vunpack.c.l.b16 %v8360
    %v9747 = vunpack.c.h.b16 %v8360
    %v9748 = vunpack.c.l.b16 %v8361
    %v9749 = vunpack.c.h.b16 %v8361
    %v9750 = vunpack.c.l.b16 %v8362
    %v9751 = vunpack.c.h.b16 %v8362
    %v9752 = vunpack.c.l.b16 %v8363
    %v9753 = vunpack.c.h.b16 %v8363
    %v9754 = vunpack.c.l.b16 %v8364
    %v9755 = vunpack.c.h.b16 %v8364
    %v9756 = vunpack.c.l.b16 %v8365
    %v9757 = vunpack.c.h.b16 %v8365
    %v9758 = vunpack.c.l.b16 %v8366
    %v9759 = vunpack.c.h.b16 %v8366
    %v9760 = vunpack.c.l.b16 %v8367
    %v9761 = vunpack.c.h.b16 %v8367
    %v9762 = vunpack.c.l.b16 %v8368
    %v9763 = vunpack.c.h.b16 %v8368
    %v9764 = vunpack.c.l.b16 %v8369
    %v9765 = vunpack.c.h.b16 %v8369
    %v9766 = vunpack.c.l.b16 %v8370
    %v9767 = vunpack.c.h.b16 %v8370
    %v9768 = vunpack.c.l.b16 %v8371
    %v9769 = vunpack.c.h.b16 %v8371
    %v9770 = vunpack.c.l.b16 %v8372
    %v9771 = vunpack.c.h.b16 %v8372
    %v9772 = vunpack.c.l.b16 %v8373
    %v9773 = vunpack.c.h.b16 %v8373
    %v9774 = vunpack.c.l.b16 %v8374
    %v9775 = vunpack.c.h.b16 %v8374
    %v9776 = vunpack.c.l.b16 %v8375
    %v9777 = vunpack.c.h.b16 %v8375
    %v9778 = vunpack.c.l.b16 %v8376
    %v9779 = vunpack.c.h.b16 %v8376
    %v9780 = vunpack.c.l.b16 %v8377
    %v9781 = vunpack.c.h.b16 %v8377
    %v9782 = vunpack.c.l.b16 %v8378
    %v9783 = vunpack.c.h.b16 %v8378
    %v9784 = vunpack.c.l.b16 %v8379
    %v9785 = vunpack.c.h.b16 %v8379
    %v9786 = vunpack.c.l.b16 %v8380
    %v9787 = vunpack.c.h.b16 %v8380
    %v9788 = vunpack.c.l.b16 %v8381
    %v9789 = vunpack.c.h.b16 %v8381
    %v9790 = vunpack.c.l.b16 %v8382
    %v9791 = vunpack.c.h.b16 %v8382
    %v9792 = vunpack.c.l.b16 %v8383
    %v9793 = vunpack.c.h.b16 %v8383
    %v9794 = vunpack.c.l.b16 %v8384
    %v9795 = vunpack.c.h.b16 %v8384
    %v9796 = vunpack.c.l.b16 %v8385
    %v9797 = vunpack.c.h.b16 %v8385
    %v9798 = vunpack.c.l.b16 %v8386
    %v9799 = vunpack.c.h.b16 %v8386
    %v9800 = vunpack.c.l.b16 %v8387
    %v9801 = vunpack.c.h.b16 %v8387
    %v9802 = vunpack.c.l.b16 %v8388
    %v9803 = vunpack.c.h.b16 %v8388
    %v9804 = vunpack.c.l.b16 %v8389
    %v9805 = vunpack.c.h.b16 %v8389
    %v9806 = vunpack.c.l.b16 %v8390
    %v9807 = vunpack.c.h.b16 %v8390
    %v9808 = vunpack.c.l.b16 %v8391
    %v9809 = vunpack.c.h.b16 %v8391
    %v9810 = vunpack.c.l.b16 %v8392
    %v9811 = vunpack.c.h.b16 %v8392
    %v9812 = vunpack.c.l.b16 %v8393
    %v9813 = vunpack.c.h.b16 %v8393
    %v9814 = vunpack.c.l.b16 %v8394
    %v9815 = vunpack.c.h.b16 %v8394
    %v9816 = vunpack.c.l.b16 %v8395
    %v9817 = vunpack.c.h.b16 %v8395
    %v9818 = vunpack.c.l.b16 %v8396
    %v9819 = vunpack.c.h.b16 %v8396
    %v9820 = vunpack.c.l.b16 %v8397
    %v9821 = vunpack.c.h.b16 %v8397
    %v9822 = vunpack.c.l.b16 %v8398
    %v9823 = vunpack.c.h.b16 %v8398
    %v9824 = vunpack.c.l.b16 %v8399
    %v9825 = vunpack.c.h.b16 %v8399
    %v9826 = vunpack.c.l.b16 %v8400
    %v9827 = vunpack.c.h.b16 %v8400
    %v9828 = vunpack.c.l.b16 %v8401
    %v9829 = vunpack.c.h.b16 %v8401
    %v9830 = vunpack.c.l.b16 %v8402
    %v9831 = vunpack.c.h.b16 %v8402
    %v9832 = vunpack.c.l.b16 %v8403
    %v9833 = vunpack.c.h.b16 %v8403
    %v9834 = vunpack.c.l.b16 %v8404
    %v9835 = vunpack.c.h.b16 %v8404
    %v9836 = vunpack.c.l.b16 %v8405
    %v9837 = vunpack.c.h.b16 %v8405
    %v9838 = vunpack.c.l.b16 %v8406
    %v9839 = vunpack.c.h.b16 %v8406
    %v9840 = vunpack.c.l.b16 %v8407
    %v9841 = vunpack.c.h.b16 %v8407
    %v9842 = vunpack.c.l.b16 %v8408
    %v9843 = vunpack.c.h.b16 %v8408
    %v9844 = vunpack.c.l.b16 %v8409
    %v9845 = vunpack.c.h.b16 %v8409
    %v9846 = vunpack.c.l.b16 %v8410
    %v9847 = vunpack.c.h.b16 %v8410
    %v9848 = vunpack.c.l.b16 %v8411
    %v9849 = vunpack.c.h.b16 %v8411
    %v9850 = vunpack.c.l.b16 %v8412
    %v9851 = vunpack.c.h.b16 %v8412
    %v9852 = vunpack.c.l.b16 %v8413
    %v9853 = vunpack.c.h.b16 %v8413
    %v9854 = vunpack.c.l.b16 %v8414
    %v9855 = vunpack.c.h.b16 %v8414
    %v9856 = vunpack.c.l.b16 %v8415
    %v9857 = vunpack.c.h.b16 %v8415
    %v9858 = vunpack.c.l.b16 %v8416
    %v9859 = vunpack.c.h.b16 %v8416
    %v9860 = vunpack.c.l.b16 %v8417
    %v9861 = vunpack.c.h.b16 %v8417
    %v9862 = vunpack.c.l.b16 %v8418
    %v9863 = vunpack.c.h.b16 %v8418
    %v9864 = vunpack.c.l.b16 %v8419
    %v9865 = vunpack.c.h.b16 %v8419
    %v9866 = vunpack.c.l.b16 %v8420
    %v9867 = vunpack.c.h.b16 %v8420
    %v9868 = vunpack.c.l.b16 %v8421
    %v9869 = vunpack.c.h.b16 %v8421
    %v9870 = vunpack.c.l.b16 %v8422
    %v9871 = vunpack.c.h.b16 %v8422
    %v9872 = vunpack.c.l.b16 %v8423
    %v9873 = vunpack.c.h.b16 %v8423
    %v9874 = vunpack.c.l.b16 %v8424
    %v9875 = vunpack.c.h.b16 %v8424
    %v9876 = vunpack.c.l.b16 %v8425
    %v9877 = vunpack.c.h.b16 %v8425
    %v9878 = vunpack.c.l.b16 %v8426
    %v9879 = vunpack.c.h.b16 %v8426
    %v9880 = vunpack.c.l.b16 %v8427
    %v9881 = vunpack.c.h.b16 %v8427
    %v9882 = vunpack.c.l.b16 %v8428
    %v9883 = vunpack.c.h.b16 %v8428
    %v9884 = vunpack.c.l.b16 %v8429
    %v9885 = vunpack.c.h.b16 %v8429
    %v9886 = vunpack.c.l.b16 %v8430
    %v9887 = vunpack.c.h.b16 %v8430
    %v9888 = vunpack.c.l.b16 %v8431
    %v9889 = vunpack.c.h.b16 %v8431
    %v9890 = vunpack.c.l.b16 %v8432
    %v9891 = vunpack.c.h.b16 %v8432
    %v9892 = vunpack.c.l.b16 %v8433
    %v9893 = vunpack.c.h.b16 %v8433
    %v9894 = vunpack.c.l.b16 %v8434
    %v9895 = vunpack.c.h.b16 %v8434
    %v9896 = vunpack.c.l.b16 %v8435
    %v9897 = vunpack.c.h.b16 %v8435
    %v9898 = vunpack.c.l.b16 %v8436
    %v9899 = vunpack.c.h.b16 %v8436
    %v9900 = vunpack.c.l.b16 %v8437
    %v9901 = vunpack.c.h.b16 %v8437
    %v9902 = vunpack.c.l.b16 %v8438
    %v9903 = vunpack.c.h.b16 %v8438
    %v9904 = vunpack.c.l.b16 %v8439
    %v9905 = vunpack.c.h.b16 %v8439
    %v9906 = vunpack.c.l.b16 %v8440
    %v9907 = vunpack.c.h.b16 %v8440
    %v9908 = vunpack.c.l.b16 %v8441
    %v9909 = vunpack.c.h.b16 %v8441
    %v9910 = vunpack.c.l.b16 %v8442
    %v9911 = vunpack.c.h.b16 %v8442
    %v9912 = vunpack.c.l.b16 %v8443
    %v9913 = vunpack.c.h.b16 %v8443
    %v9914 = vunpack.c.l.b16 %v8444
    %v9915 = vunpack.c.h.b16 %v8444
    %v9916 = vunpack.c.l.b16 %v8445
    %v9917 = vunpack.c.h.b16 %v8445
    %v9918 = vunpack.c.l.b16 %v8446
    %v9919 = vunpack.c.h.b16 %v8446
    %v9920 = vunpack.c.l.b16 %v8447
    %v9921 = vunpack.c.h.b16 %v8447
    %v9922 = vunpack.c.l.b16 %v8448
    %v9923 = vunpack.c.h.b16 %v8448
    %v9924 = vunpack.c.l.b16 %v8449
    %v9925 = vunpack.c.h.b16 %v8449
    %v9926 = vunpack.c.l.b16 %v8450
    %v9927 = vunpack.c.h.b16 %v8450
    %v9928 = vunpack.c.l.b16 %v8451
    %v9929 = vunpack.c.h.b16 %v8451
    %v9930 = vunpack.c.l.b16 %v8452
    %v9931 = vunpack.c.h.b16 %v8452
    %v9932 = vunpack.c.l.b16 %v8453
    %v9933 = vunpack.c.h.b16 %v8453
    %v9934 = vunpack.c.l.b16 %v8454
    %v9935 = vunpack.c.h.b16 %v8454
    %v9936 = vunpack.c.l.b16 %v8455
    %v9937 = vunpack.c.h.b16 %v8455
    %v9938 = vunpack.c.l.b16 %v8456
    %v9939 = vunpack.c.h.b16 %v8456
    %v9940 = vunpack.c.l.b16 %v8457
    %v9941 = vunpack.c.h.b16 %v8457
    %v9942 = vunpack.c.l.b16 %v8458
    %v9943 = vunpack.c.h.b16 %v8458
    %v9944 = vunpack.c.l.b16 %v8459
    %v9945 = vunpack.c.h.b16 %v8459
    %v9946 = vunpack.c.l.b16 %v8460
    %v9947 = vunpack.c.h.b16 %v8460
    %v9948 = vunpack.c.l.b16 %v8461
    %v9949 = vunpack.c.h.b16 %v8461
    %v9950 = vunpack.c.l.b16 %v8462
    %v9951 = vunpack.c.h.b16 %v8462
    %v9952 = vunpack.c.l.b16 %v8463
    %v9953 = vunpack.c.h.b16 %v8463
    %v9954 = vunpack.c.l.b16 %v8464
    %v9955 = vunpack.c.h.b16 %v8464
    %v9956 = vunpack.c.l.b16 %v8465
    %v9957 = vunpack.c.h.b16 %v8465
    %v9958 = vunpack.c.l.b16 %v8466
    %v9959 = vunpack.c.h.b16 %v8466
    %v9960 = vunpack.c.l.b16 %v8467
    %v9961 = vunpack.c.h.b16 %v8467
    %v9962 = vunpack.c.l.b16 %v8468
    %v9963 = vunpack.c.h.b16 %v8468
    %v9964 = vunpack.c.l.b16 %v8469
    %v9965 = vunpack.c.h.b16 %v8469
    %v9966 = vunpack.c.l.b16 %v8470
    %v9967 = vunpack.c.h.b16 %v8470
    %v9968 = vunpack.c.l.b16 %v8471
    %v9969 = vunpack.c.h.b16 %v8471
    %v9970 = vunpack.c.l.b16 %v8472
    %v9971 = vunpack.c.h.b16 %v8472
    %v9972 = vunpack.c.l.b16 %v8473
    %v9973 = vunpack.c.h.b16 %v8473
    %v9974 = vunpack.c.l.b16 %v8474
    %v9975 = vunpack.c.h.b16 %v8474
    %v9976 = vunpack.c.l.b16 %v8475
    %v9977 = vunpack.c.h.b16 %v8475
    %v9978 = vunpack.c.l.b16 %v8476
    %v9979 = vunpack.c.h.b16 %v8476
    %v9980 = vunpack.c.l.b16 %v8477
    %v9981 = vunpack.c.h.b16 %v8477
    %v9982 = vunpack.c.l.b16 %v8478
    %v9983 = vunpack.c.h.b16 %v8478
    %v9984 = vunpack.c.l.b16 %v8479
    %v9985 = vunpack.c.h.b16 %v8479
    %v9986 = vunpack.c.l.b16 %v8480
    %v9987 = vunpack.c.h.b16 %v8480
    %v9988 = vunpack.c.l.b16 %v8481
    %v9989 = vunpack.c.h.b16 %v8481
    %v9990 = vunpack.c.l.b16 %v8482
    %v9991 = vunpack.c.h.b16 %v8482
    %v9992 = vunpack.c.l.b16 %v8483
    %v9993 = vunpack.c.h.b16 %v8483
    %v9994 = vunpack.c.l.b16 %v8484
    %v9995 = vunpack.c.h.b16 %v8484
    %v9996 = vunpack.c.l.b16 %v8485
    %v9997 = vunpack.c.h.b16 %v8485
    %v9998 = vunpack.c.l.b16 %v8486
    %v9999 = vunpack.c.h.b16 %v8486
    %v10000 = vunpack.c.l.b16 %v8487
    %v10001 = vunpack.c.h.b16 %v8487
    %v10002 = vunpack.c.l.b16 %v8488
    %v10003 = vunpack.c.h.b16 %v8488
    %v10004 = vunpack.c.l.b16 %v8489
    %v10005 = vunpack.c.h.b16 %v8489
    %v10006 = vunpack.c.l.b16 %v8490
    %v10007 = vunpack.c.h.b16 %v8490
    %v10008 = vunpack.c.l.b16 %v8491
    %v10009 = vunpack.c.h.b16 %v8491
    %v10010 = vunpack.c.l.b16 %v8492
    %v10011 = vunpack.c.h.b16 %v8492
    %v10012 = vunpack.c.l.b16 %v8493
    %v10013 = vunpack.c.h.b16 %v8493
    %v10014 = vunpack.c.l.b16 %v8494
    %v10015 = vunpack.c.h.b16 %v8494
    %v10016 = vunpack.c.l.b16 %v8495
    %v10017 = vunpack.c.h.b16 %v8495
    %v10018 = vunpack.c.l.b16 %v8496
    %v10019 = vunpack.c.h.b16 %v8496
    %v10020 = vunpack.c.l.b16 %v8497
    %v10021 = vunpack.c.h.b16 %v8497
    %v10022 = vunpack.c.l.b16 %v8498
    %v10023 = vunpack.c.h.b16 %v8498
    %v10024 = vunpack.c.l.b16 %v8499
    %v10025 = vunpack.c.h.b16 %v8499
    %v10026 = vunpack.c.l.b16 %v8500
    %v10027 = vunpack.c.h.b16 %v8500
    %v10028 = vunpack.c.l.b16 %v8501
    %v10029 = vunpack.c.h.b16 %v8501
    %v10030 = vunpack.c.l.b16 %v8502
    %v10031 = vunpack.c.h.b16 %v8502
    %v10032 = vunpack.c.l.b16 %v8503
    %v10033 = vunpack.c.h.b16 %v8503
    %v10034 = vunpack.c.l.b16 %v8504
    %v10035 = vunpack.c.h.b16 %v8504
    %v10036 = vunpack.c.l.b16 %v8505
    %v10037 = vunpack.c.h.b16 %v8505
    %v10038 = vunpack.c.l.b16 %v8506
    %v10039 = vunpack.c.h.b16 %v8506
    %v10040 = vunpack.c.l.b16 %v8507
    %v10041 = vunpack.c.h.b16 %v8507
    %v10042 = vunpack.c.l.b16 %v8508
    %v10043 = vunpack.c.h.b16 %v8508
    %v10044 = vunpack.c.l.b16 %v8509
    %v10045 = vunpack.c.h.b16 %v8509
    %v10046 = vunpack.c.l.b16 %v8510
    %v10047 = vunpack.c.h.b16 %v8510
    %v10048 = vunpack.c.l.b16 %v8511
    %v10049 = vunpack.c.h.b16 %v8511
    %v10050 = vunpack.c.l.b16 %v8512
    %v10051 = vunpack.c.h.b16 %v8512
    %v10052 = vunpack.c.l.b16 %v8513
    %v10053 = vunpack.c.h.b16 %v8513
    %v10054 = vunpack.c.l.b16 %v8514
    %v10055 = vunpack.c.h.b16 %v8514
    %v10056 = vunpack.c.l.b16 %v8515
    %v10057 = vunpack.c.h.b16 %v8515
    %v10058 = vunpack.c.l.b16 %v8516
    %v10059 = vunpack.c.h.b16 %v8516
    %v10060 = vunpack.c.l.b16 %v8517
    %v10061 = vunpack.c.h.b16 %v8517
    %v10062 = vunpack.c.l.b16 %v8518
    %v10063 = vunpack.c.h.b16 %v8518
    %v10064 = vunpack.c.l.b16 %v8519
    %v10065 = vunpack.c.h.b16 %v8519
    %v10066 = vunpack.c.l.b16 %v8520
    %v10067 = vunpack.c.h.b16 %v8520
    %v10068 = vunpack.c.l.b16 %v8521
    %v10069 = vunpack.c.h.b16 %v8521
    %v10070 = vunpack.c.l.b16 %v8522
    %v10071 = vunpack.c.h.b16 %v8522
    %v10072 = vunpack.c.l.b16 %v8523
    %v10073 = vunpack.c.h.b16 %v8523
    %v10074 = vunpack.c.l.b16 %v8524
    %v10075 = vunpack.c.h.b16 %v8524
    %v10076 = vunpack.c.l.b16 %v8525
    %v10077 = vunpack.c.h.b16 %v8525
    %v10078 = vunpack.c.l.b16 %v8526
    %v10079 = vunpack.c.h.b16 %v8526
    %v10080 = vunpack.c.l.b16 %v8527
    %v10081 = vunpack.c.h.b16 %v8527
    %v10082 = vpack.c.b16 %v9066, %v9058
    %v10083 = vpack.c.b16 %v9067, %v9059
    %v10084 = vpack.c.b16 %v9068, %v9060
    %v10085 = vpack.c.b16 %v9069, %v9061
    %v10086 = vpack.c.b16 %v9070, %v9062
    %v10087 = vpack.c.b16 %v9071, %v9063
    %v10088 = vpack.c.b16 %v9072, %v9064
    %v10089 = vpack.c.b16 %v9073, %v9065
    %v10090 = vpack.c.b16 %v9082, %v9074
    %v10091 = vpack.c.b16 %v9083, %v9075
    %v10092 = vpack.c.b16 %v9084, %v9076
    %v10093 = vpack.c.b16 %v9085, %v9077
    %v10094 = vpack.c.b16 %v9086, %v9078
    %v10095 = vpack.c.b16 %v9087, %v9079
    %v10096 = vpack.c.b16 %v9088, %v9080
    %v10097 = vpack.c.b16 %v9089, %v9081
    %v10098 = vpack.c.b16 %v9098, %v9090
    %v10099 = vpack.c.b16 %v9099, %v9091
    %v10100 = vpack.c.b16 %v9100, %v9092
    %v10101 = vpack.c.b16 %v9101, %v9093
    %v10102 = vpack.c.b16 %v9102, %v9094
    %v10103 = vpack.c.b16 %v9103, %v9095
    %v10104 = vpack.c.b16 %v9104, %v9096
    %v10105 = vpack.c.b16 %v9105, %v9097
    %v10106 = vpack.c.b16 %v9114, %v9106
    %v10107 = vpack.c.b16 %v9115, %v9107
    %v10108 = vpack.c.b16 %v9116, %v9108
    %v10109 = vpack.c.b16 %v9117, %v9109
    %v10110 = vpack.c.b16 %v9118, %v9110
    %v10111 = vpack.c.b16 %v9119, %v9111
    %v10112 = vpack.c.b16 %v9120, %v9112
    %v10113 = vpack.c.b16 %v9121, %v9113
    %v10114 = vpack.c.b16 %v9130, %v9122
    %v10115 = vpack.c.b16 %v9131, %v9123
    %v10116 = vpack.c.b16 %v9132, %v9124
    %v10117 = vpack.c.b16 %v9133, %v9125
    %v10118 = vpack.c.b16 %v9134, %v9126
    %v10119 = vpack.c.b16 %v9135, %v9127
    %v10120 = vpack.c.b16 %v9136, %v9128
    %v10121 = vpack.c.b16 %v9137, %v9129
    %v10122 = vpack.c.b16 %v9146, %v9138
    %v10123 = vpack.c.b16 %v9147, %v9139
    %v10124 = vpack.c.b16 %v9148, %v9140
    %v10125 = vpack.c.b16 %v9149, %v9141
    %v10126 = vpack.c.b16 %v9150, %v9142
    %v10127 = vpack.c.b16 %v9151, %v9143
    %v10128 = vpack.c.b16 %v9152, %v9144
    %v10129 = vpack.c.b16 %v9153, %v9145
    %v10130 = vpack.c.b16 %v9162, %v9154
    %v10131 = vpack.c.b16 %v9163, %v9155
    %v10132 = vpack.c.b16 %v9164, %v9156
    %v10133 = vpack.c.b16 %v9165, %v9157
    %v10134 = vpack.c.b16 %v9166, %v9158
    %v10135 = vpack.c.b16 %v9167, %v9159
    %v10136 = vpack.c.b16 %v9168, %v9160
    %v10137 = vpack.c.b16 %v9169, %v9161
    %v10138 = vpack.c.b16 %v9178, %v9170
    %v10139 = vpack.c.b16 %v9179, %v9171
    %v10140 = vpack.c.b16 %v9180, %v9172
    %v10141 = vpack.c.b16 %v9181, %v9173
    %v10142 = vpack.c.b16 %v9182, %v9174
    %v10143 = vpack.c.b16 %v9183, %v9175
    %v10144 = vpack.c.b16 %v9184, %v9176
    %v10145 = vpack.c.b16 %v9185, %v9177
    %v10146 = vpack.c.b16 %v9194, %v9186
    %v10147 = vpack.c.b16 %v9195, %v9187
    %v10148 = vpack.c.b16 %v9196, %v9188
    %v10149 = vpack.c.b16 %v9197, %v9189
    %v10150 = vpack.c.b16 %v9198, %v9190
    %v10151 = vpack.c.b16 %v9199, %v9191
    %v10152 = vpack.c.b16 %v9200, %v9192
    %v10153 = vpack.c.b16 %v9201, %v9193
    %v10154 = vpack.c.b16 %v9210, %v9202
    %v10155 = vpack.c.b16 %v9211, %v9203
    %v10156 = vpack.c.b16 %v9212, %v9204
    %v10157 = vpack.c.b16 %v9213, %v9205
    %v10158 = vpack.c.b16 %v9214, %v9206
    %v10159 = vpack.c.b16 %v9215, %v9207
    %v10160 = vpack.c.b16 %v9216, %v9208
    %v10161 = vpack.c.b16 %v9217, %v9209
    %v10162 = vpack.c.b16 %v9226, %v9218
    %v10163 = vpack.c.b16 %v9227, %v9219
    %v10164 = vpack.c.b16 %v9228, %v9220
    %v10165 = vpack.c.b16 %v9229, %v9221
    %v10166 = vpack.c.b16 %v9230, %v9222
    %v10167 = vpack.c.b16 %v9231, %v9223
    %v10168 = vpack.c.b16 %v9232, %v9224
    %v10169 = vpack.c.b16 %v9233, %v9225
    %v10170 = vpack.c.b16 %v9242, %v9234
    %v10171 = vpack.c.b16 %v9243, %v9235
    %v10172 = vpack.c.b16 %v9244, %v9236
    %v10173 = vpack.c.b16 %v9245, %v9237
    %v10174 = vpack.c.b16 %v9246, %v9238
    %v10175 = vpack.c.b16 %v9247, %v9239
    %v10176 = vpack.c.b16 %v9248, %v9240
    %v10177 = vpack.c.b16 %v9249, %v9241
    %v10178 = vpack.c.b16 %v9258, %v9250
    %v10179 = vpack.c.b16 %v9259, %v9251
    %v10180 = vpack.c.b16 %v9260, %v9252
    %v10181 = vpack.c.b16 %v9261, %v9253
    %v10182 = vpack.c.b16 %v9262, %v9254
    %v10183 = vpack.c.b16 %v9263, %v9255
    %v10184 = vpack.c.b16 %v9264, %v9256
    %v10185 = vpack.c.b16 %v9265, %v9257
    %v10186 = vpack.c.b16 %v9274, %v9266
    %v10187 = vpack.c.b16 %v9275, %v9267
    %v10188 = vpack.c.b16 %v9276, %v9268
    %v10189 = vpack.c.b16 %v9277, %v9269
    %v10190 = vpack.c.b16 %v9278, %v9270
    %v10191 = vpack.c.b16 %v9279, %v9271
    %v10192 = vpack.c.b16 %v9280, %v9272
    %v10193 = vpack.c.b16 %v9281, %v9273
    %v10194 = vpack.c.b16 %v9290, %v9282
    %v10195 = vpack.c.b16 %v9291, %v9283
    %v10196 = vpack.c.b16 %v9292, %v9284
    %v10197 = vpack.c.b16 %v9293, %v9285
    %v10198 = vpack.c.b16 %v9294, %v9286
    %v10199 = vpack.c.b16 %v9295, %v9287
    %v10200 = vpack.c.b16 %v9296, %v9288
    %v10201 = vpack.c.b16 %v9297, %v9289
    %v10202 = vpack.c.b16 %v9306, %v9298
    %v10203 = vpack.c.b16 %v9307, %v9299
    %v10204 = vpack.c.b16 %v9308, %v9300
    %v10205 = vpack.c.b16 %v9309, %v9301
    %v10206 = vpack.c.b16 %v9310, %v9302
    %v10207 = vpack.c.b16 %v9311, %v9303
    %v10208 = vpack.c.b16 %v9312, %v9304
    %v10209 = vpack.c.b16 %v9313, %v9305
    %v10210 = vpack.c.b16 %v9322, %v9314
    %v10211 = vpack.c.b16 %v9323, %v9315
    %v10212 = vpack.c.b16 %v9324, %v9316
    %v10213 = vpack.c.b16 %v9325, %v9317
    %v10214 = vpack.c.b16 %v9326, %v9318
    %v10215 = vpack.c.b16 %v9327, %v9319
    %v10216 = vpack.c.b16 %v9328, %v9320
    %v10217 = vpack.c.b16 %v9329, %v9321
    %v10218 = vpack.c.b16 %v9338, %v9330
    %v10219 = vpack.c.b16 %v9339, %v9331
    %v10220 = vpack.c.b16 %v9340, %v9332
    %v10221 = vpack.c.b16 %v9341, %v9333
    %v10222 = vpack.c.b16 %v9342, %v9334
    %v10223 = vpack.c.b16 %v9343, %v9335
    %v10224 = vpack.c.b16 %v9344, %v9336
    %v10225 = vpack.c.b16 %v9345, %v9337
    %v10226 = vpack.c.b16 %v9354, %v9346
    %v10227 = vpack.c.b16 %v9355, %v9347
    %v10228 = vpack.c.b16 %v9356, %v9348
    %v10229 = vpack.c.b16 %v9357, %v9349
    %v10230 = vpack.c.b16 %v9358, %v9350
    %v10231 = vpack.c.b16 %v9359, %v9351
    %v10232 = vpack.c.b16 %v9360, %v9352
    %v10233 = vpack.c.b16 %v9361, %v9353
    %v10234 = vpack.c.b16 %v9370, %v9362
    %v10235 = vpack.c.b16 %v9371, %v9363
    %v10236 = vpack.c.b16 %v9372, %v9364
    %v10237 = vpack.c.b16 %v9373, %v9365
    %v10238 = vpack.c.b16 %v9374, %v9366
    %v10239 = vpack.c.b16 %v9375, %v9367
    %v10240 = vpack.c.b16 %v9376, %v9368
    %v10241 = vpack.c.b16 %v9377, %v9369
    %v10242 = vpack.c.b16 %v9386, %v9378
    %v10243 = vpack.c.b16 %v9387, %v9379
    %v10244 = vpack.c.b16 %v9388, %v9380
    %v10245 = vpack.c.b16 %v9389, %v9381
    %v10246 = vpack.c.b16 %v9390, %v9382
    %v10247 = vpack.c.b16 %v9391, %v9383
    %v10248 = vpack.c.b16 %v9392, %v9384
    %v10249 = vpack.c.b16 %v9393, %v9385
    %v10250 = vpack.c.b16 %v9402, %v9394
    %v10251 = vpack.c.b16 %v9403, %v9395
    %v10252 = vpack.c.b16 %v9404, %v9396
    %v10253 = vpack.c.b16 %v9405, %v9397
    %v10254 = vpack.c.b16 %v9406, %v9398
    %v10255 = vpack.c.b16 %v9407, %v9399
    %v10256 = vpack.c.b16 %v9408, %v9400
    %v10257 = vpack.c.b16 %v9409, %v9401
    %v10258 = vpack.c.b16 %v9418, %v9410
    %v10259 = vpack.c.b16 %v9419, %v9411
    %v10260 = vpack.c.b16 %v9420, %v9412
    %v10261 = vpack.c.b16 %v9421, %v9413
    %v10262 = vpack.c.b16 %v9422, %v9414
    %v10263 = vpack.c.b16 %v9423, %v9415
    %v10264 = vpack.c.b16 %v9424, %v9416
    %v10265 = vpack.c.b16 %v9425, %v9417
    %v10266 = vpack.c.b16 %v9434, %v9426
    %v10267 = vpack.c.b16 %v9435, %v9427
    %v10268 = vpack.c.b16 %v9436, %v9428
    %v10269 = vpack.c.b16 %v9437, %v9429
    %v10270 = vpack.c.b16 %v9438, %v9430
    %v10271 = vpack.c.b16 %v9439, %v9431
    %v10272 = vpack.c.b16 %v9440, %v9432
    %v10273 = vpack.c.b16 %v9441, %v9433
    %v10274 = vpack.c.b16 %v9450, %v9442
    %v10275 = vpack.c.b16 %v9451, %v9443
    %v10276 = vpack.c.b16 %v9452, %v9444
    %v10277 = vpack.c.b16 %v9453, %v9445
    %v10278 = vpack.c.b16 %v9454, %v9446
    %v10279 = vpack.c.b16 %v9455, %v9447
    %v10280 = vpack.c.b16 %v9456, %v9448
    %v10281 = vpack.c.b16 %v9457, %v9449
    %v10282 = vpack.c.b16 %v9466, %v9458
    %v10283 = vpack.c.b16 %v9467, %v9459
    %v10284 = vpack.c.b16 %v9468, %v9460
    %v10285 = vpack.c.b16 %v9469, %v9461
    %v10286 = vpack.c.b16 %v9470, %v9462
    %v10287 = vpack.c.b16 %v9471, %v9463
    %v10288 = vpack.c.b16 %v9472, %v9464
    %v10289 = vpack.c.b16 %v9473, %v9465
    %v10290 = vpack.c.b16 %v9482, %v9474
    %v10291 = vpack.c.b16 %v9483, %v9475
    %v10292 = vpack.c.b16 %v9484, %v9476
    %v10293 = vpack.c.b16 %v9485, %v9477
    %v10294 = vpack.c.b16 %v9486, %v9478
    %v10295 = vpack.c.b16 %v9487, %v9479
    %v10296 = vpack.c.b16 %v9488, %v9480
    %v10297 = vpack.c.b16 %v9489, %v9481
    %v10298 = vpack.c.b16 %v9498, %v9490
    %v10299 = vpack.c.b16 %v9499, %v9491
    %v10300 = vpack.c.b16 %v9500, %v9492
    %v10301 = vpack.c.b16 %v9501, %v9493
    %v10302 = vpack.c.b16 %v9502, %v9494
    %v10303 = vpack.c.b16 %v9503, %v9495
    %v10304 = vpack.c.b16 %v9504, %v9496
    %v10305 = vpack.c.b16 %v9505, %v9497
    %v10306 = vpack.c.b16 %v9514, %v9506
    %v10307 = vpack.c.b16 %v9515, %v9507
    %v10308 = vpack.c.b16 %v9516, %v9508
    %v10309 = vpack.c.b16 %v9517, %v9509
    %v10310 = vpack.c.b16 %v9518, %v9510
    %v10311 = vpack.c.b16 %v9519, %v9511
    %v10312 = vpack.c.b16 %v9520, %v9512
    %v10313 = vpack.c.b16 %v9521, %v9513
    %v10314 = vpack.c.b16 %v9530, %v9522
    %v10315 = vpack.c.b16 %v9531, %v9523
    %v10316 = vpack.c.b16 %v9532, %v9524
    %v10317 = vpack.c.b16 %v9533, %v9525
    %v10318 = vpack.c.b16 %v9534, %v9526
    %v10319 = vpack.c.b16 %v9535, %v9527
    %v10320 = vpack.c.b16 %v9536, %v9528
    %v10321 = vpack.c.b16 %v9537, %v9529
    %v10322 = vpack.c.b16 %v9546, %v9538
    %v10323 = vpack.c.b16 %v9547, %v9539
    %v10324 = vpack.c.b16 %v9548, %v9540
    %v10325 = vpack.c.b16 %v9549, %v9541
    %v10326 = vpack.c.b16 %v9550, %v9542
    %v10327 = vpack.c.b16 %v9551, %v9543
    %v10328 = vpack.c.b16 %v9552, %v9544
    %v10329 = vpack.c.b16 %v9553, %v9545
    %v10330 = vpack.c.b16 %v9562, %v9554
    %v10331 = vpack.c.b16 %v9563, %v9555
    %v10332 = vpack.c.b16 %v9564, %v9556
    %v10333 = vpack.c.b16 %v9565, %v9557
    %v10334 = vpack.c.b16 %v9566, %v9558
    %v10335 = vpack.c.b16 %v9567, %v9559
    %v10336 = vpack.c.b16 %v9568, %v9560
    %v10337 = vpack.c.b16 %v9569, %v9561
    %v10338 = vpack.c.b16 %v9578, %v9570
    %v10339 = vpack.c.b16 %v9579, %v9571
    %v10340 = vpack.c.b16 %v9580, %v9572
    %v10341 = vpack.c.b16 %v9581, %v9573
    %v10342 = vpack.c.b16 %v9582, %v9574
    %v10343 = vpack.c.b16 %v9583, %v9575
    %v10344 = vpack.c.b16 %v9584, %v9576
    %v10345 = vpack.c.b16 %v9585, %v9577
    %v10346 = vpack.c.b16 %v9594, %v9586
    %v10347 = vpack.c.b16 %v9595, %v9587
    %v10348 = vpack.c.b16 %v9596, %v9588
    %v10349 = vpack.c.b16 %v9597, %v9589
    %v10350 = vpack.c.b16 %v9598, %v9590
    %v10351 = vpack.c.b16 %v9599, %v9591
    %v10352 = vpack.c.b16 %v9600, %v9592
    %v10353 = vpack.c.b16 %v9601, %v9593
    %v10354 = vpack.c.b16 %v9610, %v9602
    %v10355 = vpack.c.b16 %v9611, %v9603
    %v10356 = vpack.c.b16 %v9612, %v9604
    %v10357 = vpack.c.b16 %v9613, %v9605
    %v10358 = vpack.c.b16 %v9614, %v9606
    %v10359 = vpack.c.b16 %v9615, %v9607
    %v10360 = vpack.c.b16 %v9616, %v9608
    %v10361 = vpack.c.b16 %v9617, %v9609
    %v10362 = vpack.c.b16 %v9626, %v9618
    %v10363 = vpack.c.b16 %v9627, %v9619
    %v10364 = vpack.c.b16 %v9628, %v9620
    %v10365 = vpack.c.b16 %v9629, %v9621
    %v10366 = vpack.c.b16 %v9630, %v9622
    %v10367 = vpack.c.b16 %v9631, %v9623
    %v10368 = vpack.c.b16 %v9632, %v9624
    %v10369 = vpack.c.b16 %v9633, %v9625
    %v10370 = vpack.c.b16 %v9642, %v9634
    %v10371 = vpack.c.b16 %v9643, %v9635
    %v10372 = vpack.c.b16 %v9644, %v9636
    %v10373 = vpack.c.b16 %v9645, %v9637
    %v10374 = vpack.c.b16 %v9646, %v9638
    %v10375 = vpack.c.b16 %v9647, %v9639
    %v10376 = vpack.c.b16 %v9648, %v9640
    %v10377 = vpack.c.b16 %v9649, %v9641
    %v10378 = vpack.c.b16 %v9658, %v9650
    %v10379 = vpack.c.b16 %v9659, %v9651
    %v10380 = vpack.c.b16 %v9660, %v9652
    %v10381 = vpack.c.b16 %v9661, %v9653
    %v10382 = vpack.c.b16 %v9662, %v9654
    %v10383 = vpack.c.b16 %v9663, %v9655
    %v10384 = vpack.c.b16 %v9664, %v9656
    %v10385 = vpack.c.b16 %v9665, %v9657
    %v10386 = vpack.c.b16 %v9674, %v9666
    %v10387 = vpack.c.b16 %v9675, %v9667
    %v10388 = vpack.c.b16 %v9676, %v9668
    %v10389 = vpack.c.b16 %v9677, %v9669
    %v10390 = vpack.c.b16 %v9678, %v9670
    %v10391 = vpack.c.b16 %v9679, %v9671
    %v10392 = vpack.c.b16 %v9680, %v9672
    %v10393 = vpack.c.b16 %v9681, %v9673
    %v10394 = vpack.c.b16 %v9690, %v9682
    %v10395 = vpack.c.b16 %v9691, %v9683
    %v10396 = vpack.c.b16 %v9692, %v9684
    %v10397 = vpack.c.b16 %v9693, %v9685
    %v10398 = vpack.c.b16 %v9694, %v9686
    %v10399 = vpack.c.b16 %v9695, %v9687
    %v10400 = vpack.c.b16 %v9696, %v9688
    %v10401 = vpack.c.b16 %v9697, %v9689
    %v10402 = vpack.c.b16 %v9706, %v9698
    %v10403 = vpack.c.b16 %v9707, %v9699
    %v10404 = vpack.c.b16 %v9708, %v9700
    %v10405 = vpack.c.b16 %v9709, %v9701
    %v10406 = vpack.c.b16 %v9710, %v9702
    %v10407 = vpack.c.b16 %v9711, %v9703
    %v10408 = vpack.c.b16 %v9712, %v9704
    %v10409 = vpack.c.b16 %v9713, %v9705
    %v10410 = vpack.c.b16 %v9722, %v9714
    %v10411 = vpack.c.b16 %v9723, %v9715
    %v10412 = vpack.c.b16 %v9724, %v9716
    %v10413 = vpack.c.b16 %v9725, %v9717
    %v10414 = vpack.c.b16 %v9726, %v9718
    %v10415 = vpack.c.b16 %v9727, %v9719
    %v10416 = vpack.c.b16 %v9728, %v9720
    %v10417 = vpack.c.b16 %v9729, %v9721
    %v10418 = vpack.c.b16 %v9738, %v9730
    %v10419 = vpack.c.b16 %v9739, %v9731
    %v10420 = vpack.c.b16 %v9740, %v9732
    %v10421 = vpack.c.b16 %v9741, %v9733
    %v10422 = vpack.c.b16 %v9742, %v9734
    %v10423 = vpack.c.b16 %v9743, %v9735
    %v10424 = vpack.c.b16 %v9744, %v9736
    %v10425 = vpack.c.b16 %v9745, %v9737
    %v10426 = vpack.c.b16 %v9754, %v9746
    %v10427 = vpack.c.b16 %v9755, %v9747
    %v10428 = vpack.c.b16 %v9756, %v9748
    %v10429 = vpack.c.b16 %v9757, %v9749
    %v10430 = vpack.c.b16 %v9758, %v9750
    %v10431 = vpack.c.b16 %v9759, %v9751
    %v10432 = vpack.c.b16 %v9760, %v9752
    %v10433 = vpack.c.b16 %v9761, %v9753
    %v10434 = vpack.c.b16 %v9770, %v9762
    %v10435 = vpack.c.b16 %v9771, %v9763
    %v10436 = vpack.c.b16 %v9772, %v9764
    %v10437 = vpack.c.b16 %v9773, %v9765
    %v10438 = vpack.c.b16 %v9774, %v9766
    %v10439 = vpack.c.b16 %v9775, %v9767
    %v10440 = vpack.c.b16 %v9776, %v9768
    %v10441 = vpack.c.b16 %v9777, %v9769
    %v10442 = vpack.c.b16 %v9786, %v9778
    %v10443 = vpack.c.b16 %v9787, %v9779
    %v10444 = vpack.c.b16 %v9788, %v9780
    %v10445 = vpack.c.b16 %v9789, %v9781
    %v10446 = vpack.c.b16 %v9790, %v9782
    %v10447 = vpack.c.b16 %v9791, %v9783
    %v10448 = vpack.c.b16 %v9792, %v9784
    %v10449 = vpack.c.b16 %v9793, %v9785
    %v10450 = vpack.c.b16 %v9802, %v9794
    %v10451 = vpack.c.b16 %v9803, %v9795
    %v10452 = vpack.c.b16 %v9804, %v9796
    %v10453 = vpack.c.b16 %v9805, %v9797
    %v10454 = vpack.c.b16 %v9806, %v9798
    %v10455 = vpack.c.b16 %v9807, %v9799
    %v10456 = vpack.c.b16 %v9808, %v9800
    %v10457 = vpack.c.b16 %v9809, %v9801
    %v10458 = vpack.c.b16 %v9818, %v9810
    %v10459 = vpack.c.b16 %v9819, %v9811
    %v10460 = vpack.c.b16 %v9820, %v9812
    %v10461 = vpack.c.b16 %v9821, %v9813
    %v10462 = vpack.c.b16 %v9822, %v9814
    %v10463 = vpack.c.b16 %v9823, %v9815
    %v10464 = vpack.c.b16 %v9824, %v9816
    %v10465 = vpack.c.b16 %v9825, %v9817
    %v10466 = vpack.c.b16 %v9834, %v9826
    %v10467 = vpack.c.b16 %v9835, %v9827
    %v10468 = vpack.c.b16 %v9836, %v9828
    %v10469 = vpack.c.b16 %v9837, %v9829
    %v10470 = vpack.c.b16 %v9838, %v9830
    %v10471 = vpack.c.b16 %v9839, %v9831
    %v10472 = vpack.c.b16 %v9840, %v9832
    %v10473 = vpack.c.b16 %v9841, %v9833
    %v10474 = vpack.c.b16 %v9850, %v9842
    %v10475 = vpack.c.b16 %v9851, %v9843
    %v10476 = vpack.c.b16 %v9852, %v9844
    %v10477 = vpack.c.b16 %v9853, %v9845
    %v10478 = vpack.c.b16 %v9854, %v9846
    %v10479 = vpack.c.b16 %v9855, %v9847
    %v10480 = vpack.c.b16 %v9856, %v9848
    %v10481 = vpack.c.b16 %v9857, %v9849
    %v10482 = vpack.c.b16 %v9866, %v9858
    %v10483 = vpack.c.b16 %v9867, %v9859
    %v10484 = vpack.c.b16 %v9868, %v9860
    %v10485 = vpack.c.b16 %v9869, %v9861
    %v10486 = vpack.c.b16 %v9870, %v9862
    %v10487 = vpack.c.b16 %v9871, %v9863
    %v10488 = vpack.c.b16 %v9872, %v9864
    %v10489 = vpack.c.b16 %v9873, %v9865
    %v10490 = vpack.c.b16 %v9882, %v9874
    %v10491 = vpack.c.b16 %v9883, %v9875
    %v10492 = vpack.c.b16 %v9884, %v9876
    %v10493 = vpack.c.b16 %v9885, %v9877
    %v10494 = vpack.c.b16 %v9886, %v9878
    %v10495 = vpack.c.b16 %v9887, %v9879
    %v10496 = vpack.c.b16 %v9888, %v9880
    %v10497 = vpack.c.b16 %v9889, %v9881
    %v10498 = vpack.c.b16 %v9898, %v9890
    %v10499 = vpack.c.b16 %v9899, %v9891
    %v10500 = vpack.c.b16 %v9900, %v9892
    %v10501 = vpack.c.b16 %v9901, %v9893
    %v10502 = vpack.c.b16 %v9902, %v9894
    %v10503 = vpack.c.b16 %v9903, %v9895
    %v10504 = vpack.c.b16 %v9904, %v9896
    %v10505 = vpack.c.b16 %v9905, %v9897
    %v10506 = vpack.c.b16 %v9914, %v9906
    %v10507 = vpack.c.b16 %v9915, %v9907
    %v10508 = vpack.c.b16 %v9916, %v9908
    %v10509 = vpack.c.b16 %v9917, %v9909
    %v10510 = vpack.c.b16 %v9918, %v9910
    %v10511 = vpack.c.b16 %v9919, %v9911
    %v10512 = vpack.c.b16 %v9920, %v9912
    %v10513 = vpack.c.b16 %v9921, %v9913
    %v10514 = vpack.c.b16 %v9930, %v9922
    %v10515 = vpack.c.b16 %v9931, %v9923
    %v10516 = vpack.c.b16 %v9932, %v9924
    %v10517 = vpack.c.b16 %v9933, %v9925
    %v10518 = vpack.c.b16 %v9934, %v9926
    %v10519 = vpack.c.b16 %v9935, %v9927
    %v10520 = vpack.c.b16 %v9936, %v9928
    %v10521 = vpack.c.b16 %v9937, %v9929
    %v10522 = vpack.c.b16 %v9946, %v9938
    %v10523 = vpack.c.b16 %v9947, %v9939
    %v10524 = vpack.c.b16 %v9948, %v9940
    %v10525 = vpack.c.b16 %v9949, %v9941
    %v10526 = vpack.c.b16 %v9950, %v9942
    %v10527 = vpack.c.b16 %v9951, %v9943
    %v10528 = vpack.c.b16 %v9952, %v9944
    %v10529 = vpack.c.b16 %v9953, %v9945
    %v10530 = vpack.c.b16 %v9962, %v9954
    %v10531 = vpack.c.b16 %v9963, %v9955
    %v10532 = vpack.c.b16 %v9964, %v9956
    %v10533 = vpack.c.b16 %v9965, %v9957
    %v10534 = vpack.c.b16 %v9966, %v9958
    %v10535 = vpack.c.b16 %v9967, %v9959
    %v10536 = vpack.c.b16 %v9968, %v9960
    %v10537 = vpack.c.b16 %v9969, %v9961
    %v10538 = vpack.c.b16 %v9978, %v9970
    %v10539 = vpack.c.b16 %v9979, %v9971
    %v10540 = vpack.c.b16 %v9980, %v9972
    %v10541 = vpack.c.b16 %v9981, %v9973
    %v10542 = vpack.c.b16 %v9982, %v9974
    %v10543 = vpack.c.b16 %v9983, %v9975
    %v10544 = vpack.c.b16 %v9984, %v9976
    %v10545 = vpack.c.b16 %v9985, %v9977
    %v10546 = vpack.c.b16 %v9994, %v9986
    %v10547 = vpack.c.b16 %v9995, %v9987
    %v10548 = vpack.c.b16 %v9996, %v9988
    %v10549 = vpack.c.b16 %v9997, %v9989
    %v10550 = vpack.c.b16 %v9998, %v9990
    %v10551 = vpack.c.b16 %v9999, %v9991
    %v10552 = vpack.c.b16 %v10000, %v9992
    %v10553 = vpack.c.b16 %v10001, %v9993
    %v10554 = vpack.c.b16 %v10010, %v10002
    %v10555 = vpack.c.b16 %v10011, %v10003
    %v10556 = vpack.c.b16 %v10012, %v10004
    %v10557 = vpack.c.b16 %v10013, %v10005
    %v10558 = vpack.c.b16 %v10014, %v10006
    %v10559 = vpack.c.b16 %v10015, %v10007
    %v10560 = vpack.c.b16 %v10016, %v10008
    %v10561 = vpack.c.b16 %v10017, %v10009
    %v10562 = vpack.c.b16 %v10026, %v10018
    %v10563 = vpack.c.b16 %v10027, %v10019
    %v10564 = vpack.c.b16 %v10028, %v10020
    %v10565 = vpack.c.b16 %v10029, %v10021
    %v10566 = vpack.c.b16 %v10030, %v10022
    %v10567 = vpack.c.b16 %v10031, %v10023
    %v10568 = vpack.c.b16 %v10032, %v10024
    %v10569 = vpack.c.b16 %v10033, %v10025
    %v10570 = vpack.c.b16 %v10042, %v10034
    %v10571 = vpack.c.b16 %v10043, %v10035
    %v10572 = vpack.c.b16 %v10044, %v10036
    %v10573 = vpack.c.b16 %v10045, %v10037
    %v10574 = vpack.c.b16 %v10046, %v10038
    %v10575 = vpack.c.b16 %v10047, %v10039
    %v10576 = vpack.c.b16 %v10048, %v10040
    %v10577 = vpack.c.b16 %v10049, %v10041
    %v10578 = vpack.c.b16 %v10058, %v10050
    %v10579 = vpack.c.b16 %v10059, %v10051
    %v10580 = vpack.c.b16 %v10060, %v10052
    %v10581 = vpack.c.b16 %v10061, %v10053
    %v10582 = vpack.c.b16 %v10062, %v10054
    %v10583 = vpack.c.b16 %v10063, %v10055
    %v10584 = vpack.c.b16 %v10064, %v10056
    %v10585 = vpack.c.b16 %v10065, %v10057
    %v10586 = vpack.c.b16 %v10074, %v10066
    %v10587 = vpack.c.b16 %v10075, %v10067
    %v10588 = vpack.c.b16 %v10076, %v10068
    %v10589 = vpack.c.b16 %v10077, %v10069
    %v10590 = vpack.c.b16 %v10078, %v10070
    %v10591 = vpack.c.b16 %v10079, %v10071
    %v10592 = vpack.c.b16 %v10080, %v10072
    %v10593 = vpack.c.b16 %v10081, %v10073
    %11106 = vmatpush.bf16.msra.mxu0 %v10138
    %11107 = vmatpush.bf16.msra.mxu0 %v10130
    %11108 = vmatpush.bf16.msra.mxu0 %v10122
    %11109 = vmatpush.bf16.msra.mxu0 %v10114
    %11110 = vmatpush.bf16.msra.mxu0 %v10106
    %11111 = vmatpush.bf16.msra.mxu0 %v10098
    %11112 = vmatpush.bf16.msra.mxu0 %v10090
    %11113 = vmatpush.bf16.msra.mxu0 %v10082
    %11114 = vmatmul.bf16.gmra.mxu0 %v8008
    %v11115 = vpop.f32.mrf.mxu0
    %v11116 = vadd.f32 %v8530, %v11115
    %v11117 = vpop.f32.mrf.mxu0
    %11118 = vdwg.mxu0
    %11119 = vmatpush.bf16.msra.mxu0 %v10202
    %11120 = vmatpush.bf16.msra.mxu0 %v10194
    %11121 = vmatpush.bf16.msra.mxu0 %v10186
    %11122 = vmatpush.bf16.msra.mxu0 %v10178
    %11123 = vmatpush.bf16.msra.mxu0 %v10170
    %11124 = vmatpush.bf16.msra.mxu0 %v10162
    %11125 = vmatpush.bf16.msra.mxu0 %v10154
    %11126 = vmatpush.bf16.msra.mxu0 %v10146
    %11127 = vmatmul.bf16.gmra.mxu0 %v8009
    %v11128 = vpop.f32.mrf.mxu0
    %v11129 = vadd.f32 %v11116, %v11128
    %v11130 = vpop.f32.mrf.mxu0
    %11131 = vdwg.mxu0
    %11132 = vmatpush.bf16.msra.mxu0 %v10266
    %11133 = vmatpush.bf16.msra.mxu0 %v10258
    %11134 = vmatpush.bf16.msra.mxu0 %v10250
    %11135 = vmatpush.bf16.msra.mxu0 %v10242
    %11136 = vmatpush.bf16.msra.mxu0 %v10234
    %11137 = vmatpush.bf16.msra.mxu0 %v10226
    %11138 = vmatpush.bf16.msra.mxu0 %v10218
    %11139 = vmatpush.bf16.msra.mxu0 %v10210
    %11140 = vmatmul.bf16.gmra.mxu0 %v8010
    %v11141 = vpop.f32.mrf.mxu0
    %v11142 = vadd.f32 %v11129, %v11141
    %v11143 = vpop.f32.mrf.mxu0
    %11144 = vdwg.mxu0
    %11145 = vmatpush.bf16.msra.mxu0 %v10330
    %11146 = vmatpush.bf16.msra.mxu0 %v10322
    %11147 = vmatpush.bf16.msra.mxu0 %v10314
    %11148 = vmatpush.bf16.msra.mxu0 %v10306
    %11149 = vmatpush.bf16.msra.mxu0 %v10298
    %11150 = vmatpush.bf16.msra.mxu0 %v10290
    %11151 = vmatpush.bf16.msra.mxu0 %v10282
    %11152 = vmatpush.bf16.msra.mxu0 %v10274
    %11153 = vmatmul.bf16.gmra.mxu0 %v8011
    %v11154 = vpop.f32.mrf.mxu0
    %v11155 = vadd.f32 %v11142, %v11154
    %v11156 = vpop.f32.mrf.mxu0
    %11157 = vdwg.mxu0
    %11158 = vmatpush.bf16.msra.mxu0 %v10394
    %11159 = vmatpush.bf16.msra.mxu0 %v10386
    %11160 = vmatpush.bf16.msra.mxu0 %v10378
    %11161 = vmatpush.bf16.msra.mxu0 %v10370
    %11162 = vmatpush.bf16.msra.mxu0 %v10362
    %11163 = vmatpush.bf16.msra.mxu0 %v10354
    %11164 = vmatpush.bf16.msra.mxu0 %v10346
    %11165 = vmatpush.bf16.msra.mxu0 %v10338
    %11166 = vmatmul.bf16.gmra.mxu0 %v8012
    %v11167 = vpop.f32.mrf.mxu0
    %v11168 = vadd.f32 %v11155, %v11167
    %v11169 = vpop.f32.mrf.mxu0
    %11170 = vdwg.mxu0
    %11171 = vmatpush.bf16.msra.mxu0 %v10458
    %11172 = vmatpush.bf16.msra.mxu0 %v10450
    %11173 = vmatpush.bf16.msra.mxu0 %v10442
    %11174 = vmatpush.bf16.msra.mxu0 %v10434
    %11175 = vmatpush.bf16.msra.mxu0 %v10426
    %11176 = vmatpush.bf16.msra.mxu0 %v10418
    %11177 = vmatpush.bf16.msra.mxu0 %v10410
    %11178 = vmatpush.bf16.msra.mxu0 %v10402
    %11179 = vmatmul.bf16.gmra.mxu0 %v8013
    %v11180 = vpop.f32.mrf.mxu0
    %v11181 = vadd.f32 %v11168, %v11180
    %v11182 = vpop.f32.mrf.mxu0
    %11183 = vdwg.mxu0
    %11184 = vmatpush.bf16.msra.mxu0 %v10522
    %11185 = vmatpush.bf16.msra.mxu0 %v10514
    %11186 = vmatpush.bf16.msra.mxu0 %v10506
    %11187 = vmatpush.bf16.msra.mxu0 %v10498
    %11188 = vmatpush.bf16.msra.mxu0 %v10490
    %11189 = vmatpush.bf16.msra.mxu0 %v10482
    %11190 = vmatpush.bf16.msra.mxu0 %v10474
    %11191 = vmatpush.bf16.msra.mxu0 %v10466
    %11192 = vmatmul.bf16.gmra.mxu0 %v8014
    %v11193 = vpop.f32.mrf.mxu0
    %v11194 = vadd.f32 %v11181, %v11193
    %v11195 = vpop.f32.mrf.mxu0
    %11196 = vdwg.mxu0
    %11197 = vmatpush.bf16.msra.mxu0 %v10586
    %11198 = vmatpush.bf16.msra.mxu0 %v10578
    %11199 = vmatpush.bf16.msra.mxu0 %v10570
    %11200 = vmatpush.bf16.msra.mxu0 %v10562
    %11201 = vmatpush.bf16.msra.mxu0 %v10554
    %11202 = vmatpush.bf16.msra.mxu0 %v10546
    %11203 = vmatpush.bf16.msra.mxu0 %v10538
    %11204 = vmatpush.bf16.msra.mxu0 %v10530
    %11205 = vmatmul.bf16.gmra.mxu0 %v8015
    %v11206 = vpop.f32.mrf.mxu0
    %v11207 = vadd.f32 %v11194, %v11206
    %v11208 = vpop.f32.mrf.mxu0
    %11209 = vdwg.mxu0
    %11210 = vmatpush.bf16.msra.mxu0 %v10139
    %11211 = vmatpush.bf16.msra.mxu0 %v10131
    %11212 = vmatpush.bf16.msra.mxu0 %v10123
    %11213 = vmatpush.bf16.msra.mxu0 %v10115
    %11214 = vmatpush.bf16.msra.mxu0 %v10107
    %11215 = vmatpush.bf16.msra.mxu0 %v10099
    %11216 = vmatpush.bf16.msra.mxu0 %v10091
    %11217 = vmatpush.bf16.msra.mxu0 %v10083
    %11218 = vmatmul.bf16.gmra.mxu0 %v8008
    %v11219 = vpop.f32.mrf.mxu0
    %v11220 = vadd.f32 %v8531, %v11219
    %v11221 = vpop.f32.mrf.mxu0
    %11222 = vdwg.mxu0
    %11223 = vmatpush.bf16.msra.mxu0 %v10203
    %11224 = vmatpush.bf16.msra.mxu0 %v10195
    %11225 = vmatpush.bf16.msra.mxu0 %v10187
    %11226 = vmatpush.bf16.msra.mxu0 %v10179
    %11227 = vmatpush.bf16.msra.mxu0 %v10171
    %11228 = vmatpush.bf16.msra.mxu0 %v10163
    %11229 = vmatpush.bf16.msra.mxu0 %v10155
    %11230 = vmatpush.bf16.msra.mxu0 %v10147
    %11231 = vmatmul.bf16.gmra.mxu0 %v8009
    %v11232 = vpop.f32.mrf.mxu0
    %v11233 = vadd.f32 %v11220, %v11232
    %v11234 = vpop.f32.mrf.mxu0
    %11235 = vdwg.mxu0
    %11236 = vmatpush.bf16.msra.mxu0 %v10267
    %11237 = vmatpush.bf16.msra.mxu0 %v10259
    %11238 = vmatpush.bf16.msra.mxu0 %v10251
    %11239 = vmatpush.bf16.msra.mxu0 %v10243
    %11240 = vmatpush.bf16.msra.mxu0 %v10235
    %11241 = vmatpush.bf16.msra.mxu0 %v10227
    %11242 = vmatpush.bf16.msra.mxu0 %v10219
    %11243 = vmatpush.bf16.msra.mxu0 %v10211
    %11244 = vmatmul.bf16.gmra.mxu0 %v8010
    %v11245 = vpop.f32.mrf.mxu0
    %v11246 = vadd.f32 %v11233, %v11245
    %v11247 = vpop.f32.mrf.mxu0
    %11248 = vdwg.mxu0
    %11249 = vmatpush.bf16.msra.mxu0 %v10331
    %11250 = vmatpush.bf16.msra.mxu0 %v10323
    %11251 = vmatpush.bf16.msra.mxu0 %v10315
    %11252 = vmatpush.bf16.msra.mxu0 %v10307
    %11253 = vmatpush.bf16.msra.mxu0 %v10299
    %11254 = vmatpush.bf16.msra.mxu0 %v10291
    %11255 = vmatpush.bf16.msra.mxu0 %v10283
    %11256 = vmatpush.bf16.msra.mxu0 %v10275
    %11257 = vmatmul.bf16.gmra.mxu0 %v8011
    %v11258 = vpop.f32.mrf.mxu0
    %v11259 = vadd.f32 %v11246, %v11258
    %v11260 = vpop.f32.mrf.mxu0
    %11261 = vdwg.mxu0
    %11262 = vmatpush.bf16.msra.mxu0 %v10395
    %11263 = vmatpush.bf16.msra.mxu0 %v10387
    %11264 = vmatpush.bf16.msra.mxu0 %v10379
    %11265 = vmatpush.bf16.msra.mxu0 %v10371
    %11266 = vmatpush.bf16.msra.mxu0 %v10363
    %11267 = vmatpush.bf16.msra.mxu0 %v10355
    %11268 = vmatpush.bf16.msra.mxu0 %v10347
    %11269 = vmatpush.bf16.msra.mxu0 %v10339
    %11270 = vmatmul.bf16.gmra.mxu0 %v8012
    %v11271 = vpop.f32.mrf.mxu0
    %v11272 = vadd.f32 %v11259, %v11271
    %v11273 = vpop.f32.mrf.mxu0
    %11274 = vdwg.mxu0
    %11275 = vmatpush.bf16.msra.mxu0 %v10459
    %11276 = vmatpush.bf16.msra.mxu0 %v10451
    %11277 = vmatpush.bf16.msra.mxu0 %v10443
    %11278 = vmatpush.bf16.msra.mxu0 %v10435
    %11279 = vmatpush.bf16.msra.mxu0 %v10427
    %11280 = vmatpush.bf16.msra.mxu0 %v10419
    %11281 = vmatpush.bf16.msra.mxu0 %v10411
    %11282 = vmatpush.bf16.msra.mxu0 %v10403
    %11283 = vmatmul.bf16.gmra.mxu0 %v8013
    %v11284 = vpop.f32.mrf.mxu0
    %v11285 = vadd.f32 %v11272, %v11284
    %v11286 = vpop.f32.mrf.mxu0
    %11287 = vdwg.mxu0
    %11288 = vmatpush.bf16.msra.mxu0 %v10523
    %11289 = vmatpush.bf16.msra.mxu0 %v10515
    %11290 = vmatpush.bf16.msra.mxu0 %v10507
    %11291 = vmatpush.bf16.msra.mxu0 %v10499
    %11292 = vmatpush.bf16.msra.mxu0 %v10491
    %11293 = vmatpush.bf16.msra.mxu0 %v10483
    %11294 = vmatpush.bf16.msra.mxu0 %v10475
    %11295 = vmatpush.bf16.msra.mxu0 %v10467
    %11296 = vmatmul.bf16.gmra.mxu0 %v8014
    %v11297 = vpop.f32.mrf.mxu0
    %v11298 = vadd.f32 %v11285, %v11297
    %v11299 = vpop.f32.mrf.mxu0
    %11300 = vdwg.mxu0
    %11301 = vmatpush.bf16.msra.mxu0 %v10587
    %11302 = vmatpush.bf16.msra.mxu0 %v10579
    %11303 = vmatpush.bf16.msra.mxu0 %v10571
    %11304 = vmatpush.bf16.msra.mxu0 %v10563
    %11305 = vmatpush.bf16.msra.mxu0 %v10555
    %11306 = vmatpush.bf16.msra.mxu0 %v10547
    %11307 = vmatpush.bf16.msra.mxu0 %v10539
    %11308 = vmatpush.bf16.msra.mxu0 %v10531
    %11309 = vmatmul.bf16.gmra.mxu0 %v8015
    %v11310 = vpop.f32.mrf.mxu0
    %v11311 = vadd.f32 %v11298, %v11310
    %v11312 = vpop.f32.mrf.mxu0
    %11313 = vdwg.mxu0
    %11314 = vmatpush.bf16.msra.mxu0 %v10140
    %11315 = vmatpush.bf16.msra.mxu0 %v10132
    %11316 = vmatpush.bf16.msra.mxu0 %v10124
    %11317 = vmatpush.bf16.msra.mxu0 %v10116
    %11318 = vmatpush.bf16.msra.mxu0 %v10108
    %11319 = vmatpush.bf16.msra.mxu0 %v10100
    %11320 = vmatpush.bf16.msra.mxu0 %v10092
    %11321 = vmatpush.bf16.msra.mxu0 %v10084
    %11322 = vmatmul.bf16.gmra.mxu0 %v8008
    %v11323 = vpop.f32.mrf.mxu0
    %v11324 = vadd.f32 %v8532, %v11323
    %v11325 = vpop.f32.mrf.mxu0
    %11326 = vdwg.mxu0
    %11327 = vmatpush.bf16.msra.mxu0 %v10204
    %11328 = vmatpush.bf16.msra.mxu0 %v10196
    %11329 = vmatpush.bf16.msra.mxu0 %v10188
    %11330 = vmatpush.bf16.msra.mxu0 %v10180
    %11331 = vmatpush.bf16.msra.mxu0 %v10172
    %11332 = vmatpush.bf16.msra.mxu0 %v10164
    %11333 = vmatpush.bf16.msra.mxu0 %v10156
    %11334 = vmatpush.bf16.msra.mxu0 %v10148
    %11335 = vmatmul.bf16.gmra.mxu0 %v8009
    %v11336 = vpop.f32.mrf.mxu0
    %v11337 = vadd.f32 %v11324, %v11336
    %v11338 = vpop.f32.mrf.mxu0
    %11339 = vdwg.mxu0
    %11340 = vmatpush.bf16.msra.mxu0 %v10268
    %11341 = vmatpush.bf16.msra.mxu0 %v10260
    %11342 = vmatpush.bf16.msra.mxu0 %v10252
    %11343 = vmatpush.bf16.msra.mxu0 %v10244
    %11344 = vmatpush.bf16.msra.mxu0 %v10236
    %11345 = vmatpush.bf16.msra.mxu0 %v10228
    %11346 = vmatpush.bf16.msra.mxu0 %v10220
    %11347 = vmatpush.bf16.msra.mxu0 %v10212
    %11348 = vmatmul.bf16.gmra.mxu0 %v8010
    %v11349 = vpop.f32.mrf.mxu0
    %v11350 = vadd.f32 %v11337, %v11349
    %v11351 = vpop.f32.mrf.mxu0
    %11352 = vdwg.mxu0
    %11353 = vmatpush.bf16.msra.mxu0 %v10332
    %11354 = vmatpush.bf16.msra.mxu0 %v10324
    %11355 = vmatpush.bf16.msra.mxu0 %v10316
    %11356 = vmatpush.bf16.msra.mxu0 %v10308
    %11357 = vmatpush.bf16.msra.mxu0 %v10300
    %11358 = vmatpush.bf16.msra.mxu0 %v10292
    %11359 = vmatpush.bf16.msra.mxu0 %v10284
    %11360 = vmatpush.bf16.msra.mxu0 %v10276
    %11361 = vmatmul.bf16.gmra.mxu0 %v8011
    %v11362 = vpop.f32.mrf.mxu0
    %v11363 = vadd.f32 %v11350, %v11362
    %v11364 = vpop.f32.mrf.mxu0
    %11365 = vdwg.mxu0
    %11366 = vmatpush.bf16.msra.mxu0 %v10396
    %11367 = vmatpush.bf16.msra.mxu0 %v10388
    %11368 = vmatpush.bf16.msra.mxu0 %v10380
    %11369 = vmatpush.bf16.msra.mxu0 %v10372
    %11370 = vmatpush.bf16.msra.mxu0 %v10364
    %11371 = vmatpush.bf16.msra.mxu0 %v10356
    %11372 = vmatpush.bf16.msra.mxu0 %v10348
    %11373 = vmatpush.bf16.msra.mxu0 %v10340
    %11374 = vmatmul.bf16.gmra.mxu0 %v8012
    %v11375 = vpop.f32.mrf.mxu0
    %v11376 = vadd.f32 %v11363, %v11375
    %v11377 = vpop.f32.mrf.mxu0
    %11378 = vdwg.mxu0
    %11379 = vmatpush.bf16.msra.mxu0 %v10460
    %11380 = vmatpush.bf16.msra.mxu0 %v10452
    %11381 = vmatpush.bf16.msra.mxu0 %v10444
    %11382 = vmatpush.bf16.msra.mxu0 %v10436
    %11383 = vmatpush.bf16.msra.mxu0 %v10428
    %11384 = vmatpush.bf16.msra.mxu0 %v10420
    %11385 = vmatpush.bf16.msra.mxu0 %v10412
    %11386 = vmatpush.bf16.msra.mxu0 %v10404
    %11387 = vmatmul.bf16.gmra.mxu0 %v8013
    %v11388 = vpop.f32.mrf.mxu0
    %v11389 = vadd.f32 %v11376, %v11388
    %v11390 = vpop.f32.mrf.mxu0
    %11391 = vdwg.mxu0
    %11392 = vmatpush.bf16.msra.mxu0 %v10524
    %11393 = vmatpush.bf16.msra.mxu0 %v10516
    %11394 = vmatpush.bf16.msra.mxu0 %v10508
    %11395 = vmatpush.bf16.msra.mxu0 %v10500
    %11396 = vmatpush.bf16.msra.mxu0 %v10492
    %11397 = vmatpush.bf16.msra.mxu0 %v10484
    %11398 = vmatpush.bf16.msra.mxu0 %v10476
    %11399 = vmatpush.bf16.msra.mxu0 %v10468
    %11400 = vmatmul.bf16.gmra.mxu0 %v8014
    %v11401 = vpop.f32.mrf.mxu0
    %v11402 = vadd.f32 %v11389, %v11401
    %v11403 = vpop.f32.mrf.mxu0
    %11404 = vdwg.mxu0
    %11405 = vmatpush.bf16.msra.mxu0 %v10588
    %11406 = vmatpush.bf16.msra.mxu0 %v10580
    %11407 = vmatpush.bf16.msra.mxu0 %v10572
    %11408 = vmatpush.bf16.msra.mxu0 %v10564
    %11409 = vmatpush.bf16.msra.mxu0 %v10556
    %11410 = vmatpush.bf16.msra.mxu0 %v10548
    %11411 = vmatpush.bf16.msra.mxu0 %v10540
    %11412 = vmatpush.bf16.msra.mxu0 %v10532
    %11413 = vmatmul.bf16.gmra.mxu0 %v8015
    %v11414 = vpop.f32.mrf.mxu0
    %v11415 = vadd.f32 %v11402, %v11414
    %v11416 = vpop.f32.mrf.mxu0
    %11417 = vdwg.mxu0
    %11418 = vmatpush.bf16.msra.mxu0 %v10141
    %11419 = vmatpush.bf16.msra.mxu0 %v10133
    %11420 = vmatpush.bf16.msra.mxu0 %v10125
    %11421 = vmatpush.bf16.msra.mxu0 %v10117
    %11422 = vmatpush.bf16.msra.mxu0 %v10109
    %11423 = vmatpush.bf16.msra.mxu0 %v10101
    %11424 = vmatpush.bf16.msra.mxu0 %v10093
    %11425 = vmatpush.bf16.msra.mxu0 %v10085
    %11426 = vmatmul.bf16.gmra.mxu0 %v8008
    %v11427 = vpop.f32.mrf.mxu0
    %v11428 = vadd.f32 %v8533, %v11427
    %v11429 = vpop.f32.mrf.mxu0
    %11430 = vdwg.mxu0
    %11431 = vmatpush.bf16.msra.mxu0 %v10205
    %11432 = vmatpush.bf16.msra.mxu0 %v10197
    %11433 = vmatpush.bf16.msra.mxu0 %v10189
    %11434 = vmatpush.bf16.msra.mxu0 %v10181
    %11435 = vmatpush.bf16.msra.mxu0 %v10173
    %11436 = vmatpush.bf16.msra.mxu0 %v10165
    %11437 = vmatpush.bf16.msra.mxu0 %v10157
    %11438 = vmatpush.bf16.msra.mxu0 %v10149
    %11439 = vmatmul.bf16.gmra.mxu0 %v8009
    %v11440 = vpop.f32.mrf.mxu0
    %v11441 = vadd.f32 %v11428, %v11440
    %v11442 = vpop.f32.mrf.mxu0
    %11443 = vdwg.mxu0
    %11444 = vmatpush.bf16.msra.mxu0 %v10269
    %11445 = vmatpush.bf16.msra.mxu0 %v10261
    %11446 = vmatpush.bf16.msra.mxu0 %v10253
    %11447 = vmatpush.bf16.msra.mxu0 %v10245
    %11448 = vmatpush.bf16.msra.mxu0 %v10237
    %11449 = vmatpush.bf16.msra.mxu0 %v10229
    %11450 = vmatpush.bf16.msra.mxu0 %v10221
    %11451 = vmatpush.bf16.msra.mxu0 %v10213
    %11452 = vmatmul.bf16.gmra.mxu0 %v8010
    %v11453 = vpop.f32.mrf.mxu0
    %v11454 = vadd.f32 %v11441, %v11453
    %v11455 = vpop.f32.mrf.mxu0
    %11456 = vdwg.mxu0
    %11457 = vmatpush.bf16.msra.mxu0 %v10333
    %11458 = vmatpush.bf16.msra.mxu0 %v10325
    %11459 = vmatpush.bf16.msra.mxu0 %v10317
    %11460 = vmatpush.bf16.msra.mxu0 %v10309
    %11461 = vmatpush.bf16.msra.mxu0 %v10301
    %11462 = vmatpush.bf16.msra.mxu0 %v10293
    %11463 = vmatpush.bf16.msra.mxu0 %v10285
    %11464 = vmatpush.bf16.msra.mxu0 %v10277
    %11465 = vmatmul.bf16.gmra.mxu0 %v8011
    %v11466 = vpop.f32.mrf.mxu0
    %v11467 = vadd.f32 %v11454, %v11466
    %v11468 = vpop.f32.mrf.mxu0
    %11469 = vdwg.mxu0
    %11470 = vmatpush.bf16.msra.mxu0 %v10397
    %11471 = vmatpush.bf16.msra.mxu0 %v10389
    %11472 = vmatpush.bf16.msra.mxu0 %v10381
    %11473 = vmatpush.bf16.msra.mxu0 %v10373
    %11474 = vmatpush.bf16.msra.mxu0 %v10365
    %11475 = vmatpush.bf16.msra.mxu0 %v10357
    %11476 = vmatpush.bf16.msra.mxu0 %v10349
    %11477 = vmatpush.bf16.msra.mxu0 %v10341
    %11478 = vmatmul.bf16.gmra.mxu0 %v8012
    %v11479 = vpop.f32.mrf.mxu0
    %v11480 = vadd.f32 %v11467, %v11479
    %v11481 = vpop.f32.mrf.mxu0
    %11482 = vdwg.mxu0
    %11483 = vmatpush.bf16.msra.mxu0 %v10461
    %11484 = vmatpush.bf16.msra.mxu0 %v10453
    %11485 = vmatpush.bf16.msra.mxu0 %v10445
    %11486 = vmatpush.bf16.msra.mxu0 %v10437
    %11487 = vmatpush.bf16.msra.mxu0 %v10429
    %11488 = vmatpush.bf16.msra.mxu0 %v10421
    %11489 = vmatpush.bf16.msra.mxu0 %v10413
    %11490 = vmatpush.bf16.msra.mxu0 %v10405
    %11491 = vmatmul.bf16.gmra.mxu0 %v8013
    %v11492 = vpop.f32.mrf.mxu0
    %v11493 = vadd.f32 %v11480, %v11492
    %v11494 = vpop.f32.mrf.mxu0
    %11495 = vdwg.mxu0
    %11496 = vmatpush.bf16.msra.mxu0 %v10525
    %11497 = vmatpush.bf16.msra.mxu0 %v10517
    %11498 = vmatpush.bf16.msra.mxu0 %v10509
    %11499 = vmatpush.bf16.msra.mxu0 %v10501
    %11500 = vmatpush.bf16.msra.mxu0 %v10493
    %11501 = vmatpush.bf16.msra.mxu0 %v10485
    %11502 = vmatpush.bf16.msra.mxu0 %v10477
    %11503 = vmatpush.bf16.msra.mxu0 %v10469
    %11504 = vmatmul.bf16.gmra.mxu0 %v8014
    %v11505 = vpop.f32.mrf.mxu0
    %v11506 = vadd.f32 %v11493, %v11505
    %v11507 = vpop.f32.mrf.mxu0
    %11508 = vdwg.mxu0
    %11509 = vmatpush.bf16.msra.mxu0 %v10589
    %11510 = vmatpush.bf16.msra.mxu0 %v10581
    %11511 = vmatpush.bf16.msra.mxu0 %v10573
    %11512 = vmatpush.bf16.msra.mxu0 %v10565
    %11513 = vmatpush.bf16.msra.mxu0 %v10557
    %11514 = vmatpush.bf16.msra.mxu0 %v10549
    %11515 = vmatpush.bf16.msra.mxu0 %v10541
    %11516 = vmatpush.bf16.msra.mxu0 %v10533
    %11517 = vmatmul.bf16.gmra.mxu0 %v8015
    %v11518 = vpop.f32.mrf.mxu0
    %v11519 = vadd.f32 %v11506, %v11518
    %v11520 = vpop.f32.mrf.mxu0
    %11521 = vdwg.mxu0
    %11522 = vmatpush.bf16.msra.mxu0 %v10142
    %11523 = vmatpush.bf16.msra.mxu0 %v10134
    %11524 = vmatpush.bf16.msra.mxu0 %v10126
    %11525 = vmatpush.bf16.msra.mxu0 %v10118
    %11526 = vmatpush.bf16.msra.mxu0 %v10110
    %11527 = vmatpush.bf16.msra.mxu0 %v10102
    %11528 = vmatpush.bf16.msra.mxu0 %v10094
    %11529 = vmatpush.bf16.msra.mxu0 %v10086
    %11530 = vmatmul.bf16.gmra.mxu0 %v8008
    %v11531 = vpop.f32.mrf.mxu0
    %v11532 = vadd.f32 %v8534, %v11531
    %v11533 = vpop.f32.mrf.mxu0
    %11534 = vdwg.mxu0
    %11535 = vmatpush.bf16.msra.mxu0 %v10206
    %11536 = vmatpush.bf16.msra.mxu0 %v10198
    %11537 = vmatpush.bf16.msra.mxu0 %v10190
    %11538 = vmatpush.bf16.msra.mxu0 %v10182
    %11539 = vmatpush.bf16.msra.mxu0 %v10174
    %11540 = vmatpush.bf16.msra.mxu0 %v10166
    %11541 = vmatpush.bf16.msra.mxu0 %v10158
    %11542 = vmatpush.bf16.msra.mxu0 %v10150
    %11543 = vmatmul.bf16.gmra.mxu0 %v8009
    %v11544 = vpop.f32.mrf.mxu0
    %v11545 = vadd.f32 %v11532, %v11544
    %v11546 = vpop.f32.mrf.mxu0
    %11547 = vdwg.mxu0
    %11548 = vmatpush.bf16.msra.mxu0 %v10270
    %11549 = vmatpush.bf16.msra.mxu0 %v10262
    %11550 = vmatpush.bf16.msra.mxu0 %v10254
    %11551 = vmatpush.bf16.msra.mxu0 %v10246
    %11552 = vmatpush.bf16.msra.mxu0 %v10238
    %11553 = vmatpush.bf16.msra.mxu0 %v10230
    %11554 = vmatpush.bf16.msra.mxu0 %v10222
    %11555 = vmatpush.bf16.msra.mxu0 %v10214
    %11556 = vmatmul.bf16.gmra.mxu0 %v8010
    %v11557 = vpop.f32.mrf.mxu0
    %v11558 = vadd.f32 %v11545, %v11557
    %v11559 = vpop.f32.mrf.mxu0
    %11560 = vdwg.mxu0
    %11561 = vmatpush.bf16.msra.mxu0 %v10334
    %11562 = vmatpush.bf16.msra.mxu0 %v10326
    %11563 = vmatpush.bf16.msra.mxu0 %v10318
    %11564 = vmatpush.bf16.msra.mxu0 %v10310
    %11565 = vmatpush.bf16.msra.mxu0 %v10302
    %11566 = vmatpush.bf16.msra.mxu0 %v10294
    %11567 = vmatpush.bf16.msra.mxu0 %v10286
    %11568 = vmatpush.bf16.msra.mxu0 %v10278
    %11569 = vmatmul.bf16.gmra.mxu0 %v8011
    %v11570 = vpop.f32.mrf.mxu0
    %v11571 = vadd.f32 %v11558, %v11570
    %v11572 = vpop.f32.mrf.mxu0
    %11573 = vdwg.mxu0
    %11574 = vmatpush.bf16.msra.mxu0 %v10398
    %11575 = vmatpush.bf16.msra.mxu0 %v10390
    %11576 = vmatpush.bf16.msra.mxu0 %v10382
    %11577 = vmatpush.bf16.msra.mxu0 %v10374
    %11578 = vmatpush.bf16.msra.mxu0 %v10366
    %11579 = vmatpush.bf16.msra.mxu0 %v10358
    %11580 = vmatpush.bf16.msra.mxu0 %v10350
    %11581 = vmatpush.bf16.msra.mxu0 %v10342
    %11582 = vmatmul.bf16.gmra.mxu0 %v8012
    %v11583 = vpop.f32.mrf.mxu0
    %v11584 = vadd.f32 %v11571, %v11583
    %v11585 = vpop.f32.mrf.mxu0
    %11586 = vdwg.mxu0
    %11587 = vmatpush.bf16.msra.mxu0 %v10462
    %11588 = vmatpush.bf16.msra.mxu0 %v10454
    %11589 = vmatpush.bf16.msra.mxu0 %v10446
    %11590 = vmatpush.bf16.msra.mxu0 %v10438
    %11591 = vmatpush.bf16.msra.mxu0 %v10430
    %11592 = vmatpush.bf16.msra.mxu0 %v10422
    %11593 = vmatpush.bf16.msra.mxu0 %v10414
    %11594 = vmatpush.bf16.msra.mxu0 %v10406
    %11595 = vmatmul.bf16.gmra.mxu0 %v8013
    %v11596 = vpop.f32.mrf.mxu0
    %v11597 = vadd.f32 %v11584, %v11596
    %v11598 = vpop.f32.mrf.mxu0
    %11599 = vdwg.mxu0
    %11600 = vmatpush.bf16.msra.mxu0 %v10526
    %11601 = vmatpush.bf16.msra.mxu0 %v10518
    %11602 = vmatpush.bf16.msra.mxu0 %v10510
    %11603 = vmatpush.bf16.msra.mxu0 %v10502
    %11604 = vmatpush.bf16.msra.mxu0 %v10494
    %11605 = vmatpush.bf16.msra.mxu0 %v10486
    %11606 = vmatpush.bf16.msra.mxu0 %v10478
    %11607 = vmatpush.bf16.msra.mxu0 %v10470
    %11608 = vmatmul.bf16.gmra.mxu0 %v8014
    %v11609 = vpop.f32.mrf.mxu0
    %v11610 = vadd.f32 %v11597, %v11609
    %v11611 = vpop.f32.mrf.mxu0
    %11612 = vdwg.mxu0
    %11613 = vmatpush.bf16.msra.mxu0 %v10590
    %11614 = vmatpush.bf16.msra.mxu0 %v10582
    %11615 = vmatpush.bf16.msra.mxu0 %v10574
    %11616 = vmatpush.bf16.msra.mxu0 %v10566
    %11617 = vmatpush.bf16.msra.mxu0 %v10558
    %11618 = vmatpush.bf16.msra.mxu0 %v10550
    %11619 = vmatpush.bf16.msra.mxu0 %v10542
    %11620 = vmatpush.bf16.msra.mxu0 %v10534
    %11621 = vmatmul.bf16.gmra.mxu0 %v8015
    %v11622 = vpop.f32.mrf.mxu0
    %v11623 = vadd.f32 %v11610, %v11622
    %v11624 = vpop.f32.mrf.mxu0
    %11625 = vdwg.mxu0
    %11626 = vmatpush.bf16.msra.mxu0 %v10143
    %11627 = vmatpush.bf16.msra.mxu0 %v10135
    %11628 = vmatpush.bf16.msra.mxu0 %v10127
    %11629 = vmatpush.bf16.msra.mxu0 %v10119
    %11630 = vmatpush.bf16.msra.mxu0 %v10111
    %11631 = vmatpush.bf16.msra.mxu0 %v10103
    %11632 = vmatpush.bf16.msra.mxu0 %v10095
    %11633 = vmatpush.bf16.msra.mxu0 %v10087
    %11634 = vmatmul.bf16.gmra.mxu0 %v8008
    %v11635 = vpop.f32.mrf.mxu0
    %v11636 = vadd.f32 %v8535, %v11635
    %v11637 = vpop.f32.mrf.mxu0
    %11638 = vdwg.mxu0
    %11639 = vmatpush.bf16.msra.mxu0 %v10207
    %11640 = vmatpush.bf16.msra.mxu0 %v10199
    %11641 = vmatpush.bf16.msra.mxu0 %v10191
    %11642 = vmatpush.bf16.msra.mxu0 %v10183
    %11643 = vmatpush.bf16.msra.mxu0 %v10175
    %11644 = vmatpush.bf16.msra.mxu0 %v10167
    %11645 = vmatpush.bf16.msra.mxu0 %v10159
    %11646 = vmatpush.bf16.msra.mxu0 %v10151
    %11647 = vmatmul.bf16.gmra.mxu0 %v8009
    %v11648 = vpop.f32.mrf.mxu0
    %v11649 = vadd.f32 %v11636, %v11648
    %v11650 = vpop.f32.mrf.mxu0
    %11651 = vdwg.mxu0
    %11652 = vmatpush.bf16.msra.mxu0 %v10271
    %11653 = vmatpush.bf16.msra.mxu0 %v10263
    %11654 = vmatpush.bf16.msra.mxu0 %v10255
    %11655 = vmatpush.bf16.msra.mxu0 %v10247
    %11656 = vmatpush.bf16.msra.mxu0 %v10239
    %11657 = vmatpush.bf16.msra.mxu0 %v10231
    %11658 = vmatpush.bf16.msra.mxu0 %v10223
    %11659 = vmatpush.bf16.msra.mxu0 %v10215
    %11660 = vmatmul.bf16.gmra.mxu0 %v8010
    %v11661 = vpop.f32.mrf.mxu0
    %v11662 = vadd.f32 %v11649, %v11661
    %v11663 = vpop.f32.mrf.mxu0
    %11664 = vdwg.mxu0
    %11665 = vmatpush.bf16.msra.mxu0 %v10335
    %11666 = vmatpush.bf16.msra.mxu0 %v10327
    %11667 = vmatpush.bf16.msra.mxu0 %v10319
    %11668 = vmatpush.bf16.msra.mxu0 %v10311
    %11669 = vmatpush.bf16.msra.mxu0 %v10303
    %11670 = vmatpush.bf16.msra.mxu0 %v10295
    %11671 = vmatpush.bf16.msra.mxu0 %v10287
    %11672 = vmatpush.bf16.msra.mxu0 %v10279
    %11673 = vmatmul.bf16.gmra.mxu0 %v8011
    %v11674 = vpop.f32.mrf.mxu0
    %v11675 = vadd.f32 %v11662, %v11674
    %v11676 = vpop.f32.mrf.mxu0
    %11677 = vdwg.mxu0
    %11678 = vmatpush.bf16.msra.mxu0 %v10399
    %11679 = vmatpush.bf16.msra.mxu0 %v10391
    %11680 = vmatpush.bf16.msra.mxu0 %v10383
    %11681 = vmatpush.bf16.msra.mxu0 %v10375
    %11682 = vmatpush.bf16.msra.mxu0 %v10367
    %11683 = vmatpush.bf16.msra.mxu0 %v10359
    %11684 = vmatpush.bf16.msra.mxu0 %v10351
    %11685 = vmatpush.bf16.msra.mxu0 %v10343
    %11686 = vmatmul.bf16.gmra.mxu0 %v8012
    %v11687 = vpop.f32.mrf.mxu0
    %v11688 = vadd.f32 %v11675, %v11687
    %v11689 = vpop.f32.mrf.mxu0
    %11690 = vdwg.mxu0
    %11691 = vmatpush.bf16.msra.mxu0 %v10463
    %11692 = vmatpush.bf16.msra.mxu0 %v10455
    %11693 = vmatpush.bf16.msra.mxu0 %v10447
    %11694 = vmatpush.bf16.msra.mxu0 %v10439
    %11695 = vmatpush.bf16.msra.mxu0 %v10431
    %11696 = vmatpush.bf16.msra.mxu0 %v10423
    %11697 = vmatpush.bf16.msra.mxu0 %v10415
    %11698 = vmatpush.bf16.msra.mxu0 %v10407
    %11699 = vmatmul.bf16.gmra.mxu0 %v8013
    %v11700 = vpop.f32.mrf.mxu0
    %v11701 = vadd.f32 %v11688, %v11700
    %v11702 = vpop.f32.mrf.mxu0
    %11703 = vdwg.mxu0
    %11704 = vmatpush.bf16.msra.mxu0 %v10527
    %11705 = vmatpush.bf16.msra.mxu0 %v10519
    %11706 = vmatpush.bf16.msra.mxu0 %v10511
    %11707 = vmatpush.bf16.msra.mxu0 %v10503
    %11708 = vmatpush.bf16.msra.mxu0 %v10495
    %11709 = vmatpush.bf16.msra.mxu0 %v10487
    %11710 = vmatpush.bf16.msra.mxu0 %v10479
    %11711 = vmatpush.bf16.msra.mxu0 %v10471
    %11712 = vmatmul.bf16.gmra.mxu0 %v8014
    %v11713 = vpop.f32.mrf.mxu0
    %v11714 = vadd.f32 %v11701, %v11713
    %v11715 = vpop.f32.mrf.mxu0
    %11716 = vdwg.mxu0
    %11717 = vmatpush.bf16.msra.mxu0 %v10591
    %11718 = vmatpush.bf16.msra.mxu0 %v10583
    %11719 = vmatpush.bf16.msra.mxu0 %v10575
    %11720 = vmatpush.bf16.msra.mxu0 %v10567
    %11721 = vmatpush.bf16.msra.mxu0 %v10559
    %11722 = vmatpush.bf16.msra.mxu0 %v10551
    %11723 = vmatpush.bf16.msra.mxu0 %v10543
    %11724 = vmatpush.bf16.msra.mxu0 %v10535
    %11725 = vmatmul.bf16.gmra.mxu0 %v8015
    %v11726 = vpop.f32.mrf.mxu0
    %v11727 = vadd.f32 %v11714, %v11726
    %v11728 = vpop.f32.mrf.mxu0
    %11729 = vdwg.mxu0
    %11730 = vmatpush.bf16.msra.mxu0 %v10144
    %11731 = vmatpush.bf16.msra.mxu0 %v10136
    %11732 = vmatpush.bf16.msra.mxu0 %v10128
    %11733 = vmatpush.bf16.msra.mxu0 %v10120
    %11734 = vmatpush.bf16.msra.mxu0 %v10112
    %11735 = vmatpush.bf16.msra.mxu0 %v10104
    %11736 = vmatpush.bf16.msra.mxu0 %v10096
    %11737 = vmatpush.bf16.msra.mxu0 %v10088
    %11738 = vmatmul.bf16.gmra.mxu0 %v8008
    %v11739 = vpop.f32.mrf.mxu0
    %v11740 = vadd.f32 %v8536, %v11739
    %v11741 = vpop.f32.mrf.mxu0
    %11742 = vdwg.mxu0
    %11743 = vmatpush.bf16.msra.mxu0 %v10208
    %11744 = vmatpush.bf16.msra.mxu0 %v10200
    %11745 = vmatpush.bf16.msra.mxu0 %v10192
    %11746 = vmatpush.bf16.msra.mxu0 %v10184
    %11747 = vmatpush.bf16.msra.mxu0 %v10176
    %11748 = vmatpush.bf16.msra.mxu0 %v10168
    %11749 = vmatpush.bf16.msra.mxu0 %v10160
    %11750 = vmatpush.bf16.msra.mxu0 %v10152
    %11751 = vmatmul.bf16.gmra.mxu0 %v8009
    %v11752 = vpop.f32.mrf.mxu0
    %v11753 = vadd.f32 %v11740, %v11752
    %v11754 = vpop.f32.mrf.mxu0
    %11755 = vdwg.mxu0
    %11756 = vmatpush.bf16.msra.mxu0 %v10272
    %11757 = vmatpush.bf16.msra.mxu0 %v10264
    %11758 = vmatpush.bf16.msra.mxu0 %v10256
    %11759 = vmatpush.bf16.msra.mxu0 %v10248
    %11760 = vmatpush.bf16.msra.mxu0 %v10240
    %11761 = vmatpush.bf16.msra.mxu0 %v10232
    %11762 = vmatpush.bf16.msra.mxu0 %v10224
    %11763 = vmatpush.bf16.msra.mxu0 %v10216
    %11764 = vmatmul.bf16.gmra.mxu0 %v8010
    %v11765 = vpop.f32.mrf.mxu0
    %v11766 = vadd.f32 %v11753, %v11765
    %v11767 = vpop.f32.mrf.mxu0
    %11768 = vdwg.mxu0
    %11769 = vmatpush.bf16.msra.mxu0 %v10336
    %11770 = vmatpush.bf16.msra.mxu0 %v10328
    %11771 = vmatpush.bf16.msra.mxu0 %v10320
    %11772 = vmatpush.bf16.msra.mxu0 %v10312
    %11773 = vmatpush.bf16.msra.mxu0 %v10304
    %11774 = vmatpush.bf16.msra.mxu0 %v10296
    %11775 = vmatpush.bf16.msra.mxu0 %v10288
    %11776 = vmatpush.bf16.msra.mxu0 %v10280
    %11777 = vmatmul.bf16.gmra.mxu0 %v8011
    %v11778 = vpop.f32.mrf.mxu0
    %v11779 = vadd.f32 %v11766, %v11778
    %v11780 = vpop.f32.mrf.mxu0
    %11781 = vdwg.mxu0
    %11782 = vmatpush.bf16.msra.mxu0 %v10400
    %11783 = vmatpush.bf16.msra.mxu0 %v10392
    %11784 = vmatpush.bf16.msra.mxu0 %v10384
    %11785 = vmatpush.bf16.msra.mxu0 %v10376
    %11786 = vmatpush.bf16.msra.mxu0 %v10368
    %11787 = vmatpush.bf16.msra.mxu0 %v10360
    %11788 = vmatpush.bf16.msra.mxu0 %v10352
    %11789 = vmatpush.bf16.msra.mxu0 %v10344
    %11790 = vmatmul.bf16.gmra.mxu0 %v8012
    %v11791 = vpop.f32.mrf.mxu0
    %v11792 = vadd.f32 %v11779, %v11791
    %v11793 = vpop.f32.mrf.mxu0
    %11794 = vdwg.mxu0
    %11795 = vmatpush.bf16.msra.mxu0 %v10464
    %11796 = vmatpush.bf16.msra.mxu0 %v10456
    %11797 = vmatpush.bf16.msra.mxu0 %v10448
    %11798 = vmatpush.bf16.msra.mxu0 %v10440
    %11799 = vmatpush.bf16.msra.mxu0 %v10432
    %11800 = vmatpush.bf16.msra.mxu0 %v10424
    %11801 = vmatpush.bf16.msra.mxu0 %v10416
    %11802 = vmatpush.bf16.msra.mxu0 %v10408
    %11803 = vmatmul.bf16.gmra.mxu0 %v8013
    %v11804 = vpop.f32.mrf.mxu0
    %v11805 = vadd.f32 %v11792, %v11804
    %v11806 = vpop.f32.mrf.mxu0
    %11807 = vdwg.mxu0
    %11808 = vmatpush.bf16.msra.mxu0 %v10528
    %11809 = vmatpush.bf16.msra.mxu0 %v10520
    %11810 = vmatpush.bf16.msra.mxu0 %v10512
    %11811 = vmatpush.bf16.msra.mxu0 %v10504
    %11812 = vmatpush.bf16.msra.mxu0 %v10496
    %11813 = vmatpush.bf16.msra.mxu0 %v10488
    %11814 = vmatpush.bf16.msra.mxu0 %v10480
    %11815 = vmatpush.bf16.msra.mxu0 %v10472
    %11816 = vmatmul.bf16.gmra.mxu0 %v8014
    %v11817 = vpop.f32.mrf.mxu0
    %v11818 = vadd.f32 %v11805, %v11817
    %v11819 = vpop.f32.mrf.mxu0
    %11820 = vdwg.mxu0
    %11821 = vmatpush.bf16.msra.mxu0 %v10592
    %11822 = vmatpush.bf16.msra.mxu0 %v10584
    %11823 = vmatpush.bf16.msra.mxu0 %v10576
    %11824 = vmatpush.bf16.msra.mxu0 %v10568
    %11825 = vmatpush.bf16.msra.mxu0 %v10560
    %11826 = vmatpush.bf16.msra.mxu0 %v10552
    %11827 = vmatpush.bf16.msra.mxu0 %v10544
    %11828 = vmatpush.bf16.msra.mxu0 %v10536
    %11829 = vmatmul.bf16.gmra.mxu0 %v8015
    %v11830 = vpop.f32.mrf.mxu0
    %v11831 = vadd.f32 %v11818, %v11830
    %v11832 = vpop.f32.mrf.mxu0
    %11833 = vdwg.mxu0
    %11834 = vmatpush.bf16.msra.mxu0 %v10145
    %11835 = vmatpush.bf16.msra.mxu0 %v10137
    %11836 = vmatpush.bf16.msra.mxu0 %v10129
    %11837 = vmatpush.bf16.msra.mxu0 %v10121
    %11838 = vmatpush.bf16.msra.mxu0 %v10113
    %11839 = vmatpush.bf16.msra.mxu0 %v10105
    %11840 = vmatpush.bf16.msra.mxu0 %v10097
    %11841 = vmatpush.bf16.msra.mxu0 %v10089
    %11842 = vmatmul.bf16.gmra.mxu0 %v8008
    %v11843 = vpop.f32.mrf.mxu0
    %v11844 = vadd.f32 %v8537, %v11843
    %v11845 = vpop.f32.mrf.mxu0
    %11846 = vdwg.mxu0
    %11847 = vmatpush.bf16.msra.mxu0 %v10209
    %11848 = vmatpush.bf16.msra.mxu0 %v10201
    %11849 = vmatpush.bf16.msra.mxu0 %v10193
    %11850 = vmatpush.bf16.msra.mxu0 %v10185
    %11851 = vmatpush.bf16.msra.mxu0 %v10177
    %11852 = vmatpush.bf16.msra.mxu0 %v10169
    %11853 = vmatpush.bf16.msra.mxu0 %v10161
    %11854 = vmatpush.bf16.msra.mxu0 %v10153
    %11855 = vmatmul.bf16.gmra.mxu0 %v8009
    %v11856 = vpop.f32.mrf.mxu0
    %v11857 = vadd.f32 %v11844, %v11856
    %v11858 = vpop.f32.mrf.mxu0
    %11859 = vdwg.mxu0
    %11860 = vmatpush.bf16.msra.mxu0 %v10273
    %11861 = vmatpush.bf16.msra.mxu0 %v10265
    %11862 = vmatpush.bf16.msra.mxu0 %v10257
    %11863 = vmatpush.bf16.msra.mxu0 %v10249
    %11864 = vmatpush.bf16.msra.mxu0 %v10241
    %11865 = vmatpush.bf16.msra.mxu0 %v10233
    %11866 = vmatpush.bf16.msra.mxu0 %v10225
    %11867 = vmatpush.bf16.msra.mxu0 %v10217
    %11868 = vmatmul.bf16.gmra.mxu0 %v8010
    %v11869 = vpop.f32.mrf.mxu0
    %v11870 = vadd.f32 %v11857, %v11869
    %v11871 = vpop.f32.mrf.mxu0
    %11872 = vdwg.mxu0
    %11873 = vmatpush.bf16.msra.mxu0 %v10337
    %11874 = vmatpush.bf16.msra.mxu0 %v10329
    %11875 = vmatpush.bf16.msra.mxu0 %v10321
    %11876 = vmatpush.bf16.msra.mxu0 %v10313
    %11877 = vmatpush.bf16.msra.mxu0 %v10305
    %11878 = vmatpush.bf16.msra.mxu0 %v10297
    %11879 = vmatpush.bf16.msra.mxu0 %v10289
    %11880 = vmatpush.bf16.msra.mxu0 %v10281
    %11881 = vmatmul.bf16.gmra.mxu0 %v8011
    %v11882 = vpop.f32.mrf.mxu0
    %v11883 = vadd.f32 %v11870, %v11882
    %v11884 = vpop.f32.mrf.mxu0
    %11885 = vdwg.mxu0
    %11886 = vmatpush.bf16.msra.mxu0 %v10401
    %11887 = vmatpush.bf16.msra.mxu0 %v10393
    %11888 = vmatpush.bf16.msra.mxu0 %v10385
    %11889 = vmatpush.bf16.msra.mxu0 %v10377
    %11890 = vmatpush.bf16.msra.mxu0 %v10369
    %11891 = vmatpush.bf16.msra.mxu0 %v10361
    %11892 = vmatpush.bf16.msra.mxu0 %v10353
    %11893 = vmatpush.bf16.msra.mxu0 %v10345
    %11894 = vmatmul.bf16.gmra.mxu0 %v8012
    %v11895 = vpop.f32.mrf.mxu0
    %v11896 = vadd.f32 %v11883, %v11895
    %v11897 = vpop.f32.mrf.mxu0
    %11898 = vdwg.mxu0
    %11899 = vmatpush.bf16.msra.mxu0 %v10465
    %11900 = vmatpush.bf16.msra.mxu0 %v10457
    %11901 = vmatpush.bf16.msra.mxu0 %v10449
    %11902 = vmatpush.bf16.msra.mxu0 %v10441
    %11903 = vmatpush.bf16.msra.mxu0 %v10433
    %11904 = vmatpush.bf16.msra.mxu0 %v10425
    %11905 = vmatpush.bf16.msra.mxu0 %v10417
    %11906 = vmatpush.bf16.msra.mxu0 %v10409
    %11907 = vmatmul.bf16.gmra.mxu0 %v8013
    %v11908 = vpop.f32.mrf.mxu0
    %v11909 = vadd.f32 %v11896, %v11908
    %v11910 = vpop.f32.mrf.mxu0
    %11911 = vdwg.mxu0
    %11912 = vmatpush.bf16.msra.mxu0 %v10529
    %11913 = vmatpush.bf16.msra.mxu0 %v10521
    %11914 = vmatpush.bf16.msra.mxu0 %v10513
    %11915 = vmatpush.bf16.msra.mxu0 %v10505
    %11916 = vmatpush.bf16.msra.mxu0 %v10497
    %11917 = vmatpush.bf16.msra.mxu0 %v10489
    %11918 = vmatpush.bf16.msra.mxu0 %v10481
    %11919 = vmatpush.bf16.msra.mxu0 %v10473
    %11920 = vmatmul.bf16.gmra.mxu0 %v8014
    %v11921 = vpop.f32.mrf.mxu0
    %v11922 = vadd.f32 %v11909, %v11921
    %v11923 = vpop.f32.mrf.mxu0
    %11924 = vdwg.mxu0
    %11925 = vmatpush.bf16.msra.mxu0 %v10593
    %11926 = vmatpush.bf16.msra.mxu0 %v10585
    %11927 = vmatpush.bf16.msra.mxu0 %v10577
    %11928 = vmatpush.bf16.msra.mxu0 %v10569
    %11929 = vmatpush.bf16.msra.mxu0 %v10561
    %11930 = vmatpush.bf16.msra.mxu0 %v10553
    %11931 = vmatpush.bf16.msra.mxu0 %v10545
    %11932 = vmatpush.bf16.msra.mxu0 %v10537
    %11933 = vmatmul.bf16.gmra.mxu0 %v8015
    %v11934 = vpop.f32.mrf.mxu0
    %v11935 = vadd.f32 %v11922, %v11934
    %v11936 = vpop.f32.mrf.mxu0
    %11937 = vdwg.mxu0
    %v11938 = vmax.f32 %v11207, 0.0
    %v11939 = vmax.f32 %v11311, 0.0
    %v11940 = vmax.f32 %v11415, 0.0
    %v11941 = vmax.f32 %v11519, 0.0
    %v11942 = vmax.f32 %v11623, 0.0
    %v11943 = vmax.f32 %v11727, 0.0
    %v11944 = vmax.f32 %v11831, 0.0
    %v11945 = vmax.f32 %v11935, 0.0
    %v11946 = vpack.c.bf16 %v11939, %v11938
    %v11947 = vpack.c.bf16 %v11941, %v11940
    %v11948 = vpack.c.bf16 %v11943, %v11942
    %v11949 = vpack.c.bf16 %v11945, %v11944
    %v11950 = vld [vmem:[#allocation21] sm:$0xf]
    %v11951 = vld [vmem:[#allocation21 + $0x4] sm:$0xf]
    %v11952 = vld [vmem:[#allocation21 + $0x8] sm:$0xf]
    %v11953 = vld [vmem:[#allocation21 + $0xc] sm:$0xf]
    %v11954 = vld [vmem:[#allocation21 + $0x10] sm:$0xf]
    %v11955 = vld [vmem:[#allocation21 + $0x14] sm:$0xf]
    %v11956 = vld [vmem:[#allocation21 + $0x18] sm:$0xf]
    %v11957 = vld [vmem:[#allocation21 + $0x1c] sm:$0xf]
    %v11958 = vld [vmem:[#allocation21 + $0x20] sm:$0xf]
    %v11959 = vld [vmem:[#allocation21 + $0x24] sm:$0xf]
    %v11960 = vld [vmem:[#allocation21 + $0x28] sm:$0xf]
    %v11961 = vld [vmem:[#allocation21 + $0x2c] sm:$0xf]
    %v11962 = vld [vmem:[#allocation21 + $0x30] sm:$0xf]
    %v11963 = vld [vmem:[#allocation21 + $0x34] sm:$0xf]
    %v11964 = vld [vmem:[#allocation21 + $0x38] sm:$0xf]
    %v11965 = vld [vmem:[#allocation21 + $0x3c] sm:$0xf]
    %v11966 = vld [vmem:[#allocation21 + $0x40] sm:$0xf]
    %v11967 = vld [vmem:[#allocation21 + $0x44] sm:$0xf]
    %v11968 = vld [vmem:[#allocation21 + $0x48] sm:$0xf]
    %v11969 = vld [vmem:[#allocation21 + $0x4c] sm:$0xf]
    %v11970 = vld [vmem:[#allocation21 + $0x50] sm:$0xf]
    %v11971 = vld [vmem:[#allocation21 + $0x54] sm:$0xf]
    %v11972 = vld [vmem:[#allocation21 + $0x58] sm:$0xf]
    %v11973 = vld [vmem:[#allocation21 + $0x5c] sm:$0xf]
    %v11974 = vld [vmem:[#allocation21 + $0x60] sm:$0xf]
    %v11975 = vld [vmem:[#allocation21 + $0x64] sm:$0xf]
    %v11976 = vld [vmem:[#allocation21 + $0x68] sm:$0xf]
    %v11977 = vld [vmem:[#allocation21 + $0x6c] sm:$0xf]
    %v11978 = vld [vmem:[#allocation21 + $0x70] sm:$0xf]
    %v11979 = vld [vmem:[#allocation21 + $0x74] sm:$0xf]
    %v11980 = vld [vmem:[#allocation21 + $0x78] sm:$0xf]
    %v11981 = vld [vmem:[#allocation21 + $0x7c] sm:$0xf]
    %v11982 = vld [vmem:[#allocation21 + $0x80] sm:$0xf]
    %v11983 = vld [vmem:[#allocation21 + $0x84] sm:$0xf]
    %v11984 = vld [vmem:[#allocation21 + $0x88] sm:$0xf]
    %v11985 = vld [vmem:[#allocation21 + $0x8c] sm:$0xf]
    %v11986 = vld [vmem:[#allocation21 + $0x90] sm:$0xf]
    %v11987 = vld [vmem:[#allocation21 + $0x94] sm:$0xf]
    %v11988 = vld [vmem:[#allocation21 + $0x98] sm:$0xf]
    %v11989 = vld [vmem:[#allocation21 + $0x9c] sm:$0xf]
    %v11990 = vld [vmem:[#allocation21 + $0xa0] sm:$0xf]
    %v11991 = vld [vmem:[#allocation21 + $0xa4] sm:$0xf]
    %v11992 = vld [vmem:[#allocation21 + $0xa8] sm:$0xf]
    %v11993 = vld [vmem:[#allocation21 + $0xac] sm:$0xf]
    %v11994 = vld [vmem:[#allocation21 + $0xb0] sm:$0xf]
    %v11995 = vld [vmem:[#allocation21 + $0xb4] sm:$0xf]
    %v11996 = vld [vmem:[#allocation21 + $0xb8] sm:$0xf]
    %v11997 = vld [vmem:[#allocation21 + $0xbc] sm:$0xf]
    %v11998 = vld [vmem:[#allocation21 + $0xc0] sm:$0xf]
    %v11999 = vld [vmem:[#allocation21 + $0xc4] sm:$0xf]
    %v12000 = vld [vmem:[#allocation21 + $0xc8] sm:$0xf]
    %v12001 = vld [vmem:[#allocation21 + $0xcc] sm:$0xf]
    %v12002 = vld [vmem:[#allocation21 + $0xd0] sm:$0xf]
    %v12003 = vld [vmem:[#allocation21 + $0xd4] sm:$0xf]
    %v12004 = vld [vmem:[#allocation21 + $0xd8] sm:$0xf]
    %v12005 = vld [vmem:[#allocation21 + $0xdc] sm:$0xf]
    %v12006 = vld [vmem:[#allocation21 + $0xe0] sm:$0xf]
    %v12007 = vld [vmem:[#allocation21 + $0xe4] sm:$0xf]
    %v12008 = vld [vmem:[#allocation21 + $0xe8] sm:$0xf]
    %v12009 = vld [vmem:[#allocation21 + $0xec] sm:$0xf]
    %v12010 = vld [vmem:[#allocation21 + $0xf0] sm:$0xf]
    %v12011 = vld [vmem:[#allocation21 + $0xf4] sm:$0xf]
    %v12012 = vld [vmem:[#allocation21 + $0xf8] sm:$0xf]
    %v12013 = vld [vmem:[#allocation21 + $0xfc] sm:$0xf]
    %v12014 = vld [vmem:[#allocation24] sm:$0x1]
    %v12016 = vperm.slane %v12014, 0
    %v12020 = vunpack.c.l.b16 %v11946
    %v12021 = vunpack.c.h.b16 %v11946
    %v12022 = vunpack.c.l.b16 %v11947
    %v12023 = vunpack.c.h.b16 %v11947
    %v12024 = vpack.c.b16 %v12020, %v12020
    %v12025 = vpack.c.b16 %v12021, %v12021
    %v12026 = vpack.c.b16 %v12022, %v12022
    %v12027 = vpack.c.b16 %v12023, %v12023
    %v12096 = vunpack.c.l.b16 %v11950
    %v12097 = vunpack.c.l.b16 %v11951
    %v12098 = vunpack.c.l.b16 %v11952
    %v12099 = vunpack.c.l.b16 %v11953
    %v12100 = vunpack.c.l.b16 %v11954
    %v12101 = vunpack.c.l.b16 %v11955
    %v12102 = vunpack.c.l.b16 %v11956
    %v12103 = vunpack.c.l.b16 %v11957
    %v12104 = vunpack.c.l.b16 %v11958
    %v12105 = vunpack.c.l.b16 %v11959
    %v12106 = vunpack.c.l.b16 %v11960
    %v12107 = vunpack.c.l.b16 %v11961
    %v12108 = vunpack.c.l.b16 %v11962
    %v12109 = vunpack.c.l.b16 %v11963
    %v12110 = vunpack.c.l.b16 %v11964
    %v12111 = vunpack.c.l.b16 %v11965
    %v12112 = vunpack.c.l.b16 %v11966
    %v12113 = vunpack.c.l.b16 %v11967
    %v12114 = vunpack.c.l.b16 %v11968
    %v12115 = vunpack.c.l.b16 %v11969
    %v12116 = vunpack.c.l.b16 %v11970
    %v12117 = vunpack.c.l.b16 %v11971
    %v12118 = vunpack.c.l.b16 %v11972
    %v12119 = vunpack.c.l.b16 %v11973
    %v12120 = vunpack.c.l.b16 %v11974
    %v12121 = vunpack.c.l.b16 %v11975
    %v12122 = vunpack.c.l.b16 %v11976
    %v12123 = vunpack.c.l.b16 %v11977
    %v12124 = vunpack.c.l.b16 %v11978
    %v12125 = vunpack.c.l.b16 %v11979
    %v12126 = vunpack.c.l.b16 %v11980
    %v12127 = vunpack.c.l.b16 %v11981
    %v12128 = vunpack.c.l.b16 %v11982
    %v12129 = vunpack.c.l.b16 %v11983
    %v12130 = vunpack.c.l.b16 %v11984
    %v12131 = vunpack.c.l.b16 %v11985
    %v12132 = vunpack.c.l.b16 %v11986
    %v12133 = vunpack.c.l.b16 %v11987
    %v12134 = vunpack.c.l.b16 %v11988
    %v12135 = vunpack.c.l.b16 %v11989
    %v12136 = vunpack.c.l.b16 %v11990
    %v12137 = vunpack.c.l.b16 %v11991
    %v12138 = vunpack.c.l.b16 %v11992
    %v12139 = vunpack.c.l.b16 %v11993
    %v12140 = vunpack.c.l.b16 %v11994
    %v12141 = vunpack.c.l.b16 %v11995
    %v12142 = vunpack.c.l.b16 %v11996
    %v12143 = vunpack.c.l.b16 %v11997
    %v12144 = vunpack.c.l.b16 %v11998
    %v12145 = vunpack.c.l.b16 %v11999
    %v12146 = vunpack.c.l.b16 %v12000
    %v12147 = vunpack.c.l.b16 %v12001
    %v12148 = vunpack.c.l.b16 %v12002
    %v12149 = vunpack.c.l.b16 %v12003
    %v12150 = vunpack.c.l.b16 %v12004
    %v12151 = vunpack.c.l.b16 %v12005
    %v12152 = vunpack.c.l.b16 %v12006
    %v12153 = vunpack.c.l.b16 %v12007
    %v12154 = vunpack.c.l.b16 %v12008
    %v12155 = vunpack.c.l.b16 %v12009
    %v12156 = vunpack.c.l.b16 %v12010
    %v12157 = vunpack.c.l.b16 %v12011
    %v12158 = vunpack.c.l.b16 %v12012
    %v12159 = vunpack.c.l.b16 %v12013
    %v12160 = vpack.c.b16 %v12097, %v12096
    %v12161 = vpack.c.b16 %v12099, %v12098
    %v12162 = vpack.c.b16 %v12101, %v12100
    %v12163 = vpack.c.b16 %v12103, %v12102
    %v12164 = vpack.c.b16 %v12105, %v12104
    %v12165 = vpack.c.b16 %v12107, %v12106
    %v12166 = vpack.c.b16 %v12109, %v12108
    %v12167 = vpack.c.b16 %v12111, %v12110
    %v12168 = vpack.c.b16 %v12113, %v12112
    %v12169 = vpack.c.b16 %v12115, %v12114
    %v12170 = vpack.c.b16 %v12117, %v12116
    %v12171 = vpack.c.b16 %v12119, %v12118
    %v12172 = vpack.c.b16 %v12121, %v12120
    %v12173 = vpack.c.b16 %v12123, %v12122
    %v12174 = vpack.c.b16 %v12125, %v12124
    %v12175 = vpack.c.b16 %v12127, %v12126
    %v12176 = vpack.c.b16 %v12129, %v12128
    %v12177 = vpack.c.b16 %v12131, %v12130
    %v12178 = vpack.c.b16 %v12133, %v12132
    %v12179 = vpack.c.b16 %v12135, %v12134
    %v12180 = vpack.c.b16 %v12137, %v12136
    %v12181 = vpack.c.b16 %v12139, %v12138
    %v12182 = vpack.c.b16 %v12141, %v12140
    %v12183 = vpack.c.b16 %v12143, %v12142
    %v12184 = vpack.c.b16 %v12145, %v12144
    %v12185 = vpack.c.b16 %v12147, %v12146
    %v12186 = vpack.c.b16 %v12149, %v12148
    %v12187 = vpack.c.b16 %v12151, %v12150
    %v12188 = vpack.c.b16 %v12153, %v12152
    %v12189 = vpack.c.b16 %v12155, %v12154
    %v12190 = vpack.c.b16 %v12157, %v12156
    %v12191 = vpack.c.b16 %v12159, %v12158
    %12224 = vmatpush.bf16.msra.mxu0 %v12167
    %12225 = vmatpush.bf16.msra.mxu0 %v12166
    %12226 = vmatpush.bf16.msra.mxu0 %v12165
    %12227 = vmatpush.bf16.msra.mxu0 %v12164
    %12228 = vmatpush.bf16.msra.mxu0 %v12163
    %12229 = vmatpush.bf16.msra.mxu0 %v12162
    %12230 = vmatpush.bf16.msra.mxu0 %v12161
    %12231 = vmatpush.bf16.msra.mxu0 %v12160
    %12232 = vmatmul.bf16.gmra.mxu0 %v12024
    %v12233 = vpop.f32.mrf.mxu0
    %v12234 = vadd.f32 %v12016, %v12233
    %v12235 = vpop.f32.mrf.mxu0
    %12236 = vdwg.mxu0
    %12237 = vmatpush.bf16.msra.mxu0 %v12175
    %12238 = vmatpush.bf16.msra.mxu0 %v12174
    %12239 = vmatpush.bf16.msra.mxu0 %v12173
    %12240 = vmatpush.bf16.msra.mxu0 %v12172
    %12241 = vmatpush.bf16.msra.mxu0 %v12171
    %12242 = vmatpush.bf16.msra.mxu0 %v12170
    %12243 = vmatpush.bf16.msra.mxu0 %v12169
    %12244 = vmatpush.bf16.msra.mxu0 %v12168
    %12245 = vmatmul.bf16.gmra.mxu0 %v12025
    %v12246 = vpop.f32.mrf.mxu0
    %v12247 = vadd.f32 %v12234, %v12246
    %v12248 = vpop.f32.mrf.mxu0
    %12249 = vdwg.mxu0
    %12250 = vmatpush.bf16.msra.mxu0 %v12183
    %12251 = vmatpush.bf16.msra.mxu0 %v12182
    %12252 = vmatpush.bf16.msra.mxu0 %v12181
    %12253 = vmatpush.bf16.msra.mxu0 %v12180
    %12254 = vmatpush.bf16.msra.mxu0 %v12179
    %12255 = vmatpush.bf16.msra.mxu0 %v12178
    %12256 = vmatpush.bf16.msra.mxu0 %v12177
    %12257 = vmatpush.bf16.msra.mxu0 %v12176
    %12258 = vmatmul.bf16.gmra.mxu0 %v12026
    %v12259 = vpop.f32.mrf.mxu0
    %v12260 = vadd.f32 %v12247, %v12259
    %v12261 = vpop.f32.mrf.mxu0
    %12262 = vdwg.mxu0
    %12263 = vmatpush.bf16.msra.mxu0 %v12191
    %12264 = vmatpush.bf16.msra.mxu0 %v12190
    %12265 = vmatpush.bf16.msra.mxu0 %v12189
    %12266 = vmatpush.bf16.msra.mxu0 %v12188
    %12267 = vmatpush.bf16.msra.mxu0 %v12187
    %12268 = vmatpush.bf16.msra.mxu0 %v12186
    %12269 = vmatpush.bf16.msra.mxu0 %v12185
    %12270 = vmatpush.bf16.msra.mxu0 %v12184
    %12271 = vmatmul.bf16.gmra.mxu0 %v12027
    %v12272 = vpop.f32.mrf.mxu0
    %v12273 = vadd.f32 %v12260, %v12272
    %v12274 = vpop.f32.mrf.mxu0
    %12275 = vdwg.mxu0
    %v12276 = vld [vmem:[#allocation22] sm:$0xf]
    %v12277 = vld [vmem:[#allocation22 + $0x4] sm:$0xf]
    %v12278 = vld [vmem:[#allocation22 + $0x8] sm:$0xf]
    %v12279 = vld [vmem:[#allocation22 + $0xc] sm:$0xf]
    %v12280 = vld [vmem:[#allocation22 + $0x10] sm:$0xf]
    %v12281 = vld [vmem:[#allocation22 + $0x14] sm:$0xf]
    %v12282 = vld [vmem:[#allocation22 + $0x18] sm:$0xf]
    %v12283 = vld [vmem:[#allocation22 + $0x1c] sm:$0xf]
    %v12284 = vld [vmem:[#allocation22 + $0x20] sm:$0xf]
    %v12285 = vld [vmem:[#allocation22 + $0x24] sm:$0xf]
    %v12286 = vld [vmem:[#allocation22 + $0x28] sm:$0xf]
    %v12287 = vld [vmem:[#allocation22 + $0x2c] sm:$0xf]
    %v12288 = vld [vmem:[#allocation22 + $0x30] sm:$0xf]
    %v12289 = vld [vmem:[#allocation22 + $0x34] sm:$0xf]
    %v12290 = vld [vmem:[#allocation22 + $0x38] sm:$0xf]
    %v12291 = vld [vmem:[#allocation22 + $0x3c] sm:$0xf]
    %v12292 = vld [vmem:[#allocation22 + $0x40] sm:$0xf]
    %v12293 = vld [vmem:[#allocation22 + $0x44] sm:$0xf]
    %v12294 = vld [vmem:[#allocation22 + $0x48] sm:$0xf]
    %v12295 = vld [vmem:[#allocation22 + $0x4c] sm:$0xf]
    %v12296 = vld [vmem:[#allocation22 + $0x50] sm:$0xf]
    %v12297 = vld [vmem:[#allocation22 + $0x54] sm:$0xf]
    %v12298 = vld [vmem:[#allocation22 + $0x58] sm:$0xf]
    %v12299 = vld [vmem:[#allocation22 + $0x5c] sm:$0xf]
    %v12300 = vld [vmem:[#allocation22 + $0x60] sm:$0xf]
    %v12301 = vld [vmem:[#allocation22 + $0x64] sm:$0xf]
    %v12302 = vld [vmem:[#allocation22 + $0x68] sm:$0xf]
    %v12303 = vld [vmem:[#allocation22 + $0x6c] sm:$0xf]
    %v12304 = vld [vmem:[#allocation22 + $0x70] sm:$0xf]
    %v12305 = vld [vmem:[#allocation22 + $0x74] sm:$0xf]
    %v12306 = vld [vmem:[#allocation22 + $0x78] sm:$0xf]
    %v12307 = vld [vmem:[#allocation22 + $0x7c] sm:$0xf]
    %v12308 = vld [vmem:[#allocation22 + $0x80] sm:$0xf]
    %v12309 = vld [vmem:[#allocation22 + $0x84] sm:$0xf]
    %v12310 = vld [vmem:[#allocation22 + $0x88] sm:$0xf]
    %v12311 = vld [vmem:[#allocation22 + $0x8c] sm:$0xf]
    %v12312 = vld [vmem:[#allocation22 + $0x90] sm:$0xf]
    %v12313 = vld [vmem:[#allocation22 + $0x94] sm:$0xf]
    %v12314 = vld [vmem:[#allocation22 + $0x98] sm:$0xf]
    %v12315 = vld [vmem:[#allocation22 + $0x9c] sm:$0xf]
    %v12316 = vld [vmem:[#allocation22 + $0xa0] sm:$0xf]
    %v12317 = vld [vmem:[#allocation22 + $0xa4] sm:$0xf]
    %v12318 = vld [vmem:[#allocation22 + $0xa8] sm:$0xf]
    %v12319 = vld [vmem:[#allocation22 + $0xac] sm:$0xf]
    %v12320 = vld [vmem:[#allocation22 + $0xb0] sm:$0xf]
    %v12321 = vld [vmem:[#allocation22 + $0xb4] sm:$0xf]
    %v12322 = vld [vmem:[#allocation22 + $0xb8] sm:$0xf]
    %v12323 = vld [vmem:[#allocation22 + $0xbc] sm:$0xf]
    %v12324 = vld [vmem:[#allocation22 + $0xc0] sm:$0xf]
    %v12325 = vld [vmem:[#allocation22 + $0xc4] sm:$0xf]
    %v12326 = vld [vmem:[#allocation22 + $0xc8] sm:$0xf]
    %v12327 = vld [vmem:[#allocation22 + $0xcc] sm:$0xf]
    %v12328 = vld [vmem:[#allocation22 + $0xd0] sm:$0xf]
    %v12329 = vld [vmem:[#allocation22 + $0xd4] sm:$0xf]
    %v12330 = vld [vmem:[#allocation22 + $0xd8] sm:$0xf]
    %v12331 = vld [vmem:[#allocation22 + $0xdc] sm:$0xf]
    %v12332 = vld [vmem:[#allocation22 + $0xe0] sm:$0xf]
    %v12333 = vld [vmem:[#allocation22 + $0xe4] sm:$0xf]
    %v12334 = vld [vmem:[#allocation22 + $0xe8] sm:$0xf]
    %v12335 = vld [vmem:[#allocation22 + $0xec] sm:$0xf]
    %v12336 = vld [vmem:[#allocation22 + $0xf0] sm:$0xf]
    %v12337 = vld [vmem:[#allocation22 + $0xf4] sm:$0xf]
    %v12338 = vld [vmem:[#allocation22 + $0xf8] sm:$0xf]
    %v12339 = vld [vmem:[#allocation22 + $0xfc] sm:$0xf]
    %v12340 = vld [vmem:[#allocation25] sm:$0x1]
    %v12342 = vperm.slane %v12340, 0
    %v12346 = vunpack.c.l.b16 %v11948
    %v12347 = vunpack.c.h.b16 %v11948
    %v12348 = vunpack.c.l.b16 %v11949
    %v12349 = vunpack.c.h.b16 %v11949
    %v12350 = vpack.c.b16 %v12346, %v12346
    %v12351 = vpack.c.b16 %v12347, %v12347
    %v12352 = vpack.c.b16 %v12348, %v12348
    %v12353 = vpack.c.b16 %v12349, %v12349
    %v12422 = vunpack.c.l.b16 %v12276
    %v12423 = vunpack.c.l.b16 %v12277
    %v12424 = vunpack.c.l.b16 %v12278
    %v12425 = vunpack.c.l.b16 %v12279
    %v12426 = vunpack.c.l.b16 %v12280
    %v12427 = vunpack.c.l.b16 %v12281
    %v12428 = vunpack.c.l.b16 %v12282
    %v12429 = vunpack.c.l.b16 %v12283
    %v12430 = vunpack.c.l.b16 %v12284
    %v12431 = vunpack.c.l.b16 %v12285
    %v12432 = vunpack.c.l.b16 %v12286
    %v12433 = vunpack.c.l.b16 %v12287
    %v12434 = vunpack.c.l.b16 %v12288
    %v12435 = vunpack.c.l.b16 %v12289
    %v12436 = vunpack.c.l.b16 %v12290
    %v12437 = vunpack.c.l.b16 %v12291
    %v12438 = vunpack.c.l.b16 %v12292
    %v12439 = vunpack.c.l.b16 %v12293
    %v12440 = vunpack.c.l.b16 %v12294
    %v12441 = vunpack.c.l.b16 %v12295
    %v12442 = vunpack.c.l.b16 %v12296
    %v12443 = vunpack.c.l.b16 %v12297
    %v12444 = vunpack.c.l.b16 %v12298
    %v12445 = vunpack.c.l.b16 %v12299
    %v12446 = vunpack.c.l.b16 %v12300
    %v12447 = vunpack.c.l.b16 %v12301
    %v12448 = vunpack.c.l.b16 %v12302
    %v12449 = vunpack.c.l.b16 %v12303
    %v12450 = vunpack.c.l.b16 %v12304
    %v12451 = vunpack.c.l.b16 %v12305
    %v12452 = vunpack.c.l.b16 %v12306
    %v12453 = vunpack.c.l.b16 %v12307
    %v12454 = vunpack.c.l.b16 %v12308
    %v12455 = vunpack.c.l.b16 %v12309
    %v12456 = vunpack.c.l.b16 %v12310
    %v12457 = vunpack.c.l.b16 %v12311
    %v12458 = vunpack.c.l.b16 %v12312
    %v12459 = vunpack.c.l.b16 %v12313
    %v12460 = vunpack.c.l.b16 %v12314
    %v12461 = vunpack.c.l.b16 %v12315
    %v12462 = vunpack.c.l.b16 %v12316
    %v12463 = vunpack.c.l.b16 %v12317
    %v12464 = vunpack.c.l.b16 %v12318
    %v12465 = vunpack.c.l.b16 %v12319
    %v12466 = vunpack.c.l.b16 %v12320
    %v12467 = vunpack.c.l.b16 %v12321
    %v12468 = vunpack.c.l.b16 %v12322
    %v12469 = vunpack.c.l.b16 %v12323
    %v12470 = vunpack.c.l.b16 %v12324
    %v12471 = vunpack.c.l.b16 %v12325
    %v12472 = vunpack.c.l.b16 %v12326
    %v12473 = vunpack.c.l.b16 %v12327
    %v12474 = vunpack.c.l.b16 %v12328
    %v12475 = vunpack.c.l.b16 %v12329
    %v12476 = vunpack.c.l.b16 %v12330
    %v12477 = vunpack.c.l.b16 %v12331
    %v12478 = vunpack.c.l.b16 %v12332
    %v12479 = vunpack.c.l.b16 %v12333
    %v12480 = vunpack.c.l.b16 %v12334
    %v12481 = vunpack.c.l.b16 %v12335
    %v12482 = vunpack.c.l.b16 %v12336
    %v12483 = vunpack.c.l.b16 %v12337
    %v12484 = vunpack.c.l.b16 %v12338
    %v12485 = vunpack.c.l.b16 %v12339
    %v12486 = vpack.c.b16 %v12423, %v12422
    %v12487 = vpack.c.b16 %v12425, %v12424
    %v12488 = vpack.c.b16 %v12427, %v12426
    %v12489 = vpack.c.b16 %v12429, %v12428
    %v12490 = vpack.c.b16 %v12431, %v12430
    %v12491 = vpack.c.b16 %v12433, %v12432
    %v12492 = vpack.c.b16 %v12435, %v12434
    %v12493 = vpack.c.b16 %v12437, %v12436
    %v12494 = vpack.c.b16 %v12439, %v12438
    %v12495 = vpack.c.b16 %v12441, %v12440
    %v12496 = vpack.c.b16 %v12443, %v12442
    %v12497 = vpack.c.b16 %v12445, %v12444
    %v12498 = vpack.c.b16 %v12447, %v12446
    %v12499 = vpack.c.b16 %v12449, %v12448
    %v12500 = vpack.c.b16 %v12451, %v12450
    %v12501 = vpack.c.b16 %v12453, %v12452
    %v12502 = vpack.c.b16 %v12455, %v12454
    %v12503 = vpack.c.b16 %v12457, %v12456
    %v12504 = vpack.c.b16 %v12459, %v12458
    %v12505 = vpack.c.b16 %v12461, %v12460
    %v12506 = vpack.c.b16 %v12463, %v12462
    %v12507 = vpack.c.b16 %v12465, %v12464
    %v12508 = vpack.c.b16 %v12467, %v12466
    %v12509 = vpack.c.b16 %v12469, %v12468
    %v12510 = vpack.c.b16 %v12471, %v12470
    %v12511 = vpack.c.b16 %v12473, %v12472
    %v12512 = vpack.c.b16 %v12475, %v12474
    %v12513 = vpack.c.b16 %v12477, %v12476
    %v12514 = vpack.c.b16 %v12479, %v12478
    %v12515 = vpack.c.b16 %v12481, %v12480
    %v12516 = vpack.c.b16 %v12483, %v12482
    %v12517 = vpack.c.b16 %v12485, %v12484
    %12550 = vmatpush.bf16.msra.mxu0 %v12493
    %12551 = vmatpush.bf16.msra.mxu0 %v12492
    %12552 = vmatpush.bf16.msra.mxu0 %v12491
    %12553 = vmatpush.bf16.msra.mxu0 %v12490
    %12554 = vmatpush.bf16.msra.mxu0 %v12489
    %12555 = vmatpush.bf16.msra.mxu0 %v12488
    %12556 = vmatpush.bf16.msra.mxu0 %v12487
    %12557 = vmatpush.bf16.msra.mxu0 %v12486
    %12558 = vmatmul.bf16.gmra.mxu0 %v12350
    %v12559 = vpop.f32.mrf.mxu0
    %v12560 = vadd.f32 %v12342, %v12559
    %v12561 = vpop.f32.mrf.mxu0
    %12562 = vdwg.mxu0
    %12563 = vmatpush.bf16.msra.mxu0 %v12501
    %12564 = vmatpush.bf16.msra.mxu0 %v12500
    %12565 = vmatpush.bf16.msra.mxu0 %v12499
    %12566 = vmatpush.bf16.msra.mxu0 %v12498
    %12567 = vmatpush.bf16.msra.mxu0 %v12497
    %12568 = vmatpush.bf16.msra.mxu0 %v12496
    %12569 = vmatpush.bf16.msra.mxu0 %v12495
    %12570 = vmatpush.bf16.msra.mxu0 %v12494
    %12571 = vmatmul.bf16.gmra.mxu0 %v12351
    %v12572 = vpop.f32.mrf.mxu0
    %v12573 = vadd.f32 %v12560, %v12572
    %v12574 = vpop.f32.mrf.mxu0
    %12575 = vdwg.mxu0
    %12576 = vmatpush.bf16.msra.mxu0 %v12509
    %12577 = vmatpush.bf16.msra.mxu0 %v12508
    %12578 = vmatpush.bf16.msra.mxu0 %v12507
    %12579 = vmatpush.bf16.msra.mxu0 %v12506
    %12580 = vmatpush.bf16.msra.mxu0 %v12505
    %12581 = vmatpush.bf16.msra.mxu0 %v12504
    %12582 = vmatpush.bf16.msra.mxu0 %v12503
    %12583 = vmatpush.bf16.msra.mxu0 %v12502
    %12584 = vmatmul.bf16.gmra.mxu0 %v12352
    %v12585 = vpop.f32.mrf.mxu0
    %v12586 = vadd.f32 %v12573, %v12585
    %v12587 = vpop.f32.mrf.mxu0
    %12588 = vdwg.mxu0
    %12589 = vmatpush.bf16.msra.mxu0 %v12517
    %12590 = vmatpush.bf16.msra.mxu0 %v12516
    %12591 = vmatpush.bf16.msra.mxu0 %v12515
    %12592 = vmatpush.bf16.msra.mxu0 %v12514
    %12593 = vmatpush.bf16.msra.mxu0 %v12513
    %12594 = vmatpush.bf16.msra.mxu0 %v12512
    %12595 = vmatpush.bf16.msra.mxu0 %v12511
    %12596 = vmatpush.bf16.msra.mxu0 %v12510
    %12597 = vmatmul.bf16.gmra.mxu0 %v12353
    %v12598 = vpop.f32.mrf.mxu0
    %v12599 = vadd.f32 %v12586, %v12598
    %v12600 = vpop.f32.mrf.mxu0
    %12601 = vdwg.mxu0
    %v12602 = vmax.f32 %v12273, 0.0
    %v12603 = vmax.f32 %v12599, 0.0
    %v12604 = vpack.c.bf16 %v12602, %v12602
    %v12605 = vpack.c.bf16 %v12603, %v12603
    %v12606 = vld [vmem:[#allocation27] sm:$0xf]
    %v12607 = vld [vmem:[#allocation27 + $0x4] sm:$0xf]
    %v12608 = vld [vmem:[#allocation27 + $0x8] sm:$0xf]
    %v12609 = vld [vmem:[#allocation27 + $0xc] sm:$0xf]
    %v12610 = vld [vmem:[#allocation27 + $0x10] sm:$0xf]
    %v12611 = vld [vmem:[#allocation27 + $0x14] sm:$0xf]
    %v12612 = vld [vmem:[#allocation27 + $0x18] sm:$0xf]
    %v12613 = vld [vmem:[#allocation27 + $0x1c] sm:$0xf]
    %v12614 = vld [vmem:[#allocation27 + $0x20] sm:$0xf]
    %v12615 = vld [vmem:[#allocation27 + $0x24] sm:$0xf]
    %v12616 = vld [vmem:[#allocation27 + $0x28] sm:$0xf]
    %v12617 = vld [vmem:[#allocation27 + $0x2c] sm:$0xf]
    %v12618 = vld [vmem:[#allocation27 + $0x30] sm:$0xf]
    %v12619 = vld [vmem:[#allocation27 + $0x34] sm:$0xf]
    %v12620 = vld [vmem:[#allocation27 + $0x38] sm:$0xf]
    %v12621 = vld [vmem:[#allocation27 + $0x3c] sm:$0xf]
    %v12622 = vld [vmem:[#allocation27 + $0x40] sm:$0xf]
    %v12623 = vld [vmem:[#allocation27 + $0x44] sm:$0xf]
    %v12624 = vld [vmem:[#allocation27 + $0x48] sm:$0xf]
    %v12625 = vld [vmem:[#allocation27 + $0x4c] sm:$0xf]
    %v12626 = vld [vmem:[#allocation27 + $0x50] sm:$0xf]
    %v12627 = vld [vmem:[#allocation27 + $0x54] sm:$0xf]
    %v12628 = vld [vmem:[#allocation27 + $0x58] sm:$0xf]
    %v12629 = vld [vmem:[#allocation27 + $0x5c] sm:$0xf]
    %v12630 = vld [vmem:[#allocation27 + $0x60] sm:$0xf]
    %v12631 = vld [vmem:[#allocation27 + $0x64] sm:$0xf]
    %v12632 = vld [vmem:[#allocation27 + $0x68] sm:$0xf]
    %v12633 = vld [vmem:[#allocation27 + $0x6c] sm:$0xf]
    %v12634 = vld [vmem:[#allocation27 + $0x70] sm:$0xf]
    %v12635 = vld [vmem:[#allocation27 + $0x74] sm:$0xf]
    %v12636 = vld [vmem:[#allocation27 + $0x78] sm:$0xf]
    %v12637 = vld [vmem:[#allocation27 + $0x7c] sm:$0xf]
    %v12638 = vld [vmem:[#allocation28] sm:$0x1]
    %v12640 = vperm.slane %v12638, 0
    %v12674 = vunpack.c.l.b16 %v12606
    %v12675 = vunpack.c.l.b16 %v12607
    %v12676 = vunpack.c.l.b16 %v12608
    %v12677 = vunpack.c.l.b16 %v12609
    %v12678 = vunpack.c.l.b16 %v12610
    %v12679 = vunpack.c.l.b16 %v12611
    %v12680 = vunpack.c.l.b16 %v12612
    %v12681 = vunpack.c.l.b16 %v12613
    %v12682 = vunpack.c.l.b16 %v12614
    %v12683 = vunpack.c.l.b16 %v12615
    %v12684 = vunpack.c.l.b16 %v12616
    %v12685 = vunpack.c.l.b16 %v12617
    %v12686 = vunpack.c.l.b16 %v12618
    %v12687 = vunpack.c.l.b16 %v12619
    %v12688 = vunpack.c.l.b16 %v12620
    %v12689 = vunpack.c.l.b16 %v12621
    %v12690 = vunpack.c.l.b16 %v12622
    %v12691 = vunpack.c.l.b16 %v12623
    %v12692 = vunpack.c.l.b16 %v12624
    %v12693 = vunpack.c.l.b16 %v12625
    %v12694 = vunpack.c.l.b16 %v12626
    %v12695 = vunpack.c.l.b16 %v12627
    %v12696 = vunpack.c.l.b16 %v12628
    %v12697 = vunpack.c.l.b16 %v12629
    %v12698 = vunpack.c.l.b16 %v12630
    %v12699 = vunpack.c.l.b16 %v12631
    %v12700 = vunpack.c.l.b16 %v12632
    %v12701 = vunpack.c.l.b16 %v12633
    %v12702 = vunpack.c.l.b16 %v12634
    %v12703 = vunpack.c.l.b16 %v12635
    %v12704 = vunpack.c.l.b16 %v12636
    %v12705 = vunpack.c.l.b16 %v12637
    %v12706 = vpack.c.b16 %v12675, %v12674
    %v12707 = vpack.c.b16 %v12677, %v12676
    %v12708 = vpack.c.b16 %v12679, %v12678
    %v12709 = vpack.c.b16 %v12681, %v12680
    %v12710 = vpack.c.b16 %v12683, %v12682
    %v12711 = vpack.c.b16 %v12685, %v12684
    %v12712 = vpack.c.b16 %v12687, %v12686
    %v12713 = vpack.c.b16 %v12689, %v12688
    %v12714 = vpack.c.b16 %v12691, %v12690
    %v12715 = vpack.c.b16 %v12693, %v12692
    %v12716 = vpack.c.b16 %v12695, %v12694
    %v12717 = vpack.c.b16 %v12697, %v12696
    %v12718 = vpack.c.b16 %v12699, %v12698
    %v12719 = vpack.c.b16 %v12701, %v12700
    %v12720 = vpack.c.b16 %v12703, %v12702
    %v12721 = vpack.c.b16 %v12705, %v12704
    %12738 = vmatpush.bf16.msra.mxu0 %v12713
    %12739 = vmatpush.bf16.msra.mxu0 %v12712
    %12740 = vmatpush.bf16.msra.mxu0 %v12711
    %12741 = vmatpush.bf16.msra.mxu0 %v12710
    %12742 = vmatpush.bf16.msra.mxu0 %v12709
    %12743 = vmatpush.bf16.msra.mxu0 %v12708
    %12744 = vmatpush.bf16.msra.mxu0 %v12707
    %12745 = vmatpush.bf16.msra.mxu0 %v12706
    %12746 = vmatmul.bf16.gmra.mxu0 %v12604
    %v12747 = vpop.f32.mrf.mxu0
    %v12748 = vadd.f32 %v12640, %v12747
    %v12749 = vpop.f32.mrf.mxu0
    %12750 = vdwg.mxu0
    %12751 = vmatpush.bf16.msra.mxu0 %v12721
    %12752 = vmatpush.bf16.msra.mxu0 %v12720
    %12753 = vmatpush.bf16.msra.mxu0 %v12719
    %12754 = vmatpush.bf16.msra.mxu0 %v12718
    %12755 = vmatpush.bf16.msra.mxu0 %v12717
    %12756 = vmatpush.bf16.msra.mxu0 %v12716
    %12757 = vmatpush.bf16.msra.mxu0 %v12715
    %12758 = vmatpush.bf16.msra.mxu0 %v12714
    %12759 = vmatmul.bf16.gmra.mxu0 %v12605
    %v12760 = vpop.f32.mrf.mxu0
    %v12761 = vadd.f32 %v12748, %v12760
    %v12762 = vpop.f32.mrf.mxu0
    %12763 = vdwg.mxu0
    %12764 = vst [vmem:[%s19] sm:$0x3] %v12761
    // Predicated region
    $region150: #{pose_refine_forward.1} parent=1 // pred_check
      _
    $region151: #{pose_refine_forward.1} parent=1 // pred_check_branch
      %12766 = sbr.rel (0) target = $region153
    $region152: #{pose_refine_forward.1} parent=1 // pred_region
      _
    $region153: #{pose_refine_forward.1} parent=1 // pred_fallthru
      _
    // Predicated region
    $region154: #{pose_refine_forward.1} parent=1 // pred_check
      _
    $region155: #{pose_refine_forward.1} parent=1 // pred_check_branch
      %12768 = sbr.rel (0) target = $region157
    $region156: #{pose_refine_forward.1} parent=1 // pred_region
      _
    $region157: #{pose_refine_forward.1} parent=1 // pred_fallthru
      _
    %12769 = vsyncpa [#allocation3], 1
    %12770 = vsyncpa [#allocation5], 1
    %12771 = vsyncpa [#allocation8], 1
    %12772 = vsyncpa [#allocation11], 1
    %12773 = vsyncpa [#allocation14], 1
    %12774 = vsyncpa [#allocation17], 1
    %12775 = vsyncpa [#allocation20], 1
    %12776 = vsyncpa [#allocation23], 1
    %12777 = vsyncpa [#allocation26], 1
    %12778 = vsyncpa [#allocation29], 1

</llo_original>
